<compile_context>
chip_gen: v5e
topology: v5e:2x2
jax: 0.10.0
libtpu: 0.0.40
codegen_flags: <defaults>
</compile_context>

<pallas_src>
from functools import partial

import jax
import jax.numpy as jnp
from jax.experimental import pallas as pl
from jax.experimental.pallas import tpu as pltpu

C1 = 32      # conv1 output channels
C2 = 64      # conv2 output channels
HIDDEN = 512  # fc1 output features


# ----------------------------------------------------------------------------
# Fused kernel: conv1+relu+pool1 -> conv2+relu+pool2 -> flatten -> fc1+relu -> fc2
# ----------------------------------------------------------------------------
def _lenet5_fused_kernel(x_ref, w1_ref, b1_ref, w2_ref, b2_ref, fc1_ref, fc2_ref,
                         o_ref,
                         pad1_ref, col1_ref, pad2_ref, col2_ref, feat_ref,
                         *, BB, H, W, Cin):
    """One batch-block of the full LeNet_5 forward, entirely in VMEM.

    x_ref   : (BB, H, W, Cin)       NHWC input block
    w1_ref  : (25*Cin, 32)          conv1 im2col weights
    b1_ref  : (1, 32)
    w2_ref  : (25*32, 64)           conv2 im2col weights
    b2_ref  : (1, 64)
    fc1_ref : (fc_in, 512)          rows permuted to NHWC flatten order
    fc2_ref : (512, num_classes)
    o_ref   : (BB, 1, num_classes)
    scratch : pad1 (BB,H+4,W+4,Cin), col1 (BB*H*W, 25*Cin),
              pad2 (BB,H/2+4,W/2+4,32), col2 (BB*H*W/4, 25*32),
              feat (BB, fc_in)
    """
    H2, W2 = H // 2, W // 2
    H4, W4 = H // 4, W // 4

    # ---------------- conv1: pad in VMEM, im2col, single MXU matmul ----------
    pad1_ref[...] = jnp.zeros_like(pad1_ref)
    pad1_ref[:, 2:2 + H, 2:2 + W, :] = x_ref[...]
    for k in range(25):                              # gather shifted windows
        kh, kw = divmod(k, 5)
        col1_ref[:, k * Cin:(k + 1) * Cin] = (
            pad1_ref[:, kh:kh + H, kw:kw + W, :].reshape(BB * H * W, Cin))
    a1 = jnp.dot(col1_ref[...], w1_ref[...], preferred_element_type=jnp.float32)
    a1 = jnp.maximum(a1 + b1_ref[...], 0.0)          # bias + ReLU  (BB*H*W, 32)

    # ---------------- maxpool1: 2x2 stride 2 ---------------------------------
    y = a1.reshape(BB, H, W2, 2, C1)                 # lane dim (C1) unchanged
    y = jnp.max(y, axis=3)                           # pool along W
    y = y.reshape(BB, H2, 2, W2, C1)                 # leading-dim regroup only
    y = jnp.maximum(y[:, :, 0], y[:, :, 1])          # pool along H -> (BB,H2,W2,32)

    # ---------------- conv2: same im2col scheme ------------------------------
    pad2_ref[...] = jnp.zeros_like(pad2_ref)
    pad2_ref[:, 2:2 + H2, 2:2 + W2, :] = y
    for k in range(25):
        kh, kw = divmod(k, 5)
        col2_ref[:, k * C1:(k + 1) * C1] = (
            pad2_ref[:, kh:kh + H2, kw:kw + W2, :].reshape(BB * H2 * W2, C1))
    a2 = jnp.dot(col2_ref[...], w2_ref[...], preferred_element_type=jnp.float32)
    a2 = jnp.maximum(a2 + b2_ref[...], 0.0)          # (BB*H2*W2, 64)

    # ---------------- maxpool2 -----------------------------------------------
    z = a2.reshape(BB, H2, W4, 2, C2)
    z = jnp.max(z, axis=3)
    z = z.reshape(BB, H4, 2, W4, C2)
    z = jnp.maximum(z[:, :, 0], z[:, :, 1])          # (BB, H4, W4, 64)

    # ---------------- flatten (NHWC order; fc1 rows pre-permuted at init) ----
    for r in range(H4 * W4):
        h, w = divmod(r, W4)
        feat_ref[:, r * C2:(r + 1) * C2] = z[:, h, w, :]

    # ---------------- fc1 + ReLU + fc2 ----------------------------------------
    h1 = jnp.maximum(
        jnp.dot(feat_ref[...], fc1_ref[...], preferred_element_type=jnp.float32), 0.0)
    out = jnp.dot(h1, fc2_ref[...], preferred_element_type=jnp.float32)
    o_ref[...] = out[:, None, :].astype(o_ref.dtype)


# ----------------------------------------------------------------------------
# Wrapper
# ----------------------------------------------------------------------------
def _replicated_spec(arr):
    zeros = (0,) * arr.ndim
    return pl.BlockSpec(arr.shape, lambda b: zeros)   # same (full) block every step


def lenet5_pallas(x_nhwc, p, num_classes, *, block_batch=1):
    B, H, W, Cin = x_nhwc.shape
    BB = block_batch
    assert B % BB == 0
    H2, W2 = H // 2, W // 2
    H4, W4 = H // 4, W // 4

    kernel = partial(_lenet5_fused_kernel, BB=BB, H=H, W=W, Cin=Cin)
    out = pl.pallas_call(
        kernel,
        out_shape=jax.ShapeDtypeStruct((B, 1, num_classes), jnp.float32),
        grid=(B // BB,),
        in_specs=[
            pl.BlockSpec((BB, H, W, Cin), lambda b: (b, 0, 0, 0)),
            _replicated_spec(p["w1"]), _replicated_spec(p["b1"]),
            _replicated_spec(p["w2"]), _replicated_spec(p["b2"]),
            _replicated_spec(p["fc1"]), _replicated_spec(p["fc2"]),
        ],
        out_specs=pl.BlockSpec((BB, 1, num_classes), lambda b: (b, 0, 0)),
        scratch_shapes=[
            pltpu.VMEM((BB, H + 4, W + 4, Cin), jnp.float32),     # padded conv1 input
            pltpu.VMEM((BB * H * W, 25 * Cin), jnp.float32),      # conv1 im2col
            pltpu.VMEM((BB, H2 + 4, W2 + 4, C1), jnp.float32),    # padded conv2 input
            pltpu.VMEM((BB * H2 * W2, 25 * C1), jnp.float32),     # conv2 im2col
            pltpu.VMEM((BB, H4 * W4 * C2), jnp.float32),          # flattened features
        ],
        compiler_params=pltpu.CompilerParams(
            dimension_semantics=("parallel",)),                   # megacore over batch
    )(x_nhwc, p["w1"], p["b1"], p["w2"], p["b2"], p["fc1"], p["fc2"])
    return out[:, 0, :]


# ----------------------------------------------------------------------------
# Parameters (PyTorch layouts) + one-time relayout + forward
# ----------------------------------------------------------------------------
def init_lenet5_params(key, in_dims, in_channels, num_classes=10):
    input_size = int(round((in_dims / in_channels) ** 0.5))
    fc_input_size = (input_size // 4) ** 2 * C2
    ks = jax.random.split(key, 6)
    return {
        "conv1_w": 0.05 * jax.random.normal(ks[0], (C1, in_channels, 5, 5), jnp.float32),
        "conv1_b": 0.05 * jax.random.normal(ks[1], (C1,), jnp.float32),
        "conv2_w": 0.05 * jax.random.normal(ks[2], (C2, C1, 5, 5), jnp.float32),
        "conv2_b": 0.05 * jax.random.normal(ks[3], (C2,), jnp.float32),
        "fc1_w": 0.02 * jax.random.normal(ks[4], (HIDDEN, fc_input_size), jnp.float32),
        "fc2_w": 0.02 * jax.random.normal(ks[5], (num_classes, HIDDEN), jnp.float32),
    }


def prepare_params(params, in_channels, input_size):
    """One-time relayout of PyTorch-style weights into kernel-friendly layouts."""
    H4 = input_size // 4
    # conv taps: (Cout, Cin, kh, kw) -> (kh, kw, Cin, Cout) -> (25*Cin, Cout)
    w1 = jnp.transpose(params["conv1_w"], (2, 3, 1, 0)).reshape(25 * in_channels, C1)
    w2 = jnp.transpose(params["conv2_w"], (2, 3, 1, 0)).reshape(25 * C1, C2)
    b1 = params["conv1_b"].reshape(1, C1)
    b2 = params["conv2_b"].reshape(1, C2)
    # fc1: torch flattens NCHW (c,h,w); permute columns to NHWC (h,w,c) order and
    # transpose so the kernel consumes the NHWC-flattened feature directly.
    fc1 = params["fc1_w"].reshape(HIDDEN, C2, H4, H4)
    fc1 = jnp.transpose(fc1, (0, 2, 3, 1)).reshape(HIDDEN, -1).T   # (fc_in, 512)
    fc2 = params["fc2_w"].T                                        # (512, num_classes)
    return {"w1": w1, "b1": b1, "w2": w2, "b2": b2, "fc1": fc1, "fc2": fc2}


@jax.jit
def lenet5_forward(prepared, x_nchw):
    num_classes = prepared["fc2"].shape[1]
    x = jnp.transpose(x_nchw, (0, 2, 3, 1)).astype(jnp.float32)    # NCHW -> NHWC
    return lenet5_pallas(x, prepared, num_classes)


if __name__ == "__main__":
    key = jax.random.PRNGKey(0)
    k_param, k_x = jax.random.split(key)

    batch, in_channels, spatial = 2, 4, 16
    in_dims = in_channels * spatial * spatial   # 1024
    num_classes = 10

    params = init_lenet5_params(k_param, in_dims, in_channels, num_classes)
    prepared = prepare_params(params, in_channels, spatial)        # one-time relayout
    x = jax.random.normal(k_x, (batch, in_channels, spatial, spatial), jnp.float32)

    logits = lenet5_forward(prepared, x)
    jax.block_until_ready(logits)
    assert logits.shape == (batch, num_classes)
    print("KERNEL_OK")
</pallas_src>

<mosaic_0001>
module attributes {stable_mosaic.version = 11 : i64} {
  func.func @_lenet5_fused_kernel(%arg0: i32, %arg1: memref<1x16x16x4xf32, #tpu.memory_space<vmem>>, %arg2: memref<100x32xf32, #tpu.memory_space<vmem>>, %arg3: memref<1x32xf32, #tpu.memory_space<vmem>>, %arg4: memref<800x64xf32, #tpu.memory_space<vmem>>, %arg5: memref<1x64xf32, #tpu.memory_space<vmem>>, %arg6: memref<1024x512xf32, #tpu.memory_space<vmem>>, %arg7: memref<512x10xf32, #tpu.memory_space<vmem>>, %arg8: memref<1x1x10xf32, #tpu.memory_space<vmem>>, %arg9: memref<1x20x20x4xf32, #tpu.memory_space<vmem>>, %arg10: memref<256x100xf32, #tpu.memory_space<vmem>>, %arg11: memref<1x12x12x32xf32, #tpu.memory_space<vmem>>, %arg12: memref<64x800xf32, #tpu.memory_space<vmem>>, %arg13: memref<1x1024xf32, #tpu.memory_space<vmem>>) attributes {dimension_semantics = [#tpu.dimension_semantics<parallel>], iteration_bounds = array<i64: 2>, scalar_prefetch = 0 : i64, scratch_operands = 5 : i64, tpu.core_type = #tpu.core_type<tc>, window_params = [{transform_indices = @transform_0, window_bounds = array<i64: 1, 16, 16, 4>}, {pipeline_mode = #tpu.pipeline_mode<synchronous>, transform_indices = @transform_1, window_bounds = array<i64: 100, 32>}, {pipeline_mode = #tpu.pipeline_mode<synchronous>, transform_indices = @transform_2, window_bounds = array<i64: 1, 32>}, {pipeline_mode = #tpu.pipeline_mode<synchronous>, transform_indices = @transform_3, window_bounds = array<i64: 800, 64>}, {pipeline_mode = #tpu.pipeline_mode<synchronous>, transform_indices = @transform_4, window_bounds = array<i64: 1, 64>}, {pipeline_mode = #tpu.pipeline_mode<synchronous>, transform_indices = @transform_5, window_bounds = array<i64: 1024, 512>}, {pipeline_mode = #tpu.pipeline_mode<synchronous>, transform_indices = @transform_6, window_bounds = array<i64: 512, 10>}, {transform_indices = @transform_7, window_bounds = array<i64: 1, 1, 10>}]} {
    %cst = arith.constant 0.000000e+00 : f32
    %0 = vector.broadcast %cst : f32 to vector<1x20x20x4xf32>
    %c0 = arith.constant 0 : index
    %c0_0 = arith.constant 0 : index
    %c0_1 = arith.constant 0 : index
    %c0_2 = arith.constant 0 : index
    %1 = vector.load %arg9[%c0, %c0_0, %c0_1, %c0_2] : memref<1x20x20x4xf32, #tpu.memory_space<vmem>>, vector<1x20x20x4xf32>
    tpu.vector_store %arg9[%c0, %c0_0, %c0_1, %c0_2], %0 {strides = array<i32>} : memref<1x20x20x4xf32, #tpu.memory_space<vmem>>, vector<1x20x20x4xf32>,
    %c0_3 = arith.constant 0 : index
    %c0_4 = arith.constant 0 : index
    %c0_5 = arith.constant 0 : index
    %c0_6 = arith.constant 0 : index
    %2 = vector.load %arg1[%c0_3, %c0_4, %c0_5, %c0_6] : memref<1x16x16x4xf32, #tpu.memory_space<vmem>>, vector<1x16x16x4xf32>
    %c0_7 = arith.constant 0 : index
    %c2 = arith.constant 2 : index
    %c2_8 = arith.constant 2 : index
    %c0_9 = arith.constant 0 : index
    %3 = vector.load %arg9[%c0_7, %c2, %c2_8, %c0_9] : memref<1x20x20x4xf32, #tpu.memory_space<vmem>>, vector<1x16x16x4xf32>
    tpu.vector_store %arg9[%c0_7, %c2, %c2_8, %c0_9], %2 {strides = array<i32>} : memref<1x20x20x4xf32, #tpu.memory_space<vmem>>, vector<1x16x16x4xf32>,
    %c0_10 = arith.constant 0 : index
    %c0_11 = arith.constant 0 : index
    %c0_12 = arith.constant 0 : index
    %c0_13 = arith.constant 0 : index
    %4 = vector.load %arg9[%c0_10, %c0_11, %c0_12, %c0_13] : memref<1x20x20x4xf32, #tpu.memory_space<vmem>>, vector<1x16x16x4xf32>
    %5 = vector.shape_cast %4 : vector<1x16x16x4xf32> to vector<256x4xf32>
    %c0_14 = arith.constant 0 : index
    %c0_15 = arith.constant 0 : index
    %6 = vector.load %arg10[%c0_14, %c0_15] : memref<256x100xf32, #tpu.memory_space<vmem>>, vector<256x4xf32>
    tpu.vector_store %arg10[%c0_14, %c0_15], %5 {strides = array<i32>} : memref<256x100xf32, #tpu.memory_space<vmem>>, vector<256x4xf32>,
    %c0_16 = arith.constant 0 : index
    %c0_17 = arith.constant 0 : index
    %c1 = arith.constant 1 : index
    %c0_18 = arith.constant 0 : index
    %7 = vector.load %arg9[%c0_16, %c0_17, %c1, %c0_18] : memref<1x20x20x4xf32, #tpu.memory_space<vmem>>, vector<1x16x16x4xf32>
    %8 = vector.shape_cast %7 : vector<1x16x16x4xf32> to vector<256x4xf32>
    %c0_19 = arith.constant 0 : index
    %c4 = arith.constant 4 : index
    %9 = vector.load %arg10[%c0_19, %c4] : memref<256x100xf32, #tpu.memory_space<vmem>>, vector<256x4xf32>
    tpu.vector_store %arg10[%c0_19, %c4], %8 {strides = array<i32>} : memref<256x100xf32, #tpu.memory_space<vmem>>, vector<256x4xf32>,
    %c0_20 = arith.constant 0 : index
    %c0_21 = arith.constant 0 : index
    %c2_22 = arith.constant 2 : index
    %c0_23 = arith.constant 0 : index
    %10 = vector.load %arg9[%c0_20, %c0_21, %c2_22, %c0_23] : memref<1x20x20x4xf32, #tpu.memory_space<vmem>>, vector<1x16x16x4xf32>
    %11 = vector.shape_cast %10 : vector<1x16x16x4xf32> to vector<256x4xf32>
    %c0_24 = arith.constant 0 : index
    %c8 = arith.constant 8 : index
    %12 = vector.load %arg10[%c0_24, %c8] : memref<256x100xf32, #tpu.memory_space<vmem>>, vector<256x4xf32>
    tpu.vector_store %arg10[%c0_24, %c8], %11 {strides = array<i32>} : memref<256x100xf32, #tpu.memory_space<vmem>>, vector<256x4xf32>,
    %c0_25 = arith.constant 0 : index
    %c0_26 = arith.constant 0 : index
    %c3 = arith.constant 3 : index
    %c0_27 = arith.constant 0 : index
    %13 = vector.load %arg9[%c0_25, %c0_26, %c3, %c0_27] : memref<1x20x20x4xf32, #tpu.memory_space<vmem>>, vector<1x16x16x4xf32>
    %14 = vector.shape_cast %13 : vector<1x16x16x4xf32> to vector<256x4xf32>
    %c0_28 = arith.constant 0 : index
    %c12 = arith.constant 12 : index
    %15 = vector.load %arg10[%c0_28, %c12] : memref<256x100xf32, #tpu.memory_space<vmem>>, vector<256x4xf32>
    tpu.vector_store %arg10[%c0_28, %c12], %14 {strides = array<i32>} : memref<256x100xf32, #tpu.memory_space<vmem>>, vector<256x4xf32>,
    %c0_29 = arith.constant 0 : index
    %c0_30 = arith.constant 0 : index
    %c4_31 = arith.constant 4 : index
    %c0_32 = arith.constant 0 : index
    %16 = vector.load %arg9[%c0_29, %c0_30, %c4_31, %c0_32] : memref<1x20x20x4xf32, #tpu.memory_space<vmem>>, vector<1x16x16x4xf32>
    %17 = vector.shape_cast %16 : vector<1x16x16x4xf32> to vector<256x4xf32>
    %c0_33 = arith.constant 0 : index
    %c16 = arith.constant 16 : index
    %18 = vector.load %arg10[%c0_33, %c16] : memref<256x100xf32, #tpu.memory_space<vmem>>, vector<256x4xf32>
    tpu.vector_store %arg10[%c0_33, %c16], %17 {strides = array<i32>} : memref<256x100xf32, #tpu.memory_space<vmem>>, vector<256x4xf32>,
    %c0_34 = arith.constant 0 : index
    %c1_35 = arith.constant 1 : index
    %c0_36 = arith.constant 0 : index
    %c0_37 = arith.constant 0 : index
    %19 = vector.load %arg9[%c0_34, %c1_35, %c0_36, %c0_37] : memref<1x20x20x4xf32, #tpu.memory_space<vmem>>, vector<1x16x16x4xf32>
    %20 = vector.shape_cast %19 : vector<1x16x16x4xf32> to vector<256x4xf32>
    %c0_38 = arith.constant 0 : index
    %c20 = arith.constant 20 : index
    %21 = vector.load %arg10[%c0_38, %c20] : memref<256x100xf32, #tpu.memory_space<vmem>>, vector<256x4xf32>
    tpu.vector_store %arg10[%c0_38, %c20], %20 {strides = array<i32>} : memref<256x100xf32, #tpu.memory_space<vmem>>, vector<256x4xf32>,
    %c0_39 = arith.constant 0 : index
    %c1_40 = arith.constant 1 : index
    %c1_41 = arith.constant 1 : index
    %c0_42 = arith.constant 0 : index
    %22 = vector.load %arg9[%c0_39, %c1_40, %c1_41, %c0_42] : memref<1x20x20x4xf32, #tpu.memory_space<vmem>>, vector<1x16x16x4xf32>
    %23 = vector.shape_cast %22 : vector<1x16x16x4xf32> to vector<256x4xf32>
    %c0_43 = arith.constant 0 : index
    %c24 = arith.constant 24 : index
    %24 = vector.load %arg10[%c0_43, %c24] : memref<256x100xf32, #tpu.memory_space<vmem>>, vector<256x4xf32>
    tpu.vector_store %arg10[%c0_43, %c24], %23 {strides = array<i32>} : memref<256x100xf32, #tpu.memory_space<vmem>>, vector<256x4xf32>,
    %c0_44 = arith.constant 0 : index
    %c1_45 = arith.constant 1 : index
    %c2_46 = arith.constant 2 : index
    %c0_47 = arith.constant 0 : index
    %25 = vector.load %arg9[%c0_44, %c1_45, %c2_46, %c0_47] : memref<1x20x20x4xf32, #tpu.memory_space<vmem>>, vector<1x16x16x4xf32>
    %26 = vector.shape_cast %25 : vector<1x16x16x4xf32> to vector<256x4xf32>
    %c0_48 = arith.constant 0 : index
    %c28 = arith.constant 28 : index
    %27 = vector.load %arg10[%c0_48, %c28] : memref<256x100xf32, #tpu.memory_space<vmem>>, vector<256x4xf32>
    tpu.vector_store %arg10[%c0_48, %c28], %26 {strides = array<i32>} : memref<256x100xf32, #tpu.memory_space<vmem>>, vector<256x4xf32>,
    %c0_49 = arith.constant 0 : index
    %c1_50 = arith.constant 1 : index
    %c3_51 = arith.constant 3 : index
    %c0_52 = arith.constant 0 : index
    %28 = vector.load %arg9[%c0_49, %c1_50, %c3_51, %c0_52] : memref<1x20x20x4xf32, #tpu.memory_space<vmem>>, vector<1x16x16x4xf32>
    %29 = vector.shape_cast %28 : vector<1x16x16x4xf32> to vector<256x4xf32>
    %c0_53 = arith.constant 0 : index
    %c32 = arith.constant 32 : index
    %30 = vector.load %arg10[%c0_53, %c32] : memref<256x100xf32, #tpu.memory_space<vmem>>, vector<256x4xf32>
    tpu.vector_store %arg10[%c0_53, %c32], %29 {strides = array<i32>} : memref<256x100xf32, #tpu.memory_space<vmem>>, vector<256x4xf32>,
    %c0_54 = arith.constant 0 : index
    %c1_55 = arith.constant 1 : index
    %c4_56 = arith.constant 4 : index
    %c0_57 = arith.constant 0 : index
    %31 = vector.load %arg9[%c0_54, %c1_55, %c4_56, %c0_57] : memref<1x20x20x4xf32, #tpu.memory_space<vmem>>, vector<1x16x16x4xf32>
    %32 = vector.shape_cast %31 : vector<1x16x16x4xf32> to vector<256x4xf32>
    %c0_58 = arith.constant 0 : index
    %c36 = arith.constant 36 : index
    %33 = vector.load %arg10[%c0_58, %c36] : memref<256x100xf32, #tpu.memory_space<vmem>>, vector<256x4xf32>
    tpu.vector_store %arg10[%c0_58, %c36], %32 {strides = array<i32>} : memref<256x100xf32, #tpu.memory_space<vmem>>, vector<256x4xf32>,
    %c0_59 = arith.constant 0 : index
    %c2_60 = arith.constant 2 : index
    %c0_61 = arith.constant 0 : index
    %c0_62 = arith.constant 0 : index
    %34 = vector.load %arg9[%c0_59, %c2_60, %c0_61, %c0_62] : memref<1x20x20x4xf32, #tpu.memory_space<vmem>>, vector<1x16x16x4xf32>
    %35 = vector.shape_cast %34 : vector<1x16x16x4xf32> to vector<256x4xf32>
    %c0_63 = arith.constant 0 : index
    %c40 = arith.constant 40 : index
    %36 = vector.load %arg10[%c0_63, %c40] : memref<256x100xf32, #tpu.memory_space<vmem>>, vector<256x4xf32>
    tpu.vector_store %arg10[%c0_63, %c40], %35 {strides = array<i32>} : memref<256x100xf32, #tpu.memory_space<vmem>>, vector<256x4xf32>,
    %c0_64 = arith.constant 0 : index
    %c2_65 = arith.constant 2 : index
    %c1_66 = arith.constant 1 : index
    %c0_67 = arith.constant 0 : index
    %37 = vector.load %arg9[%c0_64, %c2_65, %c1_66, %c0_67] : memref<1x20x20x4xf32, #tpu.memory_space<vmem>>, vector<1x16x16x4xf32>
    %38 = vector.shape_cast %37 : vector<1x16x16x4xf32> to vector<256x4xf32>
    %c0_68 = arith.constant 0 : index
    %c44 = arith.constant 44 : index
    %39 = vector.load %arg10[%c0_68, %c44] : memref<256x100xf32, #tpu.memory_space<vmem>>, vector<256x4xf32>
    tpu.vector_store %arg10[%c0_68, %c44], %38 {strides = array<i32>} : memref<256x100xf32, #tpu.memory_space<vmem>>, vector<256x4xf32>,
    %c0_69 = arith.constant 0 : index
    %c2_70 = arith.constant 2 : index
    %c2_71 = arith.constant 2 : index
    %c0_72 = arith.constant 0 : index
    %40 = vector.load %arg9[%c0_69, %c2_70, %c2_71, %c0_72] : memref<1x20x20x4xf32, #tpu.memory_space<vmem>>, vector<1x16x16x4xf32>
    %41 = vector.shape_cast %40 : vector<1x16x16x4xf32> to vector<256x4xf32>
    %c0_73 = arith.constant 0 : index
    %c48 = arith.constant 48 : index
    %42 = vector.load %arg10[%c0_73, %c48] : memref<256x100xf32, #tpu.memory_space<vmem>>, vector<256x4xf32>
    tpu.vector_store %arg10[%c0_73, %c48], %41 {strides = array<i32>} : memref<256x100xf32, #tpu.memory_space<vmem>>, vector<256x4xf32>,
    %c0_74 = arith.constant 0 : index
    %c2_75 = arith.constant 2 : index
    %c3_76 = arith.constant 3 : index
    %c0_77 = arith.constant 0 : index
    %43 = vector.load %arg9[%c0_74, %c2_75, %c3_76, %c0_77] : memref<1x20x20x4xf32, #tpu.memory_space<vmem>>, vector<1x16x16x4xf32>
    %44 = vector.shape_cast %43 : vector<1x16x16x4xf32> to vector<256x4xf32>
    %c0_78 = arith.constant 0 : index
    %c52 = arith.constant 52 : index
    %45 = vector.load %arg10[%c0_78, %c52] : memref<256x100xf32, #tpu.memory_space<vmem>>, vector<256x4xf32>
    tpu.vector_store %arg10[%c0_78, %c52], %44 {strides = array<i32>} : memref<256x100xf32, #tpu.memory_space<vmem>>, vector<256x4xf32>,
    %c0_79 = arith.constant 0 : index
    %c2_80 = arith.constant 2 : index
    %c4_81 = arith.constant 4 : index
    %c0_82 = arith.constant 0 : index
    %46 = vector.load %arg9[%c0_79, %c2_80, %c4_81, %c0_82] : memref<1x20x20x4xf32, #tpu.memory_space<vmem>>, vector<1x16x16x4xf32>
    %47 = vector.shape_cast %46 : vector<1x16x16x4xf32> to vector<256x4xf32>
    %c0_83 = arith.constant 0 : index
    %c56 = arith.constant 56 : index
    %48 = vector.load %arg10[%c0_83, %c56] : memref<256x100xf32, #tpu.memory_space<vmem>>, vector<256x4xf32>
    tpu.vector_store %arg10[%c0_83, %c56], %47 {strides = array<i32>} : memref<256x100xf32, #tpu.memory_space<vmem>>, vector<256x4xf32>,
    %c0_84 = arith.constant 0 : index
    %c3_85 = arith.constant 3 : index
    %c0_86 = arith.constant 0 : index
    %c0_87 = arith.constant 0 : index
    %49 = vector.load %arg9[%c0_84, %c3_85, %c0_86, %c0_87] : memref<1x20x20x4xf32, #tpu.memory_space<vmem>>, vector<1x16x16x4xf32>
    %50 = vector.shape_cast %49 : vector<1x16x16x4xf32> to vector<256x4xf32>
    %c0_88 = arith.constant 0 : index
    %c60 = arith.constant 60 : index
    %51 = vector.load %arg10[%c0_88, %c60] : memref<256x100xf32, #tpu.memory_space<vmem>>, vector<256x4xf32>
    tpu.vector_store %arg10[%c0_88, %c60], %50 {strides = array<i32>} : memref<256x100xf32, #tpu.memory_space<vmem>>, vector<256x4xf32>,
    %c0_89 = arith.constant 0 : index
    %c3_90 = arith.constant 3 : index
    %c1_91 = arith.constant 1 : index
    %c0_92 = arith.constant 0 : index
    %52 = vector.load %arg9[%c0_89, %c3_90, %c1_91, %c0_92] : memref<1x20x20x4xf32, #tpu.memory_space<vmem>>, vector<1x16x16x4xf32>
    %53 = vector.shape_cast %52 : vector<1x16x16x4xf32> to vector<256x4xf32>
    %c0_93 = arith.constant 0 : index
    %c64 = arith.constant 64 : index
    %54 = vector.load %arg10[%c0_93, %c64] : memref<256x100xf32, #tpu.memory_space<vmem>>, vector<256x4xf32>
    tpu.vector_store %arg10[%c0_93, %c64], %53 {strides = array<i32>} : memref<256x100xf32, #tpu.memory_space<vmem>>, vector<256x4xf32>,
    %c0_94 = arith.constant 0 : index
    %c3_95 = arith.constant 3 : index
    %c2_96 = arith.constant 2 : index
    %c0_97 = arith.constant 0 : index
    %55 = vector.load %arg9[%c0_94, %c3_95, %c2_96, %c0_97] : memref<1x20x20x4xf32, #tpu.memory_space<vmem>>, vector<1x16x16x4xf32>
    %56 = vector.shape_cast %55 : vector<1x16x16x4xf32> to vector<256x4xf32>
    %c0_98 = arith.constant 0 : index
    %c68 = arith.constant 68 : index
    %57 = vector.load %arg10[%c0_98, %c68] : memref<256x100xf32, #tpu.memory_space<vmem>>, vector<256x4xf32>
    tpu.vector_store %arg10[%c0_98, %c68], %56 {strides = array<i32>} : memref<256x100xf32, #tpu.memory_space<vmem>>, vector<256x4xf32>,
    %c0_99 = arith.constant 0 : index
    %c3_100 = arith.constant 3 : index
    %c3_101 = arith.constant 3 : index
    %c0_102 = arith.constant 0 : index
    %58 = vector.load %arg9[%c0_99, %c3_100, %c3_101, %c0_102] : memref<1x20x20x4xf32, #tpu.memory_space<vmem>>, vector<1x16x16x4xf32>
    %59 = vector.shape_cast %58 : vector<1x16x16x4xf32> to vector<256x4xf32>
    %c0_103 = arith.constant 0 : index
    %c72 = arith.constant 72 : index
    %60 = vector.load %arg10[%c0_103, %c72] : memref<256x100xf32, #tpu.memory_space<vmem>>, vector<256x4xf32>
    tpu.vector_store %arg10[%c0_103, %c72], %59 {strides = array<i32>} : memref<256x100xf32, #tpu.memory_space<vmem>>, vector<256x4xf32>,
    %c0_104 = arith.constant 0 : index
    %c3_105 = arith.constant 3 : index
    %c4_106 = arith.constant 4 : index
    %c0_107 = arith.constant 0 : index
    %61 = vector.load %arg9[%c0_104, %c3_105, %c4_106, %c0_107] : memref<1x20x20x4xf32, #tpu.memory_space<vmem>>, vector<1x16x16x4xf32>
    %62 = vector.shape_cast %61 : vector<1x16x16x4xf32> to vector<256x4xf32>
    %c0_108 = arith.constant 0 : index
    %c76 = arith.constant 76 : index
    %63 = vector.load %arg10[%c0_108, %c76] : memref<256x100xf32, #tpu.memory_space<vmem>>, vector<256x4xf32>
    tpu.vector_store %arg10[%c0_108, %c76], %62 {strides = array<i32>} : memref<256x100xf32, #tpu.memory_space<vmem>>, vector<256x4xf32>,
    %c0_109 = arith.constant 0 : index
    %c4_110 = arith.constant 4 : index
    %c0_111 = arith.constant 0 : index
    %c0_112 = arith.constant 0 : index
    %64 = vector.load %arg9[%c0_109, %c4_110, %c0_111, %c0_112] : memref<1x20x20x4xf32, #tpu.memory_space<vmem>>, vector<1x16x16x4xf32>
    %65 = vector.shape_cast %64 : vector<1x16x16x4xf32> to vector<256x4xf32>
    %c0_113 = arith.constant 0 : index
    %c80 = arith.constant 80 : index
    %66 = vector.load %arg10[%c0_113, %c80] : memref<256x100xf32, #tpu.memory_space<vmem>>, vector<256x4xf32>
    tpu.vector_store %arg10[%c0_113, %c80], %65 {strides = array<i32>} : memref<256x100xf32, #tpu.memory_space<vmem>>, vector<256x4xf32>,
    %c0_114 = arith.constant 0 : index
    %c4_115 = arith.constant 4 : index
    %c1_116 = arith.constant 1 : index
    %c0_117 = arith.constant 0 : index
    %67 = vector.load %arg9[%c0_114, %c4_115, %c1_116, %c0_117] : memref<1x20x20x4xf32, #tpu.memory_space<vmem>>, vector<1x16x16x4xf32>
    %68 = vector.shape_cast %67 : vector<1x16x16x4xf32> to vector<256x4xf32>
    %c0_118 = arith.constant 0 : index
    %c84 = arith.constant 84 : index
    %69 = vector.load %arg10[%c0_118, %c84] : memref<256x100xf32, #tpu.memory_space<vmem>>, vector<256x4xf32>
    tpu.vector_store %arg10[%c0_118, %c84], %68 {strides = array<i32>} : memref<256x100xf32, #tpu.memory_space<vmem>>, vector<256x4xf32>,
    %c0_119 = arith.constant 0 : index
    %c4_120 = arith.constant 4 : index
    %c2_121 = arith.constant 2 : index
    %c0_122 = arith.constant 0 : index
    %70 = vector.load %arg9[%c0_119, %c4_120, %c2_121, %c0_122] : memref<1x20x20x4xf32, #tpu.memory_space<vmem>>, vector<1x16x16x4xf32>
    %71 = vector.shape_cast %70 : vector<1x16x16x4xf32> to vector<256x4xf32>
    %c0_123 = arith.constant 0 : index
    %c88 = arith.constant 88 : index
    %72 = vector.load %arg10[%c0_123, %c88] : memref<256x100xf32, #tpu.memory_space<vmem>>, vector<256x4xf32>
    tpu.vector_store %arg10[%c0_123, %c88], %71 {strides = array<i32>} : memref<256x100xf32, #tpu.memory_space<vmem>>, vector<256x4xf32>,
    %c0_124 = arith.constant 0 : index
    %c4_125 = arith.constant 4 : index
    %c3_126 = arith.constant 3 : index
    %c0_127 = arith.constant 0 : index
    %73 = vector.load %arg9[%c0_124, %c4_125, %c3_126, %c0_127] : memref<1x20x20x4xf32, #tpu.memory_space<vmem>>, vector<1x16x16x4xf32>
    %74 = vector.shape_cast %73 : vector<1x16x16x4xf32> to vector<256x4xf32>
    %c0_128 = arith.constant 0 : index
    %c92 = arith.constant 92 : index
    %75 = vector.load %arg10[%c0_128, %c92] : memref<256x100xf32, #tpu.memory_space<vmem>>, vector<256x4xf32>
    tpu.vector_store %arg10[%c0_128, %c92], %74 {strides = array<i32>} : memref<256x100xf32, #tpu.memory_space<vmem>>, vector<256x4xf32>,
    %c0_129 = arith.constant 0 : index
    %c4_130 = arith.constant 4 : index
    %c4_131 = arith.constant 4 : index
    %c0_132 = arith.constant 0 : index
    %76 = vector.load %arg9[%c0_129, %c4_130, %c4_131, %c0_132] : memref<1x20x20x4xf32, #tpu.memory_space<vmem>>, vector<1x16x16x4xf32>
    %77 = vector.shape_cast %76 : vector<1x16x16x4xf32> to vector<256x4xf32>
    %c0_133 = arith.constant 0 : index
    %c96 = arith.constant 96 : index
    %78 = vector.load %arg10[%c0_133, %c96] : memref<256x100xf32, #tpu.memory_space<vmem>>, vector<256x4xf32>
    tpu.vector_store %arg10[%c0_133, %c96], %77 {strides = array<i32>} : memref<256x100xf32, #tpu.memory_space<vmem>>, vector<256x4xf32>,
    %c0_134 = arith.constant 0 : index
    %c0_135 = arith.constant 0 : index
    %79 = vector.load %arg10[%c0_134, %c0_135] : memref<256x100xf32, #tpu.memory_space<vmem>>, vector<256x100xf32>
    %c0_136 = arith.constant 0 : index
    %c0_137 = arith.constant 0 : index
    %80 = vector.load %arg2[%c0_136, %c0_137] : memref<100x32xf32, #tpu.memory_space<vmem>>, vector<100x32xf32>
    %cst_138 = arith.constant dense<0.000000e+00> : vector<256x32xf32>
    %81 = tpu.matmul %79, %80, %cst_138 {dimension_numbers = #tpu.dot_dimension_numbers<[1], [0], [0], [1], [0, 0, 1, 1], [], []>} : vector<256x100xf32>, vector<100x32xf32>, vector<256x32xf32> -> vector<256x32xf32>
    %c0_139 = arith.constant 0 : index
    %c0_140 = arith.constant 0 : index
    %82 = vector.load %arg3[%c0_139, %c0_140] : memref<1x32xf32, #tpu.memory_space<vmem>>, vector<1x32xf32>
    %83 = vector.broadcast %82 : vector<1x32xf32> to vector<256x32xf32>
    %84 = arith.addf %81, %83 : vector<256x32xf32>
    %cst_141 = arith.constant 0.000000e+00 : f32
    %85 = vector.broadcast %cst_141 : f32 to vector<256x32xf32>
    %86 = arith.maximumf %84, %85 : vector<256x32xf32>
    %87 = vector.shape_cast %86 : vector<256x32xf32> to vector<1x16x8x2x32xf32>
    %cst_142 = arith.constant dense<0xFF800000> : vector<1x16x8x32xf32>
    %88 = vector.multi_reduction <maximumf>, %87, %cst_142 [3] : vector<1x16x8x2x32xf32> to vector<1x16x8x32xf32>
    %89 = vector.shape_cast %88 : vector<1x16x8x32xf32> to vector<1x8x2x8x32xf32>
    %90 = vector.extract_strided_slice %89 {offsets = [0, 0, 0, 0, 0], sizes = [1, 8, 1, 8, 32], strides = [1, 1, 1, 1, 1]} : vector<1x8x2x8x32xf32> to vector<1x8x1x8x32xf32>
    %91 = vector.shape_cast %90 : vector<1x8x1x8x32xf32> to vector<1x8x8x32xf32>
    %92 = vector.extract_strided_slice %89 {offsets = [0, 0, 1, 0, 0], sizes = [1, 8, 1, 8, 32], strides = [1, 1, 1, 1, 1]} : vector<1x8x2x8x32xf32> to vector<1x8x1x8x32xf32>
    %93 = vector.shape_cast %92 : vector<1x8x1x8x32xf32> to vector<1x8x8x32xf32>
    %94 = arith.maximumf %91, %93 : vector<1x8x8x32xf32>
    %cst_143 = arith.constant 0.000000e+00 : f32
    %95 = vector.broadcast %cst_143 : f32 to vector<1x12x12x32xf32>
    %c0_144 = arith.constant 0 : index
    %c0_145 = arith.constant 0 : index
    %c0_146 = arith.constant 0 : index
    %c0_147 = arith.constant 0 : index
    %96 = vector.load %arg11[%c0_144, %c0_145, %c0_146, %c0_147] : memref<1x12x12x32xf32, #tpu.memory_space<vmem>>, vector<1x12x12x32xf32>
    tpu.vector_store %arg11[%c0_144, %c0_145, %c0_146, %c0_147], %95 {strides = array<i32>} : memref<1x12x12x32xf32, #tpu.memory_space<vmem>>, vector<1x12x12x32xf32>,
    %c0_148 = arith.constant 0 : index
    %c2_149 = arith.constant 2 : index
    %c2_150 = arith.constant 2 : index
    %c0_151 = arith.constant 0 : index
    %97 = vector.load %arg11[%c0_148, %c2_149, %c2_150, %c0_151] : memref<1x12x12x32xf32, #tpu.memory_space<vmem>>, vector<1x8x8x32xf32>
    tpu.vector_store %arg11[%c0_148, %c2_149, %c2_150, %c0_151], %94 {strides = array<i32>} : memref<1x12x12x32xf32, #tpu.memory_space<vmem>>, vector<1x8x8x32xf32>,
    %c0_152 = arith.constant 0 : index
    %c0_153 = arith.constant 0 : index
    %c0_154 = arith.constant 0 : index
    %c0_155 = arith.constant 0 : index
    %98 = vector.load %arg11[%c0_152, %c0_153, %c0_154, %c0_155] : memref<1x12x12x32xf32, #tpu.memory_space<vmem>>, vector<1x8x8x32xf32>
    %99 = vector.shape_cast %98 : vector<1x8x8x32xf32> to vector<64x32xf32>
    %c0_156 = arith.constant 0 : index
    %c0_157 = arith.constant 0 : index
    %100 = vector.load %arg12[%c0_156, %c0_157] : memref<64x800xf32, #tpu.memory_space<vmem>>, vector<64x32xf32>
    tpu.vector_store %arg12[%c0_156, %c0_157], %99 {strides = array<i32>} : memref<64x800xf32, #tpu.memory_space<vmem>>, vector<64x32xf32>,
    %c0_158 = arith.constant 0 : index
    %c0_159 = arith.constant 0 : index
    %c1_160 = arith.constant 1 : index
    %c0_161 = arith.constant 0 : index
    %101 = vector.load %arg11[%c0_158, %c0_159, %c1_160, %c0_161] : memref<1x12x12x32xf32, #tpu.memory_space<vmem>>, vector<1x8x8x32xf32>
    %102 = vector.shape_cast %101 : vector<1x8x8x32xf32> to vector<64x32xf32>
    %c0_162 = arith.constant 0 : index
    %c32_163 = arith.constant 32 : index
    %103 = vector.load %arg12[%c0_162, %c32_163] : memref<64x800xf32, #tpu.memory_space<vmem>>, vector<64x32xf32>
    tpu.vector_store %arg12[%c0_162, %c32_163], %102 {strides = array<i32>} : memref<64x800xf32, #tpu.memory_space<vmem>>, vector<64x32xf32>,
    %c0_164 = arith.constant 0 : index
    %c0_165 = arith.constant 0 : index
    %c2_166 = arith.constant 2 : index
    %c0_167 = arith.constant 0 : index
    %104 = vector.load %arg11[%c0_164, %c0_165, %c2_166, %c0_167] : memref<1x12x12x32xf32, #tpu.memory_space<vmem>>, vector<1x8x8x32xf32>
    %105 = vector.shape_cast %104 : vector<1x8x8x32xf32> to vector<64x32xf32>
    %c0_168 = arith.constant 0 : index
    %c64_169 = arith.constant 64 : index
    %106 = vector.load %arg12[%c0_168, %c64_169] : memref<64x800xf32, #tpu.memory_space<vmem>>, vector<64x32xf32>
    tpu.vector_store %arg12[%c0_168, %c64_169], %105 {strides = array<i32>} : memref<64x800xf32, #tpu.memory_space<vmem>>, vector<64x32xf32>,
    %c0_170 = arith.constant 0 : index
    %c0_171 = arith.constant 0 : index
    %c3_172 = arith.constant 3 : index
    %c0_173 = arith.constant 0 : index
    %107 = vector.load %arg11[%c0_170, %c0_171, %c3_172, %c0_173] : memref<1x12x12x32xf32, #tpu.memory_space<vmem>>, vector<1x8x8x32xf32>
    %108 = vector.shape_cast %107 : vector<1x8x8x32xf32> to vector<64x32xf32>
    %c0_174 = arith.constant 0 : index
    %c96_175 = arith.constant 96 : index
    %109 = vector.load %arg12[%c0_174, %c96_175] : memref<64x800xf32, #tpu.memory_space<vmem>>, vector<64x32xf32>
    tpu.vector_store %arg12[%c0_174, %c96_175], %108 {strides = array<i32>} : memref<64x800xf32, #tpu.memory_space<vmem>>, vector<64x32xf32>,
    %c0_176 = arith.constant 0 : index
    %c0_177 = arith.constant 0 : index
    %c4_178 = arith.constant 4 : index
    %c0_179 = arith.constant 0 : index
    %110 = vector.load %arg11[%c0_176, %c0_177, %c4_178, %c0_179] : memref<1x12x12x32xf32, #tpu.memory_space<vmem>>, vector<1x8x8x32xf32>
    %111 = vector.shape_cast %110 : vector<1x8x8x32xf32> to vector<64x32xf32>
    %c0_180 = arith.constant 0 : index
    %c128 = arith.constant 128 : index
    %112 = vector.load %arg12[%c0_180, %c128] : memref<64x800xf32, #tpu.memory_space<vmem>>, vector<64x32xf32>
    tpu.vector_store %arg12[%c0_180, %c128], %111 {strides = array<i32>} : memref<64x800xf32, #tpu.memory_space<vmem>>, vector<64x32xf32>,
    %c0_181 = arith.constant 0 : index
    %c1_182 = arith.constant 1 : index
    %c0_183 = arith.constant 0 : index
    %c0_184 = arith.constant 0 : index
    %113 = vector.load %arg11[%c0_181, %c1_182, %c0_183, %c0_184] : memref<1x12x12x32xf32, #tpu.memory_space<vmem>>, vector<1x8x8x32xf32>
    %114 = vector.shape_cast %113 : vector<1x8x8x32xf32> to vector<64x32xf32>
    %c0_185 = arith.constant 0 : index
    %c160 = arith.constant 160 : index
    %115 = vector.load %arg12[%c0_185, %c160] : memref<64x800xf32, #tpu.memory_space<vmem>>, vector<64x32xf32>
    tpu.vector_store %arg12[%c0_185, %c160], %114 {strides = array<i32>} : memref<64x800xf32, #tpu.memory_space<vmem>>, vector<64x32xf32>,
    %c0_186 = arith.constant 0 : index
    %c1_187 = arith.constant 1 : index
    %c1_188 = arith.constant 1 : index
    %c0_189 = arith.constant 0 : index
    %116 = vector.load %arg11[%c0_186, %c1_187, %c1_188, %c0_189] : memref<1x12x12x32xf32, #tpu.memory_space<vmem>>, vector<1x8x8x32xf32>
    %117 = vector.shape_cast %116 : vector<1x8x8x32xf32> to vector<64x32xf32>
    %c0_190 = arith.constant 0 : index
    %c192 = arith.constant 192 : index
    %118 = vector.load %arg12[%c0_190, %c192] : memref<64x800xf32, #tpu.memory_space<vmem>>, vector<64x32xf32>
    tpu.vector_store %arg12[%c0_190, %c192], %117 {strides = array<i32>} : memref<64x800xf32, #tpu.memory_space<vmem>>, vector<64x32xf32>,
    %c0_191 = arith.constant 0 : index
    %c1_192 = arith.constant 1 : index
    %c2_193 = arith.constant 2 : index
    %c0_194 = arith.constant 0 : index
    %119 = vector.load %arg11[%c0_191, %c1_192, %c2_193, %c0_194] : memref<1x12x12x32xf32, #tpu.memory_space<vmem>>, vector<1x8x8x32xf32>
    %120 = vector.shape_cast %119 : vector<1x8x8x32xf32> to vector<64x32xf32>
    %c0_195 = arith.constant 0 : index
    %c224 = arith.constant 224 : index
    %121 = vector.load %arg12[%c0_195, %c224] : memref<64x800xf32, #tpu.memory_space<vmem>>, vector<64x32xf32>
    tpu.vector_store %arg12[%c0_195, %c224], %120 {strides = array<i32>} : memref<64x800xf32, #tpu.memory_space<vmem>>, vector<64x32xf32>,
    %c0_196 = arith.constant 0 : index
    %c1_197 = arith.constant 1 : index
    %c3_198 = arith.constant 3 : index
    %c0_199 = arith.constant 0 : index
    %122 = vector.load %arg11[%c0_196, %c1_197, %c3_198, %c0_199] : memref<1x12x12x32xf32, #tpu.memory_space<vmem>>, vector<1x8x8x32xf32>
    %123 = vector.shape_cast %122 : vector<1x8x8x32xf32> to vector<64x32xf32>
    %c0_200 = arith.constant 0 : index
    %c256 = arith.constant 256 : index
    %124 = vector.load %arg12[%c0_200, %c256] : memref<64x800xf32, #tpu.memory_space<vmem>>, vector<64x32xf32>
    tpu.vector_store %arg12[%c0_200, %c256], %123 {strides = array<i32>} : memref<64x800xf32, #tpu.memory_space<vmem>>, vector<64x32xf32>,
    %c0_201 = arith.constant 0 : index
    %c1_202 = arith.constant 1 : index
    %c4_203 = arith.constant 4 : index
    %c0_204 = arith.constant 0 : index
    %125 = vector.load %arg11[%c0_201, %c1_202, %c4_203, %c0_204] : memref<1x12x12x32xf32, #tpu.memory_space<vmem>>, vector<1x8x8x32xf32>
    %126 = vector.shape_cast %125 : vector<1x8x8x32xf32> to vector<64x32xf32>
    %c0_205 = arith.constant 0 : index
    %c288 = arith.constant 288 : index
    %127 = vector.load %arg12[%c0_205, %c288] : memref<64x800xf32, #tpu.memory_space<vmem>>, vector<64x32xf32>
    tpu.vector_store %arg12[%c0_205, %c288], %126 {strides = array<i32>} : memref<64x800xf32, #tpu.memory_space<vmem>>, vector<64x32xf32>,
    %c0_206 = arith.constant 0 : index
    %c2_207 = arith.constant 2 : index
    %c0_208 = arith.constant 0 : index
    %c0_209 = arith.constant 0 : index
    %128 = vector.load %arg11[%c0_206, %c2_207, %c0_208, %c0_209] : memref<1x12x12x32xf32, #tpu.memory_space<vmem>>, vector<1x8x8x32xf32>
    %129 = vector.shape_cast %128 : vector<1x8x8x32xf32> to vector<64x32xf32>
    %c0_210 = arith.constant 0 : index
    %c320 = arith.constant 320 : index
    %130 = vector.load %arg12[%c0_210, %c320] : memref<64x800xf32, #tpu.memory_space<vmem>>, vector<64x32xf32>
    tpu.vector_store %arg12[%c0_210, %c320], %129 {strides = array<i32>} : memref<64x800xf32, #tpu.memory_space<vmem>>, vector<64x32xf32>,
    %c0_211 = arith.constant 0 : index
    %c2_212 = arith.constant 2 : index
    %c1_213 = arith.constant 1 : index
    %c0_214 = arith.constant 0 : index
    %131 = vector.load %arg11[%c0_211, %c2_212, %c1_213, %c0_214] : memref<1x12x12x32xf32, #tpu.memory_space<vmem>>, vector<1x8x8x32xf32>
    %132 = vector.shape_cast %131 : vector<1x8x8x32xf32> to vector<64x32xf32>
    %c0_215 = arith.constant 0 : index
    %c352 = arith.constant 352 : index
    %133 = vector.load %arg12[%c0_215, %c352] : memref<64x800xf32, #tpu.memory_space<vmem>>, vector<64x32xf32>
    tpu.vector_store %arg12[%c0_215, %c352], %132 {strides = array<i32>} : memref<64x800xf32, #tpu.memory_space<vmem>>, vector<64x32xf32>,
    %c0_216 = arith.constant 0 : index
    %c2_217 = arith.constant 2 : index
    %c2_218 = arith.constant 2 : index
    %c0_219 = arith.constant 0 : index
    %134 = vector.load %arg11[%c0_216, %c2_217, %c2_218, %c0_219] : memref<1x12x12x32xf32, #tpu.memory_space<vmem>>, vector<1x8x8x32xf32>
    %135 = vector.shape_cast %134 : vector<1x8x8x32xf32> to vector<64x32xf32>
    %c0_220 = arith.constant 0 : index
    %c384 = arith.constant 384 : index
    %136 = vector.load %arg12[%c0_220, %c384] : memref<64x800xf32, #tpu.memory_space<vmem>>, vector<64x32xf32>
    tpu.vector_store %arg12[%c0_220, %c384], %135 {strides = array<i32>} : memref<64x800xf32, #tpu.memory_space<vmem>>, vector<64x32xf32>,
    %c0_221 = arith.constant 0 : index
    %c2_222 = arith.constant 2 : index
    %c3_223 = arith.constant 3 : index
    %c0_224 = arith.constant 0 : index
    %137 = vector.load %arg11[%c0_221, %c2_222, %c3_223, %c0_224] : memref<1x12x12x32xf32, #tpu.memory_space<vmem>>, vector<1x8x8x32xf32>
    %138 = vector.shape_cast %137 : vector<1x8x8x32xf32> to vector<64x32xf32>
    %c0_225 = arith.constant 0 : index
    %c416 = arith.constant 416 : index
    %139 = vector.load %arg12[%c0_225, %c416] : memref<64x800xf32, #tpu.memory_space<vmem>>, vector<64x32xf32>
    tpu.vector_store %arg12[%c0_225, %c416], %138 {strides = array<i32>} : memref<64x800xf32, #tpu.memory_space<vmem>>, vector<64x32xf32>,
    %c0_226 = arith.constant 0 : index
    %c2_227 = arith.constant 2 : index
    %c4_228 = arith.constant 4 : index
    %c0_229 = arith.constant 0 : index
    %140 = vector.load %arg11[%c0_226, %c2_227, %c4_228, %c0_229] : memref<1x12x12x32xf32, #tpu.memory_space<vmem>>, vector<1x8x8x32xf32>
    %141 = vector.shape_cast %140 : vector<1x8x8x32xf32> to vector<64x32xf32>
    %c0_230 = arith.constant 0 : index
    %c448 = arith.constant 448 : index
    %142 = vector.load %arg12[%c0_230, %c448] : memref<64x800xf32, #tpu.memory_space<vmem>>, vector<64x32xf32>
    tpu.vector_store %arg12[%c0_230, %c448], %141 {strides = array<i32>} : memref<64x800xf32, #tpu.memory_space<vmem>>, vector<64x32xf32>,
    %c0_231 = arith.constant 0 : index
    %c3_232 = arith.constant 3 : index
    %c0_233 = arith.constant 0 : index
    %c0_234 = arith.constant 0 : index
    %143 = vector.load %arg11[%c0_231, %c3_232, %c0_233, %c0_234] : memref<1x12x12x32xf32, #tpu.memory_space<vmem>>, vector<1x8x8x32xf32>
    %144 = vector.shape_cast %143 : vector<1x8x8x32xf32> to vector<64x32xf32>
    %c0_235 = arith.constant 0 : index
    %c480 = arith.constant 480 : index
    %145 = vector.load %arg12[%c0_235, %c480] : memref<64x800xf32, #tpu.memory_space<vmem>>, vector<64x32xf32>
    tpu.vector_store %arg12[%c0_235, %c480], %144 {strides = array<i32>} : memref<64x800xf32, #tpu.memory_space<vmem>>, vector<64x32xf32>,
    %c0_236 = arith.constant 0 : index
    %c3_237 = arith.constant 3 : index
    %c1_238 = arith.constant 1 : index
    %c0_239 = arith.constant 0 : index
    %146 = vector.load %arg11[%c0_236, %c3_237, %c1_238, %c0_239] : memref<1x12x12x32xf32, #tpu.memory_space<vmem>>, vector<1x8x8x32xf32>
    %147 = vector.shape_cast %146 : vector<1x8x8x32xf32> to vector<64x32xf32>
    %c0_240 = arith.constant 0 : index
    %c512 = arith.constant 512 : index
    %148 = vector.load %arg12[%c0_240, %c512] : memref<64x800xf32, #tpu.memory_space<vmem>>, vector<64x32xf32>
    tpu.vector_store %arg12[%c0_240, %c512], %147 {strides = array<i32>} : memref<64x800xf32, #tpu.memory_space<vmem>>, vector<64x32xf32>,
    %c0_241 = arith.constant 0 : index
    %c3_242 = arith.constant 3 : index
    %c2_243 = arith.constant 2 : index
    %c0_244 = arith.constant 0 : index
    %149 = vector.load %arg11[%c0_241, %c3_242, %c2_243, %c0_244] : memref<1x12x12x32xf32, #tpu.memory_space<vmem>>, vector<1x8x8x32xf32>
    %150 = vector.shape_cast %149 : vector<1x8x8x32xf32> to vector<64x32xf32>
    %c0_245 = arith.constant 0 : index
    %c544 = arith.constant 544 : index
    %151 = vector.load %arg12[%c0_245, %c544] : memref<64x800xf32, #tpu.memory_space<vmem>>, vector<64x32xf32>
    tpu.vector_store %arg12[%c0_245, %c544], %150 {strides = array<i32>} : memref<64x800xf32, #tpu.memory_space<vmem>>, vector<64x32xf32>,
    %c0_246 = arith.constant 0 : index
    %c3_247 = arith.constant 3 : index
    %c3_248 = arith.constant 3 : index
    %c0_249 = arith.constant 0 : index
    %152 = vector.load %arg11[%c0_246, %c3_247, %c3_248, %c0_249] : memref<1x12x12x32xf32, #tpu.memory_space<vmem>>, vector<1x8x8x32xf32>
    %153 = vector.shape_cast %152 : vector<1x8x8x32xf32> to vector<64x32xf32>
    %c0_250 = arith.constant 0 : index
    %c576 = arith.constant 576 : index
    %154 = vector.load %arg12[%c0_250, %c576] : memref<64x800xf32, #tpu.memory_space<vmem>>, vector<64x32xf32>
    tpu.vector_store %arg12[%c0_250, %c576], %153 {strides = array<i32>} : memref<64x800xf32, #tpu.memory_space<vmem>>, vector<64x32xf32>,
    %c0_251 = arith.constant 0 : index
    %c3_252 = arith.constant 3 : index
    %c4_253 = arith.constant 4 : index
    %c0_254 = arith.constant 0 : index
    %155 = vector.load %arg11[%c0_251, %c3_252, %c4_253, %c0_254] : memref<1x12x12x32xf32, #tpu.memory_space<vmem>>, vector<1x8x8x32xf32>
    %156 = vector.shape_cast %155 : vector<1x8x8x32xf32> to vector<64x32xf32>
    %c0_255 = arith.constant 0 : index
    %c608 = arith.constant 608 : index
    %157 = vector.load %arg12[%c0_255, %c608] : memref<64x800xf32, #tpu.memory_space<vmem>>, vector<64x32xf32>
    tpu.vector_store %arg12[%c0_255, %c608], %156 {strides = array<i32>} : memref<64x800xf32, #tpu.memory_space<vmem>>, vector<64x32xf32>,
    %c0_256 = arith.constant 0 : index
    %c4_257 = arith.constant 4 : index
    %c0_258 = arith.constant 0 : index
    %c0_259 = arith.constant 0 : index
    %158 = vector.load %arg11[%c0_256, %c4_257, %c0_258, %c0_259] : memref<1x12x12x32xf32, #tpu.memory_space<vmem>>, vector<1x8x8x32xf32>
    %159 = vector.shape_cast %158 : vector<1x8x8x32xf32> to vector<64x32xf32>
    %c0_260 = arith.constant 0 : index
    %c640 = arith.constant 640 : index
    %160 = vector.load %arg12[%c0_260, %c640] : memref<64x800xf32, #tpu.memory_space<vmem>>, vector<64x32xf32>
    tpu.vector_store %arg12[%c0_260, %c640], %159 {strides = array<i32>} : memref<64x800xf32, #tpu.memory_space<vmem>>, vector<64x32xf32>,
    %c0_261 = arith.constant 0 : index
    %c4_262 = arith.constant 4 : index
    %c1_263 = arith.constant 1 : index
    %c0_264 = arith.constant 0 : index
    %161 = vector.load %arg11[%c0_261, %c4_262, %c1_263, %c0_264] : memref<1x12x12x32xf32, #tpu.memory_space<vmem>>, vector<1x8x8x32xf32>
    %162 = vector.shape_cast %161 : vector<1x8x8x32xf32> to vector<64x32xf32>
    %c0_265 = arith.constant 0 : index
    %c672 = arith.constant 672 : index
    %163 = vector.load %arg12[%c0_265, %c672] : memref<64x800xf32, #tpu.memory_space<vmem>>, vector<64x32xf32>
    tpu.vector_store %arg12[%c0_265, %c672], %162 {strides = array<i32>} : memref<64x800xf32, #tpu.memory_space<vmem>>, vector<64x32xf32>,
    %c0_266 = arith.constant 0 : index
    %c4_267 = arith.constant 4 : index
    %c2_268 = arith.constant 2 : index
    %c0_269 = arith.constant 0 : index
    %164 = vector.load %arg11[%c0_266, %c4_267, %c2_268, %c0_269] : memref<1x12x12x32xf32, #tpu.memory_space<vmem>>, vector<1x8x8x32xf32>
    %165 = vector.shape_cast %164 : vector<1x8x8x32xf32> to vector<64x32xf32>
    %c0_270 = arith.constant 0 : index
    %c704 = arith.constant 704 : index
    %166 = vector.load %arg12[%c0_270, %c704] : memref<64x800xf32, #tpu.memory_space<vmem>>, vector<64x32xf32>
    tpu.vector_store %arg12[%c0_270, %c704], %165 {strides = array<i32>} : memref<64x800xf32, #tpu.memory_space<vmem>>, vector<64x32xf32>,
    %c0_271 = arith.constant 0 : index
    %c4_272 = arith.constant 4 : index
    %c3_273 = arith.constant 3 : index
    %c0_274 = arith.constant 0 : index
    %167 = vector.load %arg11[%c0_271, %c4_272, %c3_273, %c0_274] : memref<1x12x12x32xf32, #tpu.memory_space<vmem>>, vector<1x8x8x32xf32>
    %168 = vector.shape_cast %167 : vector<1x8x8x32xf32> to vector<64x32xf32>
    %c0_275 = arith.constant 0 : index
    %c736 = arith.constant 736 : index
    %169 = vector.load %arg12[%c0_275, %c736] : memref<64x800xf32, #tpu.memory_space<vmem>>, vector<64x32xf32>
    tpu.vector_store %arg12[%c0_275, %c736], %168 {strides = array<i32>} : memref<64x800xf32, #tpu.memory_space<vmem>>, vector<64x32xf32>,
    %c0_276 = arith.constant 0 : index
    %c4_277 = arith.constant 4 : index
    %c4_278 = arith.constant 4 : index
    %c0_279 = arith.constant 0 : index
    %170 = vector.load %arg11[%c0_276, %c4_277, %c4_278, %c0_279] : memref<1x12x12x32xf32, #tpu.memory_space<vmem>>, vector<1x8x8x32xf32>
    %171 = vector.shape_cast %170 : vector<1x8x8x32xf32> to vector<64x32xf32>
    %c0_280 = arith.constant 0 : index
    %c768 = arith.constant 768 : index
    %172 = vector.load %arg12[%c0_280, %c768] : memref<64x800xf32, #tpu.memory_space<vmem>>, vector<64x32xf32>
    tpu.vector_store %arg12[%c0_280, %c768], %171 {strides = array<i32>} : memref<64x800xf32, #tpu.memory_space<vmem>>, vector<64x32xf32>,
    %c0_281 = arith.constant 0 : index
    %c0_282 = arith.constant 0 : index
    %173 = vector.load %arg12[%c0_281, %c0_282] : memref<64x800xf32, #tpu.memory_space<vmem>>, vector<64x800xf32>
    %c0_283 = arith.constant 0 : index
    %c0_284 = arith.constant 0 : index
    %174 = vector.load %arg4[%c0_283, %c0_284] : memref<800x64xf32, #tpu.memory_space<vmem>>, vector<800x64xf32>
    %cst_285 = arith.constant dense<0.000000e+00> : vector<64x64xf32>
    %175 = tpu.matmul %173, %174, %cst_285 {dimension_numbers = #tpu.dot_dimension_numbers<[1], [0], [0], [1], [0, 0, 1, 1], [], []>} : vector<64x800xf32>, vector<800x64xf32>, vector<64x64xf32> -> vector<64x64xf32>
    %c0_286 = arith.constant 0 : index
    %c0_287 = arith.constant 0 : index
    %176 = vector.load %arg5[%c0_286, %c0_287] : memref<1x64xf32, #tpu.memory_space<vmem>>, vector<1x64xf32>
    %177 = vector.broadcast %176 : vector<1x64xf32> to vector<64x64xf32>
    %178 = arith.addf %175, %177 : vector<64x64xf32>
    %cst_288 = arith.constant 0.000000e+00 : f32
    %179 = vector.broadcast %cst_288 : f32 to vector<64x64xf32>
    %180 = arith.maximumf %178, %179 : vector<64x64xf32>
    %181 = vector.shape_cast %180 : vector<64x64xf32> to vector<1x8x4x2x64xf32>
    %cst_289 = arith.constant dense<0xFF800000> : vector<1x8x4x64xf32>
    %182 = vector.multi_reduction <maximumf>, %181, %cst_289 [3] : vector<1x8x4x2x64xf32> to vector<1x8x4x64xf32>
    %183 = vector.shape_cast %182 : vector<1x8x4x64xf32> to vector<1x4x2x4x64xf32>
    %184 = vector.extract_strided_slice %183 {offsets = [0, 0, 0, 0, 0], sizes = [1, 4, 1, 4, 64], strides = [1, 1, 1, 1, 1]} : vector<1x4x2x4x64xf32> to vector<1x4x1x4x64xf32>
    %185 = vector.shape_cast %184 : vector<1x4x1x4x64xf32> to vector<1x4x4x64xf32>
    %186 = vector.extract_strided_slice %183 {offsets = [0, 0, 1, 0, 0], sizes = [1, 4, 1, 4, 64], strides = [1, 1, 1, 1, 1]} : vector<1x4x2x4x64xf32> to vector<1x4x1x4x64xf32>
    %187 = vector.shape_cast %186 : vector<1x4x1x4x64xf32> to vector<1x4x4x64xf32>
    %188 = arith.maximumf %185, %187 : vector<1x4x4x64xf32>
    %189 = vector.extract_strided_slice %188 {offsets = [0, 0, 0, 0], sizes = [1, 1, 1, 64], strides = [1, 1, 1, 1]} : vector<1x4x4x64xf32> to vector<1x1x1x64xf32>
    %190 = vector.shape_cast %189 : vector<1x1x1x64xf32> to vector<1x64xf32>
    %c0_290 = arith.constant 0 : index
    %c0_291 = arith.constant 0 : index
    %191 = vector.load %arg13[%c0_290, %c0_291] : memref<1x1024xf32, #tpu.memory_space<vmem>>, vector<1x64xf32>
    tpu.vector_store %arg13[%c0_290, %c0_291], %190 {strides = array<i32>} : memref<1x1024xf32, #tpu.memory_space<vmem>>, vector<1x64xf32>,
    %192 = vector.extract_strided_slice %188 {offsets = [0, 0, 1, 0], sizes = [1, 1, 1, 64], strides = [1, 1, 1, 1]} : vector<1x4x4x64xf32> to vector<1x1x1x64xf32>
    %193 = vector.shape_cast %192 : vector<1x1x1x64xf32> to vector<1x64xf32>
    %c0_292 = arith.constant 0 : index
    %c64_293 = arith.constant 64 : index
    %194 = vector.load %arg13[%c0_292, %c64_293] : memref<1x1024xf32, #tpu.memory_space<vmem>>, vector<1x64xf32>
    tpu.vector_store %arg13[%c0_292, %c64_293], %193 {strides = array<i32>} : memref<1x1024xf32, #tpu.memory_space<vmem>>, vector<1x64xf32>,
    %195 = vector.extract_strided_slice %188 {offsets = [0, 0, 2, 0], sizes = [1, 1, 1, 64], strides = [1, 1, 1, 1]} : vector<1x4x4x64xf32> to vector<1x1x1x64xf32>
    %196 = vector.shape_cast %195 : vector<1x1x1x64xf32> to vector<1x64xf32>
    %c0_294 = arith.constant 0 : index
    %c128_295 = arith.constant 128 : index
    %197 = vector.load %arg13[%c0_294, %c128_295] : memref<1x1024xf32, #tpu.memory_space<vmem>>, vector<1x64xf32>
    tpu.vector_store %arg13[%c0_294, %c128_295], %196 {strides = array<i32>} : memref<1x1024xf32, #tpu.memory_space<vmem>>, vector<1x64xf32>,
    %198 = vector.extract_strided_slice %188 {offsets = [0, 0, 3, 0], sizes = [1, 1, 1, 64], strides = [1, 1, 1, 1]} : vector<1x4x4x64xf32> to vector<1x1x1x64xf32>
    %199 = vector.shape_cast %198 : vector<1x1x1x64xf32> to vector<1x64xf32>
    %c0_296 = arith.constant 0 : index
    %c192_297 = arith.constant 192 : index
    %200 = vector.load %arg13[%c0_296, %c192_297] : memref<1x1024xf32, #tpu.memory_space<vmem>>, vector<1x64xf32>
    tpu.vector_store %arg13[%c0_296, %c192_297], %199 {strides = array<i32>} : memref<1x1024xf32, #tpu.memory_space<vmem>>, vector<1x64xf32>,
    %201 = vector.extract_strided_slice %188 {offsets = [0, 1, 0, 0], sizes = [1, 1, 1, 64], strides = [1, 1, 1, 1]} : vector<1x4x4x64xf32> to vector<1x1x1x64xf32>
    %202 = vector.shape_cast %201 : vector<1x1x1x64xf32> to vector<1x64xf32>
    %c0_298 = arith.constant 0 : index
    %c256_299 = arith.constant 256 : index
    %203 = vector.load %arg13[%c0_298, %c256_299] : memref<1x1024xf32, #tpu.memory_space<vmem>>, vector<1x64xf32>
    tpu.vector_store %arg13[%c0_298, %c256_299], %202 {strides = array<i32>} : memref<1x1024xf32, #tpu.memory_space<vmem>>, vector<1x64xf32>,
    %204 = vector.extract_strided_slice %188 {offsets = [0, 1, 1, 0], sizes = [1, 1, 1, 64], strides = [1, 1, 1, 1]} : vector<1x4x4x64xf32> to vector<1x1x1x64xf32>
    %205 = vector.shape_cast %204 : vector<1x1x1x64xf32> to vector<1x64xf32>
    %c0_300 = arith.constant 0 : index
    %c320_301 = arith.constant 320 : index
    %206 = vector.load %arg13[%c0_300, %c320_301] : memref<1x1024xf32, #tpu.memory_space<vmem>>, vector<1x64xf32>
    tpu.vector_store %arg13[%c0_300, %c320_301], %205 {strides = array<i32>} : memref<1x1024xf32, #tpu.memory_space<vmem>>, vector<1x64xf32>,
    %207 = vector.extract_strided_slice %188 {offsets = [0, 1, 2, 0], sizes = [1, 1, 1, 64], strides = [1, 1, 1, 1]} : vector<1x4x4x64xf32> to vector<1x1x1x64xf32>
    %208 = vector.shape_cast %207 : vector<1x1x1x64xf32> to vector<1x64xf32>
    %c0_302 = arith.constant 0 : index
    %c384_303 = arith.constant 384 : index
    %209 = vector.load %arg13[%c0_302, %c384_303] : memref<1x1024xf32, #tpu.memory_space<vmem>>, vector<1x64xf32>
    tpu.vector_store %arg13[%c0_302, %c384_303], %208 {strides = array<i32>} : memref<1x1024xf32, #tpu.memory_space<vmem>>, vector<1x64xf32>,
    %210 = vector.extract_strided_slice %188 {offsets = [0, 1, 3, 0], sizes = [1, 1, 1, 64], strides = [1, 1, 1, 1]} : vector<1x4x4x64xf32> to vector<1x1x1x64xf32>
    %211 = vector.shape_cast %210 : vector<1x1x1x64xf32> to vector<1x64xf32>
    %c0_304 = arith.constant 0 : index
    %c448_305 = arith.constant 448 : index
    %212 = vector.load %arg13[%c0_304, %c448_305] : memref<1x1024xf32, #tpu.memory_space<vmem>>, vector<1x64xf32>
    tpu.vector_store %arg13[%c0_304, %c448_305], %211 {strides = array<i32>} : memref<1x1024xf32, #tpu.memory_space<vmem>>, vector<1x64xf32>,
    %213 = vector.extract_strided_slice %188 {offsets = [0, 2, 0, 0], sizes = [1, 1, 1, 64], strides = [1, 1, 1, 1]} : vector<1x4x4x64xf32> to vector<1x1x1x64xf32>
    %214 = vector.shape_cast %213 : vector<1x1x1x64xf32> to vector<1x64xf32>
    %c0_306 = arith.constant 0 : index
    %c512_307 = arith.constant 512 : index
    %215 = vector.load %arg13[%c0_306, %c512_307] : memref<1x1024xf32, #tpu.memory_space<vmem>>, vector<1x64xf32>
    tpu.vector_store %arg13[%c0_306, %c512_307], %214 {strides = array<i32>} : memref<1x1024xf32, #tpu.memory_space<vmem>>, vector<1x64xf32>,
    %216 = vector.extract_strided_slice %188 {offsets = [0, 2, 1, 0], sizes = [1, 1, 1, 64], strides = [1, 1, 1, 1]} : vector<1x4x4x64xf32> to vector<1x1x1x64xf32>
    %217 = vector.shape_cast %216 : vector<1x1x1x64xf32> to vector<1x64xf32>
    %c0_308 = arith.constant 0 : index
    %c576_309 = arith.constant 576 : index
    %218 = vector.load %arg13[%c0_308, %c576_309] : memref<1x1024xf32, #tpu.memory_space<vmem>>, vector<1x64xf32>
    tpu.vector_store %arg13[%c0_308, %c576_309], %217 {strides = array<i32>} : memref<1x1024xf32, #tpu.memory_space<vmem>>, vector<1x64xf32>,
    %219 = vector.extract_strided_slice %188 {offsets = [0, 2, 2, 0], sizes = [1, 1, 1, 64], strides = [1, 1, 1, 1]} : vector<1x4x4x64xf32> to vector<1x1x1x64xf32>
    %220 = vector.shape_cast %219 : vector<1x1x1x64xf32> to vector<1x64xf32>
    %c0_310 = arith.constant 0 : index
    %c640_311 = arith.constant 640 : index
    %221 = vector.load %arg13[%c0_310, %c640_311] : memref<1x1024xf32, #tpu.memory_space<vmem>>, vector<1x64xf32>
    tpu.vector_store %arg13[%c0_310, %c640_311], %220 {strides = array<i32>} : memref<1x1024xf32, #tpu.memory_space<vmem>>, vector<1x64xf32>,
    %222 = vector.extract_strided_slice %188 {offsets = [0, 2, 3, 0], sizes = [1, 1, 1, 64], strides = [1, 1, 1, 1]} : vector<1x4x4x64xf32> to vector<1x1x1x64xf32>
    %223 = vector.shape_cast %222 : vector<1x1x1x64xf32> to vector<1x64xf32>
    %c0_312 = arith.constant 0 : index
    %c704_313 = arith.constant 704 : index
    %224 = vector.load %arg13[%c0_312, %c704_313] : memref<1x1024xf32, #tpu.memory_space<vmem>>, vector<1x64xf32>
    tpu.vector_store %arg13[%c0_312, %c704_313], %223 {strides = array<i32>} : memref<1x1024xf32, #tpu.memory_space<vmem>>, vector<1x64xf32>,
    %225 = vector.extract_strided_slice %188 {offsets = [0, 3, 0, 0], sizes = [1, 1, 1, 64], strides = [1, 1, 1, 1]} : vector<1x4x4x64xf32> to vector<1x1x1x64xf32>
    %226 = vector.shape_cast %225 : vector<1x1x1x64xf32> to vector<1x64xf32>
    %c0_314 = arith.constant 0 : index
    %c768_315 = arith.constant 768 : index
    %227 = vector.load %arg13[%c0_314, %c768_315] : memref<1x1024xf32, #tpu.memory_space<vmem>>, vector<1x64xf32>
    tpu.vector_store %arg13[%c0_314, %c768_315], %226 {strides = array<i32>} : memref<1x1024xf32, #tpu.memory_space<vmem>>, vector<1x64xf32>,
    %228 = vector.extract_strided_slice %188 {offsets = [0, 3, 1, 0], sizes = [1, 1, 1, 64], strides = [1, 1, 1, 1]} : vector<1x4x4x64xf32> to vector<1x1x1x64xf32>
    %229 = vector.shape_cast %228 : vector<1x1x1x64xf32> to vector<1x64xf32>
    %c0_316 = arith.constant 0 : index
    %c832 = arith.constant 832 : index
    %230 = vector.load %arg13[%c0_316, %c832] : memref<1x1024xf32, #tpu.memory_space<vmem>>, vector<1x64xf32>
    tpu.vector_store %arg13[%c0_316, %c832], %229 {strides = array<i32>} : memref<1x1024xf32, #tpu.memory_space<vmem>>, vector<1x64xf32>,
    %231 = vector.extract_strided_slice %188 {offsets = [0, 3, 2, 0], sizes = [1, 1, 1, 64], strides = [1, 1, 1, 1]} : vector<1x4x4x64xf32> to vector<1x1x1x64xf32>
    %232 = vector.shape_cast %231 : vector<1x1x1x64xf32> to vector<1x64xf32>
    %c0_317 = arith.constant 0 : index
    %c896 = arith.constant 896 : index
    %233 = vector.load %arg13[%c0_317, %c896] : memref<1x1024xf32, #tpu.memory_space<vmem>>, vector<1x64xf32>
    tpu.vector_store %arg13[%c0_317, %c896], %232 {strides = array<i32>} : memref<1x1024xf32, #tpu.memory_space<vmem>>, vector<1x64xf32>,
    %234 = vector.extract_strided_slice %188 {offsets = [0, 3, 3, 0], sizes = [1, 1, 1, 64], strides = [1, 1, 1, 1]} : vector<1x4x4x64xf32> to vector<1x1x1x64xf32>
    %235 = vector.shape_cast %234 : vector<1x1x1x64xf32> to vector<1x64xf32>
    %c0_318 = arith.constant 0 : index
    %c960 = arith.constant 960 : index
    %236 = vector.load %arg13[%c0_318, %c960] : memref<1x1024xf32, #tpu.memory_space<vmem>>, vector<1x64xf32>
    tpu.vector_store %arg13[%c0_318, %c960], %235 {strides = array<i32>} : memref<1x1024xf32, #tpu.memory_space<vmem>>, vector<1x64xf32>,
    %c0_319 = arith.constant 0 : index
    %c0_320 = arith.constant 0 : index
    %237 = vector.load %arg13[%c0_319, %c0_320] : memref<1x1024xf32, #tpu.memory_space<vmem>>, vector<1x1024xf32>
    %c0_321 = arith.constant 0 : index
    %c0_322 = arith.constant 0 : index
    %238 = vector.load %arg6[%c0_321, %c0_322] : memref<1024x512xf32, #tpu.memory_space<vmem>>, vector<1024x512xf32>
    %cst_323 = arith.constant dense<0.000000e+00> : vector<1x512xf32>
    %239 = tpu.matmul %237, %238, %cst_323 {dimension_numbers = #tpu.dot_dimension_numbers<[1], [0], [0], [1], [0, 0, 1, 1], [], []>} : vector<1x1024xf32>, vector<1024x512xf32>, vector<1x512xf32> -> vector<1x512xf32>
    %cst_324 = arith.constant 0.000000e+00 : f32
    %240 = vector.broadcast %cst_324 : f32 to vector<1x512xf32>
    %241 = arith.maximumf %239, %240 : vector<1x512xf32>
    %c0_325 = arith.constant 0 : index
    %c0_326 = arith.constant 0 : index
    %242 = vector.load %arg7[%c0_325, %c0_326] : memref<512x10xf32, #tpu.memory_space<vmem>>, vector<512x10xf32>
    %cst_327 = arith.constant dense<0.000000e+00> : vector<1x10xf32>
    %243 = tpu.matmul %241, %242, %cst_327 {dimension_numbers = #tpu.dot_dimension_numbers<[1], [0], [0], [1], [0, 0, 1, 1], [], []>} : vector<1x512xf32>, vector<512x10xf32>, vector<1x10xf32> -> vector<1x10xf32>
    %244 = vector.shape_cast %243 : vector<1x10xf32> to vector<1x1x10xf32>
    %c0_328 = arith.constant 0 : index
    %c0_329 = arith.constant 0 : index
    %c0_330 = arith.constant 0 : index
    %245 = vector.load %arg8[%c0_328, %c0_329, %c0_330] : memref<1x1x10xf32, #tpu.memory_space<vmem>>, vector<1x1x10xf32>
    tpu.vector_store %arg8[%c0_328, %c0_329, %c0_330], %244 {strides = array<i32>} : memref<1x1x10xf32, #tpu.memory_space<vmem>>, vector<1x1x10xf32>,
    return
  }
  func.func @transform_0(%arg0: i32) -> (i32, i32, i32, i32) {
    %c0_i32 = arith.constant 0 : i32
    %c0_i32_0 = arith.constant 0 : i32
    %c0_i32_1 = arith.constant 0 : i32
    %c0_i32_2 = arith.constant 0 : i32
    return %arg0, %c0_i32, %c0_i32_0, %c0_i32_1 : i32, i32, i32, i32
  }
  func.func @transform_1(%arg0: i32) -> (i32, i32) {
    %c0_i32 = arith.constant 0 : i32
    %c0_i32_0 = arith.constant 0 : i32
    %c0_i32_1 = arith.constant 0 : i32
    return %c0_i32, %c0_i32_0 : i32, i32
  }
  func.func @transform_2(%arg0: i32) -> (i32, i32) {
    %c0_i32 = arith.constant 0 : i32
    %c0_i32_0 = arith.constant 0 : i32
    %c0_i32_1 = arith.constant 0 : i32
    return %c0_i32, %c0_i32_0 : i32, i32
  }
  func.func @transform_3(%arg0: i32) -> (i32, i32) {
    %c0_i32 = arith.constant 0 : i32
    %c0_i32_0 = arith.constant 0 : i32
    %c0_i32_1 = arith.constant 0 : i32
    return %c0_i32, %c0_i32_0 : i32, i32
  }
  func.func @transform_4(%arg0: i32) -> (i32, i32) {
    %c0_i32 = arith.constant 0 : i32
    %c0_i32_0 = arith.constant 0 : i32
    %c0_i32_1 = arith.constant 0 : i32
    return %c0_i32, %c0_i32_0 : i32, i32
  }
  func.func @transform_5(%arg0: i32) -> (i32, i32) {
    %c0_i32 = arith.constant 0 : i32
    %c0_i32_0 = arith.constant 0 : i32
    %c0_i32_1 = arith.constant 0 : i32
    return %c0_i32, %c0_i32_0 : i32, i32
  }
  func.func @transform_6(%arg0: i32) -> (i32, i32) {
    %c0_i32 = arith.constant 0 : i32
    %c0_i32_0 = arith.constant 0 : i32
    %c0_i32_1 = arith.constant 0 : i32
    return %c0_i32, %c0_i32_0 : i32, i32
  }
  func.func @transform_7(%arg0: i32) -> (i32, i32, i32) {
    %c0_i32 = arith.constant 0 : i32
    %c0_i32_0 = arith.constant 0 : i32
    %c0_i32_1 = arith.constant 0 : i32
    return %arg0, %c0_i32, %c0_i32_0 : i32, i32, i32
  }
}

</mosaic_0001>

<llo_original>
// kernel: lenet5_forward.1
$region0: #{lenet5_forward.1}
  #allocation0 [shape = 'u32[]', space=smem, size = 0x4, offset = 0x4, fixed_abs, tag = 'smem constant byte address 0x4 - core index']
  #allocation1 [shape = 'u32[72,128]{1,0:T(1,128)}', space=vmem, size = 0x9000, scoped, tag = 'internal scratch']
  #allocation2 [shape = 'f32[1,20,20,4]{3,2,1,0:T(8,128)}', space=vmem, size = 0x3c000, scoped, tag = 'scratch operand']
  #allocation3 [shape = 'f32[256,100]{1,0:T(8,128)}', space=vmem, size = 0x20000, scoped, tag = 'scratch operand']
  #allocation4 [shape = 'f32[1,12,12,32]{3,2,1,0:T(8,128)}', space=vmem, size = 0x18000, scoped, tag = 'scratch operand']
  #allocation5 [shape = 'f32[64,800]{1,0:T(8,128)}', space=vmem, size = 0x38000, scoped, tag = 'scratch operand']
  #allocation6 [shape = 'f32[1,1024]{1,0:T(1,128)}', space=vmem, size = 0x1000, scoped, tag = 'scratch operand']
  %s0 = inlined_call_operand.vmem [shape: f32[2,16,16,4], index: 0, kind: input, shape index: {}]
  %s1 = inlined_call_operand.vmem [shape: f32[100,32], index: 1, kind: input, shape index: {}]
  %s2 = inlined_call_operand.hbm [shape: f32[1,32], index: 2, kind: input, shape index: {}]
  %s3 = inlined_call_operand.vmem [shape: f32[800,64], index: 3, kind: input, shape index: {}]
  %s4 = inlined_call_operand.hbm [shape: f32[1,64], index: 4, kind: input, shape index: {}]
  %s5 = inlined_call_operand.hbm [shape: f32[1024,512], index: 5, kind: input, shape index: {}]
  %s6 = inlined_call_operand.vmem [shape: f32[512,10], index: 6, kind: input, shape index: {}]
  %s7 = inlined_call_operand.hbm [shape: f32[2,1,10], index: 7, kind: output, shape index: {}]
  %s8 = sld [smem:[#allocation0]]
  $region73: #{lenet5_forward.1} parent=0
    _
  %s10 = ssub.s32 1, %s8
  %s11 = scalar_select 0, %s10, %s8
  $region1: #{lenet5_forward.1} parent=0
    #allocation7 [shape = 'u8[512]{0}', space=vmem, size = 0x400, scoped, tag = 'input window, operand 2, single buffered']
    #allocation8 [shape = 's32[2]{0}', space=sflag, size = 0x8, scoped, tag = 'scoped memory for lenet5_forward.1']
    #allocation9 [shape = 's32[2]{0}', space=sflag, size = 0x8, scoped, tag = 'scoped memory for lenet5_forward.1']
    #allocation10 [shape = 'u8[512]{0}', space=vmem, size = 0x400, scoped, tag = 'input window, operand 4, single buffered']
    #allocation11 [shape = 's32[1]{0}', space=sflag, size = 0x4, scoped, tag = 'scoped memory for lenet5_forward.1']
    #allocation12 [shape = 'u8[2097152]{0}', space=vmem, size = 0x200000, scoped, tag = 'input window, operand 5, single buffered']
    #allocation13 [shape = 'u8[1024]{0}', space=vmem, size = 0x400, scoped, tag = 'output window, operand 0']
    %12 = vsyncpa [#allocation8], 0
    %13 = vsyncpa [#allocation11], 0
    %14 = vsyncpa [#allocation9], 0
    %s15 = scalar_lea.sflag [#allocation9], 1
    %16 = vsyncpa %s15, 0
    loop: start=0, step=1, limit=4
    $region2: #{lenet5_forward.1} parent=1 // loop_pre_header
      _
    $region3: #{lenet5_forward.1} parent=1 // loop_header
      %s18 = sphi 0, %s22
      %p19 = scmp.ge.s32.totalorder %s18, 4
      %s28 = sphi 0, %s30
      %s31 = sphi 0, %s28
      %s32 = sphi 0, %s31
      %s48 = sphi 0, %s32
      %s52 = sphi 0, %s52
      %s54 = sphi 0, %s52
      %s55 = sphi 0, %s54
      %s69 = sphi 0, %s55
      %s73 = sphi 0, %s73
      %s75 = sphi 0, %s73
      %s76 = sphi 0, %s75
      %s90 = sphi 0, %s76
      %s94 = sphi 0, %s94
      %s96 = sphi 0, %s94
      %s97 = sphi 0, %s96
      %s111 = sphi 0, %s97
      %s115 = sphi 0, %s115
      %s117 = sphi 0, %s115
      %s118 = sphi 0, %s117
      %s132 = sphi 0, %s118
      %s136 = sphi 0, %s136
      %s138 = sphi 0, %s136
      %s139 = sphi 0, %s138
      %s153 = sphi 0, %s139
      %s157 = sphi 0, %s157
      %s159 = sphi 0, %s157
      %s160 = sphi 0, %s159
      %s174 = sphi 0, %s160
      %s180 = sphi 0, %s182
      %s183 = sphi 0, %s180
      %s184 = sphi 0, %s183
      %s200 = sphi 0, %s184
    $region4: #{lenet5_forward.1} parent=1 // loop_header_branch
      %21 = sbr.rel (%p19) target = $region8
    $region5: #{lenet5_forward.1} parent=1 // loop_body
      %s23 = ssub.s32 %s18, 1
      %s24 = ssub.s32 %s18, 2
      %s25 = sadd.s32 %s18, 1
      %s26 = ssub.s32 %s18, %s25
      %p27 = scmp.eq.s32.totalorder %s26, 0
      %s29 = sadd.s32 %s28, 1
      %s30 = scalar_select %p27, %s28, %s29
      %p33 = pneg %p27
      %p34 = scmp.eq.s32.totalorder %s18, 1
      %p35 = por %p33, %p34
      %p36 = scmp.ne.s32.totalorder %s28, %s31
      %p37 = scmp.eq.s32.totalorder %s18, 0
      %p38 = por %p36, %p37
      %p39 = scmp.ne.s32.totalorder %s28, %s31
      %p40 = scmp.eq.s32.totalorder %s23, 1
      %p41 = por %p39, %p40
      %p42 = scmp.ne.s32.totalorder %s31, %s32
      %p43 = scmp.eq.s32.totalorder %s23, 0
      %p44 = por %p42, %p43
      %p45 = scmp.ne.s32.totalorder %s31, %s32
      %p46 = scmp.eq.s32.totalorder %s24, 1
      %p47 = por %p45, %p46
      %p49 = scmp.ne.s32.totalorder %s32, %s48
      %p50 = scmp.eq.s32.totalorder %s24, 0
      %p51 = por %p49, %p50
      %s53 = sadd.s32 %s52, 1
      %p56 = scmp.eq.s32.totalorder %s18, 1
      %p57 = scmp.ne.s32.totalorder %s52, %s54
      %p58 = scmp.eq.s32.totalorder %s18, 0
      %p59 = por %p57, %p58
      %p60 = scmp.ne.s32.totalorder %s52, %s54
      %p61 = scmp.eq.s32.totalorder %s23, 1
      %p62 = por %p60, %p61
      %p63 = scmp.ne.s32.totalorder %s54, %s55
      %p64 = scmp.eq.s32.totalorder %s23, 0
      %p65 = por %p63, %p64
      %p66 = scmp.ne.s32.totalorder %s54, %s55
      %p67 = scmp.eq.s32.totalorder %s24, 1
      %p68 = por %p66, %p67
      %p70 = scmp.ne.s32.totalorder %s55, %s69
      %p71 = scmp.eq.s32.totalorder %s24, 0
      %p72 = por %p70, %p71
      %s74 = sadd.s32 %s73, 1
      %p77 = scmp.eq.s32.totalorder %s18, 1
      %p78 = scmp.ne.s32.totalorder %s73, %s75
      %p79 = scmp.eq.s32.totalorder %s18, 0
      %p80 = por %p78, %p79
      %p81 = scmp.ne.s32.totalorder %s73, %s75
      %p82 = scmp.eq.s32.totalorder %s23, 1
      %p83 = por %p81, %p82
      %p84 = scmp.ne.s32.totalorder %s75, %s76
      %p85 = scmp.eq.s32.totalorder %s23, 0
      %p86 = por %p84, %p85
      %p87 = scmp.ne.s32.totalorder %s75, %s76
      %p88 = scmp.eq.s32.totalorder %s24, 1
      %p89 = por %p87, %p88
      %p91 = scmp.ne.s32.totalorder %s76, %s90
      %p92 = scmp.eq.s32.totalorder %s24, 0
      %p93 = por %p91, %p92
      %s95 = sadd.s32 %s94, 1
      %p98 = scmp.eq.s32.totalorder %s18, 1
      %p99 = scmp.ne.s32.totalorder %s94, %s96
      %p100 = scmp.eq.s32.totalorder %s18, 0
      %p101 = por %p99, %p100
      %p102 = scmp.ne.s32.totalorder %s94, %s96
      %p103 = scmp.eq.s32.totalorder %s23, 1
      %p104 = por %p102, %p103
      %p105 = scmp.ne.s32.totalorder %s96, %s97
      %p106 = scmp.eq.s32.totalorder %s23, 0
      %p107 = por %p105, %p106
      %p108 = scmp.ne.s32.totalorder %s96, %s97
      %p109 = scmp.eq.s32.totalorder %s24, 1
      %p110 = por %p108, %p109
      %p112 = scmp.ne.s32.totalorder %s97, %s111
      %p113 = scmp.eq.s32.totalorder %s24, 0
      %p114 = por %p112, %p113
      %s116 = sadd.s32 %s115, 1
      %p119 = scmp.eq.s32.totalorder %s18, 1
      %p120 = scmp.ne.s32.totalorder %s115, %s117
      %p121 = scmp.eq.s32.totalorder %s18, 0
      %p122 = por %p120, %p121
      %p123 = scmp.ne.s32.totalorder %s115, %s117
      %p124 = scmp.eq.s32.totalorder %s23, 1
      %p125 = por %p123, %p124
      %p126 = scmp.ne.s32.totalorder %s117, %s118
      %p127 = scmp.eq.s32.totalorder %s23, 0
      %p128 = por %p126, %p127
      %p129 = scmp.ne.s32.totalorder %s117, %s118
      %p130 = scmp.eq.s32.totalorder %s24, 1
      %p131 = por %p129, %p130
      %p133 = scmp.ne.s32.totalorder %s118, %s132
      %p134 = scmp.eq.s32.totalorder %s24, 0
      %p135 = por %p133, %p134
      %s137 = sadd.s32 %s136, 1
      %p140 = scmp.eq.s32.totalorder %s18, 1
      %p141 = scmp.ne.s32.totalorder %s136, %s138
      %p142 = scmp.eq.s32.totalorder %s18, 0
      %p143 = por %p141, %p142
      %p144 = scmp.ne.s32.totalorder %s136, %s138
      %p145 = scmp.eq.s32.totalorder %s23, 1
      %p146 = por %p144, %p145
      %p147 = scmp.ne.s32.totalorder %s138, %s139
      %p148 = scmp.eq.s32.totalorder %s23, 0
      %p149 = por %p147, %p148
      %p150 = scmp.ne.s32.totalorder %s138, %s139
      %p151 = scmp.eq.s32.totalorder %s24, 1
      %p152 = por %p150, %p151
      %p154 = scmp.ne.s32.totalorder %s139, %s153
      %p155 = scmp.eq.s32.totalorder %s24, 0
      %p156 = por %p154, %p155
      %s158 = sadd.s32 %s157, 1
      %p161 = scmp.eq.s32.totalorder %s18, 1
      %p162 = scmp.ne.s32.totalorder %s157, %s159
      %p163 = scmp.eq.s32.totalorder %s18, 0
      %p164 = por %p162, %p163
      %p165 = scmp.ne.s32.totalorder %s157, %s159
      %p166 = scmp.eq.s32.totalorder %s23, 1
      %p167 = por %p165, %p166
      %p168 = scmp.ne.s32.totalorder %s159, %s160
      %p169 = scmp.eq.s32.totalorder %s23, 0
      %p170 = por %p168, %p169
      %p171 = scmp.ne.s32.totalorder %s159, %s160
      %p172 = scmp.eq.s32.totalorder %s24, 1
      %p173 = por %p171, %p172
      %p175 = scmp.ne.s32.totalorder %s160, %s174
      %p176 = scmp.eq.s32.totalorder %s24, 0
      %p177 = por %p175, %p176
      %s178 = ssub.s32 %s18, %s25
      %p179 = scmp.eq.s32.totalorder %s178, 0
      %s181 = sadd.s32 %s180, 1
      %s182 = scalar_select %p179, %s180, %s181
      %p185 = pneg %p179
      %p186 = scmp.eq.s32.totalorder %s18, 1
      %p187 = por %p185, %p186
      %p188 = scmp.ne.s32.totalorder %s180, %s183
      %p189 = scmp.eq.s32.totalorder %s18, 0
      %p190 = por %p188, %p189
      %p191 = scmp.ne.s32.totalorder %s180, %s183
      %p192 = scmp.eq.s32.totalorder %s23, 1
      %p193 = por %p191, %p192
      %p194 = scmp.ne.s32.totalorder %s183, %s184
      %p195 = scmp.eq.s32.totalorder %s23, 0
      %p196 = por %p194, %p195
      %p197 = scmp.ne.s32.totalorder %s183, %s184
      %p198 = scmp.eq.s32.totalorder %s24, 1
      %p199 = por %p197, %p198
      %p201 = scmp.ne.s32.totalorder %s184, %s200
      %p202 = scmp.eq.s32.totalorder %s24, 0
      %p203 = por %p201, %p202
      %p204 = scmp.le.s32.totalorder 1, %s18
      %p205 = scmp.lt.s32.totalorder %s18, 3
      %p206 = pnand %p204, %p205
      %p207 = pneg %p206
      // Predicated region
      $region9: #{lenet5_forward.1} parent=5 // pred_check
        _
      $region10: #{lenet5_forward.1} parent=5 // pred_check_branch
        %209 = sbr.rel (%p206) target = $region12
      $region11: #{lenet5_forward.1} parent=5 // pred_region
        %s210 = ssub.s32 %s18, 1
        // Predicated region
        $region13: #{lenet5_forward.1} parent=11 // pred_check
          %p211 = pneg %p65
        $region14: #{lenet5_forward.1} parent=11 // pred_check_branch
          %213 = sbr.rel (%p211) target = $region16
        $region15: #{lenet5_forward.1} parent=11 // pred_region
          _
        $region16: #{lenet5_forward.1} parent=11 // pred_fallthru
          _
        // Predicated region
        $region17: #{lenet5_forward.1} parent=11 // pred_check
          %p214 = pneg %p86
        $region18: #{lenet5_forward.1} parent=11 // pred_check_branch
          %216 = sbr.rel (%p214) target = $region20
        $region19: #{lenet5_forward.1} parent=11 // pred_region
          %218 = vsyncadd [#allocation8], 0
          %s220 = sshll.u32 %s2, 4
          %s221 = int_to_ptr.hbm [resolvable:$true] %s220
          %s222 = sshll.u32 [#allocation7], 4
          %s223 = int_to_ptr.vmem [resolvable:$true] %s222
          %225 = dma.hbm_to_vmem [thread:$0]  %s221, 16, %s223, [#allocation8]
        $region20: #{lenet5_forward.1} parent=11 // pred_fallthru
          _
        // Predicated region
        $region21: #{lenet5_forward.1} parent=11 // pred_check
          %p226 = pneg %p107
        $region22: #{lenet5_forward.1} parent=11 // pred_check_branch
          %228 = sbr.rel (%p226) target = $region24
        $region23: #{lenet5_forward.1} parent=11 // pred_region
          _
        $region24: #{lenet5_forward.1} parent=11 // pred_fallthru
          _
        // Predicated region
        $region25: #{lenet5_forward.1} parent=11 // pred_check
          %p229 = pneg %p128
        $region26: #{lenet5_forward.1} parent=11 // pred_check_branch
          %231 = sbr.rel (%p229) target = $region28
        $region27: #{lenet5_forward.1} parent=11 // pred_region
          %233 = vsyncadd [#allocation11], 0
          %s235 = sshll.u32 %s4, 4
          %s236 = int_to_ptr.hbm [resolvable:$true] %s235
          %s237 = sshll.u32 [#allocation10], 4
          %s238 = int_to_ptr.vmem [resolvable:$true] %s237
          %240 = dma.hbm_to_vmem [thread:$0]  %s236, 16, %s238, [#allocation11]
        $region28: #{lenet5_forward.1} parent=11 // pred_fallthru
          _
        // Predicated region
        $region29: #{lenet5_forward.1} parent=11 // pred_check
          %p241 = pneg %p149
        $region30: #{lenet5_forward.1} parent=11 // pred_check_branch
          %243 = sbr.rel (%p241) target = $region32
        $region31: #{lenet5_forward.1} parent=11 // pred_region
          %245 = vsyncadd [#allocation11], 0
          %s246 = sshll.u32 %s5, 4
          %s247 = int_to_ptr.hbm [resolvable:$true] %s246
          %s248 = sshll.u32 [#allocation12], 4
          %s249 = int_to_ptr.vmem [resolvable:$true] %s248
          %254 = dma.hbm_to_vmem [thread:$0]  %s247, 65536, %s249, [#allocation11], 512, 512, 32
        $region32: #{lenet5_forward.1} parent=11 // pred_fallthru
          _
        // Predicated region
        $region33: #{lenet5_forward.1} parent=11 // pred_check
          %p255 = pneg %p170
        $region34: #{lenet5_forward.1} parent=11 // pred_check_branch
          %257 = sbr.rel (%p255) target = $region36
        $region35: #{lenet5_forward.1} parent=11 // pred_region
          _
        $region36: #{lenet5_forward.1} parent=11 // pred_fallthru
          _
      $region12: #{lenet5_forward.1} parent=5 // pred_fallthru
        _
      %p258 = scmp.lt.s32.totalorder %s18, 2
      // Predicated region
      $region37: #{lenet5_forward.1} parent=5 // pred_check
        %p259 = pneg %p258
      $region38: #{lenet5_forward.1} parent=5 // pred_check_branch
        %261 = sbr.rel (%p259) target = $region40
      $region39: #{lenet5_forward.1} parent=5 // pred_region
        // Predicated region
        $region41: #{lenet5_forward.1} parent=39 // pred_check
          %p262 = pneg %p38
        $region42: #{lenet5_forward.1} parent=39 // pred_check_branch
          %264 = sbr.rel (%p262) target = $region44
        $region43: #{lenet5_forward.1} parent=39 // pred_region
          %p265 = scmp.lt.s32.totalorder %s18, 1
          %s266 = scalar_select %p265, %s18, 1
          %s267 = smul.addr %s266, 32
          %s268 = smul.addr %s267, 8
          %s269 = scalar_lea.vmem %s0, %s268
        $region44: #{lenet5_forward.1} parent=39 // pred_fallthru
          _
      $region40: #{lenet5_forward.1} parent=5 // pred_fallthru
        _
      %p270 = scmp.le.s32.totalorder 1, %s18
      %p271 = scmp.lt.s32.totalorder %s18, 3
      %p272 = pnand %p270, %p271
      %p273 = pneg %p272
      // Predicated region
      $region45: #{lenet5_forward.1} parent=5 // pred_check
        _
      $region46: #{lenet5_forward.1} parent=5 // pred_check_branch
        %275 = sbr.rel (%p272) target = $region48
      $region47: #{lenet5_forward.1} parent=5 // pred_region
        %s276 = ssub.s32 %s18, 1
        // Predicated region
        $region49: #{lenet5_forward.1} parent=47 // pred_check
          %p277 = pneg %p86
        $region50: #{lenet5_forward.1} parent=47 // pred_check_branch
          %279 = sbr.rel (%p277) target = $region52
        $region51: #{lenet5_forward.1} parent=47 // pred_region
          %281 = dma.done [#allocation8], 16
        $region52: #{lenet5_forward.1} parent=47 // pred_fallthru
          _
        // Predicated region
        $region53: #{lenet5_forward.1} parent=47 // pred_check
          %p282 = pneg %p128
        $region54: #{lenet5_forward.1} parent=47 // pred_check_branch
          %284 = sbr.rel (%p282) target = $region56
        $region55: #{lenet5_forward.1} parent=47 // pred_region
          %286 = dma.done [#allocation11], 16
        $region56: #{lenet5_forward.1} parent=47 // pred_fallthru
          _
        // Predicated region
        $region57: #{lenet5_forward.1} parent=47 // pred_check
          %p287 = pneg %p149
        $region58: #{lenet5_forward.1} parent=47 // pred_check_branch
          %289 = sbr.rel (%p287) target = $region60
        $region59: #{lenet5_forward.1} parent=47 // pred_region
          %291 = dma.done [#allocation11], 65536
        $region60: #{lenet5_forward.1} parent=47 // pred_fallthru
          _
        %p292 = scmp.lt.s32.totalorder %s23, 1
        %s293 = scalar_select %p292, %s23, 1
        %s294 = smul.addr %s293, 32
        %s295 = smul.addr %s294, 8
        %s296 = scalar_lea.vmem %s0, %s295
        %p297 = pneg %p44
        %p298 = pneg %p41
        %p299 = pneg %p65
        %p300 = pneg %p62
        %p301 = pneg %p86
        %p302 = pneg %p83
        %p303 = pneg %p107
        %p304 = pneg %p104
        %p305 = pneg %p128
        %p306 = pneg %p125
        %p307 = pneg %p149
        %p308 = pneg %p146
        %p309 = pneg %p170
        %p310 = pneg %p167
        %p311 = pneg %p196
        %p312 = pneg %p193
        %s313 = sand.u32 %s183, 1
        %s314 = scalar_lea.sflag [#allocation9], %s313
        %s315 = sand.u32 %s183, 1
        %s316 = scalar_lea.vmem [#allocation13], %s315
        %p317 = scmp.lt.s32.totalorder %s23, 1
        %s318 = scalar_select %p317, %s23, 1
        %s319 = smul.addr %s318, 32
        %s320 = smul.addr %s319, 8
        %s321 = scalar_lea.vmem %s0, %s320
        %vm322 = vcmask 31744
        %323 = vst.msk [vmem:[#allocation2] sm:$0xff] %vm322, 0.0
        %324 = vst.msk [vmem:[#allocation2 + $0x8] sm:$0xff] %vm322, 0.0
        %vm325 = vcmask 27648
        %326 = vst.msk [vmem:[#allocation2 + $0x10] sm:$0xf] %vm325, 0.0
        %327 = vst.msk [vmem:[#allocation2 + $0x18] sm:$0xff] %vm322, 0.0
        %328 = vst.msk [vmem:[#allocation2 + $0x20] sm:$0xff] %vm322, 0.0
        %329 = vst.msk [vmem:[#allocation2 + $0x28] sm:$0xf] %vm325, 0.0
        %330 = vst.msk [vmem:[#allocation2 + $0x30] sm:$0xff] %vm322, 0.0
        %331 = vst.msk [vmem:[#allocation2 + $0x38] sm:$0xff] %vm322, 0.0
        %332 = vst.msk [vmem:[#allocation2 + $0x40] sm:$0xf] %vm325, 0.0
        %333 = vst.msk [vmem:[#allocation2 + $0x48] sm:$0xff] %vm322, 0.0
        %334 = vst.msk [vmem:[#allocation2 + $0x50] sm:$0xff] %vm322, 0.0
        %335 = vst.msk [vmem:[#allocation2 + $0x58] sm:$0xf] %vm325, 0.0
        %336 = vst.msk [vmem:[#allocation2 + $0x60] sm:$0xff] %vm322, 0.0
        %337 = vst.msk [vmem:[#allocation2 + $0x68] sm:$0xff] %vm322, 0.0
        %338 = vst.msk [vmem:[#allocation2 + $0x70] sm:$0xf] %vm325, 0.0
        %339 = vst.msk [vmem:[#allocation2 + $0x78] sm:$0xff] %vm322, 0.0
        %340 = vst.msk [vmem:[#allocation2 + $0x80] sm:$0xff] %vm322, 0.0
        %341 = vst.msk [vmem:[#allocation2 + $0x88] sm:$0xf] %vm325, 0.0
        %342 = vst.msk [vmem:[#allocation2 + $0x90] sm:$0xff] %vm322, 0.0
        %343 = vst.msk [vmem:[#allocation2 + $0x98] sm:$0xff] %vm322, 0.0
        %344 = vst.msk [vmem:[#allocation2 + $0xa0] sm:$0xf] %vm325, 0.0
        %345 = vst.msk [vmem:[#allocation2 + $0xa8] sm:$0xff] %vm322, 0.0
        %346 = vst.msk [vmem:[#allocation2 + $0xb0] sm:$0xff] %vm322, 0.0
        %347 = vst.msk [vmem:[#allocation2 + $0xb8] sm:$0xf] %vm325, 0.0
        %348 = vst.msk [vmem:[#allocation2 + $0xc0] sm:$0xff] %vm322, 0.0
        %349 = vst.msk [vmem:[#allocation2 + $0xc8] sm:$0xff] %vm322, 0.0
        %350 = vst.msk [vmem:[#allocation2 + $0xd0] sm:$0xf] %vm325, 0.0
        %351 = vst.msk [vmem:[#allocation2 + $0xd8] sm:$0xff] %vm322, 0.0
        %352 = vst.msk [vmem:[#allocation2 + $0xe0] sm:$0xff] %vm322, 0.0
        %353 = vst.msk [vmem:[#allocation2 + $0xe8] sm:$0xf] %vm325, 0.0
        %354 = vst.msk [vmem:[#allocation2 + $0xf0] sm:$0xff] %vm322, 0.0
        %355 = vst.msk [vmem:[#allocation2 + $0xf8] sm:$0xff] %vm322, 0.0
        %356 = vst.msk [vmem:[#allocation2 + $0x100] sm:$0xf] %vm325, 0.0
        %357 = vst.msk [vmem:[#allocation2 + $0x108] sm:$0xff] %vm322, 0.0
        %358 = vst.msk [vmem:[#allocation2 + $0x110] sm:$0xff] %vm322, 0.0
        %359 = vst.msk [vmem:[#allocation2 + $0x118] sm:$0xf] %vm325, 0.0
        %360 = vst.msk [vmem:[#allocation2 + $0x120] sm:$0xff] %vm322, 0.0
        %361 = vst.msk [vmem:[#allocation2 + $0x128] sm:$0xff] %vm322, 0.0
        %362 = vst.msk [vmem:[#allocation2 + $0x130] sm:$0xf] %vm325, 0.0
        %363 = vst.msk [vmem:[#allocation2 + $0x138] sm:$0xff] %vm322, 0.0
        %364 = vst.msk [vmem:[#allocation2 + $0x140] sm:$0xff] %vm322, 0.0
        %365 = vst.msk [vmem:[#allocation2 + $0x148] sm:$0xf] %vm325, 0.0
        %366 = vst.msk [vmem:[#allocation2 + $0x150] sm:$0xff] %vm322, 0.0
        %367 = vst.msk [vmem:[#allocation2 + $0x158] sm:$0xff] %vm322, 0.0
        %368 = vst.msk [vmem:[#allocation2 + $0x160] sm:$0xf] %vm325, 0.0
        %369 = vst.msk [vmem:[#allocation2 + $0x168] sm:$0xff] %vm322, 0.0
        %370 = vst.msk [vmem:[#allocation2 + $0x170] sm:$0xff] %vm322, 0.0
        %371 = vst.msk [vmem:[#allocation2 + $0x178] sm:$0xf] %vm325, 0.0
        %372 = vst.msk [vmem:[#allocation2 + $0x180] sm:$0xff] %vm322, 0.0
        %373 = vst.msk [vmem:[#allocation2 + $0x188] sm:$0xff] %vm322, 0.0
        %374 = vst.msk [vmem:[#allocation2 + $0x190] sm:$0xf] %vm325, 0.0
        %375 = vst.msk [vmem:[#allocation2 + $0x198] sm:$0xff] %vm322, 0.0
        %376 = vst.msk [vmem:[#allocation2 + $0x1a0] sm:$0xff] %vm322, 0.0
        %377 = vst.msk [vmem:[#allocation2 + $0x1a8] sm:$0xf] %vm325, 0.0
        %378 = vst.msk [vmem:[#allocation2 + $0x1b0] sm:$0xff] %vm322, 0.0
        %379 = vst.msk [vmem:[#allocation2 + $0x1b8] sm:$0xff] %vm322, 0.0
        %380 = vst.msk [vmem:[#allocation2 + $0x1c0] sm:$0xf] %vm325, 0.0
        %381 = vst.msk [vmem:[#allocation2 + $0x1c8] sm:$0xff] %vm322, 0.0
        %382 = vst.msk [vmem:[#allocation2 + $0x1d0] sm:$0xff] %vm322, 0.0
        %383 = vst.msk [vmem:[#allocation2 + $0x1d8] sm:$0xf] %vm325, 0.0
        %v384 = vld [vmem:[%s321] sm:$0xff]
        %v385 = vld [vmem:[%s321 + $0x8] sm:$0xff]
        %v386 = vld [vmem:[%s321 + $0x10] sm:$0xff]
        %v387 = vld [vmem:[%s321 + $0x18] sm:$0xff]
        %v388 = vld [vmem:[%s321 + $0x20] sm:$0xff]
        %v389 = vld [vmem:[%s321 + $0x28] sm:$0xff]
        %v390 = vld [vmem:[%s321 + $0x30] sm:$0xff]
        %v391 = vld [vmem:[%s321 + $0x38] sm:$0xff]
        %v392 = vld [vmem:[%s321 + $0x40] sm:$0xff]
        %v393 = vld [vmem:[%s321 + $0x48] sm:$0xff]
        %v394 = vld [vmem:[%s321 + $0x50] sm:$0xff]
        %v395 = vld [vmem:[%s321 + $0x58] sm:$0xff]
        %v396 = vld [vmem:[%s321 + $0x60] sm:$0xff]
        %v397 = vld [vmem:[%s321 + $0x68] sm:$0xff]
        %v398 = vld [vmem:[%s321 + $0x70] sm:$0xff]
        %v399 = vld [vmem:[%s321 + $0x78] sm:$0xff]
        %v400 = vld [vmem:[%s321 + $0x80] sm:$0xff]
        %v401 = vld [vmem:[%s321 + $0x88] sm:$0xff]
        %v402 = vld [vmem:[%s321 + $0x90] sm:$0xff]
        %v403 = vld [vmem:[%s321 + $0x98] sm:$0xff]
        %v404 = vld [vmem:[%s321 + $0xa0] sm:$0xff]
        %v405 = vld [vmem:[%s321 + $0xa8] sm:$0xff]
        %v406 = vld [vmem:[%s321 + $0xb0] sm:$0xff]
        %v407 = vld [vmem:[%s321 + $0xb8] sm:$0xff]
        %v408 = vld [vmem:[%s321 + $0xc0] sm:$0xff]
        %v409 = vld [vmem:[%s321 + $0xc8] sm:$0xff]
        %v410 = vld [vmem:[%s321 + $0xd0] sm:$0xff]
        %v411 = vld [vmem:[%s321 + $0xd8] sm:$0xff]
        %v412 = vld [vmem:[%s321 + $0xe0] sm:$0xff]
        %v413 = vld [vmem:[%s321 + $0xe8] sm:$0xff]
        %v414 = vld [vmem:[%s321 + $0xf0] sm:$0xff]
        %v415 = vld [vmem:[%s321 + $0xf8] sm:$0xff]
        %s416 = scalar_lea.vmem [#allocation2], 48
        %417 = vst.msk [vmem:[%s416 + $0x2] sm:$0xff] %vm322, %v384
        %418 = vst.msk [vmem:[%s416 + $0xa] sm:$0xff] %vm322, %v385
        %419 = vst.msk [vmem:[%s416 + $0x1a] sm:$0xff] %vm322, %v386
        %420 = vst.msk [vmem:[%s416 + $0x22] sm:$0xff] %vm322, %v387
        %421 = vst.msk [vmem:[%s416 + $0x32] sm:$0xff] %vm322, %v388
        %422 = vst.msk [vmem:[%s416 + $0x3a] sm:$0xff] %vm322, %v389
        %423 = vst.msk [vmem:[%s416 + $0x4a] sm:$0xff] %vm322, %v390
        %424 = vst.msk [vmem:[%s416 + $0x52] sm:$0xff] %vm322, %v391
        %425 = vst.msk [vmem:[%s416 + $0x62] sm:$0xff] %vm322, %v392
        %426 = vst.msk [vmem:[%s416 + $0x6a] sm:$0xff] %vm322, %v393
        %427 = vst.msk [vmem:[%s416 + $0x7a] sm:$0xff] %vm322, %v394
        %428 = vst.msk [vmem:[%s416 + $0x82] sm:$0xff] %vm322, %v395
        %429 = vst.msk [vmem:[%s416 + $0x92] sm:$0xff] %vm322, %v396
        %430 = vst.msk [vmem:[%s416 + $0x9a] sm:$0xff] %vm322, %v397
        %431 = vst.msk [vmem:[%s416 + $0xaa] sm:$0xff] %vm322, %v398
        %432 = vst.msk [vmem:[%s416 + $0xb2] sm:$0xff] %vm322, %v399
        %433 = vst.msk [vmem:[%s416 + $0xc2] sm:$0xff] %vm322, %v400
        %434 = vst.msk [vmem:[%s416 + $0xca] sm:$0xff] %vm322, %v401
        %435 = vst.msk [vmem:[%s416 + $0xda] sm:$0xff] %vm322, %v402
        %436 = vst.msk [vmem:[%s416 + $0xe2] sm:$0xff] %vm322, %v403
        %437 = vst.msk [vmem:[%s416 + $0xf2] sm:$0xff] %vm322, %v404
        %438 = vst.msk [vmem:[%s416 + $0xfa] sm:$0xff] %vm322, %v405
        %439 = vst.msk [vmem:[%s416 + $0x10a] sm:$0xff] %vm322, %v406
        %440 = vst.msk [vmem:[%s416 + $0x112] sm:$0xff] %vm322, %v407
        %441 = vst.msk [vmem:[%s416 + $0x122] sm:$0xff] %vm322, %v408
        %442 = vst.msk [vmem:[%s416 + $0x12a] sm:$0xff] %vm322, %v409
        %443 = vst.msk [vmem:[%s416 + $0x13a] sm:$0xff] %vm322, %v410
        %444 = vst.msk [vmem:[%s416 + $0x142] sm:$0xff] %vm322, %v411
        %445 = vst.msk [vmem:[%s416 + $0x152] sm:$0xff] %vm322, %v412
        %446 = vst.msk [vmem:[%s416 + $0x15a] sm:$0xff] %vm322, %v413
        %447 = vst.msk [vmem:[%s416 + $0x16a] sm:$0xff] %vm322, %v414
        %448 = vst.msk [vmem:[%s416 + $0x172] sm:$0xff] %vm322, %v415
        %v449 = vld [vmem:[#allocation2] sm:$0xff]
        %v450 = vld [vmem:[#allocation2 + $0x8] sm:$0xff]
        %v451 = vld [vmem:[#allocation2 + $0x18] sm:$0xff]
        %v452 = vld [vmem:[#allocation2 + $0x20] sm:$0xff]
        %v453 = vld [vmem:[#allocation2 + $0x30] sm:$0xff]
        %v454 = vld [vmem:[#allocation2 + $0x38] sm:$0xff]
        %v455 = vld [vmem:[#allocation2 + $0x48] sm:$0xff]
        %v456 = vld [vmem:[#allocation2 + $0x50] sm:$0xff]
        %v457 = vld [vmem:[#allocation2 + $0x60] sm:$0xff]
        %v458 = vld [vmem:[#allocation2 + $0x68] sm:$0xff]
        %v459 = vld [vmem:[#allocation2 + $0x78] sm:$0xff]
        %v460 = vld [vmem:[#allocation2 + $0x80] sm:$0xff]
        %v461 = vld [vmem:[#allocation2 + $0x90] sm:$0xff]
        %v462 = vld [vmem:[#allocation2 + $0x98] sm:$0xff]
        %v463 = vld [vmem:[#allocation2 + $0xa8] sm:$0xff]
        %v464 = vld [vmem:[#allocation2 + $0xb0] sm:$0xff]
        %v465 = vld [vmem:[#allocation2 + $0xc0] sm:$0xff]
        %v466 = vld [vmem:[#allocation2 + $0xc8] sm:$0xff]
        %v467 = vld [vmem:[#allocation2 + $0xd8] sm:$0xff]
        %v468 = vld [vmem:[#allocation2 + $0xe0] sm:$0xff]
        %v469 = vld [vmem:[#allocation2 + $0xf0] sm:$0xff]
        %v470 = vld [vmem:[#allocation2 + $0xf8] sm:$0xff]
        %v471 = vld [vmem:[#allocation2 + $0x108] sm:$0xff]
        %v472 = vld [vmem:[#allocation2 + $0x110] sm:$0xff]
        %v473 = vld [vmem:[#allocation2 + $0x120] sm:$0xff]
        %v474 = vld [vmem:[#allocation2 + $0x128] sm:$0xff]
        %v475 = vld [vmem:[#allocation2 + $0x138] sm:$0xff]
        %v476 = vld [vmem:[#allocation2 + $0x140] sm:$0xff]
        %v477 = vld [vmem:[#allocation2 + $0x150] sm:$0xff]
        %v478 = vld [vmem:[#allocation2 + $0x158] sm:$0xff]
        %v479 = vld [vmem:[#allocation2 + $0x168] sm:$0xff]
        %v480 = vld [vmem:[#allocation2 + $0x170] sm:$0xff]
        %481 = vst.msk [vmem:[#allocation3] sm:$0xff] %vm322, %v449
        %482 = vst.msk [vmem:[#allocation3 + $0x8] sm:$0xff] %vm322, %v450
        %483 = vst.msk [vmem:[#allocation3 + $0x10] sm:$0xff] %vm322, %v451
        %484 = vst.msk [vmem:[#allocation3 + $0x18] sm:$0xff] %vm322, %v452
        %485 = vst.msk [vmem:[#allocation3 + $0x20] sm:$0xff] %vm322, %v453
        %486 = vst.msk [vmem:[#allocation3 + $0x28] sm:$0xff] %vm322, %v454
        %487 = vst.msk [vmem:[#allocation3 + $0x30] sm:$0xff] %vm322, %v455
        %488 = vst.msk [vmem:[#allocation3 + $0x38] sm:$0xff] %vm322, %v456
        %489 = vst.msk [vmem:[#allocation3 + $0x40] sm:$0xff] %vm322, %v457
        %490 = vst.msk [vmem:[#allocation3 + $0x48] sm:$0xff] %vm322, %v458
        %491 = vst.msk [vmem:[#allocation3 + $0x50] sm:$0xff] %vm322, %v459
        %492 = vst.msk [vmem:[#allocation3 + $0x58] sm:$0xff] %vm322, %v460
        %493 = vst.msk [vmem:[#allocation3 + $0x60] sm:$0xff] %vm322, %v461
        %494 = vst.msk [vmem:[#allocation3 + $0x68] sm:$0xff] %vm322, %v462
        %495 = vst.msk [vmem:[#allocation3 + $0x70] sm:$0xff] %vm322, %v463
        %496 = vst.msk [vmem:[#allocation3 + $0x78] sm:$0xff] %vm322, %v464
        %497 = vst.msk [vmem:[#allocation3 + $0x80] sm:$0xff] %vm322, %v465
        %498 = vst.msk [vmem:[#allocation3 + $0x88] sm:$0xff] %vm322, %v466
        %499 = vst.msk [vmem:[#allocation3 + $0x90] sm:$0xff] %vm322, %v467
        %500 = vst.msk [vmem:[#allocation3 + $0x98] sm:$0xff] %vm322, %v468
        %501 = vst.msk [vmem:[#allocation3 + $0xa0] sm:$0xff] %vm322, %v469
        %502 = vst.msk [vmem:[#allocation3 + $0xa8] sm:$0xff] %vm322, %v470
        %503 = vst.msk [vmem:[#allocation3 + $0xb0] sm:$0xff] %vm322, %v471
        %504 = vst.msk [vmem:[#allocation3 + $0xb8] sm:$0xff] %vm322, %v472
        %505 = vst.msk [vmem:[#allocation3 + $0xc0] sm:$0xff] %vm322, %v473
        %506 = vst.msk [vmem:[#allocation3 + $0xc8] sm:$0xff] %vm322, %v474
        %507 = vst.msk [vmem:[#allocation3 + $0xd0] sm:$0xff] %vm322, %v475
        %508 = vst.msk [vmem:[#allocation3 + $0xd8] sm:$0xff] %vm322, %v476
        %509 = vst.msk [vmem:[#allocation3 + $0xe0] sm:$0xff] %vm322, %v477
        %510 = vst.msk [vmem:[#allocation3 + $0xe8] sm:$0xff] %vm322, %v478
        %511 = vst.msk [vmem:[#allocation3 + $0xf0] sm:$0xff] %vm322, %v479
        %512 = vst.msk [vmem:[#allocation3 + $0xf8] sm:$0xff] %vm322, %v480
        %v513 = vld [vmem:[#allocation2 + $0x1] sm:$0xff]
        %v514 = vld [vmem:[#allocation2 + $0x9] sm:$0xff]
        %v515 = vld [vmem:[#allocation2 + $0x19] sm:$0xff]
        %v516 = vld [vmem:[#allocation2 + $0x21] sm:$0xff]
        %v517 = vld [vmem:[#allocation2 + $0x31] sm:$0xff]
        %v518 = vld [vmem:[#allocation2 + $0x39] sm:$0xff]
        %v519 = vld [vmem:[#allocation2 + $0x49] sm:$0xff]
        %v520 = vld [vmem:[#allocation2 + $0x51] sm:$0xff]
        %v521 = vld [vmem:[#allocation2 + $0x61] sm:$0xff]
        %v522 = vld [vmem:[#allocation2 + $0x69] sm:$0xff]
        %v523 = vld [vmem:[#allocation2 + $0x79] sm:$0xff]
        %v524 = vld [vmem:[#allocation2 + $0x81] sm:$0xff]
        %v525 = vld [vmem:[#allocation2 + $0x91] sm:$0xff]
        %v526 = vld [vmem:[#allocation2 + $0x99] sm:$0xff]
        %v527 = vld [vmem:[#allocation2 + $0xa9] sm:$0xff]
        %v528 = vld [vmem:[#allocation2 + $0xb1] sm:$0xff]
        %v529 = vld [vmem:[#allocation2 + $0xc1] sm:$0xff]
        %v530 = vld [vmem:[#allocation2 + $0xc9] sm:$0xff]
        %v531 = vld [vmem:[#allocation2 + $0xd9] sm:$0xff]
        %v532 = vld [vmem:[#allocation2 + $0xe1] sm:$0xff]
        %v533 = vld [vmem:[#allocation2 + $0xf1] sm:$0xff]
        %v534 = vld [vmem:[#allocation2 + $0xf9] sm:$0xff]
        %v535 = vld [vmem:[#allocation2 + $0x109] sm:$0xff]
        %v536 = vld [vmem:[#allocation2 + $0x111] sm:$0xff]
        %v537 = vld [vmem:[#allocation2 + $0x121] sm:$0xff]
        %v538 = vld [vmem:[#allocation2 + $0x129] sm:$0xff]
        %v539 = vld [vmem:[#allocation2 + $0x139] sm:$0xff]
        %v540 = vld [vmem:[#allocation2 + $0x141] sm:$0xff]
        %v541 = vld [vmem:[#allocation2 + $0x151] sm:$0xff]
        %v542 = vld [vmem:[#allocation2 + $0x159] sm:$0xff]
        %v543 = vld [vmem:[#allocation2 + $0x169] sm:$0xff]
        %v544 = vld [vmem:[#allocation2 + $0x171] sm:$0xff]
        %577 = vrot.lane.b32.xlu0 %v513, 4
        %v578 = vpop.permute.xlu0 %577
        %579 = vrot.lane.b32.xlu0 %v514, 4
        %v580 = vpop.permute.xlu0 %579
        %581 = vrot.lane.b32.xlu0 %v515, 4
        %v582 = vpop.permute.xlu0 %581
        %583 = vrot.lane.b32.xlu0 %v516, 4
        %v584 = vpop.permute.xlu0 %583
        %585 = vrot.lane.b32.xlu0 %v517, 4
        %v586 = vpop.permute.xlu0 %585
        %587 = vrot.lane.b32.xlu0 %v518, 4
        %v588 = vpop.permute.xlu0 %587
        %589 = vrot.lane.b32.xlu0 %v519, 4
        %v590 = vpop.permute.xlu0 %589
        %591 = vrot.lane.b32.xlu0 %v520, 4
        %v592 = vpop.permute.xlu0 %591
        %593 = vrot.lane.b32.xlu0 %v521, 4
        %v594 = vpop.permute.xlu0 %593
        %595 = vrot.lane.b32.xlu0 %v522, 4
        %v596 = vpop.permute.xlu0 %595
        %597 = vrot.lane.b32.xlu0 %v523, 4
        %v598 = vpop.permute.xlu0 %597
        %599 = vrot.lane.b32.xlu0 %v524, 4
        %v600 = vpop.permute.xlu0 %599
        %601 = vrot.lane.b32.xlu0 %v525, 4
        %v602 = vpop.permute.xlu0 %601
        %603 = vrot.lane.b32.xlu0 %v526, 4
        %v604 = vpop.permute.xlu0 %603
        %605 = vrot.lane.b32.xlu0 %v527, 4
        %v606 = vpop.permute.xlu0 %605
        %607 = vrot.lane.b32.xlu0 %v528, 4
        %v608 = vpop.permute.xlu0 %607
        %609 = vrot.lane.b32.xlu0 %v529, 4
        %v610 = vpop.permute.xlu0 %609
        %611 = vrot.lane.b32.xlu0 %v530, 4
        %v612 = vpop.permute.xlu0 %611
        %613 = vrot.lane.b32.xlu0 %v531, 4
        %v614 = vpop.permute.xlu0 %613
        %615 = vrot.lane.b32.xlu0 %v532, 4
        %v616 = vpop.permute.xlu0 %615
        %617 = vrot.lane.b32.xlu0 %v533, 4
        %v618 = vpop.permute.xlu0 %617
        %619 = vrot.lane.b32.xlu0 %v534, 4
        %v620 = vpop.permute.xlu0 %619
        %621 = vrot.lane.b32.xlu0 %v535, 4
        %v622 = vpop.permute.xlu0 %621
        %623 = vrot.lane.b32.xlu0 %v536, 4
        %v624 = vpop.permute.xlu0 %623
        %625 = vrot.lane.b32.xlu0 %v537, 4
        %v626 = vpop.permute.xlu0 %625
        %627 = vrot.lane.b32.xlu0 %v538, 4
        %v628 = vpop.permute.xlu0 %627
        %629 = vrot.lane.b32.xlu0 %v539, 4
        %v630 = vpop.permute.xlu0 %629
        %631 = vrot.lane.b32.xlu0 %v540, 4
        %v632 = vpop.permute.xlu0 %631
        %633 = vrot.lane.b32.xlu0 %v541, 4
        %v634 = vpop.permute.xlu0 %633
        %635 = vrot.lane.b32.xlu0 %v542, 4
        %v636 = vpop.permute.xlu0 %635
        %637 = vrot.lane.b32.xlu0 %v543, 4
        %v638 = vpop.permute.xlu0 %637
        %639 = vrot.lane.b32.xlu0 %v544, 4
        %v640 = vpop.permute.xlu0 %639
        %vm673 = vcmask 64544
        %674 = vst.msk [vmem:[#allocation3] sm:$0xff] %vm673, %v578
        %675 = vst.msk [vmem:[#allocation3 + $0x8] sm:$0xff] %vm673, %v580
        %676 = vst.msk [vmem:[#allocation3 + $0x10] sm:$0xff] %vm673, %v582
        %677 = vst.msk [vmem:[#allocation3 + $0x18] sm:$0xff] %vm673, %v584
        %678 = vst.msk [vmem:[#allocation3 + $0x20] sm:$0xff] %vm673, %v586
        %679 = vst.msk [vmem:[#allocation3 + $0x28] sm:$0xff] %vm673, %v588
        %680 = vst.msk [vmem:[#allocation3 + $0x30] sm:$0xff] %vm673, %v590
        %681 = vst.msk [vmem:[#allocation3 + $0x38] sm:$0xff] %vm673, %v592
        %682 = vst.msk [vmem:[#allocation3 + $0x40] sm:$0xff] %vm673, %v594
        %683 = vst.msk [vmem:[#allocation3 + $0x48] sm:$0xff] %vm673, %v596
        %684 = vst.msk [vmem:[#allocation3 + $0x50] sm:$0xff] %vm673, %v598
        %685 = vst.msk [vmem:[#allocation3 + $0x58] sm:$0xff] %vm673, %v600
        %686 = vst.msk [vmem:[#allocation3 + $0x60] sm:$0xff] %vm673, %v602
        %687 = vst.msk [vmem:[#allocation3 + $0x68] sm:$0xff] %vm673, %v604
        %688 = vst.msk [vmem:[#allocation3 + $0x70] sm:$0xff] %vm673, %v606
        %689 = vst.msk [vmem:[#allocation3 + $0x78] sm:$0xff] %vm673, %v608
        %690 = vst.msk [vmem:[#allocation3 + $0x80] sm:$0xff] %vm673, %v610
        %691 = vst.msk [vmem:[#allocation3 + $0x88] sm:$0xff] %vm673, %v612
        %692 = vst.msk [vmem:[#allocation3 + $0x90] sm:$0xff] %vm673, %v614
        %693 = vst.msk [vmem:[#allocation3 + $0x98] sm:$0xff] %vm673, %v616
        %694 = vst.msk [vmem:[#allocation3 + $0xa0] sm:$0xff] %vm673, %v618
        %695 = vst.msk [vmem:[#allocation3 + $0xa8] sm:$0xff] %vm673, %v620
        %696 = vst.msk [vmem:[#allocation3 + $0xb0] sm:$0xff] %vm673, %v622
        %697 = vst.msk [vmem:[#allocation3 + $0xb8] sm:$0xff] %vm673, %v624
        %698 = vst.msk [vmem:[#allocation3 + $0xc0] sm:$0xff] %vm673, %v626
        %699 = vst.msk [vmem:[#allocation3 + $0xc8] sm:$0xff] %vm673, %v628
        %700 = vst.msk [vmem:[#allocation3 + $0xd0] sm:$0xff] %vm673, %v630
        %701 = vst.msk [vmem:[#allocation3 + $0xd8] sm:$0xff] %vm673, %v632
        %702 = vst.msk [vmem:[#allocation3 + $0xe0] sm:$0xff] %vm673, %v634
        %703 = vst.msk [vmem:[#allocation3 + $0xe8] sm:$0xff] %vm673, %v636
        %704 = vst.msk [vmem:[#allocation3 + $0xf0] sm:$0xff] %vm673, %v638
        %705 = vst.msk [vmem:[#allocation3 + $0xf8] sm:$0xff] %vm673, %v640
        %v706 = vld [vmem:[#allocation2 + $0x2] sm:$0xff]
        %v707 = vld [vmem:[#allocation2 + $0xa] sm:$0xff]
        %v708 = vld [vmem:[#allocation2 + $0x1a] sm:$0xff]
        %v709 = vld [vmem:[#allocation2 + $0x22] sm:$0xff]
        %v710 = vld [vmem:[#allocation2 + $0x32] sm:$0xff]
        %v711 = vld [vmem:[#allocation2 + $0x3a] sm:$0xff]
        %v712 = vld [vmem:[#allocation2 + $0x4a] sm:$0xff]
        %v713 = vld [vmem:[#allocation2 + $0x52] sm:$0xff]
        %v714 = vld [vmem:[#allocation2 + $0x62] sm:$0xff]
        %v715 = vld [vmem:[#allocation2 + $0x6a] sm:$0xff]
        %v716 = vld [vmem:[#allocation2 + $0x7a] sm:$0xff]
        %v717 = vld [vmem:[#allocation2 + $0x82] sm:$0xff]
        %v718 = vld [vmem:[#allocation2 + $0x92] sm:$0xff]
        %v719 = vld [vmem:[#allocation2 + $0x9a] sm:$0xff]
        %v720 = vld [vmem:[#allocation2 + $0xaa] sm:$0xff]
        %v721 = vld [vmem:[#allocation2 + $0xb2] sm:$0xff]
        %v722 = vld [vmem:[#allocation2 + $0xc2] sm:$0xff]
        %v723 = vld [vmem:[#allocation2 + $0xca] sm:$0xff]
        %v724 = vld [vmem:[#allocation2 + $0xda] sm:$0xff]
        %v725 = vld [vmem:[#allocation2 + $0xe2] sm:$0xff]
        %v726 = vld [vmem:[#allocation2 + $0xf2] sm:$0xff]
        %v727 = vld [vmem:[#allocation2 + $0xfa] sm:$0xff]
        %v728 = vld [vmem:[#allocation2 + $0x10a] sm:$0xff]
        %v729 = vld [vmem:[#allocation2 + $0x112] sm:$0xff]
        %v730 = vld [vmem:[#allocation2 + $0x122] sm:$0xff]
        %v731 = vld [vmem:[#allocation2 + $0x12a] sm:$0xff]
        %v732 = vld [vmem:[#allocation2 + $0x13a] sm:$0xff]
        %v733 = vld [vmem:[#allocation2 + $0x142] sm:$0xff]
        %v734 = vld [vmem:[#allocation2 + $0x152] sm:$0xff]
        %v735 = vld [vmem:[#allocation2 + $0x15a] sm:$0xff]
        %v736 = vld [vmem:[#allocation2 + $0x16a] sm:$0xff]
        %v737 = vld [vmem:[#allocation2 + $0x172] sm:$0xff]
        %770 = vrot.lane.b32.xlu0 %v706, 8
        %v771 = vpop.permute.xlu0 %770
        %772 = vrot.lane.b32.xlu0 %v707, 8
        %v773 = vpop.permute.xlu0 %772
        %774 = vrot.lane.b32.xlu0 %v708, 8
        %v775 = vpop.permute.xlu0 %774
        %776 = vrot.lane.b32.xlu0 %v709, 8
        %v777 = vpop.permute.xlu0 %776
        %778 = vrot.lane.b32.xlu0 %v710, 8
        %v779 = vpop.permute.xlu0 %778
        %780 = vrot.lane.b32.xlu0 %v711, 8
        %v781 = vpop.permute.xlu0 %780
        %782 = vrot.lane.b32.xlu0 %v712, 8
        %v783 = vpop.permute.xlu0 %782
        %784 = vrot.lane.b32.xlu0 %v713, 8
        %v785 = vpop.permute.xlu0 %784
        %786 = vrot.lane.b32.xlu0 %v714, 8
        %v787 = vpop.permute.xlu0 %786
        %788 = vrot.lane.b32.xlu0 %v715, 8
        %v789 = vpop.permute.xlu0 %788
        %790 = vrot.lane.b32.xlu0 %v716, 8
        %v791 = vpop.permute.xlu0 %790
        %792 = vrot.lane.b32.xlu0 %v717, 8
        %v793 = vpop.permute.xlu0 %792
        %794 = vrot.lane.b32.xlu0 %v718, 8
        %v795 = vpop.permute.xlu0 %794
        %796 = vrot.lane.b32.xlu0 %v719, 8
        %v797 = vpop.permute.xlu0 %796
        %798 = vrot.lane.b32.xlu0 %v720, 8
        %v799 = vpop.permute.xlu0 %798
        %800 = vrot.lane.b32.xlu0 %v721, 8
        %v801 = vpop.permute.xlu0 %800
        %802 = vrot.lane.b32.xlu0 %v722, 8
        %v803 = vpop.permute.xlu0 %802
        %804 = vrot.lane.b32.xlu0 %v723, 8
        %v805 = vpop.permute.xlu0 %804
        %806 = vrot.lane.b32.xlu0 %v724, 8
        %v807 = vpop.permute.xlu0 %806
        %808 = vrot.lane.b32.xlu0 %v725, 8
        %v809 = vpop.permute.xlu0 %808
        %810 = vrot.lane.b32.xlu0 %v726, 8
        %v811 = vpop.permute.xlu0 %810
        %812 = vrot.lane.b32.xlu0 %v727, 8
        %v813 = vpop.permute.xlu0 %812
        %814 = vrot.lane.b32.xlu0 %v728, 8
        %v815 = vpop.permute.xlu0 %814
        %816 = vrot.lane.b32.xlu0 %v729, 8
        %v817 = vpop.permute.xlu0 %816
        %818 = vrot.lane.b32.xlu0 %v730, 8
        %v819 = vpop.permute.xlu0 %818
        %820 = vrot.lane.b32.xlu0 %v731, 8
        %v821 = vpop.permute.xlu0 %820
        %822 = vrot.lane.b32.xlu0 %v732, 8
        %v823 = vpop.permute.xlu0 %822
        %824 = vrot.lane.b32.xlu0 %v733, 8
        %v825 = vpop.permute.xlu0 %824
        %826 = vrot.lane.b32.xlu0 %v734, 8
        %v827 = vpop.permute.xlu0 %826
        %828 = vrot.lane.b32.xlu0 %v735, 8
        %v829 = vpop.permute.xlu0 %828
        %830 = vrot.lane.b32.xlu0 %v736, 8
        %v831 = vpop.permute.xlu0 %830
        %832 = vrot.lane.b32.xlu0 %v737, 8
        %v833 = vpop.permute.xlu0 %832
        %vm866 = vcmask 97344
        %867 = vst.msk [vmem:[#allocation3] sm:$0xff] %vm866, %v771
        %868 = vst.msk [vmem:[#allocation3 + $0x8] sm:$0xff] %vm866, %v773
        %869 = vst.msk [vmem:[#allocation3 + $0x10] sm:$0xff] %vm866, %v775
        %870 = vst.msk [vmem:[#allocation3 + $0x18] sm:$0xff] %vm866, %v777
        %871 = vst.msk [vmem:[#allocation3 + $0x20] sm:$0xff] %vm866, %v779
        %872 = vst.msk [vmem:[#allocation3 + $0x28] sm:$0xff] %vm866, %v781
        %873 = vst.msk [vmem:[#allocation3 + $0x30] sm:$0xff] %vm866, %v783
        %874 = vst.msk [vmem:[#allocation3 + $0x38] sm:$0xff] %vm866, %v785
        %875 = vst.msk [vmem:[#allocation3 + $0x40] sm:$0xff] %vm866, %v787
        %876 = vst.msk [vmem:[#allocation3 + $0x48] sm:$0xff] %vm866, %v789
        %877 = vst.msk [vmem:[#allocation3 + $0x50] sm:$0xff] %vm866, %v791
        %878 = vst.msk [vmem:[#allocation3 + $0x58] sm:$0xff] %vm866, %v793
        %879 = vst.msk [vmem:[#allocation3 + $0x60] sm:$0xff] %vm866, %v795
        %880 = vst.msk [vmem:[#allocation3 + $0x68] sm:$0xff] %vm866, %v797
        %881 = vst.msk [vmem:[#allocation3 + $0x70] sm:$0xff] %vm866, %v799
        %882 = vst.msk [vmem:[#allocation3 + $0x78] sm:$0xff] %vm866, %v801
        %883 = vst.msk [vmem:[#allocation3 + $0x80] sm:$0xff] %vm866, %v803
        %884 = vst.msk [vmem:[#allocation3 + $0x88] sm:$0xff] %vm866, %v805
        %885 = vst.msk [vmem:[#allocation3 + $0x90] sm:$0xff] %vm866, %v807
        %886 = vst.msk [vmem:[#allocation3 + $0x98] sm:$0xff] %vm866, %v809
        %887 = vst.msk [vmem:[#allocation3 + $0xa0] sm:$0xff] %vm866, %v811
        %888 = vst.msk [vmem:[#allocation3 + $0xa8] sm:$0xff] %vm866, %v813
        %889 = vst.msk [vmem:[#allocation3 + $0xb0] sm:$0xff] %vm866, %v815
        %890 = vst.msk [vmem:[#allocation3 + $0xb8] sm:$0xff] %vm866, %v817
        %891 = vst.msk [vmem:[#allocation3 + $0xc0] sm:$0xff] %vm866, %v819
        %892 = vst.msk [vmem:[#allocation3 + $0xc8] sm:$0xff] %vm866, %v821
        %893 = vst.msk [vmem:[#allocation3 + $0xd0] sm:$0xff] %vm866, %v823
        %894 = vst.msk [vmem:[#allocation3 + $0xd8] sm:$0xff] %vm866, %v825
        %895 = vst.msk [vmem:[#allocation3 + $0xe0] sm:$0xff] %vm866, %v827
        %896 = vst.msk [vmem:[#allocation3 + $0xe8] sm:$0xff] %vm866, %v829
        %897 = vst.msk [vmem:[#allocation3 + $0xf0] sm:$0xff] %vm866, %v831
        %898 = vst.msk [vmem:[#allocation3 + $0xf8] sm:$0xff] %vm866, %v833
        %v899 = vld [vmem:[#allocation2 + $0x3] sm:$0xff]
        %v900 = vld [vmem:[#allocation2 + $0xb] sm:$0xff]
        %v901 = vld [vmem:[#allocation2 + $0x1b] sm:$0xff]
        %v902 = vld [vmem:[#allocation2 + $0x23] sm:$0xff]
        %v903 = vld [vmem:[#allocation2 + $0x33] sm:$0xff]
        %v904 = vld [vmem:[#allocation2 + $0x3b] sm:$0xff]
        %v905 = vld [vmem:[#allocation2 + $0x4b] sm:$0xff]
        %v906 = vld [vmem:[#allocation2 + $0x53] sm:$0xff]
        %v907 = vld [vmem:[#allocation2 + $0x63] sm:$0xff]
        %v908 = vld [vmem:[#allocation2 + $0x6b] sm:$0xff]
        %v909 = vld [vmem:[#allocation2 + $0x7b] sm:$0xff]
        %v910 = vld [vmem:[#allocation2 + $0x83] sm:$0xff]
        %v911 = vld [vmem:[#allocation2 + $0x93] sm:$0xff]
        %v912 = vld [vmem:[#allocation2 + $0x9b] sm:$0xff]
        %v913 = vld [vmem:[#allocation2 + $0xab] sm:$0xff]
        %v914 = vld [vmem:[#allocation2 + $0xb3] sm:$0xff]
        %v915 = vld [vmem:[#allocation2 + $0xc3] sm:$0xff]
        %v916 = vld [vmem:[#allocation2 + $0xcb] sm:$0xff]
        %v917 = vld [vmem:[#allocation2 + $0xdb] sm:$0xff]
        %v918 = vld [vmem:[#allocation2 + $0xe3] sm:$0xff]
        %v919 = vld [vmem:[#allocation2 + $0xf3] sm:$0xff]
        %v920 = vld [vmem:[#allocation2 + $0xfb] sm:$0xff]
        %v921 = vld [vmem:[#allocation2 + $0x10b] sm:$0xff]
        %v922 = vld [vmem:[#allocation2 + $0x113] sm:$0xff]
        %v923 = vld [vmem:[#allocation2 + $0x123] sm:$0xff]
        %v924 = vld [vmem:[#allocation2 + $0x12b] sm:$0xff]
        %v925 = vld [vmem:[#allocation2 + $0x13b] sm:$0xff]
        %v926 = vld [vmem:[#allocation2 + $0x143] sm:$0xff]
        %v927 = vld [vmem:[#allocation2 + $0x153] sm:$0xff]
        %v928 = vld [vmem:[#allocation2 + $0x15b] sm:$0xff]
        %v929 = vld [vmem:[#allocation2 + $0x16b] sm:$0xff]
        %v930 = vld [vmem:[#allocation2 + $0x173] sm:$0xff]
        %963 = vrot.lane.b32.xlu0 %v899, 12
        %v964 = vpop.permute.xlu0 %963
        %965 = vrot.lane.b32.xlu0 %v900, 12
        %v966 = vpop.permute.xlu0 %965
        %967 = vrot.lane.b32.xlu0 %v901, 12
        %v968 = vpop.permute.xlu0 %967
        %969 = vrot.lane.b32.xlu0 %v902, 12
        %v970 = vpop.permute.xlu0 %969
        %971 = vrot.lane.b32.xlu0 %v903, 12
        %v972 = vpop.permute.xlu0 %971
        %973 = vrot.lane.b32.xlu0 %v904, 12
        %v974 = vpop.permute.xlu0 %973
        %975 = vrot.lane.b32.xlu0 %v905, 12
        %v976 = vpop.permute.xlu0 %975
        %977 = vrot.lane.b32.xlu0 %v906, 12
        %v978 = vpop.permute.xlu0 %977
        %979 = vrot.lane.b32.xlu0 %v907, 12
        %v980 = vpop.permute.xlu0 %979
        %981 = vrot.lane.b32.xlu0 %v908, 12
        %v982 = vpop.permute.xlu0 %981
        %983 = vrot.lane.b32.xlu0 %v909, 12
        %v984 = vpop.permute.xlu0 %983
        %985 = vrot.lane.b32.xlu0 %v910, 12
        %v986 = vpop.permute.xlu0 %985
        %987 = vrot.lane.b32.xlu0 %v911, 12
        %v988 = vpop.permute.xlu0 %987
        %989 = vrot.lane.b32.xlu0 %v912, 12
        %v990 = vpop.permute.xlu0 %989
        %991 = vrot.lane.b32.xlu0 %v913, 12
        %v992 = vpop.permute.xlu0 %991
        %993 = vrot.lane.b32.xlu0 %v914, 12
        %v994 = vpop.permute.xlu0 %993
        %995 = vrot.lane.b32.xlu0 %v915, 12
        %v996 = vpop.permute.xlu0 %995
        %997 = vrot.lane.b32.xlu0 %v916, 12
        %v998 = vpop.permute.xlu0 %997
        %999 = vrot.lane.b32.xlu0 %v917, 12
        %v1000 = vpop.permute.xlu0 %999
        %1001 = vrot.lane.b32.xlu0 %v918, 12
        %v1002 = vpop.permute.xlu0 %1001
        %1003 = vrot.lane.b32.xlu0 %v919, 12
        %v1004 = vpop.permute.xlu0 %1003
        %1005 = vrot.lane.b32.xlu0 %v920, 12
        %v1006 = vpop.permute.xlu0 %1005
        %1007 = vrot.lane.b32.xlu0 %v921, 12
        %v1008 = vpop.permute.xlu0 %1007
        %1009 = vrot.lane.b32.xlu0 %v922, 12
        %v1010 = vpop.permute.xlu0 %1009
        %1011 = vrot.lane.b32.xlu0 %v923, 12
        %v1012 = vpop.permute.xlu0 %1011
        %1013 = vrot.lane.b32.xlu0 %v924, 12
        %v1014 = vpop.permute.xlu0 %1013
        %1015 = vrot.lane.b32.xlu0 %v925, 12
        %v1016 = vpop.permute.xlu0 %1015
        %1017 = vrot.lane.b32.xlu0 %v926, 12
        %v1018 = vpop.permute.xlu0 %1017
        %1019 = vrot.lane.b32.xlu0 %v927, 12
        %v1020 = vpop.permute.xlu0 %1019
        %1021 = vrot.lane.b32.xlu0 %v928, 12
        %v1022 = vpop.permute.xlu0 %1021
        %1023 = vrot.lane.b32.xlu0 %v929, 12
        %v1024 = vpop.permute.xlu0 %1023
        %1025 = vrot.lane.b32.xlu0 %v930, 12
        %v1026 = vpop.permute.xlu0 %1025
        %vm1059 = vcmask 130144
        %1060 = vst.msk [vmem:[#allocation3] sm:$0xff] %vm1059, %v964
        %1061 = vst.msk [vmem:[#allocation3 + $0x8] sm:$0xff] %vm1059, %v966
        %1062 = vst.msk [vmem:[#allocation3 + $0x10] sm:$0xff] %vm1059, %v968
        %1063 = vst.msk [vmem:[#allocation3 + $0x18] sm:$0xff] %vm1059, %v970
        %1064 = vst.msk [vmem:[#allocation3 + $0x20] sm:$0xff] %vm1059, %v972
        %1065 = vst.msk [vmem:[#allocation3 + $0x28] sm:$0xff] %vm1059, %v974
        %1066 = vst.msk [vmem:[#allocation3 + $0x30] sm:$0xff] %vm1059, %v976
        %1067 = vst.msk [vmem:[#allocation3 + $0x38] sm:$0xff] %vm1059, %v978
        %1068 = vst.msk [vmem:[#allocation3 + $0x40] sm:$0xff] %vm1059, %v980
        %1069 = vst.msk [vmem:[#allocation3 + $0x48] sm:$0xff] %vm1059, %v982
        %1070 = vst.msk [vmem:[#allocation3 + $0x50] sm:$0xff] %vm1059, %v984
        %1071 = vst.msk [vmem:[#allocation3 + $0x58] sm:$0xff] %vm1059, %v986
        %1072 = vst.msk [vmem:[#allocation3 + $0x60] sm:$0xff] %vm1059, %v988
        %1073 = vst.msk [vmem:[#allocation3 + $0x68] sm:$0xff] %vm1059, %v990
        %1074 = vst.msk [vmem:[#allocation3 + $0x70] sm:$0xff] %vm1059, %v992
        %1075 = vst.msk [vmem:[#allocation3 + $0x78] sm:$0xff] %vm1059, %v994
        %1076 = vst.msk [vmem:[#allocation3 + $0x80] sm:$0xff] %vm1059, %v996
        %1077 = vst.msk [vmem:[#allocation3 + $0x88] sm:$0xff] %vm1059, %v998
        %1078 = vst.msk [vmem:[#allocation3 + $0x90] sm:$0xff] %vm1059, %v1000
        %1079 = vst.msk [vmem:[#allocation3 + $0x98] sm:$0xff] %vm1059, %v1002
        %1080 = vst.msk [vmem:[#allocation3 + $0xa0] sm:$0xff] %vm1059, %v1004
        %1081 = vst.msk [vmem:[#allocation3 + $0xa8] sm:$0xff] %vm1059, %v1006
        %1082 = vst.msk [vmem:[#allocation3 + $0xb0] sm:$0xff] %vm1059, %v1008
        %1083 = vst.msk [vmem:[#allocation3 + $0xb8] sm:$0xff] %vm1059, %v1010
        %1084 = vst.msk [vmem:[#allocation3 + $0xc0] sm:$0xff] %vm1059, %v1012
        %1085 = vst.msk [vmem:[#allocation3 + $0xc8] sm:$0xff] %vm1059, %v1014
        %1086 = vst.msk [vmem:[#allocation3 + $0xd0] sm:$0xff] %vm1059, %v1016
        %1087 = vst.msk [vmem:[#allocation3 + $0xd8] sm:$0xff] %vm1059, %v1018
        %1088 = vst.msk [vmem:[#allocation3 + $0xe0] sm:$0xff] %vm1059, %v1020
        %1089 = vst.msk [vmem:[#allocation3 + $0xe8] sm:$0xff] %vm1059, %v1022
        %1090 = vst.msk [vmem:[#allocation3 + $0xf0] sm:$0xff] %vm1059, %v1024
        %1091 = vst.msk [vmem:[#allocation3 + $0xf8] sm:$0xff] %vm1059, %v1026
        %v1092 = vld [vmem:[#allocation2 + $0x4] sm:$0xff]
        %v1093 = vld [vmem:[#allocation2 + $0xc] sm:$0xff]
        %v1094 = vld [vmem:[#allocation2 + $0x1c] sm:$0xff]
        %v1095 = vld [vmem:[#allocation2 + $0x24] sm:$0xff]
        %v1096 = vld [vmem:[#allocation2 + $0x34] sm:$0xff]
        %v1097 = vld [vmem:[#allocation2 + $0x3c] sm:$0xff]
        %v1098 = vld [vmem:[#allocation2 + $0x4c] sm:$0xff]
        %v1099 = vld [vmem:[#allocation2 + $0x54] sm:$0xff]
        %v1100 = vld [vmem:[#allocation2 + $0x64] sm:$0xff]
        %v1101 = vld [vmem:[#allocation2 + $0x6c] sm:$0xff]
        %v1102 = vld [vmem:[#allocation2 + $0x7c] sm:$0xff]
        %v1103 = vld [vmem:[#allocation2 + $0x84] sm:$0xff]
        %v1104 = vld [vmem:[#allocation2 + $0x94] sm:$0xff]
        %v1105 = vld [vmem:[#allocation2 + $0x9c] sm:$0xff]
        %v1106 = vld [vmem:[#allocation2 + $0xac] sm:$0xff]
        %v1107 = vld [vmem:[#allocation2 + $0xb4] sm:$0xff]
        %v1108 = vld [vmem:[#allocation2 + $0xc4] sm:$0xff]
        %v1109 = vld [vmem:[#allocation2 + $0xcc] sm:$0xff]
        %v1110 = vld [vmem:[#allocation2 + $0xdc] sm:$0xff]
        %v1111 = vld [vmem:[#allocation2 + $0xe4] sm:$0xff]
        %v1112 = vld [vmem:[#allocation2 + $0xf4] sm:$0xff]
        %v1113 = vld [vmem:[#allocation2 + $0xfc] sm:$0xff]
        %v1114 = vld [vmem:[#allocation2 + $0x10c] sm:$0xff]
        %v1115 = vld [vmem:[#allocation2 + $0x114] sm:$0xff]
        %v1116 = vld [vmem:[#allocation2 + $0x124] sm:$0xff]
        %v1117 = vld [vmem:[#allocation2 + $0x12c] sm:$0xff]
        %v1118 = vld [vmem:[#allocation2 + $0x13c] sm:$0xff]
        %v1119 = vld [vmem:[#allocation2 + $0x144] sm:$0xff]
        %v1120 = vld [vmem:[#allocation2 + $0x154] sm:$0xff]
        %v1121 = vld [vmem:[#allocation2 + $0x15c] sm:$0xff]
        %v1122 = vld [vmem:[#allocation2 + $0x16c] sm:$0xff]
        %v1123 = vld [vmem:[#allocation2 + $0x174] sm:$0xff]
        %1156 = vrot.lane.b32.xlu0 %v1092, 16
        %v1157 = vpop.permute.xlu0 %1156
        %1158 = vrot.lane.b32.xlu0 %v1093, 16
        %v1159 = vpop.permute.xlu0 %1158
        %1160 = vrot.lane.b32.xlu0 %v1094, 16
        %v1161 = vpop.permute.xlu0 %1160
        %1162 = vrot.lane.b32.xlu0 %v1095, 16
        %v1163 = vpop.permute.xlu0 %1162
        %1164 = vrot.lane.b32.xlu0 %v1096, 16
        %v1165 = vpop.permute.xlu0 %1164
        %1166 = vrot.lane.b32.xlu0 %v1097, 16
        %v1167 = vpop.permute.xlu0 %1166
        %1168 = vrot.lane.b32.xlu0 %v1098, 16
        %v1169 = vpop.permute.xlu0 %1168
        %1170 = vrot.lane.b32.xlu0 %v1099, 16
        %v1171 = vpop.permute.xlu0 %1170
        %1172 = vrot.lane.b32.xlu0 %v1100, 16
        %v1173 = vpop.permute.xlu0 %1172
        %1174 = vrot.lane.b32.xlu0 %v1101, 16
        %v1175 = vpop.permute.xlu0 %1174
        %1176 = vrot.lane.b32.xlu0 %v1102, 16
        %v1177 = vpop.permute.xlu0 %1176
        %1178 = vrot.lane.b32.xlu0 %v1103, 16
        %v1179 = vpop.permute.xlu0 %1178
        %1180 = vrot.lane.b32.xlu0 %v1104, 16
        %v1181 = vpop.permute.xlu0 %1180
        %1182 = vrot.lane.b32.xlu0 %v1105, 16
        %v1183 = vpop.permute.xlu0 %1182
        %1184 = vrot.lane.b32.xlu0 %v1106, 16
        %v1185 = vpop.permute.xlu0 %1184
        %1186 = vrot.lane.b32.xlu0 %v1107, 16
        %v1187 = vpop.permute.xlu0 %1186
        %1188 = vrot.lane.b32.xlu0 %v1108, 16
        %v1189 = vpop.permute.xlu0 %1188
        %1190 = vrot.lane.b32.xlu0 %v1109, 16
        %v1191 = vpop.permute.xlu0 %1190
        %1192 = vrot.lane.b32.xlu0 %v1110, 16
        %v1193 = vpop.permute.xlu0 %1192
        %1194 = vrot.lane.b32.xlu0 %v1111, 16
        %v1195 = vpop.permute.xlu0 %1194
        %1196 = vrot.lane.b32.xlu0 %v1112, 16
        %v1197 = vpop.permute.xlu0 %1196
        %1198 = vrot.lane.b32.xlu0 %v1113, 16
        %v1199 = vpop.permute.xlu0 %1198
        %1200 = vrot.lane.b32.xlu0 %v1114, 16
        %v1201 = vpop.permute.xlu0 %1200
        %1202 = vrot.lane.b32.xlu0 %v1115, 16
        %v1203 = vpop.permute.xlu0 %1202
        %1204 = vrot.lane.b32.xlu0 %v1116, 16
        %v1205 = vpop.permute.xlu0 %1204
        %1206 = vrot.lane.b32.xlu0 %v1117, 16
        %v1207 = vpop.permute.xlu0 %1206
        %1208 = vrot.lane.b32.xlu0 %v1118, 16
        %v1209 = vpop.permute.xlu0 %1208
        %1210 = vrot.lane.b32.xlu0 %v1119, 16
        %v1211 = vpop.permute.xlu0 %1210
        %1212 = vrot.lane.b32.xlu0 %v1120, 16
        %v1213 = vpop.permute.xlu0 %1212
        %1214 = vrot.lane.b32.xlu0 %v1121, 16
        %v1215 = vpop.permute.xlu0 %1214
        %1216 = vrot.lane.b32.xlu0 %v1122, 16
        %v1217 = vpop.permute.xlu0 %1216
        %1218 = vrot.lane.b32.xlu0 %v1123, 16
        %v1219 = vpop.permute.xlu0 %1218
        %vm1252 = vcmask 162944
        %1253 = vst.msk [vmem:[#allocation3] sm:$0xff] %vm1252, %v1157
        %1254 = vst.msk [vmem:[#allocation3 + $0x8] sm:$0xff] %vm1252, %v1159
        %1255 = vst.msk [vmem:[#allocation3 + $0x10] sm:$0xff] %vm1252, %v1161
        %1256 = vst.msk [vmem:[#allocation3 + $0x18] sm:$0xff] %vm1252, %v1163
        %1257 = vst.msk [vmem:[#allocation3 + $0x20] sm:$0xff] %vm1252, %v1165
        %1258 = vst.msk [vmem:[#allocation3 + $0x28] sm:$0xff] %vm1252, %v1167
        %1259 = vst.msk [vmem:[#allocation3 + $0x30] sm:$0xff] %vm1252, %v1169
        %1260 = vst.msk [vmem:[#allocation3 + $0x38] sm:$0xff] %vm1252, %v1171
        %1261 = vst.msk [vmem:[#allocation3 + $0x40] sm:$0xff] %vm1252, %v1173
        %1262 = vst.msk [vmem:[#allocation3 + $0x48] sm:$0xff] %vm1252, %v1175
        %1263 = vst.msk [vmem:[#allocation3 + $0x50] sm:$0xff] %vm1252, %v1177
        %1264 = vst.msk [vmem:[#allocation3 + $0x58] sm:$0xff] %vm1252, %v1179
        %1265 = vst.msk [vmem:[#allocation3 + $0x60] sm:$0xff] %vm1252, %v1181
        %1266 = vst.msk [vmem:[#allocation3 + $0x68] sm:$0xff] %vm1252, %v1183
        %1267 = vst.msk [vmem:[#allocation3 + $0x70] sm:$0xff] %vm1252, %v1185
        %1268 = vst.msk [vmem:[#allocation3 + $0x78] sm:$0xff] %vm1252, %v1187
        %1269 = vst.msk [vmem:[#allocation3 + $0x80] sm:$0xff] %vm1252, %v1189
        %1270 = vst.msk [vmem:[#allocation3 + $0x88] sm:$0xff] %vm1252, %v1191
        %1271 = vst.msk [vmem:[#allocation3 + $0x90] sm:$0xff] %vm1252, %v1193
        %1272 = vst.msk [vmem:[#allocation3 + $0x98] sm:$0xff] %vm1252, %v1195
        %1273 = vst.msk [vmem:[#allocation3 + $0xa0] sm:$0xff] %vm1252, %v1197
        %1274 = vst.msk [vmem:[#allocation3 + $0xa8] sm:$0xff] %vm1252, %v1199
        %1275 = vst.msk [vmem:[#allocation3 + $0xb0] sm:$0xff] %vm1252, %v1201
        %1276 = vst.msk [vmem:[#allocation3 + $0xb8] sm:$0xff] %vm1252, %v1203
        %1277 = vst.msk [vmem:[#allocation3 + $0xc0] sm:$0xff] %vm1252, %v1205
        %1278 = vst.msk [vmem:[#allocation3 + $0xc8] sm:$0xff] %vm1252, %v1207
        %1279 = vst.msk [vmem:[#allocation3 + $0xd0] sm:$0xff] %vm1252, %v1209
        %1280 = vst.msk [vmem:[#allocation3 + $0xd8] sm:$0xff] %vm1252, %v1211
        %1281 = vst.msk [vmem:[#allocation3 + $0xe0] sm:$0xff] %vm1252, %v1213
        %1282 = vst.msk [vmem:[#allocation3 + $0xe8] sm:$0xff] %vm1252, %v1215
        %1283 = vst.msk [vmem:[#allocation3 + $0xf0] sm:$0xff] %vm1252, %v1217
        %1284 = vst.msk [vmem:[#allocation3 + $0xf8] sm:$0xff] %vm1252, %v1219
        %s1285 = scalar_lea.vmem [#allocation2], 24
        %v1286 = vld [vmem:[%s1285] sm:$0xff]
        %v1287 = vld [vmem:[%s1285 + $0x8] sm:$0xff]
        %v1288 = vld [vmem:[%s1285 + $0x18] sm:$0xff]
        %v1289 = vld [vmem:[%s1285 + $0x20] sm:$0xff]
        %v1290 = vld [vmem:[%s1285 + $0x30] sm:$0xff]
        %v1291 = vld [vmem:[%s1285 + $0x38] sm:$0xff]
        %v1292 = vld [vmem:[%s1285 + $0x48] sm:$0xff]
        %v1293 = vld [vmem:[%s1285 + $0x50] sm:$0xff]
        %v1294 = vld [vmem:[%s1285 + $0x60] sm:$0xff]
        %v1295 = vld [vmem:[%s1285 + $0x68] sm:$0xff]
        %v1296 = vld [vmem:[%s1285 + $0x78] sm:$0xff]
        %v1297 = vld [vmem:[%s1285 + $0x80] sm:$0xff]
        %v1298 = vld [vmem:[%s1285 + $0x90] sm:$0xff]
        %v1299 = vld [vmem:[%s1285 + $0x98] sm:$0xff]
        %v1300 = vld [vmem:[%s1285 + $0xa8] sm:$0xff]
        %v1301 = vld [vmem:[%s1285 + $0xb0] sm:$0xff]
        %v1302 = vld [vmem:[%s1285 + $0xc0] sm:$0xff]
        %v1303 = vld [vmem:[%s1285 + $0xc8] sm:$0xff]
        %v1304 = vld [vmem:[%s1285 + $0xd8] sm:$0xff]
        %v1305 = vld [vmem:[%s1285 + $0xe0] sm:$0xff]
        %v1306 = vld [vmem:[%s1285 + $0xf0] sm:$0xff]
        %v1307 = vld [vmem:[%s1285 + $0xf8] sm:$0xff]
        %v1308 = vld [vmem:[%s1285 + $0x108] sm:$0xff]
        %v1309 = vld [vmem:[%s1285 + $0x110] sm:$0xff]
        %v1310 = vld [vmem:[%s1285 + $0x120] sm:$0xff]
        %v1311 = vld [vmem:[%s1285 + $0x128] sm:$0xff]
        %v1312 = vld [vmem:[%s1285 + $0x138] sm:$0xff]
        %v1313 = vld [vmem:[%s1285 + $0x140] sm:$0xff]
        %v1314 = vld [vmem:[%s1285 + $0x150] sm:$0xff]
        %v1315 = vld [vmem:[%s1285 + $0x158] sm:$0xff]
        %v1316 = vld [vmem:[%s1285 + $0x168] sm:$0xff]
        %v1317 = vld [vmem:[%s1285 + $0x170] sm:$0xff]
        %1350 = vrot.lane.b32.xlu0 %v1286, 20
        %v1351 = vpop.permute.xlu0 %1350
        %1352 = vrot.lane.b32.xlu0 %v1287, 20
        %v1353 = vpop.permute.xlu0 %1352
        %1354 = vrot.lane.b32.xlu0 %v1288, 20
        %v1355 = vpop.permute.xlu0 %1354
        %1356 = vrot.lane.b32.xlu0 %v1289, 20
        %v1357 = vpop.permute.xlu0 %1356
        %1358 = vrot.lane.b32.xlu0 %v1290, 20
        %v1359 = vpop.permute.xlu0 %1358
        %1360 = vrot.lane.b32.xlu0 %v1291, 20
        %v1361 = vpop.permute.xlu0 %1360
        %1362 = vrot.lane.b32.xlu0 %v1292, 20
        %v1363 = vpop.permute.xlu0 %1362
        %1364 = vrot.lane.b32.xlu0 %v1293, 20
        %v1365 = vpop.permute.xlu0 %1364
        %1366 = vrot.lane.b32.xlu0 %v1294, 20
        %v1367 = vpop.permute.xlu0 %1366
        %1368 = vrot.lane.b32.xlu0 %v1295, 20
        %v1369 = vpop.permute.xlu0 %1368
        %1370 = vrot.lane.b32.xlu0 %v1296, 20
        %v1371 = vpop.permute.xlu0 %1370
        %1372 = vrot.lane.b32.xlu0 %v1297, 20
        %v1373 = vpop.permute.xlu0 %1372
        %1374 = vrot.lane.b32.xlu0 %v1298, 20
        %v1375 = vpop.permute.xlu0 %1374
        %1376 = vrot.lane.b32.xlu0 %v1299, 20
        %v1377 = vpop.permute.xlu0 %1376
        %1378 = vrot.lane.b32.xlu0 %v1300, 20
        %v1379 = vpop.permute.xlu0 %1378
        %1380 = vrot.lane.b32.xlu0 %v1301, 20
        %v1381 = vpop.permute.xlu0 %1380
        %1382 = vrot.lane.b32.xlu0 %v1302, 20
        %v1383 = vpop.permute.xlu0 %1382
        %1384 = vrot.lane.b32.xlu0 %v1303, 20
        %v1385 = vpop.permute.xlu0 %1384
        %1386 = vrot.lane.b32.xlu0 %v1304, 20
        %v1387 = vpop.permute.xlu0 %1386
        %1388 = vrot.lane.b32.xlu0 %v1305, 20
        %v1389 = vpop.permute.xlu0 %1388
        %1390 = vrot.lane.b32.xlu0 %v1306, 20
        %v1391 = vpop.permute.xlu0 %1390
        %1392 = vrot.lane.b32.xlu0 %v1307, 20
        %v1393 = vpop.permute.xlu0 %1392
        %1394 = vrot.lane.b32.xlu0 %v1308, 20
        %v1395 = vpop.permute.xlu0 %1394
        %1396 = vrot.lane.b32.xlu0 %v1309, 20
        %v1397 = vpop.permute.xlu0 %1396
        %1398 = vrot.lane.b32.xlu0 %v1310, 20
        %v1399 = vpop.permute.xlu0 %1398
        %1400 = vrot.lane.b32.xlu0 %v1311, 20
        %v1401 = vpop.permute.xlu0 %1400
        %1402 = vrot.lane.b32.xlu0 %v1312, 20
        %v1403 = vpop.permute.xlu0 %1402
        %1404 = vrot.lane.b32.xlu0 %v1313, 20
        %v1405 = vpop.permute.xlu0 %1404
        %1406 = vrot.lane.b32.xlu0 %v1314, 20
        %v1407 = vpop.permute.xlu0 %1406
        %1408 = vrot.lane.b32.xlu0 %v1315, 20
        %v1409 = vpop.permute.xlu0 %1408
        %1410 = vrot.lane.b32.xlu0 %v1316, 20
        %v1411 = vpop.permute.xlu0 %1410
        %1412 = vrot.lane.b32.xlu0 %v1317, 20
        %v1413 = vpop.permute.xlu0 %1412
        %vm1446 = vcmask 195744
        %1447 = vst.msk [vmem:[#allocation3] sm:$0xff] %vm1446, %v1351
        %1448 = vst.msk [vmem:[#allocation3 + $0x8] sm:$0xff] %vm1446, %v1353
        %1449 = vst.msk [vmem:[#allocation3 + $0x10] sm:$0xff] %vm1446, %v1355
        %1450 = vst.msk [vmem:[#allocation3 + $0x18] sm:$0xff] %vm1446, %v1357
        %1451 = vst.msk [vmem:[#allocation3 + $0x20] sm:$0xff] %vm1446, %v1359
        %1452 = vst.msk [vmem:[#allocation3 + $0x28] sm:$0xff] %vm1446, %v1361
        %1453 = vst.msk [vmem:[#allocation3 + $0x30] sm:$0xff] %vm1446, %v1363
        %1454 = vst.msk [vmem:[#allocation3 + $0x38] sm:$0xff] %vm1446, %v1365
        %1455 = vst.msk [vmem:[#allocation3 + $0x40] sm:$0xff] %vm1446, %v1367
        %1456 = vst.msk [vmem:[#allocation3 + $0x48] sm:$0xff] %vm1446, %v1369
        %1457 = vst.msk [vmem:[#allocation3 + $0x50] sm:$0xff] %vm1446, %v1371
        %1458 = vst.msk [vmem:[#allocation3 + $0x58] sm:$0xff] %vm1446, %v1373
        %1459 = vst.msk [vmem:[#allocation3 + $0x60] sm:$0xff] %vm1446, %v1375
        %1460 = vst.msk [vmem:[#allocation3 + $0x68] sm:$0xff] %vm1446, %v1377
        %1461 = vst.msk [vmem:[#allocation3 + $0x70] sm:$0xff] %vm1446, %v1379
        %1462 = vst.msk [vmem:[#allocation3 + $0x78] sm:$0xff] %vm1446, %v1381
        %1463 = vst.msk [vmem:[#allocation3 + $0x80] sm:$0xff] %vm1446, %v1383
        %1464 = vst.msk [vmem:[#allocation3 + $0x88] sm:$0xff] %vm1446, %v1385
        %1465 = vst.msk [vmem:[#allocation3 + $0x90] sm:$0xff] %vm1446, %v1387
        %1466 = vst.msk [vmem:[#allocation3 + $0x98] sm:$0xff] %vm1446, %v1389
        %1467 = vst.msk [vmem:[#allocation3 + $0xa0] sm:$0xff] %vm1446, %v1391
        %1468 = vst.msk [vmem:[#allocation3 + $0xa8] sm:$0xff] %vm1446, %v1393
        %1469 = vst.msk [vmem:[#allocation3 + $0xb0] sm:$0xff] %vm1446, %v1395
        %1470 = vst.msk [vmem:[#allocation3 + $0xb8] sm:$0xff] %vm1446, %v1397
        %1471 = vst.msk [vmem:[#allocation3 + $0xc0] sm:$0xff] %vm1446, %v1399
        %1472 = vst.msk [vmem:[#allocation3 + $0xc8] sm:$0xff] %vm1446, %v1401
        %1473 = vst.msk [vmem:[#allocation3 + $0xd0] sm:$0xff] %vm1446, %v1403
        %1474 = vst.msk [vmem:[#allocation3 + $0xd8] sm:$0xff] %vm1446, %v1405
        %1475 = vst.msk [vmem:[#allocation3 + $0xe0] sm:$0xff] %vm1446, %v1407
        %1476 = vst.msk [vmem:[#allocation3 + $0xe8] sm:$0xff] %vm1446, %v1409
        %1477 = vst.msk [vmem:[#allocation3 + $0xf0] sm:$0xff] %vm1446, %v1411
        %1478 = vst.msk [vmem:[#allocation3 + $0xf8] sm:$0xff] %vm1446, %v1413
        %v1479 = vld [vmem:[%s1285 + $0x1] sm:$0xff]
        %v1480 = vld [vmem:[%s1285 + $0x9] sm:$0xff]
        %v1481 = vld [vmem:[%s1285 + $0x19] sm:$0xff]
        %v1482 = vld [vmem:[%s1285 + $0x21] sm:$0xff]
        %v1483 = vld [vmem:[%s1285 + $0x31] sm:$0xff]
        %v1484 = vld [vmem:[%s1285 + $0x39] sm:$0xff]
        %v1485 = vld [vmem:[%s1285 + $0x49] sm:$0xff]
        %v1486 = vld [vmem:[%s1285 + $0x51] sm:$0xff]
        %v1487 = vld [vmem:[%s1285 + $0x61] sm:$0xff]
        %v1488 = vld [vmem:[%s1285 + $0x69] sm:$0xff]
        %v1489 = vld [vmem:[%s1285 + $0x79] sm:$0xff]
        %v1490 = vld [vmem:[%s1285 + $0x81] sm:$0xff]
        %v1491 = vld [vmem:[%s1285 + $0x91] sm:$0xff]
        %v1492 = vld [vmem:[%s1285 + $0x99] sm:$0xff]
        %v1493 = vld [vmem:[%s1285 + $0xa9] sm:$0xff]
        %v1494 = vld [vmem:[%s1285 + $0xb1] sm:$0xff]
        %v1495 = vld [vmem:[%s1285 + $0xc1] sm:$0xff]
        %v1496 = vld [vmem:[%s1285 + $0xc9] sm:$0xff]
        %v1497 = vld [vmem:[%s1285 + $0xd9] sm:$0xff]
        %v1498 = vld [vmem:[%s1285 + $0xe1] sm:$0xff]
        %v1499 = vld [vmem:[%s1285 + $0xf1] sm:$0xff]
        %v1500 = vld [vmem:[%s1285 + $0xf9] sm:$0xff]
        %v1501 = vld [vmem:[%s1285 + $0x109] sm:$0xff]
        %v1502 = vld [vmem:[%s1285 + $0x111] sm:$0xff]
        %v1503 = vld [vmem:[%s1285 + $0x121] sm:$0xff]
        %v1504 = vld [vmem:[%s1285 + $0x129] sm:$0xff]
        %v1505 = vld [vmem:[%s1285 + $0x139] sm:$0xff]
        %v1506 = vld [vmem:[%s1285 + $0x141] sm:$0xff]
        %v1507 = vld [vmem:[%s1285 + $0x151] sm:$0xff]
        %v1508 = vld [vmem:[%s1285 + $0x159] sm:$0xff]
        %v1509 = vld [vmem:[%s1285 + $0x169] sm:$0xff]
        %v1510 = vld [vmem:[%s1285 + $0x171] sm:$0xff]
        %1543 = vrot.lane.b32.xlu0 %v1479, 24
        %v1544 = vpop.permute.xlu0 %1543
        %1545 = vrot.lane.b32.xlu0 %v1480, 24
        %v1546 = vpop.permute.xlu0 %1545
        %1547 = vrot.lane.b32.xlu0 %v1481, 24
        %v1548 = vpop.permute.xlu0 %1547
        %1549 = vrot.lane.b32.xlu0 %v1482, 24
        %v1550 = vpop.permute.xlu0 %1549
        %1551 = vrot.lane.b32.xlu0 %v1483, 24
        %v1552 = vpop.permute.xlu0 %1551
        %1553 = vrot.lane.b32.xlu0 %v1484, 24
        %v1554 = vpop.permute.xlu0 %1553
        %1555 = vrot.lane.b32.xlu0 %v1485, 24
        %v1556 = vpop.permute.xlu0 %1555
        %1557 = vrot.lane.b32.xlu0 %v1486, 24
        %v1558 = vpop.permute.xlu0 %1557
        %1559 = vrot.lane.b32.xlu0 %v1487, 24
        %v1560 = vpop.permute.xlu0 %1559
        %1561 = vrot.lane.b32.xlu0 %v1488, 24
        %v1562 = vpop.permute.xlu0 %1561
        %1563 = vrot.lane.b32.xlu0 %v1489, 24
        %v1564 = vpop.permute.xlu0 %1563
        %1565 = vrot.lane.b32.xlu0 %v1490, 24
        %v1566 = vpop.permute.xlu0 %1565
        %1567 = vrot.lane.b32.xlu0 %v1491, 24
        %v1568 = vpop.permute.xlu0 %1567
        %1569 = vrot.lane.b32.xlu0 %v1492, 24
        %v1570 = vpop.permute.xlu0 %1569
        %1571 = vrot.lane.b32.xlu0 %v1493, 24
        %v1572 = vpop.permute.xlu0 %1571
        %1573 = vrot.lane.b32.xlu0 %v1494, 24
        %v1574 = vpop.permute.xlu0 %1573
        %1575 = vrot.lane.b32.xlu0 %v1495, 24
        %v1576 = vpop.permute.xlu0 %1575
        %1577 = vrot.lane.b32.xlu0 %v1496, 24
        %v1578 = vpop.permute.xlu0 %1577
        %1579 = vrot.lane.b32.xlu0 %v1497, 24
        %v1580 = vpop.permute.xlu0 %1579
        %1581 = vrot.lane.b32.xlu0 %v1498, 24
        %v1582 = vpop.permute.xlu0 %1581
        %1583 = vrot.lane.b32.xlu0 %v1499, 24
        %v1584 = vpop.permute.xlu0 %1583
        %1585 = vrot.lane.b32.xlu0 %v1500, 24
        %v1586 = vpop.permute.xlu0 %1585
        %1587 = vrot.lane.b32.xlu0 %v1501, 24
        %v1588 = vpop.permute.xlu0 %1587
        %1589 = vrot.lane.b32.xlu0 %v1502, 24
        %v1590 = vpop.permute.xlu0 %1589
        %1591 = vrot.lane.b32.xlu0 %v1503, 24
        %v1592 = vpop.permute.xlu0 %1591
        %1593 = vrot.lane.b32.xlu0 %v1504, 24
        %v1594 = vpop.permute.xlu0 %1593
        %1595 = vrot.lane.b32.xlu0 %v1505, 24
        %v1596 = vpop.permute.xlu0 %1595
        %1597 = vrot.lane.b32.xlu0 %v1506, 24
        %v1598 = vpop.permute.xlu0 %1597
        %1599 = vrot.lane.b32.xlu0 %v1507, 24
        %v1600 = vpop.permute.xlu0 %1599
        %1601 = vrot.lane.b32.xlu0 %v1508, 24
        %v1602 = vpop.permute.xlu0 %1601
        %1603 = vrot.lane.b32.xlu0 %v1509, 24
        %v1604 = vpop.permute.xlu0 %1603
        %1605 = vrot.lane.b32.xlu0 %v1510, 24
        %v1606 = vpop.permute.xlu0 %1605
        %vm1639 = vcmask 228544
        %1640 = vst.msk [vmem:[#allocation3] sm:$0xff] %vm1639, %v1544
        %1641 = vst.msk [vmem:[#allocation3 + $0x8] sm:$0xff] %vm1639, %v1546
        %1642 = vst.msk [vmem:[#allocation3 + $0x10] sm:$0xff] %vm1639, %v1548
        %1643 = vst.msk [vmem:[#allocation3 + $0x18] sm:$0xff] %vm1639, %v1550
        %1644 = vst.msk [vmem:[#allocation3 + $0x20] sm:$0xff] %vm1639, %v1552
        %1645 = vst.msk [vmem:[#allocation3 + $0x28] sm:$0xff] %vm1639, %v1554
        %1646 = vst.msk [vmem:[#allocation3 + $0x30] sm:$0xff] %vm1639, %v1556
        %1647 = vst.msk [vmem:[#allocation3 + $0x38] sm:$0xff] %vm1639, %v1558
        %1648 = vst.msk [vmem:[#allocation3 + $0x40] sm:$0xff] %vm1639, %v1560
        %1649 = vst.msk [vmem:[#allocation3 + $0x48] sm:$0xff] %vm1639, %v1562
        %1650 = vst.msk [vmem:[#allocation3 + $0x50] sm:$0xff] %vm1639, %v1564
        %1651 = vst.msk [vmem:[#allocation3 + $0x58] sm:$0xff] %vm1639, %v1566
        %1652 = vst.msk [vmem:[#allocation3 + $0x60] sm:$0xff] %vm1639, %v1568
        %1653 = vst.msk [vmem:[#allocation3 + $0x68] sm:$0xff] %vm1639, %v1570
        %1654 = vst.msk [vmem:[#allocation3 + $0x70] sm:$0xff] %vm1639, %v1572
        %1655 = vst.msk [vmem:[#allocation3 + $0x78] sm:$0xff] %vm1639, %v1574
        %1656 = vst.msk [vmem:[#allocation3 + $0x80] sm:$0xff] %vm1639, %v1576
        %1657 = vst.msk [vmem:[#allocation3 + $0x88] sm:$0xff] %vm1639, %v1578
        %1658 = vst.msk [vmem:[#allocation3 + $0x90] sm:$0xff] %vm1639, %v1580
        %1659 = vst.msk [vmem:[#allocation3 + $0x98] sm:$0xff] %vm1639, %v1582
        %1660 = vst.msk [vmem:[#allocation3 + $0xa0] sm:$0xff] %vm1639, %v1584
        %1661 = vst.msk [vmem:[#allocation3 + $0xa8] sm:$0xff] %vm1639, %v1586
        %1662 = vst.msk [vmem:[#allocation3 + $0xb0] sm:$0xff] %vm1639, %v1588
        %1663 = vst.msk [vmem:[#allocation3 + $0xb8] sm:$0xff] %vm1639, %v1590
        %1664 = vst.msk [vmem:[#allocation3 + $0xc0] sm:$0xff] %vm1639, %v1592
        %1665 = vst.msk [vmem:[#allocation3 + $0xc8] sm:$0xff] %vm1639, %v1594
        %1666 = vst.msk [vmem:[#allocation3 + $0xd0] sm:$0xff] %vm1639, %v1596
        %1667 = vst.msk [vmem:[#allocation3 + $0xd8] sm:$0xff] %vm1639, %v1598
        %1668 = vst.msk [vmem:[#allocation3 + $0xe0] sm:$0xff] %vm1639, %v1600
        %1669 = vst.msk [vmem:[#allocation3 + $0xe8] sm:$0xff] %vm1639, %v1602
        %1670 = vst.msk [vmem:[#allocation3 + $0xf0] sm:$0xff] %vm1639, %v1604
        %1671 = vst.msk [vmem:[#allocation3 + $0xf8] sm:$0xff] %vm1639, %v1606
        %v1672 = vld [vmem:[%s1285 + $0x2] sm:$0xff]
        %v1673 = vld [vmem:[%s1285 + $0xa] sm:$0xff]
        %v1674 = vld [vmem:[%s1285 + $0x1a] sm:$0xff]
        %v1675 = vld [vmem:[%s1285 + $0x22] sm:$0xff]
        %v1676 = vld [vmem:[%s1285 + $0x32] sm:$0xff]
        %v1677 = vld [vmem:[%s1285 + $0x3a] sm:$0xff]
        %v1678 = vld [vmem:[%s1285 + $0x4a] sm:$0xff]
        %v1679 = vld [vmem:[%s1285 + $0x52] sm:$0xff]
        %v1680 = vld [vmem:[%s1285 + $0x62] sm:$0xff]
        %v1681 = vld [vmem:[%s1285 + $0x6a] sm:$0xff]
        %v1682 = vld [vmem:[%s1285 + $0x7a] sm:$0xff]
        %v1683 = vld [vmem:[%s1285 + $0x82] sm:$0xff]
        %v1684 = vld [vmem:[%s1285 + $0x92] sm:$0xff]
        %v1685 = vld [vmem:[%s1285 + $0x9a] sm:$0xff]
        %v1686 = vld [vmem:[%s1285 + $0xaa] sm:$0xff]
        %v1687 = vld [vmem:[%s1285 + $0xb2] sm:$0xff]
        %v1688 = vld [vmem:[%s1285 + $0xc2] sm:$0xff]
        %v1689 = vld [vmem:[%s1285 + $0xca] sm:$0xff]
        %v1690 = vld [vmem:[%s1285 + $0xda] sm:$0xff]
        %v1691 = vld [vmem:[%s1285 + $0xe2] sm:$0xff]
        %v1692 = vld [vmem:[%s1285 + $0xf2] sm:$0xff]
        %v1693 = vld [vmem:[%s1285 + $0xfa] sm:$0xff]
        %v1694 = vld [vmem:[%s1285 + $0x10a] sm:$0xff]
        %v1695 = vld [vmem:[%s1285 + $0x112] sm:$0xff]
        %v1696 = vld [vmem:[%s1285 + $0x122] sm:$0xff]
        %v1697 = vld [vmem:[%s1285 + $0x12a] sm:$0xff]
        %v1698 = vld [vmem:[%s1285 + $0x13a] sm:$0xff]
        %v1699 = vld [vmem:[%s1285 + $0x142] sm:$0xff]
        %v1700 = vld [vmem:[%s1285 + $0x152] sm:$0xff]
        %v1701 = vld [vmem:[%s1285 + $0x15a] sm:$0xff]
        %v1702 = vld [vmem:[%s1285 + $0x16a] sm:$0xff]
        %v1703 = vld [vmem:[%s1285 + $0x172] sm:$0xff]
        %1736 = vrot.lane.b32.xlu0 %v1672, 28
        %v1737 = vpop.permute.xlu0 %1736
        %1738 = vrot.lane.b32.xlu0 %v1673, 28
        %v1739 = vpop.permute.xlu0 %1738
        %1740 = vrot.lane.b32.xlu0 %v1674, 28
        %v1741 = vpop.permute.xlu0 %1740
        %1742 = vrot.lane.b32.xlu0 %v1675, 28
        %v1743 = vpop.permute.xlu0 %1742
        %1744 = vrot.lane.b32.xlu0 %v1676, 28
        %v1745 = vpop.permute.xlu0 %1744
        %1746 = vrot.lane.b32.xlu0 %v1677, 28
        %v1747 = vpop.permute.xlu0 %1746
        %1748 = vrot.lane.b32.xlu0 %v1678, 28
        %v1749 = vpop.permute.xlu0 %1748
        %1750 = vrot.lane.b32.xlu0 %v1679, 28
        %v1751 = vpop.permute.xlu0 %1750
        %1752 = vrot.lane.b32.xlu0 %v1680, 28
        %v1753 = vpop.permute.xlu0 %1752
        %1754 = vrot.lane.b32.xlu0 %v1681, 28
        %v1755 = vpop.permute.xlu0 %1754
        %1756 = vrot.lane.b32.xlu0 %v1682, 28
        %v1757 = vpop.permute.xlu0 %1756
        %1758 = vrot.lane.b32.xlu0 %v1683, 28
        %v1759 = vpop.permute.xlu0 %1758
        %1760 = vrot.lane.b32.xlu0 %v1684, 28
        %v1761 = vpop.permute.xlu0 %1760
        %1762 = vrot.lane.b32.xlu0 %v1685, 28
        %v1763 = vpop.permute.xlu0 %1762
        %1764 = vrot.lane.b32.xlu0 %v1686, 28
        %v1765 = vpop.permute.xlu0 %1764
        %1766 = vrot.lane.b32.xlu0 %v1687, 28
        %v1767 = vpop.permute.xlu0 %1766
        %1768 = vrot.lane.b32.xlu0 %v1688, 28
        %v1769 = vpop.permute.xlu0 %1768
        %1770 = vrot.lane.b32.xlu0 %v1689, 28
        %v1771 = vpop.permute.xlu0 %1770
        %1772 = vrot.lane.b32.xlu0 %v1690, 28
        %v1773 = vpop.permute.xlu0 %1772
        %1774 = vrot.lane.b32.xlu0 %v1691, 28
        %v1775 = vpop.permute.xlu0 %1774
        %1776 = vrot.lane.b32.xlu0 %v1692, 28
        %v1777 = vpop.permute.xlu0 %1776
        %1778 = vrot.lane.b32.xlu0 %v1693, 28
        %v1779 = vpop.permute.xlu0 %1778
        %1780 = vrot.lane.b32.xlu0 %v1694, 28
        %v1781 = vpop.permute.xlu0 %1780
        %1782 = vrot.lane.b32.xlu0 %v1695, 28
        %v1783 = vpop.permute.xlu0 %1782
        %1784 = vrot.lane.b32.xlu0 %v1696, 28
        %v1785 = vpop.permute.xlu0 %1784
        %1786 = vrot.lane.b32.xlu0 %v1697, 28
        %v1787 = vpop.permute.xlu0 %1786
        %1788 = vrot.lane.b32.xlu0 %v1698, 28
        %v1789 = vpop.permute.xlu0 %1788
        %1790 = vrot.lane.b32.xlu0 %v1699, 28
        %v1791 = vpop.permute.xlu0 %1790
        %1792 = vrot.lane.b32.xlu0 %v1700, 28
        %v1793 = vpop.permute.xlu0 %1792
        %1794 = vrot.lane.b32.xlu0 %v1701, 28
        %v1795 = vpop.permute.xlu0 %1794
        %1796 = vrot.lane.b32.xlu0 %v1702, 28
        %v1797 = vpop.permute.xlu0 %1796
        %1798 = vrot.lane.b32.xlu0 %v1703, 28
        %v1799 = vpop.permute.xlu0 %1798
        %vm1832 = vcmask 261344
        %1833 = vst.msk [vmem:[#allocation3] sm:$0xff] %vm1832, %v1737
        %1834 = vst.msk [vmem:[#allocation3 + $0x8] sm:$0xff] %vm1832, %v1739
        %1835 = vst.msk [vmem:[#allocation3 + $0x10] sm:$0xff] %vm1832, %v1741
        %1836 = vst.msk [vmem:[#allocation3 + $0x18] sm:$0xff] %vm1832, %v1743
        %1837 = vst.msk [vmem:[#allocation3 + $0x20] sm:$0xff] %vm1832, %v1745
        %1838 = vst.msk [vmem:[#allocation3 + $0x28] sm:$0xff] %vm1832, %v1747
        %1839 = vst.msk [vmem:[#allocation3 + $0x30] sm:$0xff] %vm1832, %v1749
        %1840 = vst.msk [vmem:[#allocation3 + $0x38] sm:$0xff] %vm1832, %v1751
        %1841 = vst.msk [vmem:[#allocation3 + $0x40] sm:$0xff] %vm1832, %v1753
        %1842 = vst.msk [vmem:[#allocation3 + $0x48] sm:$0xff] %vm1832, %v1755
        %1843 = vst.msk [vmem:[#allocation3 + $0x50] sm:$0xff] %vm1832, %v1757
        %1844 = vst.msk [vmem:[#allocation3 + $0x58] sm:$0xff] %vm1832, %v1759
        %1845 = vst.msk [vmem:[#allocation3 + $0x60] sm:$0xff] %vm1832, %v1761
        %1846 = vst.msk [vmem:[#allocation3 + $0x68] sm:$0xff] %vm1832, %v1763
        %1847 = vst.msk [vmem:[#allocation3 + $0x70] sm:$0xff] %vm1832, %v1765
        %1848 = vst.msk [vmem:[#allocation3 + $0x78] sm:$0xff] %vm1832, %v1767
        %1849 = vst.msk [vmem:[#allocation3 + $0x80] sm:$0xff] %vm1832, %v1769
        %1850 = vst.msk [vmem:[#allocation3 + $0x88] sm:$0xff] %vm1832, %v1771
        %1851 = vst.msk [vmem:[#allocation3 + $0x90] sm:$0xff] %vm1832, %v1773
        %1852 = vst.msk [vmem:[#allocation3 + $0x98] sm:$0xff] %vm1832, %v1775
        %1853 = vst.msk [vmem:[#allocation3 + $0xa0] sm:$0xff] %vm1832, %v1777
        %1854 = vst.msk [vmem:[#allocation3 + $0xa8] sm:$0xff] %vm1832, %v1779
        %1855 = vst.msk [vmem:[#allocation3 + $0xb0] sm:$0xff] %vm1832, %v1781
        %1856 = vst.msk [vmem:[#allocation3 + $0xb8] sm:$0xff] %vm1832, %v1783
        %1857 = vst.msk [vmem:[#allocation3 + $0xc0] sm:$0xff] %vm1832, %v1785
        %1858 = vst.msk [vmem:[#allocation3 + $0xc8] sm:$0xff] %vm1832, %v1787
        %1859 = vst.msk [vmem:[#allocation3 + $0xd0] sm:$0xff] %vm1832, %v1789
        %1860 = vst.msk [vmem:[#allocation3 + $0xd8] sm:$0xff] %vm1832, %v1791
        %1861 = vst.msk [vmem:[#allocation3 + $0xe0] sm:$0xff] %vm1832, %v1793
        %1862 = vst.msk [vmem:[#allocation3 + $0xe8] sm:$0xff] %vm1832, %v1795
        %1863 = vst.msk [vmem:[#allocation3 + $0xf0] sm:$0xff] %vm1832, %v1797
        %1864 = vst.msk [vmem:[#allocation3 + $0xf8] sm:$0xff] %vm1832, %v1799
        %v1865 = vld [vmem:[%s1285 + $0x3] sm:$0xff]
        %v1866 = vld [vmem:[%s1285 + $0xb] sm:$0xff]
        %v1867 = vld [vmem:[%s1285 + $0x1b] sm:$0xff]
        %v1868 = vld [vmem:[%s1285 + $0x23] sm:$0xff]
        %v1869 = vld [vmem:[%s1285 + $0x33] sm:$0xff]
        %v1870 = vld [vmem:[%s1285 + $0x3b] sm:$0xff]
        %v1871 = vld [vmem:[%s1285 + $0x4b] sm:$0xff]
        %v1872 = vld [vmem:[%s1285 + $0x53] sm:$0xff]
        %v1873 = vld [vmem:[%s1285 + $0x63] sm:$0xff]
        %v1874 = vld [vmem:[%s1285 + $0x6b] sm:$0xff]
        %v1875 = vld [vmem:[%s1285 + $0x7b] sm:$0xff]
        %v1876 = vld [vmem:[%s1285 + $0x83] sm:$0xff]
        %v1877 = vld [vmem:[%s1285 + $0x93] sm:$0xff]
        %v1878 = vld [vmem:[%s1285 + $0x9b] sm:$0xff]
        %v1879 = vld [vmem:[%s1285 + $0xab] sm:$0xff]
        %v1880 = vld [vmem:[%s1285 + $0xb3] sm:$0xff]
        %v1881 = vld [vmem:[%s1285 + $0xc3] sm:$0xff]
        %v1882 = vld [vmem:[%s1285 + $0xcb] sm:$0xff]
        %v1883 = vld [vmem:[%s1285 + $0xdb] sm:$0xff]
        %v1884 = vld [vmem:[%s1285 + $0xe3] sm:$0xff]
        %v1885 = vld [vmem:[%s1285 + $0xf3] sm:$0xff]
        %v1886 = vld [vmem:[%s1285 + $0xfb] sm:$0xff]
        %v1887 = vld [vmem:[%s1285 + $0x10b] sm:$0xff]
        %v1888 = vld [vmem:[%s1285 + $0x113] sm:$0xff]
        %v1889 = vld [vmem:[%s1285 + $0x123] sm:$0xff]
        %v1890 = vld [vmem:[%s1285 + $0x12b] sm:$0xff]
        %v1891 = vld [vmem:[%s1285 + $0x13b] sm:$0xff]
        %v1892 = vld [vmem:[%s1285 + $0x143] sm:$0xff]
        %v1893 = vld [vmem:[%s1285 + $0x153] sm:$0xff]
        %v1894 = vld [vmem:[%s1285 + $0x15b] sm:$0xff]
        %v1895 = vld [vmem:[%s1285 + $0x16b] sm:$0xff]
        %v1896 = vld [vmem:[%s1285 + $0x173] sm:$0xff]
        %1929 = vrot.lane.b32.xlu0 %v1865, 32
        %v1930 = vpop.permute.xlu0 %1929
        %1931 = vrot.lane.b32.xlu0 %v1866, 32
        %v1932 = vpop.permute.xlu0 %1931
        %1933 = vrot.lane.b32.xlu0 %v1867, 32
        %v1934 = vpop.permute.xlu0 %1933
        %1935 = vrot.lane.b32.xlu0 %v1868, 32
        %v1936 = vpop.permute.xlu0 %1935
        %1937 = vrot.lane.b32.xlu0 %v1869, 32
        %v1938 = vpop.permute.xlu0 %1937
        %1939 = vrot.lane.b32.xlu0 %v1870, 32
        %v1940 = vpop.permute.xlu0 %1939
        %1941 = vrot.lane.b32.xlu0 %v1871, 32
        %v1942 = vpop.permute.xlu0 %1941
        %1943 = vrot.lane.b32.xlu0 %v1872, 32
        %v1944 = vpop.permute.xlu0 %1943
        %1945 = vrot.lane.b32.xlu0 %v1873, 32
        %v1946 = vpop.permute.xlu0 %1945
        %1947 = vrot.lane.b32.xlu0 %v1874, 32
        %v1948 = vpop.permute.xlu0 %1947
        %1949 = vrot.lane.b32.xlu0 %v1875, 32
        %v1950 = vpop.permute.xlu0 %1949
        %1951 = vrot.lane.b32.xlu0 %v1876, 32
        %v1952 = vpop.permute.xlu0 %1951
        %1953 = vrot.lane.b32.xlu0 %v1877, 32
        %v1954 = vpop.permute.xlu0 %1953
        %1955 = vrot.lane.b32.xlu0 %v1878, 32
        %v1956 = vpop.permute.xlu0 %1955
        %1957 = vrot.lane.b32.xlu0 %v1879, 32
        %v1958 = vpop.permute.xlu0 %1957
        %1959 = vrot.lane.b32.xlu0 %v1880, 32
        %v1960 = vpop.permute.xlu0 %1959
        %1961 = vrot.lane.b32.xlu0 %v1881, 32
        %v1962 = vpop.permute.xlu0 %1961
        %1963 = vrot.lane.b32.xlu0 %v1882, 32
        %v1964 = vpop.permute.xlu0 %1963
        %1965 = vrot.lane.b32.xlu0 %v1883, 32
        %v1966 = vpop.permute.xlu0 %1965
        %1967 = vrot.lane.b32.xlu0 %v1884, 32
        %v1968 = vpop.permute.xlu0 %1967
        %1969 = vrot.lane.b32.xlu0 %v1885, 32
        %v1970 = vpop.permute.xlu0 %1969
        %1971 = vrot.lane.b32.xlu0 %v1886, 32
        %v1972 = vpop.permute.xlu0 %1971
        %1973 = vrot.lane.b32.xlu0 %v1887, 32
        %v1974 = vpop.permute.xlu0 %1973
        %1975 = vrot.lane.b32.xlu0 %v1888, 32
        %v1976 = vpop.permute.xlu0 %1975
        %1977 = vrot.lane.b32.xlu0 %v1889, 32
        %v1978 = vpop.permute.xlu0 %1977
        %1979 = vrot.lane.b32.xlu0 %v1890, 32
        %v1980 = vpop.permute.xlu0 %1979
        %1981 = vrot.lane.b32.xlu0 %v1891, 32
        %v1982 = vpop.permute.xlu0 %1981
        %1983 = vrot.lane.b32.xlu0 %v1892, 32
        %v1984 = vpop.permute.xlu0 %1983
        %1985 = vrot.lane.b32.xlu0 %v1893, 32
        %v1986 = vpop.permute.xlu0 %1985
        %1987 = vrot.lane.b32.xlu0 %v1894, 32
        %v1988 = vpop.permute.xlu0 %1987
        %1989 = vrot.lane.b32.xlu0 %v1895, 32
        %v1990 = vpop.permute.xlu0 %1989
        %1991 = vrot.lane.b32.xlu0 %v1896, 32
        %v1992 = vpop.permute.xlu0 %1991
        %vm2025 = vcmask 294144
        %2026 = vst.msk [vmem:[#allocation3] sm:$0xff] %vm2025, %v1930
        %2027 = vst.msk [vmem:[#allocation3 + $0x8] sm:$0xff] %vm2025, %v1932
        %2028 = vst.msk [vmem:[#allocation3 + $0x10] sm:$0xff] %vm2025, %v1934
        %2029 = vst.msk [vmem:[#allocation3 + $0x18] sm:$0xff] %vm2025, %v1936
        %2030 = vst.msk [vmem:[#allocation3 + $0x20] sm:$0xff] %vm2025, %v1938
        %2031 = vst.msk [vmem:[#allocation3 + $0x28] sm:$0xff] %vm2025, %v1940
        %2032 = vst.msk [vmem:[#allocation3 + $0x30] sm:$0xff] %vm2025, %v1942
        %2033 = vst.msk [vmem:[#allocation3 + $0x38] sm:$0xff] %vm2025, %v1944
        %2034 = vst.msk [vmem:[#allocation3 + $0x40] sm:$0xff] %vm2025, %v1946
        %2035 = vst.msk [vmem:[#allocation3 + $0x48] sm:$0xff] %vm2025, %v1948
        %2036 = vst.msk [vmem:[#allocation3 + $0x50] sm:$0xff] %vm2025, %v1950
        %2037 = vst.msk [vmem:[#allocation3 + $0x58] sm:$0xff] %vm2025, %v1952
        %2038 = vst.msk [vmem:[#allocation3 + $0x60] sm:$0xff] %vm2025, %v1954
        %2039 = vst.msk [vmem:[#allocation3 + $0x68] sm:$0xff] %vm2025, %v1956
        %2040 = vst.msk [vmem:[#allocation3 + $0x70] sm:$0xff] %vm2025, %v1958
        %2041 = vst.msk [vmem:[#allocation3 + $0x78] sm:$0xff] %vm2025, %v1960
        %2042 = vst.msk [vmem:[#allocation3 + $0x80] sm:$0xff] %vm2025, %v1962
        %2043 = vst.msk [vmem:[#allocation3 + $0x88] sm:$0xff] %vm2025, %v1964
        %2044 = vst.msk [vmem:[#allocation3 + $0x90] sm:$0xff] %vm2025, %v1966
        %2045 = vst.msk [vmem:[#allocation3 + $0x98] sm:$0xff] %vm2025, %v1968
        %2046 = vst.msk [vmem:[#allocation3 + $0xa0] sm:$0xff] %vm2025, %v1970
        %2047 = vst.msk [vmem:[#allocation3 + $0xa8] sm:$0xff] %vm2025, %v1972
        %2048 = vst.msk [vmem:[#allocation3 + $0xb0] sm:$0xff] %vm2025, %v1974
        %2049 = vst.msk [vmem:[#allocation3 + $0xb8] sm:$0xff] %vm2025, %v1976
        %2050 = vst.msk [vmem:[#allocation3 + $0xc0] sm:$0xff] %vm2025, %v1978
        %2051 = vst.msk [vmem:[#allocation3 + $0xc8] sm:$0xff] %vm2025, %v1980
        %2052 = vst.msk [vmem:[#allocation3 + $0xd0] sm:$0xff] %vm2025, %v1982
        %2053 = vst.msk [vmem:[#allocation3 + $0xd8] sm:$0xff] %vm2025, %v1984
        %2054 = vst.msk [vmem:[#allocation3 + $0xe0] sm:$0xff] %vm2025, %v1986
        %2055 = vst.msk [vmem:[#allocation3 + $0xe8] sm:$0xff] %vm2025, %v1988
        %2056 = vst.msk [vmem:[#allocation3 + $0xf0] sm:$0xff] %vm2025, %v1990
        %2057 = vst.msk [vmem:[#allocation3 + $0xf8] sm:$0xff] %vm2025, %v1992
        %v2058 = vld [vmem:[%s1285 + $0x4] sm:$0xff]
        %v2059 = vld [vmem:[%s1285 + $0xc] sm:$0xff]
        %v2060 = vld [vmem:[%s1285 + $0x1c] sm:$0xff]
        %v2061 = vld [vmem:[%s1285 + $0x24] sm:$0xff]
        %v2062 = vld [vmem:[%s1285 + $0x34] sm:$0xff]
        %v2063 = vld [vmem:[%s1285 + $0x3c] sm:$0xff]
        %v2064 = vld [vmem:[%s1285 + $0x4c] sm:$0xff]
        %v2065 = vld [vmem:[%s1285 + $0x54] sm:$0xff]
        %v2066 = vld [vmem:[%s1285 + $0x64] sm:$0xff]
        %v2067 = vld [vmem:[%s1285 + $0x6c] sm:$0xff]
        %v2068 = vld [vmem:[%s1285 + $0x7c] sm:$0xff]
        %v2069 = vld [vmem:[%s1285 + $0x84] sm:$0xff]
        %v2070 = vld [vmem:[%s1285 + $0x94] sm:$0xff]
        %v2071 = vld [vmem:[%s1285 + $0x9c] sm:$0xff]
        %v2072 = vld [vmem:[%s1285 + $0xac] sm:$0xff]
        %v2073 = vld [vmem:[%s1285 + $0xb4] sm:$0xff]
        %v2074 = vld [vmem:[%s1285 + $0xc4] sm:$0xff]
        %v2075 = vld [vmem:[%s1285 + $0xcc] sm:$0xff]
        %v2076 = vld [vmem:[%s1285 + $0xdc] sm:$0xff]
        %v2077 = vld [vmem:[%s1285 + $0xe4] sm:$0xff]
        %v2078 = vld [vmem:[%s1285 + $0xf4] sm:$0xff]
        %v2079 = vld [vmem:[%s1285 + $0xfc] sm:$0xff]
        %v2080 = vld [vmem:[%s1285 + $0x10c] sm:$0xff]
        %v2081 = vld [vmem:[%s1285 + $0x114] sm:$0xff]
        %v2082 = vld [vmem:[%s1285 + $0x124] sm:$0xff]
        %v2083 = vld [vmem:[%s1285 + $0x12c] sm:$0xff]
        %v2084 = vld [vmem:[%s1285 + $0x13c] sm:$0xff]
        %v2085 = vld [vmem:[%s1285 + $0x144] sm:$0xff]
        %v2086 = vld [vmem:[%s1285 + $0x154] sm:$0xff]
        %v2087 = vld [vmem:[%s1285 + $0x15c] sm:$0xff]
        %v2088 = vld [vmem:[%s1285 + $0x16c] sm:$0xff]
        %v2089 = vld [vmem:[%s1285 + $0x174] sm:$0xff]
        %2122 = vrot.lane.b32.xlu0 %v2058, 36
        %v2123 = vpop.permute.xlu0 %2122
        %2124 = vrot.lane.b32.xlu0 %v2059, 36
        %v2125 = vpop.permute.xlu0 %2124
        %2126 = vrot.lane.b32.xlu0 %v2060, 36
        %v2127 = vpop.permute.xlu0 %2126
        %2128 = vrot.lane.b32.xlu0 %v2061, 36
        %v2129 = vpop.permute.xlu0 %2128
        %2130 = vrot.lane.b32.xlu0 %v2062, 36
        %v2131 = vpop.permute.xlu0 %2130
        %2132 = vrot.lane.b32.xlu0 %v2063, 36
        %v2133 = vpop.permute.xlu0 %2132
        %2134 = vrot.lane.b32.xlu0 %v2064, 36
        %v2135 = vpop.permute.xlu0 %2134
        %2136 = vrot.lane.b32.xlu0 %v2065, 36
        %v2137 = vpop.permute.xlu0 %2136
        %2138 = vrot.lane.b32.xlu0 %v2066, 36
        %v2139 = vpop.permute.xlu0 %2138
        %2140 = vrot.lane.b32.xlu0 %v2067, 36
        %v2141 = vpop.permute.xlu0 %2140
        %2142 = vrot.lane.b32.xlu0 %v2068, 36
        %v2143 = vpop.permute.xlu0 %2142
        %2144 = vrot.lane.b32.xlu0 %v2069, 36
        %v2145 = vpop.permute.xlu0 %2144
        %2146 = vrot.lane.b32.xlu0 %v2070, 36
        %v2147 = vpop.permute.xlu0 %2146
        %2148 = vrot.lane.b32.xlu0 %v2071, 36
        %v2149 = vpop.permute.xlu0 %2148
        %2150 = vrot.lane.b32.xlu0 %v2072, 36
        %v2151 = vpop.permute.xlu0 %2150
        %2152 = vrot.lane.b32.xlu0 %v2073, 36
        %v2153 = vpop.permute.xlu0 %2152
        %2154 = vrot.lane.b32.xlu0 %v2074, 36
        %v2155 = vpop.permute.xlu0 %2154
        %2156 = vrot.lane.b32.xlu0 %v2075, 36
        %v2157 = vpop.permute.xlu0 %2156
        %2158 = vrot.lane.b32.xlu0 %v2076, 36
        %v2159 = vpop.permute.xlu0 %2158
        %2160 = vrot.lane.b32.xlu0 %v2077, 36
        %v2161 = vpop.permute.xlu0 %2160
        %2162 = vrot.lane.b32.xlu0 %v2078, 36
        %v2163 = vpop.permute.xlu0 %2162
        %2164 = vrot.lane.b32.xlu0 %v2079, 36
        %v2165 = vpop.permute.xlu0 %2164
        %2166 = vrot.lane.b32.xlu0 %v2080, 36
        %v2167 = vpop.permute.xlu0 %2166
        %2168 = vrot.lane.b32.xlu0 %v2081, 36
        %v2169 = vpop.permute.xlu0 %2168
        %2170 = vrot.lane.b32.xlu0 %v2082, 36
        %v2171 = vpop.permute.xlu0 %2170
        %2172 = vrot.lane.b32.xlu0 %v2083, 36
        %v2173 = vpop.permute.xlu0 %2172
        %2174 = vrot.lane.b32.xlu0 %v2084, 36
        %v2175 = vpop.permute.xlu0 %2174
        %2176 = vrot.lane.b32.xlu0 %v2085, 36
        %v2177 = vpop.permute.xlu0 %2176
        %2178 = vrot.lane.b32.xlu0 %v2086, 36
        %v2179 = vpop.permute.xlu0 %2178
        %2180 = vrot.lane.b32.xlu0 %v2087, 36
        %v2181 = vpop.permute.xlu0 %2180
        %2182 = vrot.lane.b32.xlu0 %v2088, 36
        %v2183 = vpop.permute.xlu0 %2182
        %2184 = vrot.lane.b32.xlu0 %v2089, 36
        %v2185 = vpop.permute.xlu0 %2184
        %vm2218 = vcmask 326944
        %2219 = vst.msk [vmem:[#allocation3] sm:$0xff] %vm2218, %v2123
        %2220 = vst.msk [vmem:[#allocation3 + $0x8] sm:$0xff] %vm2218, %v2125
        %2221 = vst.msk [vmem:[#allocation3 + $0x10] sm:$0xff] %vm2218, %v2127
        %2222 = vst.msk [vmem:[#allocation3 + $0x18] sm:$0xff] %vm2218, %v2129
        %2223 = vst.msk [vmem:[#allocation3 + $0x20] sm:$0xff] %vm2218, %v2131
        %2224 = vst.msk [vmem:[#allocation3 + $0x28] sm:$0xff] %vm2218, %v2133
        %2225 = vst.msk [vmem:[#allocation3 + $0x30] sm:$0xff] %vm2218, %v2135
        %2226 = vst.msk [vmem:[#allocation3 + $0x38] sm:$0xff] %vm2218, %v2137
        %2227 = vst.msk [vmem:[#allocation3 + $0x40] sm:$0xff] %vm2218, %v2139
        %2228 = vst.msk [vmem:[#allocation3 + $0x48] sm:$0xff] %vm2218, %v2141
        %2229 = vst.msk [vmem:[#allocation3 + $0x50] sm:$0xff] %vm2218, %v2143
        %2230 = vst.msk [vmem:[#allocation3 + $0x58] sm:$0xff] %vm2218, %v2145
        %2231 = vst.msk [vmem:[#allocation3 + $0x60] sm:$0xff] %vm2218, %v2147
        %2232 = vst.msk [vmem:[#allocation3 + $0x68] sm:$0xff] %vm2218, %v2149
        %2233 = vst.msk [vmem:[#allocation3 + $0x70] sm:$0xff] %vm2218, %v2151
        %2234 = vst.msk [vmem:[#allocation3 + $0x78] sm:$0xff] %vm2218, %v2153
        %2235 = vst.msk [vmem:[#allocation3 + $0x80] sm:$0xff] %vm2218, %v2155
        %2236 = vst.msk [vmem:[#allocation3 + $0x88] sm:$0xff] %vm2218, %v2157
        %2237 = vst.msk [vmem:[#allocation3 + $0x90] sm:$0xff] %vm2218, %v2159
        %2238 = vst.msk [vmem:[#allocation3 + $0x98] sm:$0xff] %vm2218, %v2161
        %2239 = vst.msk [vmem:[#allocation3 + $0xa0] sm:$0xff] %vm2218, %v2163
        %2240 = vst.msk [vmem:[#allocation3 + $0xa8] sm:$0xff] %vm2218, %v2165
        %2241 = vst.msk [vmem:[#allocation3 + $0xb0] sm:$0xff] %vm2218, %v2167
        %2242 = vst.msk [vmem:[#allocation3 + $0xb8] sm:$0xff] %vm2218, %v2169
        %2243 = vst.msk [vmem:[#allocation3 + $0xc0] sm:$0xff] %vm2218, %v2171
        %2244 = vst.msk [vmem:[#allocation3 + $0xc8] sm:$0xff] %vm2218, %v2173
        %2245 = vst.msk [vmem:[#allocation3 + $0xd0] sm:$0xff] %vm2218, %v2175
        %2246 = vst.msk [vmem:[#allocation3 + $0xd8] sm:$0xff] %vm2218, %v2177
        %2247 = vst.msk [vmem:[#allocation3 + $0xe0] sm:$0xff] %vm2218, %v2179
        %2248 = vst.msk [vmem:[#allocation3 + $0xe8] sm:$0xff] %vm2218, %v2181
        %2249 = vst.msk [vmem:[#allocation3 + $0xf0] sm:$0xff] %vm2218, %v2183
        %2250 = vst.msk [vmem:[#allocation3 + $0xf8] sm:$0xff] %vm2218, %v2185
        %v2251 = vld [vmem:[%s416] sm:$0xff]
        %v2252 = vld [vmem:[%s416 + $0x8] sm:$0xff]
        %v2253 = vld [vmem:[%s416 + $0x18] sm:$0xff]
        %v2254 = vld [vmem:[%s416 + $0x20] sm:$0xff]
        %v2255 = vld [vmem:[%s416 + $0x30] sm:$0xff]
        %v2256 = vld [vmem:[%s416 + $0x38] sm:$0xff]
        %v2257 = vld [vmem:[%s416 + $0x48] sm:$0xff]
        %v2258 = vld [vmem:[%s416 + $0x50] sm:$0xff]
        %v2259 = vld [vmem:[%s416 + $0x60] sm:$0xff]
        %v2260 = vld [vmem:[%s416 + $0x68] sm:$0xff]
        %v2261 = vld [vmem:[%s416 + $0x78] sm:$0xff]
        %v2262 = vld [vmem:[%s416 + $0x80] sm:$0xff]
        %v2263 = vld [vmem:[%s416 + $0x90] sm:$0xff]
        %v2264 = vld [vmem:[%s416 + $0x98] sm:$0xff]
        %v2265 = vld [vmem:[%s416 + $0xa8] sm:$0xff]
        %v2266 = vld [vmem:[%s416 + $0xb0] sm:$0xff]
        %v2267 = vld [vmem:[%s416 + $0xc0] sm:$0xff]
        %v2268 = vld [vmem:[%s416 + $0xc8] sm:$0xff]
        %v2269 = vld [vmem:[%s416 + $0xd8] sm:$0xff]
        %v2270 = vld [vmem:[%s416 + $0xe0] sm:$0xff]
        %v2271 = vld [vmem:[%s416 + $0xf0] sm:$0xff]
        %v2272 = vld [vmem:[%s416 + $0xf8] sm:$0xff]
        %v2273 = vld [vmem:[%s416 + $0x108] sm:$0xff]
        %v2274 = vld [vmem:[%s416 + $0x110] sm:$0xff]
        %v2275 = vld [vmem:[%s416 + $0x120] sm:$0xff]
        %v2276 = vld [vmem:[%s416 + $0x128] sm:$0xff]
        %v2277 = vld [vmem:[%s416 + $0x138] sm:$0xff]
        %v2278 = vld [vmem:[%s416 + $0x140] sm:$0xff]
        %v2279 = vld [vmem:[%s416 + $0x150] sm:$0xff]
        %v2280 = vld [vmem:[%s416 + $0x158] sm:$0xff]
        %v2281 = vld [vmem:[%s416 + $0x168] sm:$0xff]
        %v2282 = vld [vmem:[%s416 + $0x170] sm:$0xff]
        %2315 = vrot.lane.b32.xlu0 %v2251, 40
        %v2316 = vpop.permute.xlu0 %2315
        %2317 = vrot.lane.b32.xlu0 %v2252, 40
        %v2318 = vpop.permute.xlu0 %2317
        %2319 = vrot.lane.b32.xlu0 %v2253, 40
        %v2320 = vpop.permute.xlu0 %2319
        %2321 = vrot.lane.b32.xlu0 %v2254, 40
        %v2322 = vpop.permute.xlu0 %2321
        %2323 = vrot.lane.b32.xlu0 %v2255, 40
        %v2324 = vpop.permute.xlu0 %2323
        %2325 = vrot.lane.b32.xlu0 %v2256, 40
        %v2326 = vpop.permute.xlu0 %2325
        %2327 = vrot.lane.b32.xlu0 %v2257, 40
        %v2328 = vpop.permute.xlu0 %2327
        %2329 = vrot.lane.b32.xlu0 %v2258, 40
        %v2330 = vpop.permute.xlu0 %2329
        %2331 = vrot.lane.b32.xlu0 %v2259, 40
        %v2332 = vpop.permute.xlu0 %2331
        %2333 = vrot.lane.b32.xlu0 %v2260, 40
        %v2334 = vpop.permute.xlu0 %2333
        %2335 = vrot.lane.b32.xlu0 %v2261, 40
        %v2336 = vpop.permute.xlu0 %2335
        %2337 = vrot.lane.b32.xlu0 %v2262, 40
        %v2338 = vpop.permute.xlu0 %2337
        %2339 = vrot.lane.b32.xlu0 %v2263, 40
        %v2340 = vpop.permute.xlu0 %2339
        %2341 = vrot.lane.b32.xlu0 %v2264, 40
        %v2342 = vpop.permute.xlu0 %2341
        %2343 = vrot.lane.b32.xlu0 %v2265, 40
        %v2344 = vpop.permute.xlu0 %2343
        %2345 = vrot.lane.b32.xlu0 %v2266, 40
        %v2346 = vpop.permute.xlu0 %2345
        %2347 = vrot.lane.b32.xlu0 %v2267, 40
        %v2348 = vpop.permute.xlu0 %2347
        %2349 = vrot.lane.b32.xlu0 %v2268, 40
        %v2350 = vpop.permute.xlu0 %2349
        %2351 = vrot.lane.b32.xlu0 %v2269, 40
        %v2352 = vpop.permute.xlu0 %2351
        %2353 = vrot.lane.b32.xlu0 %v2270, 40
        %v2354 = vpop.permute.xlu0 %2353
        %2355 = vrot.lane.b32.xlu0 %v2271, 40
        %v2356 = vpop.permute.xlu0 %2355
        %2357 = vrot.lane.b32.xlu0 %v2272, 40
        %v2358 = vpop.permute.xlu0 %2357
        %2359 = vrot.lane.b32.xlu0 %v2273, 40
        %v2360 = vpop.permute.xlu0 %2359
        %2361 = vrot.lane.b32.xlu0 %v2274, 40
        %v2362 = vpop.permute.xlu0 %2361
        %2363 = vrot.lane.b32.xlu0 %v2275, 40
        %v2364 = vpop.permute.xlu0 %2363
        %2365 = vrot.lane.b32.xlu0 %v2276, 40
        %v2366 = vpop.permute.xlu0 %2365
        %2367 = vrot.lane.b32.xlu0 %v2277, 40
        %v2368 = vpop.permute.xlu0 %2367
        %2369 = vrot.lane.b32.xlu0 %v2278, 40
        %v2370 = vpop.permute.xlu0 %2369
        %2371 = vrot.lane.b32.xlu0 %v2279, 40
        %v2372 = vpop.permute.xlu0 %2371
        %2373 = vrot.lane.b32.xlu0 %v2280, 40
        %v2374 = vpop.permute.xlu0 %2373
        %2375 = vrot.lane.b32.xlu0 %v2281, 40
        %v2376 = vpop.permute.xlu0 %2375
        %2377 = vrot.lane.b32.xlu0 %v2282, 40
        %v2378 = vpop.permute.xlu0 %2377
        %vm2411 = vcmask 359744
        %2412 = vst.msk [vmem:[#allocation3] sm:$0xff] %vm2411, %v2316
        %2413 = vst.msk [vmem:[#allocation3 + $0x8] sm:$0xff] %vm2411, %v2318
        %2414 = vst.msk [vmem:[#allocation3 + $0x10] sm:$0xff] %vm2411, %v2320
        %2415 = vst.msk [vmem:[#allocation3 + $0x18] sm:$0xff] %vm2411, %v2322
        %2416 = vst.msk [vmem:[#allocation3 + $0x20] sm:$0xff] %vm2411, %v2324
        %2417 = vst.msk [vmem:[#allocation3 + $0x28] sm:$0xff] %vm2411, %v2326
        %2418 = vst.msk [vmem:[#allocation3 + $0x30] sm:$0xff] %vm2411, %v2328
        %2419 = vst.msk [vmem:[#allocation3 + $0x38] sm:$0xff] %vm2411, %v2330
        %2420 = vst.msk [vmem:[#allocation3 + $0x40] sm:$0xff] %vm2411, %v2332
        %2421 = vst.msk [vmem:[#allocation3 + $0x48] sm:$0xff] %vm2411, %v2334
        %2422 = vst.msk [vmem:[#allocation3 + $0x50] sm:$0xff] %vm2411, %v2336
        %2423 = vst.msk [vmem:[#allocation3 + $0x58] sm:$0xff] %vm2411, %v2338
        %2424 = vst.msk [vmem:[#allocation3 + $0x60] sm:$0xff] %vm2411, %v2340
        %2425 = vst.msk [vmem:[#allocation3 + $0x68] sm:$0xff] %vm2411, %v2342
        %2426 = vst.msk [vmem:[#allocation3 + $0x70] sm:$0xff] %vm2411, %v2344
        %2427 = vst.msk [vmem:[#allocation3 + $0x78] sm:$0xff] %vm2411, %v2346
        %2428 = vst.msk [vmem:[#allocation3 + $0x80] sm:$0xff] %vm2411, %v2348
        %2429 = vst.msk [vmem:[#allocation3 + $0x88] sm:$0xff] %vm2411, %v2350
        %2430 = vst.msk [vmem:[#allocation3 + $0x90] sm:$0xff] %vm2411, %v2352
        %2431 = vst.msk [vmem:[#allocation3 + $0x98] sm:$0xff] %vm2411, %v2354
        %2432 = vst.msk [vmem:[#allocation3 + $0xa0] sm:$0xff] %vm2411, %v2356
        %2433 = vst.msk [vmem:[#allocation3 + $0xa8] sm:$0xff] %vm2411, %v2358
        %2434 = vst.msk [vmem:[#allocation3 + $0xb0] sm:$0xff] %vm2411, %v2360
        %2435 = vst.msk [vmem:[#allocation3 + $0xb8] sm:$0xff] %vm2411, %v2362
        %2436 = vst.msk [vmem:[#allocation3 + $0xc0] sm:$0xff] %vm2411, %v2364
        %2437 = vst.msk [vmem:[#allocation3 + $0xc8] sm:$0xff] %vm2411, %v2366
        %2438 = vst.msk [vmem:[#allocation3 + $0xd0] sm:$0xff] %vm2411, %v2368
        %2439 = vst.msk [vmem:[#allocation3 + $0xd8] sm:$0xff] %vm2411, %v2370
        %2440 = vst.msk [vmem:[#allocation3 + $0xe0] sm:$0xff] %vm2411, %v2372
        %2441 = vst.msk [vmem:[#allocation3 + $0xe8] sm:$0xff] %vm2411, %v2374
        %2442 = vst.msk [vmem:[#allocation3 + $0xf0] sm:$0xff] %vm2411, %v2376
        %2443 = vst.msk [vmem:[#allocation3 + $0xf8] sm:$0xff] %vm2411, %v2378
        %v2444 = vld [vmem:[%s416 + $0x1] sm:$0xff]
        %v2445 = vld [vmem:[%s416 + $0x9] sm:$0xff]
        %v2446 = vld [vmem:[%s416 + $0x19] sm:$0xff]
        %v2447 = vld [vmem:[%s416 + $0x21] sm:$0xff]
        %v2448 = vld [vmem:[%s416 + $0x31] sm:$0xff]
        %v2449 = vld [vmem:[%s416 + $0x39] sm:$0xff]
        %v2450 = vld [vmem:[%s416 + $0x49] sm:$0xff]
        %v2451 = vld [vmem:[%s416 + $0x51] sm:$0xff]
        %v2452 = vld [vmem:[%s416 + $0x61] sm:$0xff]
        %v2453 = vld [vmem:[%s416 + $0x69] sm:$0xff]
        %v2454 = vld [vmem:[%s416 + $0x79] sm:$0xff]
        %v2455 = vld [vmem:[%s416 + $0x81] sm:$0xff]
        %v2456 = vld [vmem:[%s416 + $0x91] sm:$0xff]
        %v2457 = vld [vmem:[%s416 + $0x99] sm:$0xff]
        %v2458 = vld [vmem:[%s416 + $0xa9] sm:$0xff]
        %v2459 = vld [vmem:[%s416 + $0xb1] sm:$0xff]
        %v2460 = vld [vmem:[%s416 + $0xc1] sm:$0xff]
        %v2461 = vld [vmem:[%s416 + $0xc9] sm:$0xff]
        %v2462 = vld [vmem:[%s416 + $0xd9] sm:$0xff]
        %v2463 = vld [vmem:[%s416 + $0xe1] sm:$0xff]
        %v2464 = vld [vmem:[%s416 + $0xf1] sm:$0xff]
        %v2465 = vld [vmem:[%s416 + $0xf9] sm:$0xff]
        %v2466 = vld [vmem:[%s416 + $0x109] sm:$0xff]
        %v2467 = vld [vmem:[%s416 + $0x111] sm:$0xff]
        %v2468 = vld [vmem:[%s416 + $0x121] sm:$0xff]
        %v2469 = vld [vmem:[%s416 + $0x129] sm:$0xff]
        %v2470 = vld [vmem:[%s416 + $0x139] sm:$0xff]
        %v2471 = vld [vmem:[%s416 + $0x141] sm:$0xff]
        %v2472 = vld [vmem:[%s416 + $0x151] sm:$0xff]
        %v2473 = vld [vmem:[%s416 + $0x159] sm:$0xff]
        %v2474 = vld [vmem:[%s416 + $0x169] sm:$0xff]
        %v2475 = vld [vmem:[%s416 + $0x171] sm:$0xff]
        %2508 = vrot.lane.b32.xlu0 %v2444, 44
        %v2509 = vpop.permute.xlu0 %2508
        %2510 = vrot.lane.b32.xlu0 %v2445, 44
        %v2511 = vpop.permute.xlu0 %2510
        %2512 = vrot.lane.b32.xlu0 %v2446, 44
        %v2513 = vpop.permute.xlu0 %2512
        %2514 = vrot.lane.b32.xlu0 %v2447, 44
        %v2515 = vpop.permute.xlu0 %2514
        %2516 = vrot.lane.b32.xlu0 %v2448, 44
        %v2517 = vpop.permute.xlu0 %2516
        %2518 = vrot.lane.b32.xlu0 %v2449, 44
        %v2519 = vpop.permute.xlu0 %2518
        %2520 = vrot.lane.b32.xlu0 %v2450, 44
        %v2521 = vpop.permute.xlu0 %2520
        %2522 = vrot.lane.b32.xlu0 %v2451, 44
        %v2523 = vpop.permute.xlu0 %2522
        %2524 = vrot.lane.b32.xlu0 %v2452, 44
        %v2525 = vpop.permute.xlu0 %2524
        %2526 = vrot.lane.b32.xlu0 %v2453, 44
        %v2527 = vpop.permute.xlu0 %2526
        %2528 = vrot.lane.b32.xlu0 %v2454, 44
        %v2529 = vpop.permute.xlu0 %2528
        %2530 = vrot.lane.b32.xlu0 %v2455, 44
        %v2531 = vpop.permute.xlu0 %2530
        %2532 = vrot.lane.b32.xlu0 %v2456, 44
        %v2533 = vpop.permute.xlu0 %2532
        %2534 = vrot.lane.b32.xlu0 %v2457, 44
        %v2535 = vpop.permute.xlu0 %2534
        %2536 = vrot.lane.b32.xlu0 %v2458, 44
        %v2537 = vpop.permute.xlu0 %2536
        %2538 = vrot.lane.b32.xlu0 %v2459, 44
        %v2539 = vpop.permute.xlu0 %2538
        %2540 = vrot.lane.b32.xlu0 %v2460, 44
        %v2541 = vpop.permute.xlu0 %2540
        %2542 = vrot.lane.b32.xlu0 %v2461, 44
        %v2543 = vpop.permute.xlu0 %2542
        %2544 = vrot.lane.b32.xlu0 %v2462, 44
        %v2545 = vpop.permute.xlu0 %2544
        %2546 = vrot.lane.b32.xlu0 %v2463, 44
        %v2547 = vpop.permute.xlu0 %2546
        %2548 = vrot.lane.b32.xlu0 %v2464, 44
        %v2549 = vpop.permute.xlu0 %2548
        %2550 = vrot.lane.b32.xlu0 %v2465, 44
        %v2551 = vpop.permute.xlu0 %2550
        %2552 = vrot.lane.b32.xlu0 %v2466, 44
        %v2553 = vpop.permute.xlu0 %2552
        %2554 = vrot.lane.b32.xlu0 %v2467, 44
        %v2555 = vpop.permute.xlu0 %2554
        %2556 = vrot.lane.b32.xlu0 %v2468, 44
        %v2557 = vpop.permute.xlu0 %2556
        %2558 = vrot.lane.b32.xlu0 %v2469, 44
        %v2559 = vpop.permute.xlu0 %2558
        %2560 = vrot.lane.b32.xlu0 %v2470, 44
        %v2561 = vpop.permute.xlu0 %2560
        %2562 = vrot.lane.b32.xlu0 %v2471, 44
        %v2563 = vpop.permute.xlu0 %2562
        %2564 = vrot.lane.b32.xlu0 %v2472, 44
        %v2565 = vpop.permute.xlu0 %2564
        %2566 = vrot.lane.b32.xlu0 %v2473, 44
        %v2567 = vpop.permute.xlu0 %2566
        %2568 = vrot.lane.b32.xlu0 %v2474, 44
        %v2569 = vpop.permute.xlu0 %2568
        %2570 = vrot.lane.b32.xlu0 %v2475, 44
        %v2571 = vpop.permute.xlu0 %2570
        %vm2604 = vcmask 392544
        %2605 = vst.msk [vmem:[#allocation3] sm:$0xff] %vm2604, %v2509
        %2606 = vst.msk [vmem:[#allocation3 + $0x8] sm:$0xff] %vm2604, %v2511
        %2607 = vst.msk [vmem:[#allocation3 + $0x10] sm:$0xff] %vm2604, %v2513
        %2608 = vst.msk [vmem:[#allocation3 + $0x18] sm:$0xff] %vm2604, %v2515
        %2609 = vst.msk [vmem:[#allocation3 + $0x20] sm:$0xff] %vm2604, %v2517
        %2610 = vst.msk [vmem:[#allocation3 + $0x28] sm:$0xff] %vm2604, %v2519
        %2611 = vst.msk [vmem:[#allocation3 + $0x30] sm:$0xff] %vm2604, %v2521
        %2612 = vst.msk [vmem:[#allocation3 + $0x38] sm:$0xff] %vm2604, %v2523
        %2613 = vst.msk [vmem:[#allocation3 + $0x40] sm:$0xff] %vm2604, %v2525
        %2614 = vst.msk [vmem:[#allocation3 + $0x48] sm:$0xff] %vm2604, %v2527
        %2615 = vst.msk [vmem:[#allocation3 + $0x50] sm:$0xff] %vm2604, %v2529
        %2616 = vst.msk [vmem:[#allocation3 + $0x58] sm:$0xff] %vm2604, %v2531
        %2617 = vst.msk [vmem:[#allocation3 + $0x60] sm:$0xff] %vm2604, %v2533
        %2618 = vst.msk [vmem:[#allocation3 + $0x68] sm:$0xff] %vm2604, %v2535
        %2619 = vst.msk [vmem:[#allocation3 + $0x70] sm:$0xff] %vm2604, %v2537
        %2620 = vst.msk [vmem:[#allocation3 + $0x78] sm:$0xff] %vm2604, %v2539
        %2621 = vst.msk [vmem:[#allocation3 + $0x80] sm:$0xff] %vm2604, %v2541
        %2622 = vst.msk [vmem:[#allocation3 + $0x88] sm:$0xff] %vm2604, %v2543
        %2623 = vst.msk [vmem:[#allocation3 + $0x90] sm:$0xff] %vm2604, %v2545
        %2624 = vst.msk [vmem:[#allocation3 + $0x98] sm:$0xff] %vm2604, %v2547
        %2625 = vst.msk [vmem:[#allocation3 + $0xa0] sm:$0xff] %vm2604, %v2549
        %2626 = vst.msk [vmem:[#allocation3 + $0xa8] sm:$0xff] %vm2604, %v2551
        %2627 = vst.msk [vmem:[#allocation3 + $0xb0] sm:$0xff] %vm2604, %v2553
        %2628 = vst.msk [vmem:[#allocation3 + $0xb8] sm:$0xff] %vm2604, %v2555
        %2629 = vst.msk [vmem:[#allocation3 + $0xc0] sm:$0xff] %vm2604, %v2557
        %2630 = vst.msk [vmem:[#allocation3 + $0xc8] sm:$0xff] %vm2604, %v2559
        %2631 = vst.msk [vmem:[#allocation3 + $0xd0] sm:$0xff] %vm2604, %v2561
        %2632 = vst.msk [vmem:[#allocation3 + $0xd8] sm:$0xff] %vm2604, %v2563
        %2633 = vst.msk [vmem:[#allocation3 + $0xe0] sm:$0xff] %vm2604, %v2565
        %2634 = vst.msk [vmem:[#allocation3 + $0xe8] sm:$0xff] %vm2604, %v2567
        %2635 = vst.msk [vmem:[#allocation3 + $0xf0] sm:$0xff] %vm2604, %v2569
        %2636 = vst.msk [vmem:[#allocation3 + $0xf8] sm:$0xff] %vm2604, %v2571
        %v2637 = vld [vmem:[%s416 + $0x2] sm:$0xff]
        %v2638 = vld [vmem:[%s416 + $0xa] sm:$0xff]
        %v2639 = vld [vmem:[%s416 + $0x1a] sm:$0xff]
        %v2640 = vld [vmem:[%s416 + $0x22] sm:$0xff]
        %v2641 = vld [vmem:[%s416 + $0x32] sm:$0xff]
        %v2642 = vld [vmem:[%s416 + $0x3a] sm:$0xff]
        %v2643 = vld [vmem:[%s416 + $0x4a] sm:$0xff]
        %v2644 = vld [vmem:[%s416 + $0x52] sm:$0xff]
        %v2645 = vld [vmem:[%s416 + $0x62] sm:$0xff]
        %v2646 = vld [vmem:[%s416 + $0x6a] sm:$0xff]
        %v2647 = vld [vmem:[%s416 + $0x7a] sm:$0xff]
        %v2648 = vld [vmem:[%s416 + $0x82] sm:$0xff]
        %v2649 = vld [vmem:[%s416 + $0x92] sm:$0xff]
        %v2650 = vld [vmem:[%s416 + $0x9a] sm:$0xff]
        %v2651 = vld [vmem:[%s416 + $0xaa] sm:$0xff]
        %v2652 = vld [vmem:[%s416 + $0xb2] sm:$0xff]
        %v2653 = vld [vmem:[%s416 + $0xc2] sm:$0xff]
        %v2654 = vld [vmem:[%s416 + $0xca] sm:$0xff]
        %v2655 = vld [vmem:[%s416 + $0xda] sm:$0xff]
        %v2656 = vld [vmem:[%s416 + $0xe2] sm:$0xff]
        %v2657 = vld [vmem:[%s416 + $0xf2] sm:$0xff]
        %v2658 = vld [vmem:[%s416 + $0xfa] sm:$0xff]
        %v2659 = vld [vmem:[%s416 + $0x10a] sm:$0xff]
        %v2660 = vld [vmem:[%s416 + $0x112] sm:$0xff]
        %v2661 = vld [vmem:[%s416 + $0x122] sm:$0xff]
        %v2662 = vld [vmem:[%s416 + $0x12a] sm:$0xff]
        %v2663 = vld [vmem:[%s416 + $0x13a] sm:$0xff]
        %v2664 = vld [vmem:[%s416 + $0x142] sm:$0xff]
        %v2665 = vld [vmem:[%s416 + $0x152] sm:$0xff]
        %v2666 = vld [vmem:[%s416 + $0x15a] sm:$0xff]
        %v2667 = vld [vmem:[%s416 + $0x16a] sm:$0xff]
        %v2668 = vld [vmem:[%s416 + $0x172] sm:$0xff]
        %2701 = vrot.lane.b32.xlu0 %v2637, 48
        %v2702 = vpop.permute.xlu0 %2701
        %2703 = vrot.lane.b32.xlu0 %v2638, 48
        %v2704 = vpop.permute.xlu0 %2703
        %2705 = vrot.lane.b32.xlu0 %v2639, 48
        %v2706 = vpop.permute.xlu0 %2705
        %2707 = vrot.lane.b32.xlu0 %v2640, 48
        %v2708 = vpop.permute.xlu0 %2707
        %2709 = vrot.lane.b32.xlu0 %v2641, 48
        %v2710 = vpop.permute.xlu0 %2709
        %2711 = vrot.lane.b32.xlu0 %v2642, 48
        %v2712 = vpop.permute.xlu0 %2711
        %2713 = vrot.lane.b32.xlu0 %v2643, 48
        %v2714 = vpop.permute.xlu0 %2713
        %2715 = vrot.lane.b32.xlu0 %v2644, 48
        %v2716 = vpop.permute.xlu0 %2715
        %2717 = vrot.lane.b32.xlu0 %v2645, 48
        %v2718 = vpop.permute.xlu0 %2717
        %2719 = vrot.lane.b32.xlu0 %v2646, 48
        %v2720 = vpop.permute.xlu0 %2719
        %2721 = vrot.lane.b32.xlu0 %v2647, 48
        %v2722 = vpop.permute.xlu0 %2721
        %2723 = vrot.lane.b32.xlu0 %v2648, 48
        %v2724 = vpop.permute.xlu0 %2723
        %2725 = vrot.lane.b32.xlu0 %v2649, 48
        %v2726 = vpop.permute.xlu0 %2725
        %2727 = vrot.lane.b32.xlu0 %v2650, 48
        %v2728 = vpop.permute.xlu0 %2727
        %2729 = vrot.lane.b32.xlu0 %v2651, 48
        %v2730 = vpop.permute.xlu0 %2729
        %2731 = vrot.lane.b32.xlu0 %v2652, 48
        %v2732 = vpop.permute.xlu0 %2731
        %2733 = vrot.lane.b32.xlu0 %v2653, 48
        %v2734 = vpop.permute.xlu0 %2733
        %2735 = vrot.lane.b32.xlu0 %v2654, 48
        %v2736 = vpop.permute.xlu0 %2735
        %2737 = vrot.lane.b32.xlu0 %v2655, 48
        %v2738 = vpop.permute.xlu0 %2737
        %2739 = vrot.lane.b32.xlu0 %v2656, 48
        %v2740 = vpop.permute.xlu0 %2739
        %2741 = vrot.lane.b32.xlu0 %v2657, 48
        %v2742 = vpop.permute.xlu0 %2741
        %2743 = vrot.lane.b32.xlu0 %v2658, 48
        %v2744 = vpop.permute.xlu0 %2743
        %2745 = vrot.lane.b32.xlu0 %v2659, 48
        %v2746 = vpop.permute.xlu0 %2745
        %2747 = vrot.lane.b32.xlu0 %v2660, 48
        %v2748 = vpop.permute.xlu0 %2747
        %2749 = vrot.lane.b32.xlu0 %v2661, 48
        %v2750 = vpop.permute.xlu0 %2749
        %2751 = vrot.lane.b32.xlu0 %v2662, 48
        %v2752 = vpop.permute.xlu0 %2751
        %2753 = vrot.lane.b32.xlu0 %v2663, 48
        %v2754 = vpop.permute.xlu0 %2753
        %2755 = vrot.lane.b32.xlu0 %v2664, 48
        %v2756 = vpop.permute.xlu0 %2755
        %2757 = vrot.lane.b32.xlu0 %v2665, 48
        %v2758 = vpop.permute.xlu0 %2757
        %2759 = vrot.lane.b32.xlu0 %v2666, 48
        %v2760 = vpop.permute.xlu0 %2759
        %2761 = vrot.lane.b32.xlu0 %v2667, 48
        %v2762 = vpop.permute.xlu0 %2761
        %2763 = vrot.lane.b32.xlu0 %v2668, 48
        %v2764 = vpop.permute.xlu0 %2763
        %vm2797 = vcmask 425344
        %2798 = vst.msk [vmem:[#allocation3] sm:$0xff] %vm2797, %v2702
        %2799 = vst.msk [vmem:[#allocation3 + $0x8] sm:$0xff] %vm2797, %v2704
        %2800 = vst.msk [vmem:[#allocation3 + $0x10] sm:$0xff] %vm2797, %v2706
        %2801 = vst.msk [vmem:[#allocation3 + $0x18] sm:$0xff] %vm2797, %v2708
        %2802 = vst.msk [vmem:[#allocation3 + $0x20] sm:$0xff] %vm2797, %v2710
        %2803 = vst.msk [vmem:[#allocation3 + $0x28] sm:$0xff] %vm2797, %v2712
        %2804 = vst.msk [vmem:[#allocation3 + $0x30] sm:$0xff] %vm2797, %v2714
        %2805 = vst.msk [vmem:[#allocation3 + $0x38] sm:$0xff] %vm2797, %v2716
        %2806 = vst.msk [vmem:[#allocation3 + $0x40] sm:$0xff] %vm2797, %v2718
        %2807 = vst.msk [vmem:[#allocation3 + $0x48] sm:$0xff] %vm2797, %v2720
        %2808 = vst.msk [vmem:[#allocation3 + $0x50] sm:$0xff] %vm2797, %v2722
        %2809 = vst.msk [vmem:[#allocation3 + $0x58] sm:$0xff] %vm2797, %v2724
        %2810 = vst.msk [vmem:[#allocation3 + $0x60] sm:$0xff] %vm2797, %v2726
        %2811 = vst.msk [vmem:[#allocation3 + $0x68] sm:$0xff] %vm2797, %v2728
        %2812 = vst.msk [vmem:[#allocation3 + $0x70] sm:$0xff] %vm2797, %v2730
        %2813 = vst.msk [vmem:[#allocation3 + $0x78] sm:$0xff] %vm2797, %v2732
        %2814 = vst.msk [vmem:[#allocation3 + $0x80] sm:$0xff] %vm2797, %v2734
        %2815 = vst.msk [vmem:[#allocation3 + $0x88] sm:$0xff] %vm2797, %v2736
        %2816 = vst.msk [vmem:[#allocation3 + $0x90] sm:$0xff] %vm2797, %v2738
        %2817 = vst.msk [vmem:[#allocation3 + $0x98] sm:$0xff] %vm2797, %v2740
        %2818 = vst.msk [vmem:[#allocation3 + $0xa0] sm:$0xff] %vm2797, %v2742
        %2819 = vst.msk [vmem:[#allocation3 + $0xa8] sm:$0xff] %vm2797, %v2744
        %2820 = vst.msk [vmem:[#allocation3 + $0xb0] sm:$0xff] %vm2797, %v2746
        %2821 = vst.msk [vmem:[#allocation3 + $0xb8] sm:$0xff] %vm2797, %v2748
        %2822 = vst.msk [vmem:[#allocation3 + $0xc0] sm:$0xff] %vm2797, %v2750
        %2823 = vst.msk [vmem:[#allocation3 + $0xc8] sm:$0xff] %vm2797, %v2752
        %2824 = vst.msk [vmem:[#allocation3 + $0xd0] sm:$0xff] %vm2797, %v2754
        %2825 = vst.msk [vmem:[#allocation3 + $0xd8] sm:$0xff] %vm2797, %v2756
        %2826 = vst.msk [vmem:[#allocation3 + $0xe0] sm:$0xff] %vm2797, %v2758
        %2827 = vst.msk [vmem:[#allocation3 + $0xe8] sm:$0xff] %vm2797, %v2760
        %2828 = vst.msk [vmem:[#allocation3 + $0xf0] sm:$0xff] %vm2797, %v2762
        %2829 = vst.msk [vmem:[#allocation3 + $0xf8] sm:$0xff] %vm2797, %v2764
        %v2830 = vld [vmem:[%s416 + $0x3] sm:$0xff]
        %v2831 = vld [vmem:[%s416 + $0xb] sm:$0xff]
        %v2832 = vld [vmem:[%s416 + $0x1b] sm:$0xff]
        %v2833 = vld [vmem:[%s416 + $0x23] sm:$0xff]
        %v2834 = vld [vmem:[%s416 + $0x33] sm:$0xff]
        %v2835 = vld [vmem:[%s416 + $0x3b] sm:$0xff]
        %v2836 = vld [vmem:[%s416 + $0x4b] sm:$0xff]
        %v2837 = vld [vmem:[%s416 + $0x53] sm:$0xff]
        %v2838 = vld [vmem:[%s416 + $0x63] sm:$0xff]
        %v2839 = vld [vmem:[%s416 + $0x6b] sm:$0xff]
        %v2840 = vld [vmem:[%s416 + $0x7b] sm:$0xff]
        %v2841 = vld [vmem:[%s416 + $0x83] sm:$0xff]
        %v2842 = vld [vmem:[%s416 + $0x93] sm:$0xff]
        %v2843 = vld [vmem:[%s416 + $0x9b] sm:$0xff]
        %v2844 = vld [vmem:[%s416 + $0xab] sm:$0xff]
        %v2845 = vld [vmem:[%s416 + $0xb3] sm:$0xff]
        %v2846 = vld [vmem:[%s416 + $0xc3] sm:$0xff]
        %v2847 = vld [vmem:[%s416 + $0xcb] sm:$0xff]
        %v2848 = vld [vmem:[%s416 + $0xdb] sm:$0xff]
        %v2849 = vld [vmem:[%s416 + $0xe3] sm:$0xff]
        %v2850 = vld [vmem:[%s416 + $0xf3] sm:$0xff]
        %v2851 = vld [vmem:[%s416 + $0xfb] sm:$0xff]
        %v2852 = vld [vmem:[%s416 + $0x10b] sm:$0xff]
        %v2853 = vld [vmem:[%s416 + $0x113] sm:$0xff]
        %v2854 = vld [vmem:[%s416 + $0x123] sm:$0xff]
        %v2855 = vld [vmem:[%s416 + $0x12b] sm:$0xff]
        %v2856 = vld [vmem:[%s416 + $0x13b] sm:$0xff]
        %v2857 = vld [vmem:[%s416 + $0x143] sm:$0xff]
        %v2858 = vld [vmem:[%s416 + $0x153] sm:$0xff]
        %v2859 = vld [vmem:[%s416 + $0x15b] sm:$0xff]
        %v2860 = vld [vmem:[%s416 + $0x16b] sm:$0xff]
        %v2861 = vld [vmem:[%s416 + $0x173] sm:$0xff]
        %2894 = vrot.lane.b32.xlu0 %v2830, 52
        %v2895 = vpop.permute.xlu0 %2894
        %2896 = vrot.lane.b32.xlu0 %v2831, 52
        %v2897 = vpop.permute.xlu0 %2896
        %2898 = vrot.lane.b32.xlu0 %v2832, 52
        %v2899 = vpop.permute.xlu0 %2898
        %2900 = vrot.lane.b32.xlu0 %v2833, 52
        %v2901 = vpop.permute.xlu0 %2900
        %2902 = vrot.lane.b32.xlu0 %v2834, 52
        %v2903 = vpop.permute.xlu0 %2902
        %2904 = vrot.lane.b32.xlu0 %v2835, 52
        %v2905 = vpop.permute.xlu0 %2904
        %2906 = vrot.lane.b32.xlu0 %v2836, 52
        %v2907 = vpop.permute.xlu0 %2906
        %2908 = vrot.lane.b32.xlu0 %v2837, 52
        %v2909 = vpop.permute.xlu0 %2908
        %2910 = vrot.lane.b32.xlu0 %v2838, 52
        %v2911 = vpop.permute.xlu0 %2910
        %2912 = vrot.lane.b32.xlu0 %v2839, 52
        %v2913 = vpop.permute.xlu0 %2912
        %2914 = vrot.lane.b32.xlu0 %v2840, 52
        %v2915 = vpop.permute.xlu0 %2914
        %2916 = vrot.lane.b32.xlu0 %v2841, 52
        %v2917 = vpop.permute.xlu0 %2916
        %2918 = vrot.lane.b32.xlu0 %v2842, 52
        %v2919 = vpop.permute.xlu0 %2918
        %2920 = vrot.lane.b32.xlu0 %v2843, 52
        %v2921 = vpop.permute.xlu0 %2920
        %2922 = vrot.lane.b32.xlu0 %v2844, 52
        %v2923 = vpop.permute.xlu0 %2922
        %2924 = vrot.lane.b32.xlu0 %v2845, 52
        %v2925 = vpop.permute.xlu0 %2924
        %2926 = vrot.lane.b32.xlu0 %v2846, 52
        %v2927 = vpop.permute.xlu0 %2926
        %2928 = vrot.lane.b32.xlu0 %v2847, 52
        %v2929 = vpop.permute.xlu0 %2928
        %2930 = vrot.lane.b32.xlu0 %v2848, 52
        %v2931 = vpop.permute.xlu0 %2930
        %2932 = vrot.lane.b32.xlu0 %v2849, 52
        %v2933 = vpop.permute.xlu0 %2932
        %2934 = vrot.lane.b32.xlu0 %v2850, 52
        %v2935 = vpop.permute.xlu0 %2934
        %2936 = vrot.lane.b32.xlu0 %v2851, 52
        %v2937 = vpop.permute.xlu0 %2936
        %2938 = vrot.lane.b32.xlu0 %v2852, 52
        %v2939 = vpop.permute.xlu0 %2938
        %2940 = vrot.lane.b32.xlu0 %v2853, 52
        %v2941 = vpop.permute.xlu0 %2940
        %2942 = vrot.lane.b32.xlu0 %v2854, 52
        %v2943 = vpop.permute.xlu0 %2942
        %2944 = vrot.lane.b32.xlu0 %v2855, 52
        %v2945 = vpop.permute.xlu0 %2944
        %2946 = vrot.lane.b32.xlu0 %v2856, 52
        %v2947 = vpop.permute.xlu0 %2946
        %2948 = vrot.lane.b32.xlu0 %v2857, 52
        %v2949 = vpop.permute.xlu0 %2948
        %2950 = vrot.lane.b32.xlu0 %v2858, 52
        %v2951 = vpop.permute.xlu0 %2950
        %2952 = vrot.lane.b32.xlu0 %v2859, 52
        %v2953 = vpop.permute.xlu0 %2952
        %2954 = vrot.lane.b32.xlu0 %v2860, 52
        %v2955 = vpop.permute.xlu0 %2954
        %2956 = vrot.lane.b32.xlu0 %v2861, 52
        %v2957 = vpop.permute.xlu0 %2956
        %vm2990 = vcmask 458144
        %2991 = vst.msk [vmem:[#allocation3] sm:$0xff] %vm2990, %v2895
        %2992 = vst.msk [vmem:[#allocation3 + $0x8] sm:$0xff] %vm2990, %v2897
        %2993 = vst.msk [vmem:[#allocation3 + $0x10] sm:$0xff] %vm2990, %v2899
        %2994 = vst.msk [vmem:[#allocation3 + $0x18] sm:$0xff] %vm2990, %v2901
        %2995 = vst.msk [vmem:[#allocation3 + $0x20] sm:$0xff] %vm2990, %v2903
        %2996 = vst.msk [vmem:[#allocation3 + $0x28] sm:$0xff] %vm2990, %v2905
        %2997 = vst.msk [vmem:[#allocation3 + $0x30] sm:$0xff] %vm2990, %v2907
        %2998 = vst.msk [vmem:[#allocation3 + $0x38] sm:$0xff] %vm2990, %v2909
        %2999 = vst.msk [vmem:[#allocation3 + $0x40] sm:$0xff] %vm2990, %v2911
        %3000 = vst.msk [vmem:[#allocation3 + $0x48] sm:$0xff] %vm2990, %v2913
        %3001 = vst.msk [vmem:[#allocation3 + $0x50] sm:$0xff] %vm2990, %v2915
        %3002 = vst.msk [vmem:[#allocation3 + $0x58] sm:$0xff] %vm2990, %v2917
        %3003 = vst.msk [vmem:[#allocation3 + $0x60] sm:$0xff] %vm2990, %v2919
        %3004 = vst.msk [vmem:[#allocation3 + $0x68] sm:$0xff] %vm2990, %v2921
        %3005 = vst.msk [vmem:[#allocation3 + $0x70] sm:$0xff] %vm2990, %v2923
        %3006 = vst.msk [vmem:[#allocation3 + $0x78] sm:$0xff] %vm2990, %v2925
        %3007 = vst.msk [vmem:[#allocation3 + $0x80] sm:$0xff] %vm2990, %v2927
        %3008 = vst.msk [vmem:[#allocation3 + $0x88] sm:$0xff] %vm2990, %v2929
        %3009 = vst.msk [vmem:[#allocation3 + $0x90] sm:$0xff] %vm2990, %v2931
        %3010 = vst.msk [vmem:[#allocation3 + $0x98] sm:$0xff] %vm2990, %v2933
        %3011 = vst.msk [vmem:[#allocation3 + $0xa0] sm:$0xff] %vm2990, %v2935
        %3012 = vst.msk [vmem:[#allocation3 + $0xa8] sm:$0xff] %vm2990, %v2937
        %3013 = vst.msk [vmem:[#allocation3 + $0xb0] sm:$0xff] %vm2990, %v2939
        %3014 = vst.msk [vmem:[#allocation3 + $0xb8] sm:$0xff] %vm2990, %v2941
        %3015 = vst.msk [vmem:[#allocation3 + $0xc0] sm:$0xff] %vm2990, %v2943
        %3016 = vst.msk [vmem:[#allocation3 + $0xc8] sm:$0xff] %vm2990, %v2945
        %3017 = vst.msk [vmem:[#allocation3 + $0xd0] sm:$0xff] %vm2990, %v2947
        %3018 = vst.msk [vmem:[#allocation3 + $0xd8] sm:$0xff] %vm2990, %v2949
        %3019 = vst.msk [vmem:[#allocation3 + $0xe0] sm:$0xff] %vm2990, %v2951
        %3020 = vst.msk [vmem:[#allocation3 + $0xe8] sm:$0xff] %vm2990, %v2953
        %3021 = vst.msk [vmem:[#allocation3 + $0xf0] sm:$0xff] %vm2990, %v2955
        %3022 = vst.msk [vmem:[#allocation3 + $0xf8] sm:$0xff] %vm2990, %v2957
        %v3023 = vld [vmem:[%s416 + $0x4] sm:$0xff]
        %v3024 = vld [vmem:[%s416 + $0xc] sm:$0xff]
        %v3025 = vld [vmem:[%s416 + $0x1c] sm:$0xff]
        %v3026 = vld [vmem:[%s416 + $0x24] sm:$0xff]
        %v3027 = vld [vmem:[%s416 + $0x34] sm:$0xff]
        %v3028 = vld [vmem:[%s416 + $0x3c] sm:$0xff]
        %v3029 = vld [vmem:[%s416 + $0x4c] sm:$0xff]
        %v3030 = vld [vmem:[%s416 + $0x54] sm:$0xff]
        %v3031 = vld [vmem:[%s416 + $0x64] sm:$0xff]
        %v3032 = vld [vmem:[%s416 + $0x6c] sm:$0xff]
        %v3033 = vld [vmem:[%s416 + $0x7c] sm:$0xff]
        %v3034 = vld [vmem:[%s416 + $0x84] sm:$0xff]
        %v3035 = vld [vmem:[%s416 + $0x94] sm:$0xff]
        %v3036 = vld [vmem:[%s416 + $0x9c] sm:$0xff]
        %v3037 = vld [vmem:[%s416 + $0xac] sm:$0xff]
        %v3038 = vld [vmem:[%s416 + $0xb4] sm:$0xff]
        %v3039 = vld [vmem:[%s416 + $0xc4] sm:$0xff]
        %v3040 = vld [vmem:[%s416 + $0xcc] sm:$0xff]
        %v3041 = vld [vmem:[%s416 + $0xdc] sm:$0xff]
        %v3042 = vld [vmem:[%s416 + $0xe4] sm:$0xff]
        %v3043 = vld [vmem:[%s416 + $0xf4] sm:$0xff]
        %v3044 = vld [vmem:[%s416 + $0xfc] sm:$0xff]
        %v3045 = vld [vmem:[%s416 + $0x10c] sm:$0xff]
        %v3046 = vld [vmem:[%s416 + $0x114] sm:$0xff]
        %v3047 = vld [vmem:[%s416 + $0x124] sm:$0xff]
        %v3048 = vld [vmem:[%s416 + $0x12c] sm:$0xff]
        %v3049 = vld [vmem:[%s416 + $0x13c] sm:$0xff]
        %v3050 = vld [vmem:[%s416 + $0x144] sm:$0xff]
        %v3051 = vld [vmem:[%s416 + $0x154] sm:$0xff]
        %v3052 = vld [vmem:[%s416 + $0x15c] sm:$0xff]
        %v3053 = vld [vmem:[%s416 + $0x16c] sm:$0xff]
        %v3054 = vld [vmem:[%s416 + $0x174] sm:$0xff]
        %3087 = vrot.lane.b32.xlu0 %v3023, 56
        %v3088 = vpop.permute.xlu0 %3087
        %3089 = vrot.lane.b32.xlu0 %v3024, 56
        %v3090 = vpop.permute.xlu0 %3089
        %3091 = vrot.lane.b32.xlu0 %v3025, 56
        %v3092 = vpop.permute.xlu0 %3091
        %3093 = vrot.lane.b32.xlu0 %v3026, 56
        %v3094 = vpop.permute.xlu0 %3093
        %3095 = vrot.lane.b32.xlu0 %v3027, 56
        %v3096 = vpop.permute.xlu0 %3095
        %3097 = vrot.lane.b32.xlu0 %v3028, 56
        %v3098 = vpop.permute.xlu0 %3097
        %3099 = vrot.lane.b32.xlu0 %v3029, 56
        %v3100 = vpop.permute.xlu0 %3099
        %3101 = vrot.lane.b32.xlu0 %v3030, 56
        %v3102 = vpop.permute.xlu0 %3101
        %3103 = vrot.lane.b32.xlu0 %v3031, 56
        %v3104 = vpop.permute.xlu0 %3103
        %3105 = vrot.lane.b32.xlu0 %v3032, 56
        %v3106 = vpop.permute.xlu0 %3105
        %3107 = vrot.lane.b32.xlu0 %v3033, 56
        %v3108 = vpop.permute.xlu0 %3107
        %3109 = vrot.lane.b32.xlu0 %v3034, 56
        %v3110 = vpop.permute.xlu0 %3109
        %3111 = vrot.lane.b32.xlu0 %v3035, 56
        %v3112 = vpop.permute.xlu0 %3111
        %3113 = vrot.lane.b32.xlu0 %v3036, 56
        %v3114 = vpop.permute.xlu0 %3113
        %3115 = vrot.lane.b32.xlu0 %v3037, 56
        %v3116 = vpop.permute.xlu0 %3115
        %3117 = vrot.lane.b32.xlu0 %v3038, 56
        %v3118 = vpop.permute.xlu0 %3117
        %3119 = vrot.lane.b32.xlu0 %v3039, 56
        %v3120 = vpop.permute.xlu0 %3119
        %3121 = vrot.lane.b32.xlu0 %v3040, 56
        %v3122 = vpop.permute.xlu0 %3121
        %3123 = vrot.lane.b32.xlu0 %v3041, 56
        %v3124 = vpop.permute.xlu0 %3123
        %3125 = vrot.lane.b32.xlu0 %v3042, 56
        %v3126 = vpop.permute.xlu0 %3125
        %3127 = vrot.lane.b32.xlu0 %v3043, 56
        %v3128 = vpop.permute.xlu0 %3127
        %3129 = vrot.lane.b32.xlu0 %v3044, 56
        %v3130 = vpop.permute.xlu0 %3129
        %3131 = vrot.lane.b32.xlu0 %v3045, 56
        %v3132 = vpop.permute.xlu0 %3131
        %3133 = vrot.lane.b32.xlu0 %v3046, 56
        %v3134 = vpop.permute.xlu0 %3133
        %3135 = vrot.lane.b32.xlu0 %v3047, 56
        %v3136 = vpop.permute.xlu0 %3135
        %3137 = vrot.lane.b32.xlu0 %v3048, 56
        %v3138 = vpop.permute.xlu0 %3137
        %3139 = vrot.lane.b32.xlu0 %v3049, 56
        %v3140 = vpop.permute.xlu0 %3139
        %3141 = vrot.lane.b32.xlu0 %v3050, 56
        %v3142 = vpop.permute.xlu0 %3141
        %3143 = vrot.lane.b32.xlu0 %v3051, 56
        %v3144 = vpop.permute.xlu0 %3143
        %3145 = vrot.lane.b32.xlu0 %v3052, 56
        %v3146 = vpop.permute.xlu0 %3145
        %3147 = vrot.lane.b32.xlu0 %v3053, 56
        %v3148 = vpop.permute.xlu0 %3147
        %3149 = vrot.lane.b32.xlu0 %v3054, 56
        %v3150 = vpop.permute.xlu0 %3149
        %vm3183 = vcmask 490944
        %3184 = vst.msk [vmem:[#allocation3] sm:$0xff] %vm3183, %v3088
        %3185 = vst.msk [vmem:[#allocation3 + $0x8] sm:$0xff] %vm3183, %v3090
        %3186 = vst.msk [vmem:[#allocation3 + $0x10] sm:$0xff] %vm3183, %v3092
        %3187 = vst.msk [vmem:[#allocation3 + $0x18] sm:$0xff] %vm3183, %v3094
        %3188 = vst.msk [vmem:[#allocation3 + $0x20] sm:$0xff] %vm3183, %v3096
        %3189 = vst.msk [vmem:[#allocation3 + $0x28] sm:$0xff] %vm3183, %v3098
        %3190 = vst.msk [vmem:[#allocation3 + $0x30] sm:$0xff] %vm3183, %v3100
        %3191 = vst.msk [vmem:[#allocation3 + $0x38] sm:$0xff] %vm3183, %v3102
        %3192 = vst.msk [vmem:[#allocation3 + $0x40] sm:$0xff] %vm3183, %v3104
        %3193 = vst.msk [vmem:[#allocation3 + $0x48] sm:$0xff] %vm3183, %v3106
        %3194 = vst.msk [vmem:[#allocation3 + $0x50] sm:$0xff] %vm3183, %v3108
        %3195 = vst.msk [vmem:[#allocation3 + $0x58] sm:$0xff] %vm3183, %v3110
        %3196 = vst.msk [vmem:[#allocation3 + $0x60] sm:$0xff] %vm3183, %v3112
        %3197 = vst.msk [vmem:[#allocation3 + $0x68] sm:$0xff] %vm3183, %v3114
        %3198 = vst.msk [vmem:[#allocation3 + $0x70] sm:$0xff] %vm3183, %v3116
        %3199 = vst.msk [vmem:[#allocation3 + $0x78] sm:$0xff] %vm3183, %v3118
        %3200 = vst.msk [vmem:[#allocation3 + $0x80] sm:$0xff] %vm3183, %v3120
        %3201 = vst.msk [vmem:[#allocation3 + $0x88] sm:$0xff] %vm3183, %v3122
        %3202 = vst.msk [vmem:[#allocation3 + $0x90] sm:$0xff] %vm3183, %v3124
        %3203 = vst.msk [vmem:[#allocation3 + $0x98] sm:$0xff] %vm3183, %v3126
        %3204 = vst.msk [vmem:[#allocation3 + $0xa0] sm:$0xff] %vm3183, %v3128
        %3205 = vst.msk [vmem:[#allocation3 + $0xa8] sm:$0xff] %vm3183, %v3130
        %3206 = vst.msk [vmem:[#allocation3 + $0xb0] sm:$0xff] %vm3183, %v3132
        %3207 = vst.msk [vmem:[#allocation3 + $0xb8] sm:$0xff] %vm3183, %v3134
        %3208 = vst.msk [vmem:[#allocation3 + $0xc0] sm:$0xff] %vm3183, %v3136
        %3209 = vst.msk [vmem:[#allocation3 + $0xc8] sm:$0xff] %vm3183, %v3138
        %3210 = vst.msk [vmem:[#allocation3 + $0xd0] sm:$0xff] %vm3183, %v3140
        %3211 = vst.msk [vmem:[#allocation3 + $0xd8] sm:$0xff] %vm3183, %v3142
        %3212 = vst.msk [vmem:[#allocation3 + $0xe0] sm:$0xff] %vm3183, %v3144
        %3213 = vst.msk [vmem:[#allocation3 + $0xe8] sm:$0xff] %vm3183, %v3146
        %3214 = vst.msk [vmem:[#allocation3 + $0xf0] sm:$0xff] %vm3183, %v3148
        %3215 = vst.msk [vmem:[#allocation3 + $0xf8] sm:$0xff] %vm3183, %v3150
        %s3216 = scalar_lea.vmem [#allocation2], 72
        %v3217 = vld [vmem:[%s3216] sm:$0xff]
        %v3218 = vld [vmem:[%s3216 + $0x8] sm:$0xff]
        %v3219 = vld [vmem:[%s3216 + $0x18] sm:$0xff]
        %v3220 = vld [vmem:[%s3216 + $0x20] sm:$0xff]
        %v3221 = vld [vmem:[%s3216 + $0x30] sm:$0xff]
        %v3222 = vld [vmem:[%s3216 + $0x38] sm:$0xff]
        %v3223 = vld [vmem:[%s3216 + $0x48] sm:$0xff]
        %v3224 = vld [vmem:[%s3216 + $0x50] sm:$0xff]
        %v3225 = vld [vmem:[%s3216 + $0x60] sm:$0xff]
        %v3226 = vld [vmem:[%s3216 + $0x68] sm:$0xff]
        %v3227 = vld [vmem:[%s3216 + $0x78] sm:$0xff]
        %v3228 = vld [vmem:[%s3216 + $0x80] sm:$0xff]
        %v3229 = vld [vmem:[%s3216 + $0x90] sm:$0xff]
        %v3230 = vld [vmem:[%s3216 + $0x98] sm:$0xff]
        %v3231 = vld [vmem:[%s3216 + $0xa8] sm:$0xff]
        %v3232 = vld [vmem:[%s3216 + $0xb0] sm:$0xff]
        %v3233 = vld [vmem:[%s3216 + $0xc0] sm:$0xff]
        %v3234 = vld [vmem:[%s3216 + $0xc8] sm:$0xff]
        %v3235 = vld [vmem:[%s3216 + $0xd8] sm:$0xff]
        %v3236 = vld [vmem:[%s3216 + $0xe0] sm:$0xff]
        %v3237 = vld [vmem:[%s3216 + $0xf0] sm:$0xff]
        %v3238 = vld [vmem:[%s3216 + $0xf8] sm:$0xff]
        %v3239 = vld [vmem:[%s3216 + $0x108] sm:$0xff]
        %v3240 = vld [vmem:[%s3216 + $0x110] sm:$0xff]
        %v3241 = vld [vmem:[%s3216 + $0x120] sm:$0xff]
        %v3242 = vld [vmem:[%s3216 + $0x128] sm:$0xff]
        %v3243 = vld [vmem:[%s3216 + $0x138] sm:$0xff]
        %v3244 = vld [vmem:[%s3216 + $0x140] sm:$0xff]
        %v3245 = vld [vmem:[%s3216 + $0x150] sm:$0xff]
        %v3246 = vld [vmem:[%s3216 + $0x158] sm:$0xff]
        %v3247 = vld [vmem:[%s3216 + $0x168] sm:$0xff]
        %v3248 = vld [vmem:[%s3216 + $0x170] sm:$0xff]
        %3281 = vrot.lane.b32.xlu0 %v3217, 60
        %v3282 = vpop.permute.xlu0 %3281
        %3283 = vrot.lane.b32.xlu0 %v3218, 60
        %v3284 = vpop.permute.xlu0 %3283
        %3285 = vrot.lane.b32.xlu0 %v3219, 60
        %v3286 = vpop.permute.xlu0 %3285
        %3287 = vrot.lane.b32.xlu0 %v3220, 60
        %v3288 = vpop.permute.xlu0 %3287
        %3289 = vrot.lane.b32.xlu0 %v3221, 60
        %v3290 = vpop.permute.xlu0 %3289
        %3291 = vrot.lane.b32.xlu0 %v3222, 60
        %v3292 = vpop.permute.xlu0 %3291
        %3293 = vrot.lane.b32.xlu0 %v3223, 60
        %v3294 = vpop.permute.xlu0 %3293
        %3295 = vrot.lane.b32.xlu0 %v3224, 60
        %v3296 = vpop.permute.xlu0 %3295
        %3297 = vrot.lane.b32.xlu0 %v3225, 60
        %v3298 = vpop.permute.xlu0 %3297
        %3299 = vrot.lane.b32.xlu0 %v3226, 60
        %v3300 = vpop.permute.xlu0 %3299
        %3301 = vrot.lane.b32.xlu0 %v3227, 60
        %v3302 = vpop.permute.xlu0 %3301
        %3303 = vrot.lane.b32.xlu0 %v3228, 60
        %v3304 = vpop.permute.xlu0 %3303
        %3305 = vrot.lane.b32.xlu0 %v3229, 60
        %v3306 = vpop.permute.xlu0 %3305
        %3307 = vrot.lane.b32.xlu0 %v3230, 60
        %v3308 = vpop.permute.xlu0 %3307
        %3309 = vrot.lane.b32.xlu0 %v3231, 60
        %v3310 = vpop.permute.xlu0 %3309
        %3311 = vrot.lane.b32.xlu0 %v3232, 60
        %v3312 = vpop.permute.xlu0 %3311
        %3313 = vrot.lane.b32.xlu0 %v3233, 60
        %v3314 = vpop.permute.xlu0 %3313
        %3315 = vrot.lane.b32.xlu0 %v3234, 60
        %v3316 = vpop.permute.xlu0 %3315
        %3317 = vrot.lane.b32.xlu0 %v3235, 60
        %v3318 = vpop.permute.xlu0 %3317
        %3319 = vrot.lane.b32.xlu0 %v3236, 60
        %v3320 = vpop.permute.xlu0 %3319
        %3321 = vrot.lane.b32.xlu0 %v3237, 60
        %v3322 = vpop.permute.xlu0 %3321
        %3323 = vrot.lane.b32.xlu0 %v3238, 60
        %v3324 = vpop.permute.xlu0 %3323
        %3325 = vrot.lane.b32.xlu0 %v3239, 60
        %v3326 = vpop.permute.xlu0 %3325
        %3327 = vrot.lane.b32.xlu0 %v3240, 60
        %v3328 = vpop.permute.xlu0 %3327
        %3329 = vrot.lane.b32.xlu0 %v3241, 60
        %v3330 = vpop.permute.xlu0 %3329
        %3331 = vrot.lane.b32.xlu0 %v3242, 60
        %v3332 = vpop.permute.xlu0 %3331
        %3333 = vrot.lane.b32.xlu0 %v3243, 60
        %v3334 = vpop.permute.xlu0 %3333
        %3335 = vrot.lane.b32.xlu0 %v3244, 60
        %v3336 = vpop.permute.xlu0 %3335
        %3337 = vrot.lane.b32.xlu0 %v3245, 60
        %v3338 = vpop.permute.xlu0 %3337
        %3339 = vrot.lane.b32.xlu0 %v3246, 60
        %v3340 = vpop.permute.xlu0 %3339
        %3341 = vrot.lane.b32.xlu0 %v3247, 60
        %v3342 = vpop.permute.xlu0 %3341
        %3343 = vrot.lane.b32.xlu0 %v3248, 60
        %v3344 = vpop.permute.xlu0 %3343
        %vm3377 = vcmask 523744
        %3378 = vst.msk [vmem:[#allocation3] sm:$0xff] %vm3377, %v3282
        %3379 = vst.msk [vmem:[#allocation3 + $0x8] sm:$0xff] %vm3377, %v3284
        %3380 = vst.msk [vmem:[#allocation3 + $0x10] sm:$0xff] %vm3377, %v3286
        %3381 = vst.msk [vmem:[#allocation3 + $0x18] sm:$0xff] %vm3377, %v3288
        %3382 = vst.msk [vmem:[#allocation3 + $0x20] sm:$0xff] %vm3377, %v3290
        %3383 = vst.msk [vmem:[#allocation3 + $0x28] sm:$0xff] %vm3377, %v3292
        %3384 = vst.msk [vmem:[#allocation3 + $0x30] sm:$0xff] %vm3377, %v3294
        %3385 = vst.msk [vmem:[#allocation3 + $0x38] sm:$0xff] %vm3377, %v3296
        %3386 = vst.msk [vmem:[#allocation3 + $0x40] sm:$0xff] %vm3377, %v3298
        %3387 = vst.msk [vmem:[#allocation3 + $0x48] sm:$0xff] %vm3377, %v3300
        %3388 = vst.msk [vmem:[#allocation3 + $0x50] sm:$0xff] %vm3377, %v3302
        %3389 = vst.msk [vmem:[#allocation3 + $0x58] sm:$0xff] %vm3377, %v3304
        %3390 = vst.msk [vmem:[#allocation3 + $0x60] sm:$0xff] %vm3377, %v3306
        %3391 = vst.msk [vmem:[#allocation3 + $0x68] sm:$0xff] %vm3377, %v3308
        %3392 = vst.msk [vmem:[#allocation3 + $0x70] sm:$0xff] %vm3377, %v3310
        %3393 = vst.msk [vmem:[#allocation3 + $0x78] sm:$0xff] %vm3377, %v3312
        %3394 = vst.msk [vmem:[#allocation3 + $0x80] sm:$0xff] %vm3377, %v3314
        %3395 = vst.msk [vmem:[#allocation3 + $0x88] sm:$0xff] %vm3377, %v3316
        %3396 = vst.msk [vmem:[#allocation3 + $0x90] sm:$0xff] %vm3377, %v3318
        %3397 = vst.msk [vmem:[#allocation3 + $0x98] sm:$0xff] %vm3377, %v3320
        %3398 = vst.msk [vmem:[#allocation3 + $0xa0] sm:$0xff] %vm3377, %v3322
        %3399 = vst.msk [vmem:[#allocation3 + $0xa8] sm:$0xff] %vm3377, %v3324
        %3400 = vst.msk [vmem:[#allocation3 + $0xb0] sm:$0xff] %vm3377, %v3326
        %3401 = vst.msk [vmem:[#allocation3 + $0xb8] sm:$0xff] %vm3377, %v3328
        %3402 = vst.msk [vmem:[#allocation3 + $0xc0] sm:$0xff] %vm3377, %v3330
        %3403 = vst.msk [vmem:[#allocation3 + $0xc8] sm:$0xff] %vm3377, %v3332
        %3404 = vst.msk [vmem:[#allocation3 + $0xd0] sm:$0xff] %vm3377, %v3334
        %3405 = vst.msk [vmem:[#allocation3 + $0xd8] sm:$0xff] %vm3377, %v3336
        %3406 = vst.msk [vmem:[#allocation3 + $0xe0] sm:$0xff] %vm3377, %v3338
        %3407 = vst.msk [vmem:[#allocation3 + $0xe8] sm:$0xff] %vm3377, %v3340
        %3408 = vst.msk [vmem:[#allocation3 + $0xf0] sm:$0xff] %vm3377, %v3342
        %3409 = vst.msk [vmem:[#allocation3 + $0xf8] sm:$0xff] %vm3377, %v3344
        %v3410 = vld [vmem:[%s3216 + $0x1] sm:$0xff]
        %v3411 = vld [vmem:[%s3216 + $0x9] sm:$0xff]
        %v3412 = vld [vmem:[%s3216 + $0x19] sm:$0xff]
        %v3413 = vld [vmem:[%s3216 + $0x21] sm:$0xff]
        %v3414 = vld [vmem:[%s3216 + $0x31] sm:$0xff]
        %v3415 = vld [vmem:[%s3216 + $0x39] sm:$0xff]
        %v3416 = vld [vmem:[%s3216 + $0x49] sm:$0xff]
        %v3417 = vld [vmem:[%s3216 + $0x51] sm:$0xff]
        %v3418 = vld [vmem:[%s3216 + $0x61] sm:$0xff]
        %v3419 = vld [vmem:[%s3216 + $0x69] sm:$0xff]
        %v3420 = vld [vmem:[%s3216 + $0x79] sm:$0xff]
        %v3421 = vld [vmem:[%s3216 + $0x81] sm:$0xff]
        %v3422 = vld [vmem:[%s3216 + $0x91] sm:$0xff]
        %v3423 = vld [vmem:[%s3216 + $0x99] sm:$0xff]
        %v3424 = vld [vmem:[%s3216 + $0xa9] sm:$0xff]
        %v3425 = vld [vmem:[%s3216 + $0xb1] sm:$0xff]
        %v3426 = vld [vmem:[%s3216 + $0xc1] sm:$0xff]
        %v3427 = vld [vmem:[%s3216 + $0xc9] sm:$0xff]
        %v3428 = vld [vmem:[%s3216 + $0xd9] sm:$0xff]
        %v3429 = vld [vmem:[%s3216 + $0xe1] sm:$0xff]
        %v3430 = vld [vmem:[%s3216 + $0xf1] sm:$0xff]
        %v3431 = vld [vmem:[%s3216 + $0xf9] sm:$0xff]
        %v3432 = vld [vmem:[%s3216 + $0x109] sm:$0xff]
        %v3433 = vld [vmem:[%s3216 + $0x111] sm:$0xff]
        %v3434 = vld [vmem:[%s3216 + $0x121] sm:$0xff]
        %v3435 = vld [vmem:[%s3216 + $0x129] sm:$0xff]
        %v3436 = vld [vmem:[%s3216 + $0x139] sm:$0xff]
        %v3437 = vld [vmem:[%s3216 + $0x141] sm:$0xff]
        %v3438 = vld [vmem:[%s3216 + $0x151] sm:$0xff]
        %v3439 = vld [vmem:[%s3216 + $0x159] sm:$0xff]
        %v3440 = vld [vmem:[%s3216 + $0x169] sm:$0xff]
        %v3441 = vld [vmem:[%s3216 + $0x171] sm:$0xff]
        %3474 = vrot.lane.b32.xlu0 %v3410, 64
        %v3475 = vpop.permute.xlu0 %3474
        %3476 = vrot.lane.b32.xlu0 %v3411, 64
        %v3477 = vpop.permute.xlu0 %3476
        %3478 = vrot.lane.b32.xlu0 %v3412, 64
        %v3479 = vpop.permute.xlu0 %3478
        %3480 = vrot.lane.b32.xlu0 %v3413, 64
        %v3481 = vpop.permute.xlu0 %3480
        %3482 = vrot.lane.b32.xlu0 %v3414, 64
        %v3483 = vpop.permute.xlu0 %3482
        %3484 = vrot.lane.b32.xlu0 %v3415, 64
        %v3485 = vpop.permute.xlu0 %3484
        %3486 = vrot.lane.b32.xlu0 %v3416, 64
        %v3487 = vpop.permute.xlu0 %3486
        %3488 = vrot.lane.b32.xlu0 %v3417, 64
        %v3489 = vpop.permute.xlu0 %3488
        %3490 = vrot.lane.b32.xlu0 %v3418, 64
        %v3491 = vpop.permute.xlu0 %3490
        %3492 = vrot.lane.b32.xlu0 %v3419, 64
        %v3493 = vpop.permute.xlu0 %3492
        %3494 = vrot.lane.b32.xlu0 %v3420, 64
        %v3495 = vpop.permute.xlu0 %3494
        %3496 = vrot.lane.b32.xlu0 %v3421, 64
        %v3497 = vpop.permute.xlu0 %3496
        %3498 = vrot.lane.b32.xlu0 %v3422, 64
        %v3499 = vpop.permute.xlu0 %3498
        %3500 = vrot.lane.b32.xlu0 %v3423, 64
        %v3501 = vpop.permute.xlu0 %3500
        %3502 = vrot.lane.b32.xlu0 %v3424, 64
        %v3503 = vpop.permute.xlu0 %3502
        %3504 = vrot.lane.b32.xlu0 %v3425, 64
        %v3505 = vpop.permute.xlu0 %3504
        %3506 = vrot.lane.b32.xlu0 %v3426, 64
        %v3507 = vpop.permute.xlu0 %3506
        %3508 = vrot.lane.b32.xlu0 %v3427, 64
        %v3509 = vpop.permute.xlu0 %3508
        %3510 = vrot.lane.b32.xlu0 %v3428, 64
        %v3511 = vpop.permute.xlu0 %3510
        %3512 = vrot.lane.b32.xlu0 %v3429, 64
        %v3513 = vpop.permute.xlu0 %3512
        %3514 = vrot.lane.b32.xlu0 %v3430, 64
        %v3515 = vpop.permute.xlu0 %3514
        %3516 = vrot.lane.b32.xlu0 %v3431, 64
        %v3517 = vpop.permute.xlu0 %3516
        %3518 = vrot.lane.b32.xlu0 %v3432, 64
        %v3519 = vpop.permute.xlu0 %3518
        %3520 = vrot.lane.b32.xlu0 %v3433, 64
        %v3521 = vpop.permute.xlu0 %3520
        %3522 = vrot.lane.b32.xlu0 %v3434, 64
        %v3523 = vpop.permute.xlu0 %3522
        %3524 = vrot.lane.b32.xlu0 %v3435, 64
        %v3525 = vpop.permute.xlu0 %3524
        %3526 = vrot.lane.b32.xlu0 %v3436, 64
        %v3527 = vpop.permute.xlu0 %3526
        %3528 = vrot.lane.b32.xlu0 %v3437, 64
        %v3529 = vpop.permute.xlu0 %3528
        %3530 = vrot.lane.b32.xlu0 %v3438, 64
        %v3531 = vpop.permute.xlu0 %3530
        %3532 = vrot.lane.b32.xlu0 %v3439, 64
        %v3533 = vpop.permute.xlu0 %3532
        %3534 = vrot.lane.b32.xlu0 %v3440, 64
        %v3535 = vpop.permute.xlu0 %3534
        %3536 = vrot.lane.b32.xlu0 %v3441, 64
        %v3537 = vpop.permute.xlu0 %3536
        %vm3570 = vcmask 556544
        %3571 = vst.msk [vmem:[#allocation3] sm:$0xff] %vm3570, %v3475
        %3572 = vst.msk [vmem:[#allocation3 + $0x8] sm:$0xff] %vm3570, %v3477
        %3573 = vst.msk [vmem:[#allocation3 + $0x10] sm:$0xff] %vm3570, %v3479
        %3574 = vst.msk [vmem:[#allocation3 + $0x18] sm:$0xff] %vm3570, %v3481
        %3575 = vst.msk [vmem:[#allocation3 + $0x20] sm:$0xff] %vm3570, %v3483
        %3576 = vst.msk [vmem:[#allocation3 + $0x28] sm:$0xff] %vm3570, %v3485
        %3577 = vst.msk [vmem:[#allocation3 + $0x30] sm:$0xff] %vm3570, %v3487
        %3578 = vst.msk [vmem:[#allocation3 + $0x38] sm:$0xff] %vm3570, %v3489
        %3579 = vst.msk [vmem:[#allocation3 + $0x40] sm:$0xff] %vm3570, %v3491
        %3580 = vst.msk [vmem:[#allocation3 + $0x48] sm:$0xff] %vm3570, %v3493
        %3581 = vst.msk [vmem:[#allocation3 + $0x50] sm:$0xff] %vm3570, %v3495
        %3582 = vst.msk [vmem:[#allocation3 + $0x58] sm:$0xff] %vm3570, %v3497
        %3583 = vst.msk [vmem:[#allocation3 + $0x60] sm:$0xff] %vm3570, %v3499
        %3584 = vst.msk [vmem:[#allocation3 + $0x68] sm:$0xff] %vm3570, %v3501
        %3585 = vst.msk [vmem:[#allocation3 + $0x70] sm:$0xff] %vm3570, %v3503
        %3586 = vst.msk [vmem:[#allocation3 + $0x78] sm:$0xff] %vm3570, %v3505
        %3587 = vst.msk [vmem:[#allocation3 + $0x80] sm:$0xff] %vm3570, %v3507
        %3588 = vst.msk [vmem:[#allocation3 + $0x88] sm:$0xff] %vm3570, %v3509
        %3589 = vst.msk [vmem:[#allocation3 + $0x90] sm:$0xff] %vm3570, %v3511
        %3590 = vst.msk [vmem:[#allocation3 + $0x98] sm:$0xff] %vm3570, %v3513
        %3591 = vst.msk [vmem:[#allocation3 + $0xa0] sm:$0xff] %vm3570, %v3515
        %3592 = vst.msk [vmem:[#allocation3 + $0xa8] sm:$0xff] %vm3570, %v3517
        %3593 = vst.msk [vmem:[#allocation3 + $0xb0] sm:$0xff] %vm3570, %v3519
        %3594 = vst.msk [vmem:[#allocation3 + $0xb8] sm:$0xff] %vm3570, %v3521
        %3595 = vst.msk [vmem:[#allocation3 + $0xc0] sm:$0xff] %vm3570, %v3523
        %3596 = vst.msk [vmem:[#allocation3 + $0xc8] sm:$0xff] %vm3570, %v3525
        %3597 = vst.msk [vmem:[#allocation3 + $0xd0] sm:$0xff] %vm3570, %v3527
        %3598 = vst.msk [vmem:[#allocation3 + $0xd8] sm:$0xff] %vm3570, %v3529
        %3599 = vst.msk [vmem:[#allocation3 + $0xe0] sm:$0xff] %vm3570, %v3531
        %3600 = vst.msk [vmem:[#allocation3 + $0xe8] sm:$0xff] %vm3570, %v3533
        %3601 = vst.msk [vmem:[#allocation3 + $0xf0] sm:$0xff] %vm3570, %v3535
        %3602 = vst.msk [vmem:[#allocation3 + $0xf8] sm:$0xff] %vm3570, %v3537
        %v3603 = vld [vmem:[%s3216 + $0x2] sm:$0xff]
        %v3604 = vld [vmem:[%s3216 + $0xa] sm:$0xff]
        %v3605 = vld [vmem:[%s3216 + $0x1a] sm:$0xff]
        %v3606 = vld [vmem:[%s3216 + $0x22] sm:$0xff]
        %v3607 = vld [vmem:[%s3216 + $0x32] sm:$0xff]
        %v3608 = vld [vmem:[%s3216 + $0x3a] sm:$0xff]
        %v3609 = vld [vmem:[%s3216 + $0x4a] sm:$0xff]
        %v3610 = vld [vmem:[%s3216 + $0x52] sm:$0xff]
        %v3611 = vld [vmem:[%s3216 + $0x62] sm:$0xff]
        %v3612 = vld [vmem:[%s3216 + $0x6a] sm:$0xff]
        %v3613 = vld [vmem:[%s3216 + $0x7a] sm:$0xff]
        %v3614 = vld [vmem:[%s3216 + $0x82] sm:$0xff]
        %v3615 = vld [vmem:[%s3216 + $0x92] sm:$0xff]
        %v3616 = vld [vmem:[%s3216 + $0x9a] sm:$0xff]
        %v3617 = vld [vmem:[%s3216 + $0xaa] sm:$0xff]
        %v3618 = vld [vmem:[%s3216 + $0xb2] sm:$0xff]
        %v3619 = vld [vmem:[%s3216 + $0xc2] sm:$0xff]
        %v3620 = vld [vmem:[%s3216 + $0xca] sm:$0xff]
        %v3621 = vld [vmem:[%s3216 + $0xda] sm:$0xff]
        %v3622 = vld [vmem:[%s3216 + $0xe2] sm:$0xff]
        %v3623 = vld [vmem:[%s3216 + $0xf2] sm:$0xff]
        %v3624 = vld [vmem:[%s3216 + $0xfa] sm:$0xff]
        %v3625 = vld [vmem:[%s3216 + $0x10a] sm:$0xff]
        %v3626 = vld [vmem:[%s3216 + $0x112] sm:$0xff]
        %v3627 = vld [vmem:[%s3216 + $0x122] sm:$0xff]
        %v3628 = vld [vmem:[%s3216 + $0x12a] sm:$0xff]
        %v3629 = vld [vmem:[%s3216 + $0x13a] sm:$0xff]
        %v3630 = vld [vmem:[%s3216 + $0x142] sm:$0xff]
        %v3631 = vld [vmem:[%s3216 + $0x152] sm:$0xff]
        %v3632 = vld [vmem:[%s3216 + $0x15a] sm:$0xff]
        %v3633 = vld [vmem:[%s3216 + $0x16a] sm:$0xff]
        %v3634 = vld [vmem:[%s3216 + $0x172] sm:$0xff]
        %3667 = vrot.lane.b32.xlu0 %v3603, 68
        %v3668 = vpop.permute.xlu0 %3667
        %3669 = vrot.lane.b32.xlu0 %v3604, 68
        %v3670 = vpop.permute.xlu0 %3669
        %3671 = vrot.lane.b32.xlu0 %v3605, 68
        %v3672 = vpop.permute.xlu0 %3671
        %3673 = vrot.lane.b32.xlu0 %v3606, 68
        %v3674 = vpop.permute.xlu0 %3673
        %3675 = vrot.lane.b32.xlu0 %v3607, 68
        %v3676 = vpop.permute.xlu0 %3675
        %3677 = vrot.lane.b32.xlu0 %v3608, 68
        %v3678 = vpop.permute.xlu0 %3677
        %3679 = vrot.lane.b32.xlu0 %v3609, 68
        %v3680 = vpop.permute.xlu0 %3679
        %3681 = vrot.lane.b32.xlu0 %v3610, 68
        %v3682 = vpop.permute.xlu0 %3681
        %3683 = vrot.lane.b32.xlu0 %v3611, 68
        %v3684 = vpop.permute.xlu0 %3683
        %3685 = vrot.lane.b32.xlu0 %v3612, 68
        %v3686 = vpop.permute.xlu0 %3685
        %3687 = vrot.lane.b32.xlu0 %v3613, 68
        %v3688 = vpop.permute.xlu0 %3687
        %3689 = vrot.lane.b32.xlu0 %v3614, 68
        %v3690 = vpop.permute.xlu0 %3689
        %3691 = vrot.lane.b32.xlu0 %v3615, 68
        %v3692 = vpop.permute.xlu0 %3691
        %3693 = vrot.lane.b32.xlu0 %v3616, 68
        %v3694 = vpop.permute.xlu0 %3693
        %3695 = vrot.lane.b32.xlu0 %v3617, 68
        %v3696 = vpop.permute.xlu0 %3695
        %3697 = vrot.lane.b32.xlu0 %v3618, 68
        %v3698 = vpop.permute.xlu0 %3697
        %3699 = vrot.lane.b32.xlu0 %v3619, 68
        %v3700 = vpop.permute.xlu0 %3699
        %3701 = vrot.lane.b32.xlu0 %v3620, 68
        %v3702 = vpop.permute.xlu0 %3701
        %3703 = vrot.lane.b32.xlu0 %v3621, 68
        %v3704 = vpop.permute.xlu0 %3703
        %3705 = vrot.lane.b32.xlu0 %v3622, 68
        %v3706 = vpop.permute.xlu0 %3705
        %3707 = vrot.lane.b32.xlu0 %v3623, 68
        %v3708 = vpop.permute.xlu0 %3707
        %3709 = vrot.lane.b32.xlu0 %v3624, 68
        %v3710 = vpop.permute.xlu0 %3709
        %3711 = vrot.lane.b32.xlu0 %v3625, 68
        %v3712 = vpop.permute.xlu0 %3711
        %3713 = vrot.lane.b32.xlu0 %v3626, 68
        %v3714 = vpop.permute.xlu0 %3713
        %3715 = vrot.lane.b32.xlu0 %v3627, 68
        %v3716 = vpop.permute.xlu0 %3715
        %3717 = vrot.lane.b32.xlu0 %v3628, 68
        %v3718 = vpop.permute.xlu0 %3717
        %3719 = vrot.lane.b32.xlu0 %v3629, 68
        %v3720 = vpop.permute.xlu0 %3719
        %3721 = vrot.lane.b32.xlu0 %v3630, 68
        %v3722 = vpop.permute.xlu0 %3721
        %3723 = vrot.lane.b32.xlu0 %v3631, 68
        %v3724 = vpop.permute.xlu0 %3723
        %3725 = vrot.lane.b32.xlu0 %v3632, 68
        %v3726 = vpop.permute.xlu0 %3725
        %3727 = vrot.lane.b32.xlu0 %v3633, 68
        %v3728 = vpop.permute.xlu0 %3727
        %3729 = vrot.lane.b32.xlu0 %v3634, 68
        %v3730 = vpop.permute.xlu0 %3729
        %vm3763 = vcmask 589344
        %3764 = vst.msk [vmem:[#allocation3] sm:$0xff] %vm3763, %v3668
        %3765 = vst.msk [vmem:[#allocation3 + $0x8] sm:$0xff] %vm3763, %v3670
        %3766 = vst.msk [vmem:[#allocation3 + $0x10] sm:$0xff] %vm3763, %v3672
        %3767 = vst.msk [vmem:[#allocation3 + $0x18] sm:$0xff] %vm3763, %v3674
        %3768 = vst.msk [vmem:[#allocation3 + $0x20] sm:$0xff] %vm3763, %v3676
        %3769 = vst.msk [vmem:[#allocation3 + $0x28] sm:$0xff] %vm3763, %v3678
        %3770 = vst.msk [vmem:[#allocation3 + $0x30] sm:$0xff] %vm3763, %v3680
        %3771 = vst.msk [vmem:[#allocation3 + $0x38] sm:$0xff] %vm3763, %v3682
        %3772 = vst.msk [vmem:[#allocation3 + $0x40] sm:$0xff] %vm3763, %v3684
        %3773 = vst.msk [vmem:[#allocation3 + $0x48] sm:$0xff] %vm3763, %v3686
        %3774 = vst.msk [vmem:[#allocation3 + $0x50] sm:$0xff] %vm3763, %v3688
        %3775 = vst.msk [vmem:[#allocation3 + $0x58] sm:$0xff] %vm3763, %v3690
        %3776 = vst.msk [vmem:[#allocation3 + $0x60] sm:$0xff] %vm3763, %v3692
        %3777 = vst.msk [vmem:[#allocation3 + $0x68] sm:$0xff] %vm3763, %v3694
        %3778 = vst.msk [vmem:[#allocation3 + $0x70] sm:$0xff] %vm3763, %v3696
        %3779 = vst.msk [vmem:[#allocation3 + $0x78] sm:$0xff] %vm3763, %v3698
        %3780 = vst.msk [vmem:[#allocation3 + $0x80] sm:$0xff] %vm3763, %v3700
        %3781 = vst.msk [vmem:[#allocation3 + $0x88] sm:$0xff] %vm3763, %v3702
        %3782 = vst.msk [vmem:[#allocation3 + $0x90] sm:$0xff] %vm3763, %v3704
        %3783 = vst.msk [vmem:[#allocation3 + $0x98] sm:$0xff] %vm3763, %v3706
        %3784 = vst.msk [vmem:[#allocation3 + $0xa0] sm:$0xff] %vm3763, %v3708
        %3785 = vst.msk [vmem:[#allocation3 + $0xa8] sm:$0xff] %vm3763, %v3710
        %3786 = vst.msk [vmem:[#allocation3 + $0xb0] sm:$0xff] %vm3763, %v3712
        %3787 = vst.msk [vmem:[#allocation3 + $0xb8] sm:$0xff] %vm3763, %v3714
        %3788 = vst.msk [vmem:[#allocation3 + $0xc0] sm:$0xff] %vm3763, %v3716
        %3789 = vst.msk [vmem:[#allocation3 + $0xc8] sm:$0xff] %vm3763, %v3718
        %3790 = vst.msk [vmem:[#allocation3 + $0xd0] sm:$0xff] %vm3763, %v3720
        %3791 = vst.msk [vmem:[#allocation3 + $0xd8] sm:$0xff] %vm3763, %v3722
        %3792 = vst.msk [vmem:[#allocation3 + $0xe0] sm:$0xff] %vm3763, %v3724
        %3793 = vst.msk [vmem:[#allocation3 + $0xe8] sm:$0xff] %vm3763, %v3726
        %3794 = vst.msk [vmem:[#allocation3 + $0xf0] sm:$0xff] %vm3763, %v3728
        %3795 = vst.msk [vmem:[#allocation3 + $0xf8] sm:$0xff] %vm3763, %v3730
        %v3796 = vld [vmem:[%s3216 + $0x3] sm:$0xff]
        %v3797 = vld [vmem:[%s3216 + $0xb] sm:$0xff]
        %v3798 = vld [vmem:[%s3216 + $0x1b] sm:$0xff]
        %v3799 = vld [vmem:[%s3216 + $0x23] sm:$0xff]
        %v3800 = vld [vmem:[%s3216 + $0x33] sm:$0xff]
        %v3801 = vld [vmem:[%s3216 + $0x3b] sm:$0xff]
        %v3802 = vld [vmem:[%s3216 + $0x4b] sm:$0xff]
        %v3803 = vld [vmem:[%s3216 + $0x53] sm:$0xff]
        %v3804 = vld [vmem:[%s3216 + $0x63] sm:$0xff]
        %v3805 = vld [vmem:[%s3216 + $0x6b] sm:$0xff]
        %v3806 = vld [vmem:[%s3216 + $0x7b] sm:$0xff]
        %v3807 = vld [vmem:[%s3216 + $0x83] sm:$0xff]
        %v3808 = vld [vmem:[%s3216 + $0x93] sm:$0xff]
        %v3809 = vld [vmem:[%s3216 + $0x9b] sm:$0xff]
        %v3810 = vld [vmem:[%s3216 + $0xab] sm:$0xff]
        %v3811 = vld [vmem:[%s3216 + $0xb3] sm:$0xff]
        %v3812 = vld [vmem:[%s3216 + $0xc3] sm:$0xff]
        %v3813 = vld [vmem:[%s3216 + $0xcb] sm:$0xff]
        %v3814 = vld [vmem:[%s3216 + $0xdb] sm:$0xff]
        %v3815 = vld [vmem:[%s3216 + $0xe3] sm:$0xff]
        %v3816 = vld [vmem:[%s3216 + $0xf3] sm:$0xff]
        %v3817 = vld [vmem:[%s3216 + $0xfb] sm:$0xff]
        %v3818 = vld [vmem:[%s3216 + $0x10b] sm:$0xff]
        %v3819 = vld [vmem:[%s3216 + $0x113] sm:$0xff]
        %v3820 = vld [vmem:[%s3216 + $0x123] sm:$0xff]
        %v3821 = vld [vmem:[%s3216 + $0x12b] sm:$0xff]
        %v3822 = vld [vmem:[%s3216 + $0x13b] sm:$0xff]
        %v3823 = vld [vmem:[%s3216 + $0x143] sm:$0xff]
        %v3824 = vld [vmem:[%s3216 + $0x153] sm:$0xff]
        %v3825 = vld [vmem:[%s3216 + $0x15b] sm:$0xff]
        %v3826 = vld [vmem:[%s3216 + $0x16b] sm:$0xff]
        %v3827 = vld [vmem:[%s3216 + $0x173] sm:$0xff]
        %3860 = vrot.lane.b32.xlu0 %v3796, 72
        %v3861 = vpop.permute.xlu0 %3860
        %3862 = vrot.lane.b32.xlu0 %v3797, 72
        %v3863 = vpop.permute.xlu0 %3862
        %3864 = vrot.lane.b32.xlu0 %v3798, 72
        %v3865 = vpop.permute.xlu0 %3864
        %3866 = vrot.lane.b32.xlu0 %v3799, 72
        %v3867 = vpop.permute.xlu0 %3866
        %3868 = vrot.lane.b32.xlu0 %v3800, 72
        %v3869 = vpop.permute.xlu0 %3868
        %3870 = vrot.lane.b32.xlu0 %v3801, 72
        %v3871 = vpop.permute.xlu0 %3870
        %3872 = vrot.lane.b32.xlu0 %v3802, 72
        %v3873 = vpop.permute.xlu0 %3872
        %3874 = vrot.lane.b32.xlu0 %v3803, 72
        %v3875 = vpop.permute.xlu0 %3874
        %3876 = vrot.lane.b32.xlu0 %v3804, 72
        %v3877 = vpop.permute.xlu0 %3876
        %3878 = vrot.lane.b32.xlu0 %v3805, 72
        %v3879 = vpop.permute.xlu0 %3878
        %3880 = vrot.lane.b32.xlu0 %v3806, 72
        %v3881 = vpop.permute.xlu0 %3880
        %3882 = vrot.lane.b32.xlu0 %v3807, 72
        %v3883 = vpop.permute.xlu0 %3882
        %3884 = vrot.lane.b32.xlu0 %v3808, 72
        %v3885 = vpop.permute.xlu0 %3884
        %3886 = vrot.lane.b32.xlu0 %v3809, 72
        %v3887 = vpop.permute.xlu0 %3886
        %3888 = vrot.lane.b32.xlu0 %v3810, 72
        %v3889 = vpop.permute.xlu0 %3888
        %3890 = vrot.lane.b32.xlu0 %v3811, 72
        %v3891 = vpop.permute.xlu0 %3890
        %3892 = vrot.lane.b32.xlu0 %v3812, 72
        %v3893 = vpop.permute.xlu0 %3892
        %3894 = vrot.lane.b32.xlu0 %v3813, 72
        %v3895 = vpop.permute.xlu0 %3894
        %3896 = vrot.lane.b32.xlu0 %v3814, 72
        %v3897 = vpop.permute.xlu0 %3896
        %3898 = vrot.lane.b32.xlu0 %v3815, 72
        %v3899 = vpop.permute.xlu0 %3898
        %3900 = vrot.lane.b32.xlu0 %v3816, 72
        %v3901 = vpop.permute.xlu0 %3900
        %3902 = vrot.lane.b32.xlu0 %v3817, 72
        %v3903 = vpop.permute.xlu0 %3902
        %3904 = vrot.lane.b32.xlu0 %v3818, 72
        %v3905 = vpop.permute.xlu0 %3904
        %3906 = vrot.lane.b32.xlu0 %v3819, 72
        %v3907 = vpop.permute.xlu0 %3906
        %3908 = vrot.lane.b32.xlu0 %v3820, 72
        %v3909 = vpop.permute.xlu0 %3908
        %3910 = vrot.lane.b32.xlu0 %v3821, 72
        %v3911 = vpop.permute.xlu0 %3910
        %3912 = vrot.lane.b32.xlu0 %v3822, 72
        %v3913 = vpop.permute.xlu0 %3912
        %3914 = vrot.lane.b32.xlu0 %v3823, 72
        %v3915 = vpop.permute.xlu0 %3914
        %3916 = vrot.lane.b32.xlu0 %v3824, 72
        %v3917 = vpop.permute.xlu0 %3916
        %3918 = vrot.lane.b32.xlu0 %v3825, 72
        %v3919 = vpop.permute.xlu0 %3918
        %3920 = vrot.lane.b32.xlu0 %v3826, 72
        %v3921 = vpop.permute.xlu0 %3920
        %3922 = vrot.lane.b32.xlu0 %v3827, 72
        %v3923 = vpop.permute.xlu0 %3922
        %vm3956 = vcmask 622144
        %3957 = vst.msk [vmem:[#allocation3] sm:$0xff] %vm3956, %v3861
        %3958 = vst.msk [vmem:[#allocation3 + $0x8] sm:$0xff] %vm3956, %v3863
        %3959 = vst.msk [vmem:[#allocation3 + $0x10] sm:$0xff] %vm3956, %v3865
        %3960 = vst.msk [vmem:[#allocation3 + $0x18] sm:$0xff] %vm3956, %v3867
        %3961 = vst.msk [vmem:[#allocation3 + $0x20] sm:$0xff] %vm3956, %v3869
        %3962 = vst.msk [vmem:[#allocation3 + $0x28] sm:$0xff] %vm3956, %v3871
        %3963 = vst.msk [vmem:[#allocation3 + $0x30] sm:$0xff] %vm3956, %v3873
        %3964 = vst.msk [vmem:[#allocation3 + $0x38] sm:$0xff] %vm3956, %v3875
        %3965 = vst.msk [vmem:[#allocation3 + $0x40] sm:$0xff] %vm3956, %v3877
        %3966 = vst.msk [vmem:[#allocation3 + $0x48] sm:$0xff] %vm3956, %v3879
        %3967 = vst.msk [vmem:[#allocation3 + $0x50] sm:$0xff] %vm3956, %v3881
        %3968 = vst.msk [vmem:[#allocation3 + $0x58] sm:$0xff] %vm3956, %v3883
        %3969 = vst.msk [vmem:[#allocation3 + $0x60] sm:$0xff] %vm3956, %v3885
        %3970 = vst.msk [vmem:[#allocation3 + $0x68] sm:$0xff] %vm3956, %v3887
        %3971 = vst.msk [vmem:[#allocation3 + $0x70] sm:$0xff] %vm3956, %v3889
        %3972 = vst.msk [vmem:[#allocation3 + $0x78] sm:$0xff] %vm3956, %v3891
        %3973 = vst.msk [vmem:[#allocation3 + $0x80] sm:$0xff] %vm3956, %v3893
        %3974 = vst.msk [vmem:[#allocation3 + $0x88] sm:$0xff] %vm3956, %v3895
        %3975 = vst.msk [vmem:[#allocation3 + $0x90] sm:$0xff] %vm3956, %v3897
        %3976 = vst.msk [vmem:[#allocation3 + $0x98] sm:$0xff] %vm3956, %v3899
        %3977 = vst.msk [vmem:[#allocation3 + $0xa0] sm:$0xff] %vm3956, %v3901
        %3978 = vst.msk [vmem:[#allocation3 + $0xa8] sm:$0xff] %vm3956, %v3903
        %3979 = vst.msk [vmem:[#allocation3 + $0xb0] sm:$0xff] %vm3956, %v3905
        %3980 = vst.msk [vmem:[#allocation3 + $0xb8] sm:$0xff] %vm3956, %v3907
        %3981 = vst.msk [vmem:[#allocation3 + $0xc0] sm:$0xff] %vm3956, %v3909
        %3982 = vst.msk [vmem:[#allocation3 + $0xc8] sm:$0xff] %vm3956, %v3911
        %3983 = vst.msk [vmem:[#allocation3 + $0xd0] sm:$0xff] %vm3956, %v3913
        %3984 = vst.msk [vmem:[#allocation3 + $0xd8] sm:$0xff] %vm3956, %v3915
        %3985 = vst.msk [vmem:[#allocation3 + $0xe0] sm:$0xff] %vm3956, %v3917
        %3986 = vst.msk [vmem:[#allocation3 + $0xe8] sm:$0xff] %vm3956, %v3919
        %3987 = vst.msk [vmem:[#allocation3 + $0xf0] sm:$0xff] %vm3956, %v3921
        %3988 = vst.msk [vmem:[#allocation3 + $0xf8] sm:$0xff] %vm3956, %v3923
        %v3989 = vld [vmem:[%s3216 + $0x4] sm:$0xff]
        %v3990 = vld [vmem:[%s3216 + $0xc] sm:$0xff]
        %v3991 = vld [vmem:[%s3216 + $0x1c] sm:$0xff]
        %v3992 = vld [vmem:[%s3216 + $0x24] sm:$0xff]
        %v3993 = vld [vmem:[%s3216 + $0x34] sm:$0xff]
        %v3994 = vld [vmem:[%s3216 + $0x3c] sm:$0xff]
        %v3995 = vld [vmem:[%s3216 + $0x4c] sm:$0xff]
        %v3996 = vld [vmem:[%s3216 + $0x54] sm:$0xff]
        %v3997 = vld [vmem:[%s3216 + $0x64] sm:$0xff]
        %v3998 = vld [vmem:[%s3216 + $0x6c] sm:$0xff]
        %v3999 = vld [vmem:[%s3216 + $0x7c] sm:$0xff]
        %v4000 = vld [vmem:[%s3216 + $0x84] sm:$0xff]
        %v4001 = vld [vmem:[%s3216 + $0x94] sm:$0xff]
        %v4002 = vld [vmem:[%s3216 + $0x9c] sm:$0xff]
        %v4003 = vld [vmem:[%s3216 + $0xac] sm:$0xff]
        %v4004 = vld [vmem:[%s3216 + $0xb4] sm:$0xff]
        %v4005 = vld [vmem:[%s3216 + $0xc4] sm:$0xff]
        %v4006 = vld [vmem:[%s3216 + $0xcc] sm:$0xff]
        %v4007 = vld [vmem:[%s3216 + $0xdc] sm:$0xff]
        %v4008 = vld [vmem:[%s3216 + $0xe4] sm:$0xff]
        %v4009 = vld [vmem:[%s3216 + $0xf4] sm:$0xff]
        %v4010 = vld [vmem:[%s3216 + $0xfc] sm:$0xff]
        %v4011 = vld [vmem:[%s3216 + $0x10c] sm:$0xff]
        %v4012 = vld [vmem:[%s3216 + $0x114] sm:$0xff]
        %v4013 = vld [vmem:[%s3216 + $0x124] sm:$0xff]
        %v4014 = vld [vmem:[%s3216 + $0x12c] sm:$0xff]
        %v4015 = vld [vmem:[%s3216 + $0x13c] sm:$0xff]
        %v4016 = vld [vmem:[%s3216 + $0x144] sm:$0xff]
        %v4017 = vld [vmem:[%s3216 + $0x154] sm:$0xff]
        %v4018 = vld [vmem:[%s3216 + $0x15c] sm:$0xff]
        %v4019 = vld [vmem:[%s3216 + $0x16c] sm:$0xff]
        %v4020 = vld [vmem:[%s3216 + $0x174] sm:$0xff]
        %4053 = vrot.lane.b32.xlu0 %v3989, 76
        %v4054 = vpop.permute.xlu0 %4053
        %4055 = vrot.lane.b32.xlu0 %v3990, 76
        %v4056 = vpop.permute.xlu0 %4055
        %4057 = vrot.lane.b32.xlu0 %v3991, 76
        %v4058 = vpop.permute.xlu0 %4057
        %4059 = vrot.lane.b32.xlu0 %v3992, 76
        %v4060 = vpop.permute.xlu0 %4059
        %4061 = vrot.lane.b32.xlu0 %v3993, 76
        %v4062 = vpop.permute.xlu0 %4061
        %4063 = vrot.lane.b32.xlu0 %v3994, 76
        %v4064 = vpop.permute.xlu0 %4063
        %4065 = vrot.lane.b32.xlu0 %v3995, 76
        %v4066 = vpop.permute.xlu0 %4065
        %4067 = vrot.lane.b32.xlu0 %v3996, 76
        %v4068 = vpop.permute.xlu0 %4067
        %4069 = vrot.lane.b32.xlu0 %v3997, 76
        %v4070 = vpop.permute.xlu0 %4069
        %4071 = vrot.lane.b32.xlu0 %v3998, 76
        %v4072 = vpop.permute.xlu0 %4071
        %4073 = vrot.lane.b32.xlu0 %v3999, 76
        %v4074 = vpop.permute.xlu0 %4073
        %4075 = vrot.lane.b32.xlu0 %v4000, 76
        %v4076 = vpop.permute.xlu0 %4075
        %4077 = vrot.lane.b32.xlu0 %v4001, 76
        %v4078 = vpop.permute.xlu0 %4077
        %4079 = vrot.lane.b32.xlu0 %v4002, 76
        %v4080 = vpop.permute.xlu0 %4079
        %4081 = vrot.lane.b32.xlu0 %v4003, 76
        %v4082 = vpop.permute.xlu0 %4081
        %4083 = vrot.lane.b32.xlu0 %v4004, 76
        %v4084 = vpop.permute.xlu0 %4083
        %4085 = vrot.lane.b32.xlu0 %v4005, 76
        %v4086 = vpop.permute.xlu0 %4085
        %4087 = vrot.lane.b32.xlu0 %v4006, 76
        %v4088 = vpop.permute.xlu0 %4087
        %4089 = vrot.lane.b32.xlu0 %v4007, 76
        %v4090 = vpop.permute.xlu0 %4089
        %4091 = vrot.lane.b32.xlu0 %v4008, 76
        %v4092 = vpop.permute.xlu0 %4091
        %4093 = vrot.lane.b32.xlu0 %v4009, 76
        %v4094 = vpop.permute.xlu0 %4093
        %4095 = vrot.lane.b32.xlu0 %v4010, 76
        %v4096 = vpop.permute.xlu0 %4095
        %4097 = vrot.lane.b32.xlu0 %v4011, 76
        %v4098 = vpop.permute.xlu0 %4097
        %4099 = vrot.lane.b32.xlu0 %v4012, 76
        %v4100 = vpop.permute.xlu0 %4099
        %4101 = vrot.lane.b32.xlu0 %v4013, 76
        %v4102 = vpop.permute.xlu0 %4101
        %4103 = vrot.lane.b32.xlu0 %v4014, 76
        %v4104 = vpop.permute.xlu0 %4103
        %4105 = vrot.lane.b32.xlu0 %v4015, 76
        %v4106 = vpop.permute.xlu0 %4105
        %4107 = vrot.lane.b32.xlu0 %v4016, 76
        %v4108 = vpop.permute.xlu0 %4107
        %4109 = vrot.lane.b32.xlu0 %v4017, 76
        %v4110 = vpop.permute.xlu0 %4109
        %4111 = vrot.lane.b32.xlu0 %v4018, 76
        %v4112 = vpop.permute.xlu0 %4111
        %4113 = vrot.lane.b32.xlu0 %v4019, 76
        %v4114 = vpop.permute.xlu0 %4113
        %4115 = vrot.lane.b32.xlu0 %v4020, 76
        %v4116 = vpop.permute.xlu0 %4115
        %vm4149 = vcmask 654944
        %4150 = vst.msk [vmem:[#allocation3] sm:$0xff] %vm4149, %v4054
        %4151 = vst.msk [vmem:[#allocation3 + $0x8] sm:$0xff] %vm4149, %v4056
        %4152 = vst.msk [vmem:[#allocation3 + $0x10] sm:$0xff] %vm4149, %v4058
        %4153 = vst.msk [vmem:[#allocation3 + $0x18] sm:$0xff] %vm4149, %v4060
        %4154 = vst.msk [vmem:[#allocation3 + $0x20] sm:$0xff] %vm4149, %v4062
        %4155 = vst.msk [vmem:[#allocation3 + $0x28] sm:$0xff] %vm4149, %v4064
        %4156 = vst.msk [vmem:[#allocation3 + $0x30] sm:$0xff] %vm4149, %v4066
        %4157 = vst.msk [vmem:[#allocation3 + $0x38] sm:$0xff] %vm4149, %v4068
        %4158 = vst.msk [vmem:[#allocation3 + $0x40] sm:$0xff] %vm4149, %v4070
        %4159 = vst.msk [vmem:[#allocation3 + $0x48] sm:$0xff] %vm4149, %v4072
        %4160 = vst.msk [vmem:[#allocation3 + $0x50] sm:$0xff] %vm4149, %v4074
        %4161 = vst.msk [vmem:[#allocation3 + $0x58] sm:$0xff] %vm4149, %v4076
        %4162 = vst.msk [vmem:[#allocation3 + $0x60] sm:$0xff] %vm4149, %v4078
        %4163 = vst.msk [vmem:[#allocation3 + $0x68] sm:$0xff] %vm4149, %v4080
        %4164 = vst.msk [vmem:[#allocation3 + $0x70] sm:$0xff] %vm4149, %v4082
        %4165 = vst.msk [vmem:[#allocation3 + $0x78] sm:$0xff] %vm4149, %v4084
        %4166 = vst.msk [vmem:[#allocation3 + $0x80] sm:$0xff] %vm4149, %v4086
        %4167 = vst.msk [vmem:[#allocation3 + $0x88] sm:$0xff] %vm4149, %v4088
        %4168 = vst.msk [vmem:[#allocation3 + $0x90] sm:$0xff] %vm4149, %v4090
        %4169 = vst.msk [vmem:[#allocation3 + $0x98] sm:$0xff] %vm4149, %v4092
        %4170 = vst.msk [vmem:[#allocation3 + $0xa0] sm:$0xff] %vm4149, %v4094
        %4171 = vst.msk [vmem:[#allocation3 + $0xa8] sm:$0xff] %vm4149, %v4096
        %4172 = vst.msk [vmem:[#allocation3 + $0xb0] sm:$0xff] %vm4149, %v4098
        %4173 = vst.msk [vmem:[#allocation3 + $0xb8] sm:$0xff] %vm4149, %v4100
        %4174 = vst.msk [vmem:[#allocation3 + $0xc0] sm:$0xff] %vm4149, %v4102
        %4175 = vst.msk [vmem:[#allocation3 + $0xc8] sm:$0xff] %vm4149, %v4104
        %4176 = vst.msk [vmem:[#allocation3 + $0xd0] sm:$0xff] %vm4149, %v4106
        %4177 = vst.msk [vmem:[#allocation3 + $0xd8] sm:$0xff] %vm4149, %v4108
        %4178 = vst.msk [vmem:[#allocation3 + $0xe0] sm:$0xff] %vm4149, %v4110
        %4179 = vst.msk [vmem:[#allocation3 + $0xe8] sm:$0xff] %vm4149, %v4112
        %4180 = vst.msk [vmem:[#allocation3 + $0xf0] sm:$0xff] %vm4149, %v4114
        %4181 = vst.msk [vmem:[#allocation3 + $0xf8] sm:$0xff] %vm4149, %v4116
        %s4182 = scalar_lea.vmem [#allocation2], 96
        %v4183 = vld [vmem:[%s4182] sm:$0xff]
        %v4184 = vld [vmem:[%s4182 + $0x8] sm:$0xff]
        %v4185 = vld [vmem:[%s4182 + $0x18] sm:$0xff]
        %v4186 = vld [vmem:[%s4182 + $0x20] sm:$0xff]
        %v4187 = vld [vmem:[%s4182 + $0x30] sm:$0xff]
        %v4188 = vld [vmem:[%s4182 + $0x38] sm:$0xff]
        %v4189 = vld [vmem:[%s4182 + $0x48] sm:$0xff]
        %v4190 = vld [vmem:[%s4182 + $0x50] sm:$0xff]
        %v4191 = vld [vmem:[%s4182 + $0x60] sm:$0xff]
        %v4192 = vld [vmem:[%s4182 + $0x68] sm:$0xff]
        %v4193 = vld [vmem:[%s4182 + $0x78] sm:$0xff]
        %v4194 = vld [vmem:[%s4182 + $0x80] sm:$0xff]
        %v4195 = vld [vmem:[%s4182 + $0x90] sm:$0xff]
        %v4196 = vld [vmem:[%s4182 + $0x98] sm:$0xff]
        %v4197 = vld [vmem:[%s4182 + $0xa8] sm:$0xff]
        %v4198 = vld [vmem:[%s4182 + $0xb0] sm:$0xff]
        %v4199 = vld [vmem:[%s4182 + $0xc0] sm:$0xff]
        %v4200 = vld [vmem:[%s4182 + $0xc8] sm:$0xff]
        %v4201 = vld [vmem:[%s4182 + $0xd8] sm:$0xff]
        %v4202 = vld [vmem:[%s4182 + $0xe0] sm:$0xff]
        %v4203 = vld [vmem:[%s4182 + $0xf0] sm:$0xff]
        %v4204 = vld [vmem:[%s4182 + $0xf8] sm:$0xff]
        %v4205 = vld [vmem:[%s4182 + $0x108] sm:$0xff]
        %v4206 = vld [vmem:[%s4182 + $0x110] sm:$0xff]
        %v4207 = vld [vmem:[%s4182 + $0x120] sm:$0xff]
        %v4208 = vld [vmem:[%s4182 + $0x128] sm:$0xff]
        %v4209 = vld [vmem:[%s4182 + $0x138] sm:$0xff]
        %v4210 = vld [vmem:[%s4182 + $0x140] sm:$0xff]
        %v4211 = vld [vmem:[%s4182 + $0x150] sm:$0xff]
        %v4212 = vld [vmem:[%s4182 + $0x158] sm:$0xff]
        %v4213 = vld [vmem:[%s4182 + $0x168] sm:$0xff]
        %v4214 = vld [vmem:[%s4182 + $0x170] sm:$0xff]
        %4247 = vrot.lane.b32.xlu0 %v4183, 80
        %v4248 = vpop.permute.xlu0 %4247
        %4249 = vrot.lane.b32.xlu0 %v4184, 80
        %v4250 = vpop.permute.xlu0 %4249
        %4251 = vrot.lane.b32.xlu0 %v4185, 80
        %v4252 = vpop.permute.xlu0 %4251
        %4253 = vrot.lane.b32.xlu0 %v4186, 80
        %v4254 = vpop.permute.xlu0 %4253
        %4255 = vrot.lane.b32.xlu0 %v4187, 80
        %v4256 = vpop.permute.xlu0 %4255
        %4257 = vrot.lane.b32.xlu0 %v4188, 80
        %v4258 = vpop.permute.xlu0 %4257
        %4259 = vrot.lane.b32.xlu0 %v4189, 80
        %v4260 = vpop.permute.xlu0 %4259
        %4261 = vrot.lane.b32.xlu0 %v4190, 80
        %v4262 = vpop.permute.xlu0 %4261
        %4263 = vrot.lane.b32.xlu0 %v4191, 80
        %v4264 = vpop.permute.xlu0 %4263
        %4265 = vrot.lane.b32.xlu0 %v4192, 80
        %v4266 = vpop.permute.xlu0 %4265
        %4267 = vrot.lane.b32.xlu0 %v4193, 80
        %v4268 = vpop.permute.xlu0 %4267
        %4269 = vrot.lane.b32.xlu0 %v4194, 80
        %v4270 = vpop.permute.xlu0 %4269
        %4271 = vrot.lane.b32.xlu0 %v4195, 80
        %v4272 = vpop.permute.xlu0 %4271
        %4273 = vrot.lane.b32.xlu0 %v4196, 80
        %v4274 = vpop.permute.xlu0 %4273
        %4275 = vrot.lane.b32.xlu0 %v4197, 80
        %v4276 = vpop.permute.xlu0 %4275
        %4277 = vrot.lane.b32.xlu0 %v4198, 80
        %v4278 = vpop.permute.xlu0 %4277
        %4279 = vrot.lane.b32.xlu0 %v4199, 80
        %v4280 = vpop.permute.xlu0 %4279
        %4281 = vrot.lane.b32.xlu0 %v4200, 80
        %v4282 = vpop.permute.xlu0 %4281
        %4283 = vrot.lane.b32.xlu0 %v4201, 80
        %v4284 = vpop.permute.xlu0 %4283
        %4285 = vrot.lane.b32.xlu0 %v4202, 80
        %v4286 = vpop.permute.xlu0 %4285
        %4287 = vrot.lane.b32.xlu0 %v4203, 80
        %v4288 = vpop.permute.xlu0 %4287
        %4289 = vrot.lane.b32.xlu0 %v4204, 80
        %v4290 = vpop.permute.xlu0 %4289
        %4291 = vrot.lane.b32.xlu0 %v4205, 80
        %v4292 = vpop.permute.xlu0 %4291
        %4293 = vrot.lane.b32.xlu0 %v4206, 80
        %v4294 = vpop.permute.xlu0 %4293
        %4295 = vrot.lane.b32.xlu0 %v4207, 80
        %v4296 = vpop.permute.xlu0 %4295
        %4297 = vrot.lane.b32.xlu0 %v4208, 80
        %v4298 = vpop.permute.xlu0 %4297
        %4299 = vrot.lane.b32.xlu0 %v4209, 80
        %v4300 = vpop.permute.xlu0 %4299
        %4301 = vrot.lane.b32.xlu0 %v4210, 80
        %v4302 = vpop.permute.xlu0 %4301
        %4303 = vrot.lane.b32.xlu0 %v4211, 80
        %v4304 = vpop.permute.xlu0 %4303
        %4305 = vrot.lane.b32.xlu0 %v4212, 80
        %v4306 = vpop.permute.xlu0 %4305
        %4307 = vrot.lane.b32.xlu0 %v4213, 80
        %v4308 = vpop.permute.xlu0 %4307
        %4309 = vrot.lane.b32.xlu0 %v4214, 80
        %v4310 = vpop.permute.xlu0 %4309
        %vm4343 = vcmask 687744
        %4344 = vst.msk [vmem:[#allocation3] sm:$0xff] %vm4343, %v4248
        %4345 = vst.msk [vmem:[#allocation3 + $0x8] sm:$0xff] %vm4343, %v4250
        %4346 = vst.msk [vmem:[#allocation3 + $0x10] sm:$0xff] %vm4343, %v4252
        %4347 = vst.msk [vmem:[#allocation3 + $0x18] sm:$0xff] %vm4343, %v4254
        %4348 = vst.msk [vmem:[#allocation3 + $0x20] sm:$0xff] %vm4343, %v4256
        %4349 = vst.msk [vmem:[#allocation3 + $0x28] sm:$0xff] %vm4343, %v4258
        %4350 = vst.msk [vmem:[#allocation3 + $0x30] sm:$0xff] %vm4343, %v4260
        %4351 = vst.msk [vmem:[#allocation3 + $0x38] sm:$0xff] %vm4343, %v4262
        %4352 = vst.msk [vmem:[#allocation3 + $0x40] sm:$0xff] %vm4343, %v4264
        %4353 = vst.msk [vmem:[#allocation3 + $0x48] sm:$0xff] %vm4343, %v4266
        %4354 = vst.msk [vmem:[#allocation3 + $0x50] sm:$0xff] %vm4343, %v4268
        %4355 = vst.msk [vmem:[#allocation3 + $0x58] sm:$0xff] %vm4343, %v4270
        %4356 = vst.msk [vmem:[#allocation3 + $0x60] sm:$0xff] %vm4343, %v4272
        %4357 = vst.msk [vmem:[#allocation3 + $0x68] sm:$0xff] %vm4343, %v4274
        %4358 = vst.msk [vmem:[#allocation3 + $0x70] sm:$0xff] %vm4343, %v4276
        %4359 = vst.msk [vmem:[#allocation3 + $0x78] sm:$0xff] %vm4343, %v4278
        %4360 = vst.msk [vmem:[#allocation3 + $0x80] sm:$0xff] %vm4343, %v4280
        %4361 = vst.msk [vmem:[#allocation3 + $0x88] sm:$0xff] %vm4343, %v4282
        %4362 = vst.msk [vmem:[#allocation3 + $0x90] sm:$0xff] %vm4343, %v4284
        %4363 = vst.msk [vmem:[#allocation3 + $0x98] sm:$0xff] %vm4343, %v4286
        %4364 = vst.msk [vmem:[#allocation3 + $0xa0] sm:$0xff] %vm4343, %v4288
        %4365 = vst.msk [vmem:[#allocation3 + $0xa8] sm:$0xff] %vm4343, %v4290
        %4366 = vst.msk [vmem:[#allocation3 + $0xb0] sm:$0xff] %vm4343, %v4292
        %4367 = vst.msk [vmem:[#allocation3 + $0xb8] sm:$0xff] %vm4343, %v4294
        %4368 = vst.msk [vmem:[#allocation3 + $0xc0] sm:$0xff] %vm4343, %v4296
        %4369 = vst.msk [vmem:[#allocation3 + $0xc8] sm:$0xff] %vm4343, %v4298
        %4370 = vst.msk [vmem:[#allocation3 + $0xd0] sm:$0xff] %vm4343, %v4300
        %4371 = vst.msk [vmem:[#allocation3 + $0xd8] sm:$0xff] %vm4343, %v4302
        %4372 = vst.msk [vmem:[#allocation3 + $0xe0] sm:$0xff] %vm4343, %v4304
        %4373 = vst.msk [vmem:[#allocation3 + $0xe8] sm:$0xff] %vm4343, %v4306
        %4374 = vst.msk [vmem:[#allocation3 + $0xf0] sm:$0xff] %vm4343, %v4308
        %4375 = vst.msk [vmem:[#allocation3 + $0xf8] sm:$0xff] %vm4343, %v4310
        %v4376 = vld [vmem:[%s4182 + $0x1] sm:$0xff]
        %v4377 = vld [vmem:[%s4182 + $0x9] sm:$0xff]
        %v4378 = vld [vmem:[%s4182 + $0x19] sm:$0xff]
        %v4379 = vld [vmem:[%s4182 + $0x21] sm:$0xff]
        %v4380 = vld [vmem:[%s4182 + $0x31] sm:$0xff]
        %v4381 = vld [vmem:[%s4182 + $0x39] sm:$0xff]
        %v4382 = vld [vmem:[%s4182 + $0x49] sm:$0xff]
        %v4383 = vld [vmem:[%s4182 + $0x51] sm:$0xff]
        %v4384 = vld [vmem:[%s4182 + $0x61] sm:$0xff]
        %v4385 = vld [vmem:[%s4182 + $0x69] sm:$0xff]
        %v4386 = vld [vmem:[%s4182 + $0x79] sm:$0xff]
        %v4387 = vld [vmem:[%s4182 + $0x81] sm:$0xff]
        %v4388 = vld [vmem:[%s4182 + $0x91] sm:$0xff]
        %v4389 = vld [vmem:[%s4182 + $0x99] sm:$0xff]
        %v4390 = vld [vmem:[%s4182 + $0xa9] sm:$0xff]
        %v4391 = vld [vmem:[%s4182 + $0xb1] sm:$0xff]
        %v4392 = vld [vmem:[%s4182 + $0xc1] sm:$0xff]
        %v4393 = vld [vmem:[%s4182 + $0xc9] sm:$0xff]
        %v4394 = vld [vmem:[%s4182 + $0xd9] sm:$0xff]
        %v4395 = vld [vmem:[%s4182 + $0xe1] sm:$0xff]
        %v4396 = vld [vmem:[%s4182 + $0xf1] sm:$0xff]
        %v4397 = vld [vmem:[%s4182 + $0xf9] sm:$0xff]
        %v4398 = vld [vmem:[%s4182 + $0x109] sm:$0xff]
        %v4399 = vld [vmem:[%s4182 + $0x111] sm:$0xff]
        %v4400 = vld [vmem:[%s4182 + $0x121] sm:$0xff]
        %v4401 = vld [vmem:[%s4182 + $0x129] sm:$0xff]
        %v4402 = vld [vmem:[%s4182 + $0x139] sm:$0xff]
        %v4403 = vld [vmem:[%s4182 + $0x141] sm:$0xff]
        %v4404 = vld [vmem:[%s4182 + $0x151] sm:$0xff]
        %v4405 = vld [vmem:[%s4182 + $0x159] sm:$0xff]
        %v4406 = vld [vmem:[%s4182 + $0x169] sm:$0xff]
        %v4407 = vld [vmem:[%s4182 + $0x171] sm:$0xff]
        %4440 = vrot.lane.b32.xlu0 %v4376, 84
        %v4441 = vpop.permute.xlu0 %4440
        %4442 = vrot.lane.b32.xlu0 %v4377, 84
        %v4443 = vpop.permute.xlu0 %4442
        %4444 = vrot.lane.b32.xlu0 %v4378, 84
        %v4445 = vpop.permute.xlu0 %4444
        %4446 = vrot.lane.b32.xlu0 %v4379, 84
        %v4447 = vpop.permute.xlu0 %4446
        %4448 = vrot.lane.b32.xlu0 %v4380, 84
        %v4449 = vpop.permute.xlu0 %4448
        %4450 = vrot.lane.b32.xlu0 %v4381, 84
        %v4451 = vpop.permute.xlu0 %4450
        %4452 = vrot.lane.b32.xlu0 %v4382, 84
        %v4453 = vpop.permute.xlu0 %4452
        %4454 = vrot.lane.b32.xlu0 %v4383, 84
        %v4455 = vpop.permute.xlu0 %4454
        %4456 = vrot.lane.b32.xlu0 %v4384, 84
        %v4457 = vpop.permute.xlu0 %4456
        %4458 = vrot.lane.b32.xlu0 %v4385, 84
        %v4459 = vpop.permute.xlu0 %4458
        %4460 = vrot.lane.b32.xlu0 %v4386, 84
        %v4461 = vpop.permute.xlu0 %4460
        %4462 = vrot.lane.b32.xlu0 %v4387, 84
        %v4463 = vpop.permute.xlu0 %4462
        %4464 = vrot.lane.b32.xlu0 %v4388, 84
        %v4465 = vpop.permute.xlu0 %4464
        %4466 = vrot.lane.b32.xlu0 %v4389, 84
        %v4467 = vpop.permute.xlu0 %4466
        %4468 = vrot.lane.b32.xlu0 %v4390, 84
        %v4469 = vpop.permute.xlu0 %4468
        %4470 = vrot.lane.b32.xlu0 %v4391, 84
        %v4471 = vpop.permute.xlu0 %4470
        %4472 = vrot.lane.b32.xlu0 %v4392, 84
        %v4473 = vpop.permute.xlu0 %4472
        %4474 = vrot.lane.b32.xlu0 %v4393, 84
        %v4475 = vpop.permute.xlu0 %4474
        %4476 = vrot.lane.b32.xlu0 %v4394, 84
        %v4477 = vpop.permute.xlu0 %4476
        %4478 = vrot.lane.b32.xlu0 %v4395, 84
        %v4479 = vpop.permute.xlu0 %4478
        %4480 = vrot.lane.b32.xlu0 %v4396, 84
        %v4481 = vpop.permute.xlu0 %4480
        %4482 = vrot.lane.b32.xlu0 %v4397, 84
        %v4483 = vpop.permute.xlu0 %4482
        %4484 = vrot.lane.b32.xlu0 %v4398, 84
        %v4485 = vpop.permute.xlu0 %4484
        %4486 = vrot.lane.b32.xlu0 %v4399, 84
        %v4487 = vpop.permute.xlu0 %4486
        %4488 = vrot.lane.b32.xlu0 %v4400, 84
        %v4489 = vpop.permute.xlu0 %4488
        %4490 = vrot.lane.b32.xlu0 %v4401, 84
        %v4491 = vpop.permute.xlu0 %4490
        %4492 = vrot.lane.b32.xlu0 %v4402, 84
        %v4493 = vpop.permute.xlu0 %4492
        %4494 = vrot.lane.b32.xlu0 %v4403, 84
        %v4495 = vpop.permute.xlu0 %4494
        %4496 = vrot.lane.b32.xlu0 %v4404, 84
        %v4497 = vpop.permute.xlu0 %4496
        %4498 = vrot.lane.b32.xlu0 %v4405, 84
        %v4499 = vpop.permute.xlu0 %4498
        %4500 = vrot.lane.b32.xlu0 %v4406, 84
        %v4501 = vpop.permute.xlu0 %4500
        %4502 = vrot.lane.b32.xlu0 %v4407, 84
        %v4503 = vpop.permute.xlu0 %4502
        %vm4536 = vcmask 720544
        %4537 = vst.msk [vmem:[#allocation3] sm:$0xff] %vm4536, %v4441
        %4538 = vst.msk [vmem:[#allocation3 + $0x8] sm:$0xff] %vm4536, %v4443
        %4539 = vst.msk [vmem:[#allocation3 + $0x10] sm:$0xff] %vm4536, %v4445
        %4540 = vst.msk [vmem:[#allocation3 + $0x18] sm:$0xff] %vm4536, %v4447
        %4541 = vst.msk [vmem:[#allocation3 + $0x20] sm:$0xff] %vm4536, %v4449
        %4542 = vst.msk [vmem:[#allocation3 + $0x28] sm:$0xff] %vm4536, %v4451
        %4543 = vst.msk [vmem:[#allocation3 + $0x30] sm:$0xff] %vm4536, %v4453
        %4544 = vst.msk [vmem:[#allocation3 + $0x38] sm:$0xff] %vm4536, %v4455
        %4545 = vst.msk [vmem:[#allocation3 + $0x40] sm:$0xff] %vm4536, %v4457
        %4546 = vst.msk [vmem:[#allocation3 + $0x48] sm:$0xff] %vm4536, %v4459
        %4547 = vst.msk [vmem:[#allocation3 + $0x50] sm:$0xff] %vm4536, %v4461
        %4548 = vst.msk [vmem:[#allocation3 + $0x58] sm:$0xff] %vm4536, %v4463
        %4549 = vst.msk [vmem:[#allocation3 + $0x60] sm:$0xff] %vm4536, %v4465
        %4550 = vst.msk [vmem:[#allocation3 + $0x68] sm:$0xff] %vm4536, %v4467
        %4551 = vst.msk [vmem:[#allocation3 + $0x70] sm:$0xff] %vm4536, %v4469
        %4552 = vst.msk [vmem:[#allocation3 + $0x78] sm:$0xff] %vm4536, %v4471
        %4553 = vst.msk [vmem:[#allocation3 + $0x80] sm:$0xff] %vm4536, %v4473
        %4554 = vst.msk [vmem:[#allocation3 + $0x88] sm:$0xff] %vm4536, %v4475
        %4555 = vst.msk [vmem:[#allocation3 + $0x90] sm:$0xff] %vm4536, %v4477
        %4556 = vst.msk [vmem:[#allocation3 + $0x98] sm:$0xff] %vm4536, %v4479
        %4557 = vst.msk [vmem:[#allocation3 + $0xa0] sm:$0xff] %vm4536, %v4481
        %4558 = vst.msk [vmem:[#allocation3 + $0xa8] sm:$0xff] %vm4536, %v4483
        %4559 = vst.msk [vmem:[#allocation3 + $0xb0] sm:$0xff] %vm4536, %v4485
        %4560 = vst.msk [vmem:[#allocation3 + $0xb8] sm:$0xff] %vm4536, %v4487
        %4561 = vst.msk [vmem:[#allocation3 + $0xc0] sm:$0xff] %vm4536, %v4489
        %4562 = vst.msk [vmem:[#allocation3 + $0xc8] sm:$0xff] %vm4536, %v4491
        %4563 = vst.msk [vmem:[#allocation3 + $0xd0] sm:$0xff] %vm4536, %v4493
        %4564 = vst.msk [vmem:[#allocation3 + $0xd8] sm:$0xff] %vm4536, %v4495
        %4565 = vst.msk [vmem:[#allocation3 + $0xe0] sm:$0xff] %vm4536, %v4497
        %4566 = vst.msk [vmem:[#allocation3 + $0xe8] sm:$0xff] %vm4536, %v4499
        %4567 = vst.msk [vmem:[#allocation3 + $0xf0] sm:$0xff] %vm4536, %v4501
        %4568 = vst.msk [vmem:[#allocation3 + $0xf8] sm:$0xff] %vm4536, %v4503
        %v4569 = vld [vmem:[%s4182 + $0x2] sm:$0xff]
        %v4570 = vld [vmem:[%s4182 + $0xa] sm:$0xff]
        %v4571 = vld [vmem:[%s4182 + $0x1a] sm:$0xff]
        %v4572 = vld [vmem:[%s4182 + $0x22] sm:$0xff]
        %v4573 = vld [vmem:[%s4182 + $0x32] sm:$0xff]
        %v4574 = vld [vmem:[%s4182 + $0x3a] sm:$0xff]
        %v4575 = vld [vmem:[%s4182 + $0x4a] sm:$0xff]
        %v4576 = vld [vmem:[%s4182 + $0x52] sm:$0xff]
        %v4577 = vld [vmem:[%s4182 + $0x62] sm:$0xff]
        %v4578 = vld [vmem:[%s4182 + $0x6a] sm:$0xff]
        %v4579 = vld [vmem:[%s4182 + $0x7a] sm:$0xff]
        %v4580 = vld [vmem:[%s4182 + $0x82] sm:$0xff]
        %v4581 = vld [vmem:[%s4182 + $0x92] sm:$0xff]
        %v4582 = vld [vmem:[%s4182 + $0x9a] sm:$0xff]
        %v4583 = vld [vmem:[%s4182 + $0xaa] sm:$0xff]
        %v4584 = vld [vmem:[%s4182 + $0xb2] sm:$0xff]
        %v4585 = vld [vmem:[%s4182 + $0xc2] sm:$0xff]
        %v4586 = vld [vmem:[%s4182 + $0xca] sm:$0xff]
        %v4587 = vld [vmem:[%s4182 + $0xda] sm:$0xff]
        %v4588 = vld [vmem:[%s4182 + $0xe2] sm:$0xff]
        %v4589 = vld [vmem:[%s4182 + $0xf2] sm:$0xff]
        %v4590 = vld [vmem:[%s4182 + $0xfa] sm:$0xff]
        %v4591 = vld [vmem:[%s4182 + $0x10a] sm:$0xff]
        %v4592 = vld [vmem:[%s4182 + $0x112] sm:$0xff]
        %v4593 = vld [vmem:[%s4182 + $0x122] sm:$0xff]
        %v4594 = vld [vmem:[%s4182 + $0x12a] sm:$0xff]
        %v4595 = vld [vmem:[%s4182 + $0x13a] sm:$0xff]
        %v4596 = vld [vmem:[%s4182 + $0x142] sm:$0xff]
        %v4597 = vld [vmem:[%s4182 + $0x152] sm:$0xff]
        %v4598 = vld [vmem:[%s4182 + $0x15a] sm:$0xff]
        %v4599 = vld [vmem:[%s4182 + $0x16a] sm:$0xff]
        %v4600 = vld [vmem:[%s4182 + $0x172] sm:$0xff]
        %4633 = vrot.lane.b32.xlu0 %v4569, 88
        %v4634 = vpop.permute.xlu0 %4633
        %4635 = vrot.lane.b32.xlu0 %v4570, 88
        %v4636 = vpop.permute.xlu0 %4635
        %4637 = vrot.lane.b32.xlu0 %v4571, 88
        %v4638 = vpop.permute.xlu0 %4637
        %4639 = vrot.lane.b32.xlu0 %v4572, 88
        %v4640 = vpop.permute.xlu0 %4639
        %4641 = vrot.lane.b32.xlu0 %v4573, 88
        %v4642 = vpop.permute.xlu0 %4641
        %4643 = vrot.lane.b32.xlu0 %v4574, 88
        %v4644 = vpop.permute.xlu0 %4643
        %4645 = vrot.lane.b32.xlu0 %v4575, 88
        %v4646 = vpop.permute.xlu0 %4645
        %4647 = vrot.lane.b32.xlu0 %v4576, 88
        %v4648 = vpop.permute.xlu0 %4647
        %4649 = vrot.lane.b32.xlu0 %v4577, 88
        %v4650 = vpop.permute.xlu0 %4649
        %4651 = vrot.lane.b32.xlu0 %v4578, 88
        %v4652 = vpop.permute.xlu0 %4651
        %4653 = vrot.lane.b32.xlu0 %v4579, 88
        %v4654 = vpop.permute.xlu0 %4653
        %4655 = vrot.lane.b32.xlu0 %v4580, 88
        %v4656 = vpop.permute.xlu0 %4655
        %4657 = vrot.lane.b32.xlu0 %v4581, 88
        %v4658 = vpop.permute.xlu0 %4657
        %4659 = vrot.lane.b32.xlu0 %v4582, 88
        %v4660 = vpop.permute.xlu0 %4659
        %4661 = vrot.lane.b32.xlu0 %v4583, 88
        %v4662 = vpop.permute.xlu0 %4661
        %4663 = vrot.lane.b32.xlu0 %v4584, 88
        %v4664 = vpop.permute.xlu0 %4663
        %4665 = vrot.lane.b32.xlu0 %v4585, 88
        %v4666 = vpop.permute.xlu0 %4665
        %4667 = vrot.lane.b32.xlu0 %v4586, 88
        %v4668 = vpop.permute.xlu0 %4667
        %4669 = vrot.lane.b32.xlu0 %v4587, 88
        %v4670 = vpop.permute.xlu0 %4669
        %4671 = vrot.lane.b32.xlu0 %v4588, 88
        %v4672 = vpop.permute.xlu0 %4671
        %4673 = vrot.lane.b32.xlu0 %v4589, 88
        %v4674 = vpop.permute.xlu0 %4673
        %4675 = vrot.lane.b32.xlu0 %v4590, 88
        %v4676 = vpop.permute.xlu0 %4675
        %4677 = vrot.lane.b32.xlu0 %v4591, 88
        %v4678 = vpop.permute.xlu0 %4677
        %4679 = vrot.lane.b32.xlu0 %v4592, 88
        %v4680 = vpop.permute.xlu0 %4679
        %4681 = vrot.lane.b32.xlu0 %v4593, 88
        %v4682 = vpop.permute.xlu0 %4681
        %4683 = vrot.lane.b32.xlu0 %v4594, 88
        %v4684 = vpop.permute.xlu0 %4683
        %4685 = vrot.lane.b32.xlu0 %v4595, 88
        %v4686 = vpop.permute.xlu0 %4685
        %4687 = vrot.lane.b32.xlu0 %v4596, 88
        %v4688 = vpop.permute.xlu0 %4687
        %4689 = vrot.lane.b32.xlu0 %v4597, 88
        %v4690 = vpop.permute.xlu0 %4689
        %4691 = vrot.lane.b32.xlu0 %v4598, 88
        %v4692 = vpop.permute.xlu0 %4691
        %4693 = vrot.lane.b32.xlu0 %v4599, 88
        %v4694 = vpop.permute.xlu0 %4693
        %4695 = vrot.lane.b32.xlu0 %v4600, 88
        %v4696 = vpop.permute.xlu0 %4695
        %vm4729 = vcmask 753344
        %4730 = vst.msk [vmem:[#allocation3] sm:$0xff] %vm4729, %v4634
        %4731 = vst.msk [vmem:[#allocation3 + $0x8] sm:$0xff] %vm4729, %v4636
        %4732 = vst.msk [vmem:[#allocation3 + $0x10] sm:$0xff] %vm4729, %v4638
        %4733 = vst.msk [vmem:[#allocation3 + $0x18] sm:$0xff] %vm4729, %v4640
        %4734 = vst.msk [vmem:[#allocation3 + $0x20] sm:$0xff] %vm4729, %v4642
        %4735 = vst.msk [vmem:[#allocation3 + $0x28] sm:$0xff] %vm4729, %v4644
        %4736 = vst.msk [vmem:[#allocation3 + $0x30] sm:$0xff] %vm4729, %v4646
        %4737 = vst.msk [vmem:[#allocation3 + $0x38] sm:$0xff] %vm4729, %v4648
        %4738 = vst.msk [vmem:[#allocation3 + $0x40] sm:$0xff] %vm4729, %v4650
        %4739 = vst.msk [vmem:[#allocation3 + $0x48] sm:$0xff] %vm4729, %v4652
        %4740 = vst.msk [vmem:[#allocation3 + $0x50] sm:$0xff] %vm4729, %v4654
        %4741 = vst.msk [vmem:[#allocation3 + $0x58] sm:$0xff] %vm4729, %v4656
        %4742 = vst.msk [vmem:[#allocation3 + $0x60] sm:$0xff] %vm4729, %v4658
        %4743 = vst.msk [vmem:[#allocation3 + $0x68] sm:$0xff] %vm4729, %v4660
        %4744 = vst.msk [vmem:[#allocation3 + $0x70] sm:$0xff] %vm4729, %v4662
        %4745 = vst.msk [vmem:[#allocation3 + $0x78] sm:$0xff] %vm4729, %v4664
        %4746 = vst.msk [vmem:[#allocation3 + $0x80] sm:$0xff] %vm4729, %v4666
        %4747 = vst.msk [vmem:[#allocation3 + $0x88] sm:$0xff] %vm4729, %v4668
        %4748 = vst.msk [vmem:[#allocation3 + $0x90] sm:$0xff] %vm4729, %v4670
        %4749 = vst.msk [vmem:[#allocation3 + $0x98] sm:$0xff] %vm4729, %v4672
        %4750 = vst.msk [vmem:[#allocation3 + $0xa0] sm:$0xff] %vm4729, %v4674
        %4751 = vst.msk [vmem:[#allocation3 + $0xa8] sm:$0xff] %vm4729, %v4676
        %4752 = vst.msk [vmem:[#allocation3 + $0xb0] sm:$0xff] %vm4729, %v4678
        %4753 = vst.msk [vmem:[#allocation3 + $0xb8] sm:$0xff] %vm4729, %v4680
        %4754 = vst.msk [vmem:[#allocation3 + $0xc0] sm:$0xff] %vm4729, %v4682
        %4755 = vst.msk [vmem:[#allocation3 + $0xc8] sm:$0xff] %vm4729, %v4684
        %4756 = vst.msk [vmem:[#allocation3 + $0xd0] sm:$0xff] %vm4729, %v4686
        %4757 = vst.msk [vmem:[#allocation3 + $0xd8] sm:$0xff] %vm4729, %v4688
        %4758 = vst.msk [vmem:[#allocation3 + $0xe0] sm:$0xff] %vm4729, %v4690
        %4759 = vst.msk [vmem:[#allocation3 + $0xe8] sm:$0xff] %vm4729, %v4692
        %4760 = vst.msk [vmem:[#allocation3 + $0xf0] sm:$0xff] %vm4729, %v4694
        %4761 = vst.msk [vmem:[#allocation3 + $0xf8] sm:$0xff] %vm4729, %v4696
        %v4762 = vld [vmem:[%s4182 + $0x3] sm:$0xff]
        %v4763 = vld [vmem:[%s4182 + $0xb] sm:$0xff]
        %v4764 = vld [vmem:[%s4182 + $0x1b] sm:$0xff]
        %v4765 = vld [vmem:[%s4182 + $0x23] sm:$0xff]
        %v4766 = vld [vmem:[%s4182 + $0x33] sm:$0xff]
        %v4767 = vld [vmem:[%s4182 + $0x3b] sm:$0xff]
        %v4768 = vld [vmem:[%s4182 + $0x4b] sm:$0xff]
        %v4769 = vld [vmem:[%s4182 + $0x53] sm:$0xff]
        %v4770 = vld [vmem:[%s4182 + $0x63] sm:$0xff]
        %v4771 = vld [vmem:[%s4182 + $0x6b] sm:$0xff]
        %v4772 = vld [vmem:[%s4182 + $0x7b] sm:$0xff]
        %v4773 = vld [vmem:[%s4182 + $0x83] sm:$0xff]
        %v4774 = vld [vmem:[%s4182 + $0x93] sm:$0xff]
        %v4775 = vld [vmem:[%s4182 + $0x9b] sm:$0xff]
        %v4776 = vld [vmem:[%s4182 + $0xab] sm:$0xff]
        %v4777 = vld [vmem:[%s4182 + $0xb3] sm:$0xff]
        %v4778 = vld [vmem:[%s4182 + $0xc3] sm:$0xff]
        %v4779 = vld [vmem:[%s4182 + $0xcb] sm:$0xff]
        %v4780 = vld [vmem:[%s4182 + $0xdb] sm:$0xff]
        %v4781 = vld [vmem:[%s4182 + $0xe3] sm:$0xff]
        %v4782 = vld [vmem:[%s4182 + $0xf3] sm:$0xff]
        %v4783 = vld [vmem:[%s4182 + $0xfb] sm:$0xff]
        %v4784 = vld [vmem:[%s4182 + $0x10b] sm:$0xff]
        %v4785 = vld [vmem:[%s4182 + $0x113] sm:$0xff]
        %v4786 = vld [vmem:[%s4182 + $0x123] sm:$0xff]
        %v4787 = vld [vmem:[%s4182 + $0x12b] sm:$0xff]
        %v4788 = vld [vmem:[%s4182 + $0x13b] sm:$0xff]
        %v4789 = vld [vmem:[%s4182 + $0x143] sm:$0xff]
        %v4790 = vld [vmem:[%s4182 + $0x153] sm:$0xff]
        %v4791 = vld [vmem:[%s4182 + $0x15b] sm:$0xff]
        %v4792 = vld [vmem:[%s4182 + $0x16b] sm:$0xff]
        %v4793 = vld [vmem:[%s4182 + $0x173] sm:$0xff]
        %4826 = vrot.lane.b32.xlu0 %v4762, 92
        %v4827 = vpop.permute.xlu0 %4826
        %4828 = vrot.lane.b32.xlu0 %v4763, 92
        %v4829 = vpop.permute.xlu0 %4828
        %4830 = vrot.lane.b32.xlu0 %v4764, 92
        %v4831 = vpop.permute.xlu0 %4830
        %4832 = vrot.lane.b32.xlu0 %v4765, 92
        %v4833 = vpop.permute.xlu0 %4832
        %4834 = vrot.lane.b32.xlu0 %v4766, 92
        %v4835 = vpop.permute.xlu0 %4834
        %4836 = vrot.lane.b32.xlu0 %v4767, 92
        %v4837 = vpop.permute.xlu0 %4836
        %4838 = vrot.lane.b32.xlu0 %v4768, 92
        %v4839 = vpop.permute.xlu0 %4838
        %4840 = vrot.lane.b32.xlu0 %v4769, 92
        %v4841 = vpop.permute.xlu0 %4840
        %4842 = vrot.lane.b32.xlu0 %v4770, 92
        %v4843 = vpop.permute.xlu0 %4842
        %4844 = vrot.lane.b32.xlu0 %v4771, 92
        %v4845 = vpop.permute.xlu0 %4844
        %4846 = vrot.lane.b32.xlu0 %v4772, 92
        %v4847 = vpop.permute.xlu0 %4846
        %4848 = vrot.lane.b32.xlu0 %v4773, 92
        %v4849 = vpop.permute.xlu0 %4848
        %4850 = vrot.lane.b32.xlu0 %v4774, 92
        %v4851 = vpop.permute.xlu0 %4850
        %4852 = vrot.lane.b32.xlu0 %v4775, 92
        %v4853 = vpop.permute.xlu0 %4852
        %4854 = vrot.lane.b32.xlu0 %v4776, 92
        %v4855 = vpop.permute.xlu0 %4854
        %4856 = vrot.lane.b32.xlu0 %v4777, 92
        %v4857 = vpop.permute.xlu0 %4856
        %4858 = vrot.lane.b32.xlu0 %v4778, 92
        %v4859 = vpop.permute.xlu0 %4858
        %4860 = vrot.lane.b32.xlu0 %v4779, 92
        %v4861 = vpop.permute.xlu0 %4860
        %4862 = vrot.lane.b32.xlu0 %v4780, 92
        %v4863 = vpop.permute.xlu0 %4862
        %4864 = vrot.lane.b32.xlu0 %v4781, 92
        %v4865 = vpop.permute.xlu0 %4864
        %4866 = vrot.lane.b32.xlu0 %v4782, 92
        %v4867 = vpop.permute.xlu0 %4866
        %4868 = vrot.lane.b32.xlu0 %v4783, 92
        %v4869 = vpop.permute.xlu0 %4868
        %4870 = vrot.lane.b32.xlu0 %v4784, 92
        %v4871 = vpop.permute.xlu0 %4870
        %4872 = vrot.lane.b32.xlu0 %v4785, 92
        %v4873 = vpop.permute.xlu0 %4872
        %4874 = vrot.lane.b32.xlu0 %v4786, 92
        %v4875 = vpop.permute.xlu0 %4874
        %4876 = vrot.lane.b32.xlu0 %v4787, 92
        %v4877 = vpop.permute.xlu0 %4876
        %4878 = vrot.lane.b32.xlu0 %v4788, 92
        %v4879 = vpop.permute.xlu0 %4878
        %4880 = vrot.lane.b32.xlu0 %v4789, 92
        %v4881 = vpop.permute.xlu0 %4880
        %4882 = vrot.lane.b32.xlu0 %v4790, 92
        %v4883 = vpop.permute.xlu0 %4882
        %4884 = vrot.lane.b32.xlu0 %v4791, 92
        %v4885 = vpop.permute.xlu0 %4884
        %4886 = vrot.lane.b32.xlu0 %v4792, 92
        %v4887 = vpop.permute.xlu0 %4886
        %4888 = vrot.lane.b32.xlu0 %v4793, 92
        %v4889 = vpop.permute.xlu0 %4888
        %vm4922 = vcmask 786144
        %4923 = vst.msk [vmem:[#allocation3] sm:$0xff] %vm4922, %v4827
        %4924 = vst.msk [vmem:[#allocation3 + $0x8] sm:$0xff] %vm4922, %v4829
        %4925 = vst.msk [vmem:[#allocation3 + $0x10] sm:$0xff] %vm4922, %v4831
        %4926 = vst.msk [vmem:[#allocation3 + $0x18] sm:$0xff] %vm4922, %v4833
        %4927 = vst.msk [vmem:[#allocation3 + $0x20] sm:$0xff] %vm4922, %v4835
        %4928 = vst.msk [vmem:[#allocation3 + $0x28] sm:$0xff] %vm4922, %v4837
        %4929 = vst.msk [vmem:[#allocation3 + $0x30] sm:$0xff] %vm4922, %v4839
        %4930 = vst.msk [vmem:[#allocation3 + $0x38] sm:$0xff] %vm4922, %v4841
        %4931 = vst.msk [vmem:[#allocation3 + $0x40] sm:$0xff] %vm4922, %v4843
        %4932 = vst.msk [vmem:[#allocation3 + $0x48] sm:$0xff] %vm4922, %v4845
        %4933 = vst.msk [vmem:[#allocation3 + $0x50] sm:$0xff] %vm4922, %v4847
        %4934 = vst.msk [vmem:[#allocation3 + $0x58] sm:$0xff] %vm4922, %v4849
        %4935 = vst.msk [vmem:[#allocation3 + $0x60] sm:$0xff] %vm4922, %v4851
        %4936 = vst.msk [vmem:[#allocation3 + $0x68] sm:$0xff] %vm4922, %v4853
        %4937 = vst.msk [vmem:[#allocation3 + $0x70] sm:$0xff] %vm4922, %v4855
        %4938 = vst.msk [vmem:[#allocation3 + $0x78] sm:$0xff] %vm4922, %v4857
        %4939 = vst.msk [vmem:[#allocation3 + $0x80] sm:$0xff] %vm4922, %v4859
        %4940 = vst.msk [vmem:[#allocation3 + $0x88] sm:$0xff] %vm4922, %v4861
        %4941 = vst.msk [vmem:[#allocation3 + $0x90] sm:$0xff] %vm4922, %v4863
        %4942 = vst.msk [vmem:[#allocation3 + $0x98] sm:$0xff] %vm4922, %v4865
        %4943 = vst.msk [vmem:[#allocation3 + $0xa0] sm:$0xff] %vm4922, %v4867
        %4944 = vst.msk [vmem:[#allocation3 + $0xa8] sm:$0xff] %vm4922, %v4869
        %4945 = vst.msk [vmem:[#allocation3 + $0xb0] sm:$0xff] %vm4922, %v4871
        %4946 = vst.msk [vmem:[#allocation3 + $0xb8] sm:$0xff] %vm4922, %v4873
        %4947 = vst.msk [vmem:[#allocation3 + $0xc0] sm:$0xff] %vm4922, %v4875
        %4948 = vst.msk [vmem:[#allocation3 + $0xc8] sm:$0xff] %vm4922, %v4877
        %4949 = vst.msk [vmem:[#allocation3 + $0xd0] sm:$0xff] %vm4922, %v4879
        %4950 = vst.msk [vmem:[#allocation3 + $0xd8] sm:$0xff] %vm4922, %v4881
        %4951 = vst.msk [vmem:[#allocation3 + $0xe0] sm:$0xff] %vm4922, %v4883
        %4952 = vst.msk [vmem:[#allocation3 + $0xe8] sm:$0xff] %vm4922, %v4885
        %4953 = vst.msk [vmem:[#allocation3 + $0xf0] sm:$0xff] %vm4922, %v4887
        %4954 = vst.msk [vmem:[#allocation3 + $0xf8] sm:$0xff] %vm4922, %v4889
        %v4955 = vld [vmem:[%s4182 + $0x4] sm:$0xff]
        %v4956 = vld [vmem:[%s4182 + $0xc] sm:$0xff]
        %v4957 = vld [vmem:[%s4182 + $0x1c] sm:$0xff]
        %v4958 = vld [vmem:[%s4182 + $0x24] sm:$0xff]
        %v4959 = vld [vmem:[%s4182 + $0x34] sm:$0xff]
        %v4960 = vld [vmem:[%s4182 + $0x3c] sm:$0xff]
        %v4961 = vld [vmem:[%s4182 + $0x4c] sm:$0xff]
        %v4962 = vld [vmem:[%s4182 + $0x54] sm:$0xff]
        %v4963 = vld [vmem:[%s4182 + $0x64] sm:$0xff]
        %v4964 = vld [vmem:[%s4182 + $0x6c] sm:$0xff]
        %v4965 = vld [vmem:[%s4182 + $0x7c] sm:$0xff]
        %v4966 = vld [vmem:[%s4182 + $0x84] sm:$0xff]
        %v4967 = vld [vmem:[%s4182 + $0x94] sm:$0xff]
        %v4968 = vld [vmem:[%s4182 + $0x9c] sm:$0xff]
        %v4969 = vld [vmem:[%s4182 + $0xac] sm:$0xff]
        %v4970 = vld [vmem:[%s4182 + $0xb4] sm:$0xff]
        %v4971 = vld [vmem:[%s4182 + $0xc4] sm:$0xff]
        %v4972 = vld [vmem:[%s4182 + $0xcc] sm:$0xff]
        %v4973 = vld [vmem:[%s4182 + $0xdc] sm:$0xff]
        %v4974 = vld [vmem:[%s4182 + $0xe4] sm:$0xff]
        %v4975 = vld [vmem:[%s4182 + $0xf4] sm:$0xff]
        %v4976 = vld [vmem:[%s4182 + $0xfc] sm:$0xff]
        %v4977 = vld [vmem:[%s4182 + $0x10c] sm:$0xff]
        %v4978 = vld [vmem:[%s4182 + $0x114] sm:$0xff]
        %v4979 = vld [vmem:[%s4182 + $0x124] sm:$0xff]
        %v4980 = vld [vmem:[%s4182 + $0x12c] sm:$0xff]
        %v4981 = vld [vmem:[%s4182 + $0x13c] sm:$0xff]
        %v4982 = vld [vmem:[%s4182 + $0x144] sm:$0xff]
        %v4983 = vld [vmem:[%s4182 + $0x154] sm:$0xff]
        %v4984 = vld [vmem:[%s4182 + $0x15c] sm:$0xff]
        %v4985 = vld [vmem:[%s4182 + $0x16c] sm:$0xff]
        %v4986 = vld [vmem:[%s4182 + $0x174] sm:$0xff]
        %5019 = vrot.lane.b32.xlu0 %v4955, 96
        %v5020 = vpop.permute.xlu0 %5019
        %5021 = vrot.lane.b32.xlu0 %v4956, 96
        %v5022 = vpop.permute.xlu0 %5021
        %5023 = vrot.lane.b32.xlu0 %v4957, 96
        %v5024 = vpop.permute.xlu0 %5023
        %5025 = vrot.lane.b32.xlu0 %v4958, 96
        %v5026 = vpop.permute.xlu0 %5025
        %5027 = vrot.lane.b32.xlu0 %v4959, 96
        %v5028 = vpop.permute.xlu0 %5027
        %5029 = vrot.lane.b32.xlu0 %v4960, 96
        %v5030 = vpop.permute.xlu0 %5029
        %5031 = vrot.lane.b32.xlu0 %v4961, 96
        %v5032 = vpop.permute.xlu0 %5031
        %5033 = vrot.lane.b32.xlu0 %v4962, 96
        %v5034 = vpop.permute.xlu0 %5033
        %5035 = vrot.lane.b32.xlu0 %v4963, 96
        %v5036 = vpop.permute.xlu0 %5035
        %5037 = vrot.lane.b32.xlu0 %v4964, 96
        %v5038 = vpop.permute.xlu0 %5037
        %5039 = vrot.lane.b32.xlu0 %v4965, 96
        %v5040 = vpop.permute.xlu0 %5039
        %5041 = vrot.lane.b32.xlu0 %v4966, 96
        %v5042 = vpop.permute.xlu0 %5041
        %5043 = vrot.lane.b32.xlu0 %v4967, 96
        %v5044 = vpop.permute.xlu0 %5043
        %5045 = vrot.lane.b32.xlu0 %v4968, 96
        %v5046 = vpop.permute.xlu0 %5045
        %5047 = vrot.lane.b32.xlu0 %v4969, 96
        %v5048 = vpop.permute.xlu0 %5047
        %5049 = vrot.lane.b32.xlu0 %v4970, 96
        %v5050 = vpop.permute.xlu0 %5049
        %5051 = vrot.lane.b32.xlu0 %v4971, 96
        %v5052 = vpop.permute.xlu0 %5051
        %5053 = vrot.lane.b32.xlu0 %v4972, 96
        %v5054 = vpop.permute.xlu0 %5053
        %5055 = vrot.lane.b32.xlu0 %v4973, 96
        %v5056 = vpop.permute.xlu0 %5055
        %5057 = vrot.lane.b32.xlu0 %v4974, 96
        %v5058 = vpop.permute.xlu0 %5057
        %5059 = vrot.lane.b32.xlu0 %v4975, 96
        %v5060 = vpop.permute.xlu0 %5059
        %5061 = vrot.lane.b32.xlu0 %v4976, 96
        %v5062 = vpop.permute.xlu0 %5061
        %5063 = vrot.lane.b32.xlu0 %v4977, 96
        %v5064 = vpop.permute.xlu0 %5063
        %5065 = vrot.lane.b32.xlu0 %v4978, 96
        %v5066 = vpop.permute.xlu0 %5065
        %5067 = vrot.lane.b32.xlu0 %v4979, 96
        %v5068 = vpop.permute.xlu0 %5067
        %5069 = vrot.lane.b32.xlu0 %v4980, 96
        %v5070 = vpop.permute.xlu0 %5069
        %5071 = vrot.lane.b32.xlu0 %v4981, 96
        %v5072 = vpop.permute.xlu0 %5071
        %5073 = vrot.lane.b32.xlu0 %v4982, 96
        %v5074 = vpop.permute.xlu0 %5073
        %5075 = vrot.lane.b32.xlu0 %v4983, 96
        %v5076 = vpop.permute.xlu0 %5075
        %5077 = vrot.lane.b32.xlu0 %v4984, 96
        %v5078 = vpop.permute.xlu0 %5077
        %5079 = vrot.lane.b32.xlu0 %v4985, 96
        %v5080 = vpop.permute.xlu0 %5079
        %5081 = vrot.lane.b32.xlu0 %v4986, 96
        %v5082 = vpop.permute.xlu0 %5081
        %vm5115 = vcmask 818944
        %5116 = vst.msk [vmem:[#allocation3] sm:$0xff] %vm5115, %v5020
        %5117 = vst.msk [vmem:[#allocation3 + $0x8] sm:$0xff] %vm5115, %v5022
        %5118 = vst.msk [vmem:[#allocation3 + $0x10] sm:$0xff] %vm5115, %v5024
        %5119 = vst.msk [vmem:[#allocation3 + $0x18] sm:$0xff] %vm5115, %v5026
        %5120 = vst.msk [vmem:[#allocation3 + $0x20] sm:$0xff] %vm5115, %v5028
        %5121 = vst.msk [vmem:[#allocation3 + $0x28] sm:$0xff] %vm5115, %v5030
        %5122 = vst.msk [vmem:[#allocation3 + $0x30] sm:$0xff] %vm5115, %v5032
        %5123 = vst.msk [vmem:[#allocation3 + $0x38] sm:$0xff] %vm5115, %v5034
        %5124 = vst.msk [vmem:[#allocation3 + $0x40] sm:$0xff] %vm5115, %v5036
        %5125 = vst.msk [vmem:[#allocation3 + $0x48] sm:$0xff] %vm5115, %v5038
        %5126 = vst.msk [vmem:[#allocation3 + $0x50] sm:$0xff] %vm5115, %v5040
        %5127 = vst.msk [vmem:[#allocation3 + $0x58] sm:$0xff] %vm5115, %v5042
        %5128 = vst.msk [vmem:[#allocation3 + $0x60] sm:$0xff] %vm5115, %v5044
        %5129 = vst.msk [vmem:[#allocation3 + $0x68] sm:$0xff] %vm5115, %v5046
        %5130 = vst.msk [vmem:[#allocation3 + $0x70] sm:$0xff] %vm5115, %v5048
        %5131 = vst.msk [vmem:[#allocation3 + $0x78] sm:$0xff] %vm5115, %v5050
        %5132 = vst.msk [vmem:[#allocation3 + $0x80] sm:$0xff] %vm5115, %v5052
        %5133 = vst.msk [vmem:[#allocation3 + $0x88] sm:$0xff] %vm5115, %v5054
        %5134 = vst.msk [vmem:[#allocation3 + $0x90] sm:$0xff] %vm5115, %v5056
        %5135 = vst.msk [vmem:[#allocation3 + $0x98] sm:$0xff] %vm5115, %v5058
        %5136 = vst.msk [vmem:[#allocation3 + $0xa0] sm:$0xff] %vm5115, %v5060
        %5137 = vst.msk [vmem:[#allocation3 + $0xa8] sm:$0xff] %vm5115, %v5062
        %5138 = vst.msk [vmem:[#allocation3 + $0xb0] sm:$0xff] %vm5115, %v5064
        %5139 = vst.msk [vmem:[#allocation3 + $0xb8] sm:$0xff] %vm5115, %v5066
        %5140 = vst.msk [vmem:[#allocation3 + $0xc0] sm:$0xff] %vm5115, %v5068
        %5141 = vst.msk [vmem:[#allocation3 + $0xc8] sm:$0xff] %vm5115, %v5070
        %5142 = vst.msk [vmem:[#allocation3 + $0xd0] sm:$0xff] %vm5115, %v5072
        %5143 = vst.msk [vmem:[#allocation3 + $0xd8] sm:$0xff] %vm5115, %v5074
        %5144 = vst.msk [vmem:[#allocation3 + $0xe0] sm:$0xff] %vm5115, %v5076
        %5145 = vst.msk [vmem:[#allocation3 + $0xe8] sm:$0xff] %vm5115, %v5078
        %5146 = vst.msk [vmem:[#allocation3 + $0xf0] sm:$0xff] %vm5115, %v5080
        %5147 = vst.msk [vmem:[#allocation3 + $0xf8] sm:$0xff] %vm5115, %v5082
        %v5148 = vld [vmem:[#allocation3] sm:$0xff]
        %v5149 = vld [vmem:[#allocation3 + $0x8] sm:$0xff]
        %v5150 = vld [vmem:[#allocation3 + $0x10] sm:$0xff]
        %v5151 = vld [vmem:[#allocation3 + $0x18] sm:$0xff]
        %v5152 = vld [vmem:[#allocation3 + $0x20] sm:$0xff]
        %v5153 = vld [vmem:[#allocation3 + $0x28] sm:$0xff]
        %v5154 = vld [vmem:[#allocation3 + $0x30] sm:$0xff]
        %v5155 = vld [vmem:[#allocation3 + $0x38] sm:$0xff]
        %v5156 = vld [vmem:[#allocation3 + $0x40] sm:$0xff]
        %v5157 = vld [vmem:[#allocation3 + $0x48] sm:$0xff]
        %v5158 = vld [vmem:[#allocation3 + $0x50] sm:$0xff]
        %v5159 = vld [vmem:[#allocation3 + $0x58] sm:$0xff]
        %v5160 = vld [vmem:[#allocation3 + $0x60] sm:$0xff]
        %v5161 = vld [vmem:[#allocation3 + $0x68] sm:$0xff]
        %v5162 = vld [vmem:[#allocation3 + $0x70] sm:$0xff]
        %v5163 = vld [vmem:[#allocation3 + $0x78] sm:$0xff]
        %v5164 = vld [vmem:[#allocation3 + $0x80] sm:$0xff]
        %v5165 = vld [vmem:[#allocation3 + $0x88] sm:$0xff]
        %v5166 = vld [vmem:[#allocation3 + $0x90] sm:$0xff]
        %v5167 = vld [vmem:[#allocation3 + $0x98] sm:$0xff]
        %v5168 = vld [vmem:[#allocation3 + $0xa0] sm:$0xff]
        %v5169 = vld [vmem:[#allocation3 + $0xa8] sm:$0xff]
        %v5170 = vld [vmem:[#allocation3 + $0xb0] sm:$0xff]
        %v5171 = vld [vmem:[#allocation3 + $0xb8] sm:$0xff]
        %v5172 = vld [vmem:[#allocation3 + $0xc0] sm:$0xff]
        %v5173 = vld [vmem:[#allocation3 + $0xc8] sm:$0xff]
        %v5174 = vld [vmem:[#allocation3 + $0xd0] sm:$0xff]
        %v5175 = vld [vmem:[#allocation3 + $0xd8] sm:$0xff]
        %v5176 = vld [vmem:[#allocation3 + $0xe0] sm:$0xff]
        %v5177 = vld [vmem:[#allocation3 + $0xe8] sm:$0xff]
        %v5178 = vld [vmem:[#allocation3 + $0xf0] sm:$0xff]
        %v5179 = vld [vmem:[#allocation3 + $0xf8] sm:$0xff]
        %v5180 = vld [vmem:[%s1] sm:$0xff]
        %v5181 = vld [vmem:[%s1 + $0x8] sm:$0xff]
        %v5182 = vld [vmem:[%s1 + $0x10] sm:$0xff]
        %v5183 = vld [vmem:[%s1 + $0x18] sm:$0xff]
        %v5184 = vld [vmem:[%s1 + $0x20] sm:$0xff]
        %v5185 = vld [vmem:[%s1 + $0x28] sm:$0xff]
        %v5186 = vld [vmem:[%s1 + $0x30] sm:$0xff]
        %v5187 = vld [vmem:[%s1 + $0x38] sm:$0xff]
        %v5188 = vld [vmem:[%s1 + $0x40] sm:$0xff]
        %v5189 = vld [vmem:[%s1 + $0x48] sm:$0xff]
        %v5190 = vld [vmem:[%s1 + $0x50] sm:$0xff]
        %v5191 = vld [vmem:[%s1 + $0x58] sm:$0xff]
        %v5192 = vld [vmem:[%s1 + $0x60] sm:$0xf]
        %v5193 = vld [vmem:[#allocation7] sm:$0x1]
        %v5195 = vperm.slane %v5193, 0
        %vm5197 = vcmask 818176
        %v5199 = vsel %vm5197, %v5148, 0
        %v5202 = vsel %vm5197, %v5149, 0
        %v5205 = vsel %vm5197, %v5150, 0
        %v5208 = vsel %vm5197, %v5151, 0
        %v5211 = vsel %vm5197, %v5152, 0
        %v5214 = vsel %vm5197, %v5153, 0
        %v5217 = vsel %vm5197, %v5154, 0
        %v5220 = vsel %vm5197, %v5155, 0
        %v5223 = vsel %vm5197, %v5156, 0
        %v5226 = vsel %vm5197, %v5157, 0
        %v5229 = vsel %vm5197, %v5158, 0
        %v5232 = vsel %vm5197, %v5159, 0
        %v5235 = vsel %vm5197, %v5160, 0
        %v5238 = vsel %vm5197, %v5161, 0
        %v5241 = vsel %vm5197, %v5162, 0
        %v5244 = vsel %vm5197, %v5163, 0
        %v5247 = vsel %vm5197, %v5164, 0
        %v5250 = vsel %vm5197, %v5165, 0
        %v5253 = vsel %vm5197, %v5166, 0
        %v5256 = vsel %vm5197, %v5167, 0
        %v5259 = vsel %vm5197, %v5168, 0
        %v5262 = vsel %vm5197, %v5169, 0
        %v5265 = vsel %vm5197, %v5170, 0
        %v5268 = vsel %vm5197, %v5171, 0
        %v5271 = vsel %vm5197, %v5172, 0
        %v5274 = vsel %vm5197, %v5173, 0
        %v5277 = vsel %vm5197, %v5174, 0
        %v5280 = vsel %vm5197, %v5175, 0
        %v5283 = vsel %vm5197, %v5176, 0
        %v5286 = vsel %vm5197, %v5177, 0
        %v5289 = vsel %vm5197, %v5178, 0
        %v5292 = vsel %vm5197, %v5179, 0
        %vm5294 = vcmask 1043456
        %v5296 = vsel %vm5294, %v5192, 0
        %5298 = vmatpush.msra.mxu0 0.0
        %5299 = vmatpush.msra.mxu0 0.0
        %5300 = vmatpush.msra.mxu0 0.0
        %5301 = vmatpush.msra.mxu0 %v5296
        %5302 = vmatpush.msra.mxu0 %v5191
        %5303 = vmatpush.msra.mxu0 %v5190
        %5304 = vmatpush.msra.mxu0 %v5189
        %5305 = vmatpush.msra.mxu0 %v5188
        %5306 = vmatpush.msra.mxu0 %v5187
        %5307 = vmatpush.msra.mxu0 %v5186
        %5308 = vmatpush.msra.mxu0 %v5185
        %5309 = vmatpush.msra.mxu0 %v5184
        %5310 = vmatpush.msra.mxu0 %v5183
        %5311 = vmatpush.msra.mxu0 %v5182
        %5312 = vmatpush.msra.mxu0 %v5181
        %5313 = vmatpush.msra.mxu0 %v5180
        %5314 = vmatmul.f32.gmra.mxu0 %v5199
        %v5315 = vpop.f32.mrf.mxu0
        %v5316 = vadd.f32 %v5195, %v5315
        %5317 = vmatmul.f32.gmra.mxu0 %v5202
        %v5318 = vpop.f32.mrf.mxu0
        %v5319 = vadd.f32 %v5195, %v5318
        %5320 = vmatmul.f32.gmra.mxu0 %v5205
        %v5321 = vpop.f32.mrf.mxu0
        %v5322 = vadd.f32 %v5195, %v5321
        %5323 = vmatmul.f32.gmra.mxu0 %v5208
        %v5324 = vpop.f32.mrf.mxu0
        %v5325 = vadd.f32 %v5195, %v5324
        %5326 = vmatmul.f32.gmra.mxu0 %v5211
        %v5327 = vpop.f32.mrf.mxu0
        %v5328 = vadd.f32 %v5195, %v5327
        %5329 = vmatmul.f32.gmra.mxu0 %v5214
        %v5330 = vpop.f32.mrf.mxu0
        %v5331 = vadd.f32 %v5195, %v5330
        %5332 = vmatmul.f32.gmra.mxu0 %v5217
        %v5333 = vpop.f32.mrf.mxu0
        %v5334 = vadd.f32 %v5195, %v5333
        %5335 = vmatmul.f32.gmra.mxu0 %v5220
        %v5336 = vpop.f32.mrf.mxu0
        %v5337 = vadd.f32 %v5195, %v5336
        %5338 = vmatmul.f32.gmra.mxu0 %v5223
        %v5339 = vpop.f32.mrf.mxu0
        %v5340 = vadd.f32 %v5195, %v5339
        %5341 = vmatmul.f32.gmra.mxu0 %v5226
        %v5342 = vpop.f32.mrf.mxu0
        %v5343 = vadd.f32 %v5195, %v5342
        %5344 = vmatmul.f32.gmra.mxu0 %v5229
        %v5345 = vpop.f32.mrf.mxu0
        %v5346 = vadd.f32 %v5195, %v5345
        %5347 = vmatmul.f32.gmra.mxu0 %v5232
        %v5348 = vpop.f32.mrf.mxu0
        %v5349 = vadd.f32 %v5195, %v5348
        %5350 = vmatmul.f32.gmra.mxu0 %v5235
        %v5351 = vpop.f32.mrf.mxu0
        %v5352 = vadd.f32 %v5195, %v5351
        %5353 = vmatmul.f32.gmra.mxu0 %v5238
        %v5354 = vpop.f32.mrf.mxu0
        %v5355 = vadd.f32 %v5195, %v5354
        %5356 = vmatmul.f32.gmra.mxu0 %v5241
        %v5357 = vpop.f32.mrf.mxu0
        %v5358 = vadd.f32 %v5195, %v5357
        %5359 = vmatmul.f32.gmra.mxu0 %v5244
        %v5360 = vpop.f32.mrf.mxu0
        %v5361 = vadd.f32 %v5195, %v5360
        %5362 = vmatmul.f32.gmra.mxu0 %v5247
        %v5363 = vpop.f32.mrf.mxu0
        %v5364 = vadd.f32 %v5195, %v5363
        %5365 = vmatmul.f32.gmra.mxu0 %v5250
        %v5366 = vpop.f32.mrf.mxu0
        %v5367 = vadd.f32 %v5195, %v5366
        %5368 = vmatmul.f32.gmra.mxu0 %v5253
        %v5369 = vpop.f32.mrf.mxu0
        %v5370 = vadd.f32 %v5195, %v5369
        %5371 = vmatmul.f32.gmra.mxu0 %v5256
        %v5372 = vpop.f32.mrf.mxu0
        %v5373 = vadd.f32 %v5195, %v5372
        %5374 = vmatmul.f32.gmra.mxu0 %v5259
        %v5375 = vpop.f32.mrf.mxu0
        %v5376 = vadd.f32 %v5195, %v5375
        %5377 = vmatmul.f32.gmra.mxu0 %v5262
        %v5378 = vpop.f32.mrf.mxu0
        %v5379 = vadd.f32 %v5195, %v5378
        %5380 = vmatmul.f32.gmra.mxu0 %v5265
        %v5381 = vpop.f32.mrf.mxu0
        %v5382 = vadd.f32 %v5195, %v5381
        %5383 = vmatmul.f32.gmra.mxu0 %v5268
        %v5384 = vpop.f32.mrf.mxu0
        %v5385 = vadd.f32 %v5195, %v5384
        %5386 = vmatmul.f32.gmra.mxu0 %v5271
        %v5387 = vpop.f32.mrf.mxu0
        %v5388 = vadd.f32 %v5195, %v5387
        %5389 = vmatmul.f32.gmra.mxu0 %v5274
        %v5390 = vpop.f32.mrf.mxu0
        %v5391 = vadd.f32 %v5195, %v5390
        %5392 = vmatmul.f32.gmra.mxu0 %v5277
        %v5393 = vpop.f32.mrf.mxu0
        %v5394 = vadd.f32 %v5195, %v5393
        %5395 = vmatmul.f32.gmra.mxu0 %v5280
        %v5396 = vpop.f32.mrf.mxu0
        %v5397 = vadd.f32 %v5195, %v5396
        %5398 = vmatmul.f32.gmra.mxu0 %v5283
        %v5399 = vpop.f32.mrf.mxu0
        %v5400 = vadd.f32 %v5195, %v5399
        %5401 = vmatmul.f32.gmra.mxu0 %v5286
        %v5402 = vpop.f32.mrf.mxu0
        %v5403 = vadd.f32 %v5195, %v5402
        %5404 = vmatmul.f32.gmra.mxu0 %v5289
        %v5405 = vpop.f32.mrf.mxu0
        %v5406 = vadd.f32 %v5195, %v5405
        %5407 = vmatmul.f32.gmra.mxu0 %v5292
        %v5408 = vpop.f32.mrf.mxu0
        %v5409 = vadd.f32 %v5195, %v5408
        %5410 = vdwg.mxu0
        %v5411 = vmax.f32 %v5316, 0.0
        %v5412 = vmax.f32 %v5319, 0.0
        %v5413 = vmax.f32 %v5322, 0.0
        %v5414 = vmax.f32 %v5325, 0.0
        %v5415 = vmax.f32 %v5328, 0.0
        %v5416 = vmax.f32 %v5331, 0.0
        %v5417 = vmax.f32 %v5334, 0.0
        %v5418 = vmax.f32 %v5337, 0.0
        %v5419 = vmax.f32 %v5340, 0.0
        %v5420 = vmax.f32 %v5343, 0.0
        %v5421 = vmax.f32 %v5346, 0.0
        %v5422 = vmax.f32 %v5349, 0.0
        %v5423 = vmax.f32 %v5352, 0.0
        %v5424 = vmax.f32 %v5355, 0.0
        %v5425 = vmax.f32 %v5358, 0.0
        %v5426 = vmax.f32 %v5361, 0.0
        %v5427 = vmax.f32 %v5364, 0.0
        %v5428 = vmax.f32 %v5367, 0.0
        %v5429 = vmax.f32 %v5370, 0.0
        %v5430 = vmax.f32 %v5373, 0.0
        %v5431 = vmax.f32 %v5376, 0.0
        %v5432 = vmax.f32 %v5379, 0.0
        %v5433 = vmax.f32 %v5382, 0.0
        %v5434 = vmax.f32 %v5385, 0.0
        %v5435 = vmax.f32 %v5388, 0.0
        %v5436 = vmax.f32 %v5391, 0.0
        %v5437 = vmax.f32 %v5394, 0.0
        %v5438 = vmax.f32 %v5397, 0.0
        %v5439 = vmax.f32 %v5400, 0.0
        %v5440 = vmax.f32 %v5403, 0.0
        %v5441 = vmax.f32 %v5406, 0.0
        %v5442 = vmax.f32 %v5409, 0.0
        %v5475 = vrot.slane %v5411, 2
        %v5476 = vrot.slane %v5411, 4
        %v5477 = vrot.slane %v5411, 6
        %v5478 = vrot.slane %v5412, 2
        %v5479 = vrot.slane %v5412, 4
        %v5480 = vrot.slane %v5412, 6
        %v5481 = vrot.slane %v5413, 2
        %v5482 = vrot.slane %v5413, 4
        %v5483 = vrot.slane %v5413, 6
        %v5484 = vrot.slane %v5414, 2
        %v5485 = vrot.slane %v5414, 4
        %v5486 = vrot.slane %v5414, 6
        %v5487 = vrot.slane %v5415, 2
        %v5488 = vrot.slane %v5415, 4
        %v5489 = vrot.slane %v5415, 6
        %v5490 = vrot.slane %v5416, 2
        %v5491 = vrot.slane %v5416, 4
        %v5492 = vrot.slane %v5416, 6
        %v5493 = vrot.slane %v5417, 2
        %v5494 = vrot.slane %v5417, 4
        %v5495 = vrot.slane %v5417, 6
        %v5496 = vrot.slane %v5418, 2
        %v5497 = vrot.slane %v5418, 4
        %v5498 = vrot.slane %v5418, 6
        %v5499 = vrot.slane %v5419, 2
        %v5500 = vrot.slane %v5419, 4
        %v5501 = vrot.slane %v5419, 6
        %v5502 = vrot.slane %v5420, 2
        %v5503 = vrot.slane %v5420, 4
        %v5504 = vrot.slane %v5420, 6
        %v5505 = vrot.slane %v5421, 2
        %v5506 = vrot.slane %v5421, 4
        %v5507 = vrot.slane %v5421, 6
        %v5508 = vrot.slane %v5422, 2
        %v5509 = vrot.slane %v5422, 4
        %v5510 = vrot.slane %v5422, 6
        %v5511 = vrot.slane %v5423, 2
        %v5512 = vrot.slane %v5423, 4
        %v5513 = vrot.slane %v5423, 6
        %v5514 = vrot.slane %v5424, 2
        %v5515 = vrot.slane %v5424, 4
        %v5516 = vrot.slane %v5424, 6
        %v5517 = vrot.slane %v5425, 2
        %v5518 = vrot.slane %v5425, 4
        %v5519 = vrot.slane %v5425, 6
        %v5520 = vrot.slane %v5426, 2
        %v5521 = vrot.slane %v5426, 4
        %v5522 = vrot.slane %v5426, 6
        %v5523 = vrot.slane %v5427, 2
        %v5524 = vrot.slane %v5427, 4
        %v5525 = vrot.slane %v5427, 6
        %v5526 = vrot.slane %v5428, 2
        %v5527 = vrot.slane %v5428, 4
        %v5528 = vrot.slane %v5428, 6
        %v5529 = vrot.slane %v5429, 2
        %v5530 = vrot.slane %v5429, 4
        %v5531 = vrot.slane %v5429, 6
        %v5532 = vrot.slane %v5430, 2
        %v5533 = vrot.slane %v5430, 4
        %v5534 = vrot.slane %v5430, 6
        %v5535 = vrot.slane %v5431, 2
        %v5536 = vrot.slane %v5431, 4
        %v5537 = vrot.slane %v5431, 6
        %v5538 = vrot.slane %v5432, 2
        %v5539 = vrot.slane %v5432, 4
        %v5540 = vrot.slane %v5432, 6
        %v5541 = vrot.slane %v5433, 2
        %v5542 = vrot.slane %v5433, 4
        %v5543 = vrot.slane %v5433, 6
        %v5544 = vrot.slane %v5434, 2
        %v5545 = vrot.slane %v5434, 4
        %v5546 = vrot.slane %v5434, 6
        %v5547 = vrot.slane %v5435, 2
        %v5548 = vrot.slane %v5435, 4
        %v5549 = vrot.slane %v5435, 6
        %v5550 = vrot.slane %v5436, 2
        %v5551 = vrot.slane %v5436, 4
        %v5552 = vrot.slane %v5436, 6
        %v5553 = vrot.slane %v5437, 2
        %v5554 = vrot.slane %v5437, 4
        %v5555 = vrot.slane %v5437, 6
        %v5556 = vrot.slane %v5438, 2
        %v5557 = vrot.slane %v5438, 4
        %v5558 = vrot.slane %v5438, 6
        %v5559 = vrot.slane %v5439, 2
        %v5560 = vrot.slane %v5439, 4
        %v5561 = vrot.slane %v5439, 6
        %v5562 = vrot.slane %v5440, 2
        %v5563 = vrot.slane %v5440, 4
        %v5564 = vrot.slane %v5440, 6
        %v5565 = vrot.slane %v5441, 2
        %v5566 = vrot.slane %v5441, 4
        %v5567 = vrot.slane %v5441, 6
        %v5568 = vrot.slane %v5442, 2
        %v5569 = vrot.slane %v5442, 4
        %v5570 = vrot.slane %v5442, 6
        %vm5667 = vcmask 254976
        %v5668 = vsel %vm5667, %v5411, -inf
        %v5669 = vrot.slane %v5668, 4
        %v5670 = vmax.f32 %v5668, %v5669
        %v5671 = vrot.slane %v5670, 2
        %v5672 = vmax.f32 %v5670, %v5671
        %v5673 = vrot.slane %v5672, 1
        %v5674 = vmax.f32 %v5672, %v5673
        %v5675 = vsel %vm5667, %v5475, -inf
        %v5676 = vrot.slane %v5675, 4
        %v5677 = vmax.f32 %v5675, %v5676
        %v5678 = vrot.slane %v5677, 2
        %v5679 = vmax.f32 %v5677, %v5678
        %v5680 = vrot.slane %v5679, 1
        %v5681 = vmax.f32 %v5679, %v5680
        %v5682 = vsel %vm5667, %v5476, -inf
        %v5683 = vrot.slane %v5682, 4
        %v5684 = vmax.f32 %v5682, %v5683
        %v5685 = vrot.slane %v5684, 2
        %v5686 = vmax.f32 %v5684, %v5685
        %v5687 = vrot.slane %v5686, 1
        %v5688 = vmax.f32 %v5686, %v5687
        %v5689 = vsel %vm5667, %v5477, -inf
        %v5690 = vrot.slane %v5689, 4
        %v5691 = vmax.f32 %v5689, %v5690
        %v5692 = vrot.slane %v5691, 2
        %v5693 = vmax.f32 %v5691, %v5692
        %v5694 = vrot.slane %v5693, 1
        %v5695 = vmax.f32 %v5693, %v5694
        %v5696 = vsel %vm5667, %v5412, -inf
        %v5697 = vrot.slane %v5696, 4
        %v5698 = vmax.f32 %v5696, %v5697
        %v5699 = vrot.slane %v5698, 2
        %v5700 = vmax.f32 %v5698, %v5699
        %v5701 = vrot.slane %v5700, 1
        %v5702 = vmax.f32 %v5700, %v5701
        %v5703 = vsel %vm5667, %v5478, -inf
        %v5704 = vrot.slane %v5703, 4
        %v5705 = vmax.f32 %v5703, %v5704
        %v5706 = vrot.slane %v5705, 2
        %v5707 = vmax.f32 %v5705, %v5706
        %v5708 = vrot.slane %v5707, 1
        %v5709 = vmax.f32 %v5707, %v5708
        %v5710 = vsel %vm5667, %v5479, -inf
        %v5711 = vrot.slane %v5710, 4
        %v5712 = vmax.f32 %v5710, %v5711
        %v5713 = vrot.slane %v5712, 2
        %v5714 = vmax.f32 %v5712, %v5713
        %v5715 = vrot.slane %v5714, 1
        %v5716 = vmax.f32 %v5714, %v5715
        %v5717 = vsel %vm5667, %v5480, -inf
        %v5718 = vrot.slane %v5717, 4
        %v5719 = vmax.f32 %v5717, %v5718
        %v5720 = vrot.slane %v5719, 2
        %v5721 = vmax.f32 %v5719, %v5720
        %v5722 = vrot.slane %v5721, 1
        %v5723 = vmax.f32 %v5721, %v5722
        %v5724 = vsel %vm5667, %v5413, -inf
        %v5725 = vrot.slane %v5724, 4
        %v5726 = vmax.f32 %v5724, %v5725
        %v5727 = vrot.slane %v5726, 2
        %v5728 = vmax.f32 %v5726, %v5727
        %v5729 = vrot.slane %v5728, 1
        %v5730 = vmax.f32 %v5728, %v5729
        %v5731 = vsel %vm5667, %v5481, -inf
        %v5732 = vrot.slane %v5731, 4
        %v5733 = vmax.f32 %v5731, %v5732
        %v5734 = vrot.slane %v5733, 2
        %v5735 = vmax.f32 %v5733, %v5734
        %v5736 = vrot.slane %v5735, 1
        %v5737 = vmax.f32 %v5735, %v5736
        %v5738 = vsel %vm5667, %v5482, -inf
        %v5739 = vrot.slane %v5738, 4
        %v5740 = vmax.f32 %v5738, %v5739
        %v5741 = vrot.slane %v5740, 2
        %v5742 = vmax.f32 %v5740, %v5741
        %v5743 = vrot.slane %v5742, 1
        %v5744 = vmax.f32 %v5742, %v5743
        %v5745 = vsel %vm5667, %v5483, -inf
        %v5746 = vrot.slane %v5745, 4
        %v5747 = vmax.f32 %v5745, %v5746
        %v5748 = vrot.slane %v5747, 2
        %v5749 = vmax.f32 %v5747, %v5748
        %v5750 = vrot.slane %v5749, 1
        %v5751 = vmax.f32 %v5749, %v5750
        %v5752 = vsel %vm5667, %v5414, -inf
        %v5753 = vrot.slane %v5752, 4
        %v5754 = vmax.f32 %v5752, %v5753
        %v5755 = vrot.slane %v5754, 2
        %v5756 = vmax.f32 %v5754, %v5755
        %v5757 = vrot.slane %v5756, 1
        %v5758 = vmax.f32 %v5756, %v5757
        %v5759 = vsel %vm5667, %v5484, -inf
        %v5760 = vrot.slane %v5759, 4
        %v5761 = vmax.f32 %v5759, %v5760
        %v5762 = vrot.slane %v5761, 2
        %v5763 = vmax.f32 %v5761, %v5762
        %v5764 = vrot.slane %v5763, 1
        %v5765 = vmax.f32 %v5763, %v5764
        %v5766 = vsel %vm5667, %v5485, -inf
        %v5767 = vrot.slane %v5766, 4
        %v5768 = vmax.f32 %v5766, %v5767
        %v5769 = vrot.slane %v5768, 2
        %v5770 = vmax.f32 %v5768, %v5769
        %v5771 = vrot.slane %v5770, 1
        %v5772 = vmax.f32 %v5770, %v5771
        %v5773 = vsel %vm5667, %v5486, -inf
        %v5774 = vrot.slane %v5773, 4
        %v5775 = vmax.f32 %v5773, %v5774
        %v5776 = vrot.slane %v5775, 2
        %v5777 = vmax.f32 %v5775, %v5776
        %v5778 = vrot.slane %v5777, 1
        %v5779 = vmax.f32 %v5777, %v5778
        %v5780 = vsel %vm5667, %v5415, -inf
        %v5781 = vrot.slane %v5780, 4
        %v5782 = vmax.f32 %v5780, %v5781
        %v5783 = vrot.slane %v5782, 2
        %v5784 = vmax.f32 %v5782, %v5783
        %v5785 = vrot.slane %v5784, 1
        %v5786 = vmax.f32 %v5784, %v5785
        %v5787 = vsel %vm5667, %v5487, -inf
        %v5788 = vrot.slane %v5787, 4
        %v5789 = vmax.f32 %v5787, %v5788
        %v5790 = vrot.slane %v5789, 2
        %v5791 = vmax.f32 %v5789, %v5790
        %v5792 = vrot.slane %v5791, 1
        %v5793 = vmax.f32 %v5791, %v5792
        %v5794 = vsel %vm5667, %v5488, -inf
        %v5795 = vrot.slane %v5794, 4
        %v5796 = vmax.f32 %v5794, %v5795
        %v5797 = vrot.slane %v5796, 2
        %v5798 = vmax.f32 %v5796, %v5797
        %v5799 = vrot.slane %v5798, 1
        %v5800 = vmax.f32 %v5798, %v5799
        %v5801 = vsel %vm5667, %v5489, -inf
        %v5802 = vrot.slane %v5801, 4
        %v5803 = vmax.f32 %v5801, %v5802
        %v5804 = vrot.slane %v5803, 2
        %v5805 = vmax.f32 %v5803, %v5804
        %v5806 = vrot.slane %v5805, 1
        %v5807 = vmax.f32 %v5805, %v5806
        %v5808 = vsel %vm5667, %v5416, -inf
        %v5809 = vrot.slane %v5808, 4
        %v5810 = vmax.f32 %v5808, %v5809
        %v5811 = vrot.slane %v5810, 2
        %v5812 = vmax.f32 %v5810, %v5811
        %v5813 = vrot.slane %v5812, 1
        %v5814 = vmax.f32 %v5812, %v5813
        %v5815 = vsel %vm5667, %v5490, -inf
        %v5816 = vrot.slane %v5815, 4
        %v5817 = vmax.f32 %v5815, %v5816
        %v5818 = vrot.slane %v5817, 2
        %v5819 = vmax.f32 %v5817, %v5818
        %v5820 = vrot.slane %v5819, 1
        %v5821 = vmax.f32 %v5819, %v5820
        %v5822 = vsel %vm5667, %v5491, -inf
        %v5823 = vrot.slane %v5822, 4
        %v5824 = vmax.f32 %v5822, %v5823
        %v5825 = vrot.slane %v5824, 2
        %v5826 = vmax.f32 %v5824, %v5825
        %v5827 = vrot.slane %v5826, 1
        %v5828 = vmax.f32 %v5826, %v5827
        %v5829 = vsel %vm5667, %v5492, -inf
        %v5830 = vrot.slane %v5829, 4
        %v5831 = vmax.f32 %v5829, %v5830
        %v5832 = vrot.slane %v5831, 2
        %v5833 = vmax.f32 %v5831, %v5832
        %v5834 = vrot.slane %v5833, 1
        %v5835 = vmax.f32 %v5833, %v5834
        %v5836 = vsel %vm5667, %v5417, -inf
        %v5837 = vrot.slane %v5836, 4
        %v5838 = vmax.f32 %v5836, %v5837
        %v5839 = vrot.slane %v5838, 2
        %v5840 = vmax.f32 %v5838, %v5839
        %v5841 = vrot.slane %v5840, 1
        %v5842 = vmax.f32 %v5840, %v5841
        %v5843 = vsel %vm5667, %v5493, -inf
        %v5844 = vrot.slane %v5843, 4
        %v5845 = vmax.f32 %v5843, %v5844
        %v5846 = vrot.slane %v5845, 2
        %v5847 = vmax.f32 %v5845, %v5846
        %v5848 = vrot.slane %v5847, 1
        %v5849 = vmax.f32 %v5847, %v5848
        %v5850 = vsel %vm5667, %v5494, -inf
        %v5851 = vrot.slane %v5850, 4
        %v5852 = vmax.f32 %v5850, %v5851
        %v5853 = vrot.slane %v5852, 2
        %v5854 = vmax.f32 %v5852, %v5853
        %v5855 = vrot.slane %v5854, 1
        %v5856 = vmax.f32 %v5854, %v5855
        %v5857 = vsel %vm5667, %v5495, -inf
        %v5858 = vrot.slane %v5857, 4
        %v5859 = vmax.f32 %v5857, %v5858
        %v5860 = vrot.slane %v5859, 2
        %v5861 = vmax.f32 %v5859, %v5860
        %v5862 = vrot.slane %v5861, 1
        %v5863 = vmax.f32 %v5861, %v5862
        %v5864 = vsel %vm5667, %v5418, -inf
        %v5865 = vrot.slane %v5864, 4
        %v5866 = vmax.f32 %v5864, %v5865
        %v5867 = vrot.slane %v5866, 2
        %v5868 = vmax.f32 %v5866, %v5867
        %v5869 = vrot.slane %v5868, 1
        %v5870 = vmax.f32 %v5868, %v5869
        %v5871 = vsel %vm5667, %v5496, -inf
        %v5872 = vrot.slane %v5871, 4
        %v5873 = vmax.f32 %v5871, %v5872
        %v5874 = vrot.slane %v5873, 2
        %v5875 = vmax.f32 %v5873, %v5874
        %v5876 = vrot.slane %v5875, 1
        %v5877 = vmax.f32 %v5875, %v5876
        %v5878 = vsel %vm5667, %v5497, -inf
        %v5879 = vrot.slane %v5878, 4
        %v5880 = vmax.f32 %v5878, %v5879
        %v5881 = vrot.slane %v5880, 2
        %v5882 = vmax.f32 %v5880, %v5881
        %v5883 = vrot.slane %v5882, 1
        %v5884 = vmax.f32 %v5882, %v5883
        %v5885 = vsel %vm5667, %v5498, -inf
        %v5886 = vrot.slane %v5885, 4
        %v5887 = vmax.f32 %v5885, %v5886
        %v5888 = vrot.slane %v5887, 2
        %v5889 = vmax.f32 %v5887, %v5888
        %v5890 = vrot.slane %v5889, 1
        %v5891 = vmax.f32 %v5889, %v5890
        %v5892 = vsel %vm5667, %v5419, -inf
        %v5893 = vrot.slane %v5892, 4
        %v5894 = vmax.f32 %v5892, %v5893
        %v5895 = vrot.slane %v5894, 2
        %v5896 = vmax.f32 %v5894, %v5895
        %v5897 = vrot.slane %v5896, 1
        %v5898 = vmax.f32 %v5896, %v5897
        %v5899 = vsel %vm5667, %v5499, -inf
        %v5900 = vrot.slane %v5899, 4
        %v5901 = vmax.f32 %v5899, %v5900
        %v5902 = vrot.slane %v5901, 2
        %v5903 = vmax.f32 %v5901, %v5902
        %v5904 = vrot.slane %v5903, 1
        %v5905 = vmax.f32 %v5903, %v5904
        %v5906 = vsel %vm5667, %v5500, -inf
        %v5907 = vrot.slane %v5906, 4
        %v5908 = vmax.f32 %v5906, %v5907
        %v5909 = vrot.slane %v5908, 2
        %v5910 = vmax.f32 %v5908, %v5909
        %v5911 = vrot.slane %v5910, 1
        %v5912 = vmax.f32 %v5910, %v5911
        %v5913 = vsel %vm5667, %v5501, -inf
        %v5914 = vrot.slane %v5913, 4
        %v5915 = vmax.f32 %v5913, %v5914
        %v5916 = vrot.slane %v5915, 2
        %v5917 = vmax.f32 %v5915, %v5916
        %v5918 = vrot.slane %v5917, 1
        %v5919 = vmax.f32 %v5917, %v5918
        %v5920 = vsel %vm5667, %v5420, -inf
        %v5921 = vrot.slane %v5920, 4
        %v5922 = vmax.f32 %v5920, %v5921
        %v5923 = vrot.slane %v5922, 2
        %v5924 = vmax.f32 %v5922, %v5923
        %v5925 = vrot.slane %v5924, 1
        %v5926 = vmax.f32 %v5924, %v5925
        %v5927 = vsel %vm5667, %v5502, -inf
        %v5928 = vrot.slane %v5927, 4
        %v5929 = vmax.f32 %v5927, %v5928
        %v5930 = vrot.slane %v5929, 2
        %v5931 = vmax.f32 %v5929, %v5930
        %v5932 = vrot.slane %v5931, 1
        %v5933 = vmax.f32 %v5931, %v5932
        %v5934 = vsel %vm5667, %v5503, -inf
        %v5935 = vrot.slane %v5934, 4
        %v5936 = vmax.f32 %v5934, %v5935
        %v5937 = vrot.slane %v5936, 2
        %v5938 = vmax.f32 %v5936, %v5937
        %v5939 = vrot.slane %v5938, 1
        %v5940 = vmax.f32 %v5938, %v5939
        %v5941 = vsel %vm5667, %v5504, -inf
        %v5942 = vrot.slane %v5941, 4
        %v5943 = vmax.f32 %v5941, %v5942
        %v5944 = vrot.slane %v5943, 2
        %v5945 = vmax.f32 %v5943, %v5944
        %v5946 = vrot.slane %v5945, 1
        %v5947 = vmax.f32 %v5945, %v5946
        %v5948 = vsel %vm5667, %v5421, -inf
        %v5949 = vrot.slane %v5948, 4
        %v5950 = vmax.f32 %v5948, %v5949
        %v5951 = vrot.slane %v5950, 2
        %v5952 = vmax.f32 %v5950, %v5951
        %v5953 = vrot.slane %v5952, 1
        %v5954 = vmax.f32 %v5952, %v5953
        %v5955 = vsel %vm5667, %v5505, -inf
        %v5956 = vrot.slane %v5955, 4
        %v5957 = vmax.f32 %v5955, %v5956
        %v5958 = vrot.slane %v5957, 2
        %v5959 = vmax.f32 %v5957, %v5958
        %v5960 = vrot.slane %v5959, 1
        %v5961 = vmax.f32 %v5959, %v5960
        %v5962 = vsel %vm5667, %v5506, -inf
        %v5963 = vrot.slane %v5962, 4
        %v5964 = vmax.f32 %v5962, %v5963
        %v5965 = vrot.slane %v5964, 2
        %v5966 = vmax.f32 %v5964, %v5965
        %v5967 = vrot.slane %v5966, 1
        %v5968 = vmax.f32 %v5966, %v5967
        %v5969 = vsel %vm5667, %v5507, -inf
        %v5970 = vrot.slane %v5969, 4
        %v5971 = vmax.f32 %v5969, %v5970
        %v5972 = vrot.slane %v5971, 2
        %v5973 = vmax.f32 %v5971, %v5972
        %v5974 = vrot.slane %v5973, 1
        %v5975 = vmax.f32 %v5973, %v5974
        %v5976 = vsel %vm5667, %v5422, -inf
        %v5977 = vrot.slane %v5976, 4
        %v5978 = vmax.f32 %v5976, %v5977
        %v5979 = vrot.slane %v5978, 2
        %v5980 = vmax.f32 %v5978, %v5979
        %v5981 = vrot.slane %v5980, 1
        %v5982 = vmax.f32 %v5980, %v5981
        %v5983 = vsel %vm5667, %v5508, -inf
        %v5984 = vrot.slane %v5983, 4
        %v5985 = vmax.f32 %v5983, %v5984
        %v5986 = vrot.slane %v5985, 2
        %v5987 = vmax.f32 %v5985, %v5986
        %v5988 = vrot.slane %v5987, 1
        %v5989 = vmax.f32 %v5987, %v5988
        %v5990 = vsel %vm5667, %v5509, -inf
        %v5991 = vrot.slane %v5990, 4
        %v5992 = vmax.f32 %v5990, %v5991
        %v5993 = vrot.slane %v5992, 2
        %v5994 = vmax.f32 %v5992, %v5993
        %v5995 = vrot.slane %v5994, 1
        %v5996 = vmax.f32 %v5994, %v5995
        %v5997 = vsel %vm5667, %v5510, -inf
        %v5998 = vrot.slane %v5997, 4
        %v5999 = vmax.f32 %v5997, %v5998
        %v6000 = vrot.slane %v5999, 2
        %v6001 = vmax.f32 %v5999, %v6000
        %v6002 = vrot.slane %v6001, 1
        %v6003 = vmax.f32 %v6001, %v6002
        %v6004 = vsel %vm5667, %v5423, -inf
        %v6005 = vrot.slane %v6004, 4
        %v6006 = vmax.f32 %v6004, %v6005
        %v6007 = vrot.slane %v6006, 2
        %v6008 = vmax.f32 %v6006, %v6007
        %v6009 = vrot.slane %v6008, 1
        %v6010 = vmax.f32 %v6008, %v6009
        %v6011 = vsel %vm5667, %v5511, -inf
        %v6012 = vrot.slane %v6011, 4
        %v6013 = vmax.f32 %v6011, %v6012
        %v6014 = vrot.slane %v6013, 2
        %v6015 = vmax.f32 %v6013, %v6014
        %v6016 = vrot.slane %v6015, 1
        %v6017 = vmax.f32 %v6015, %v6016
        %v6018 = vsel %vm5667, %v5512, -inf
        %v6019 = vrot.slane %v6018, 4
        %v6020 = vmax.f32 %v6018, %v6019
        %v6021 = vrot.slane %v6020, 2
        %v6022 = vmax.f32 %v6020, %v6021
        %v6023 = vrot.slane %v6022, 1
        %v6024 = vmax.f32 %v6022, %v6023
        %v6025 = vsel %vm5667, %v5513, -inf
        %v6026 = vrot.slane %v6025, 4
        %v6027 = vmax.f32 %v6025, %v6026
        %v6028 = vrot.slane %v6027, 2
        %v6029 = vmax.f32 %v6027, %v6028
        %v6030 = vrot.slane %v6029, 1
        %v6031 = vmax.f32 %v6029, %v6030
        %v6032 = vsel %vm5667, %v5424, -inf
        %v6033 = vrot.slane %v6032, 4
        %v6034 = vmax.f32 %v6032, %v6033
        %v6035 = vrot.slane %v6034, 2
        %v6036 = vmax.f32 %v6034, %v6035
        %v6037 = vrot.slane %v6036, 1
        %v6038 = vmax.f32 %v6036, %v6037
        %v6039 = vsel %vm5667, %v5514, -inf
        %v6040 = vrot.slane %v6039, 4
        %v6041 = vmax.f32 %v6039, %v6040
        %v6042 = vrot.slane %v6041, 2
        %v6043 = vmax.f32 %v6041, %v6042
        %v6044 = vrot.slane %v6043, 1
        %v6045 = vmax.f32 %v6043, %v6044
        %v6046 = vsel %vm5667, %v5515, -inf
        %v6047 = vrot.slane %v6046, 4
        %v6048 = vmax.f32 %v6046, %v6047
        %v6049 = vrot.slane %v6048, 2
        %v6050 = vmax.f32 %v6048, %v6049
        %v6051 = vrot.slane %v6050, 1
        %v6052 = vmax.f32 %v6050, %v6051
        %v6053 = vsel %vm5667, %v5516, -inf
        %v6054 = vrot.slane %v6053, 4
        %v6055 = vmax.f32 %v6053, %v6054
        %v6056 = vrot.slane %v6055, 2
        %v6057 = vmax.f32 %v6055, %v6056
        %v6058 = vrot.slane %v6057, 1
        %v6059 = vmax.f32 %v6057, %v6058
        %v6060 = vsel %vm5667, %v5425, -inf
        %v6061 = vrot.slane %v6060, 4
        %v6062 = vmax.f32 %v6060, %v6061
        %v6063 = vrot.slane %v6062, 2
        %v6064 = vmax.f32 %v6062, %v6063
        %v6065 = vrot.slane %v6064, 1
        %v6066 = vmax.f32 %v6064, %v6065
        %v6067 = vsel %vm5667, %v5517, -inf
        %v6068 = vrot.slane %v6067, 4
        %v6069 = vmax.f32 %v6067, %v6068
        %v6070 = vrot.slane %v6069, 2
        %v6071 = vmax.f32 %v6069, %v6070
        %v6072 = vrot.slane %v6071, 1
        %v6073 = vmax.f32 %v6071, %v6072
        %v6074 = vsel %vm5667, %v5518, -inf
        %v6075 = vrot.slane %v6074, 4
        %v6076 = vmax.f32 %v6074, %v6075
        %v6077 = vrot.slane %v6076, 2
        %v6078 = vmax.f32 %v6076, %v6077
        %v6079 = vrot.slane %v6078, 1
        %v6080 = vmax.f32 %v6078, %v6079
        %v6081 = vsel %vm5667, %v5519, -inf
        %v6082 = vrot.slane %v6081, 4
        %v6083 = vmax.f32 %v6081, %v6082
        %v6084 = vrot.slane %v6083, 2
        %v6085 = vmax.f32 %v6083, %v6084
        %v6086 = vrot.slane %v6085, 1
        %v6087 = vmax.f32 %v6085, %v6086
        %v6088 = vsel %vm5667, %v5426, -inf
        %v6089 = vrot.slane %v6088, 4
        %v6090 = vmax.f32 %v6088, %v6089
        %v6091 = vrot.slane %v6090, 2
        %v6092 = vmax.f32 %v6090, %v6091
        %v6093 = vrot.slane %v6092, 1
        %v6094 = vmax.f32 %v6092, %v6093
        %v6095 = vsel %vm5667, %v5520, -inf
        %v6096 = vrot.slane %v6095, 4
        %v6097 = vmax.f32 %v6095, %v6096
        %v6098 = vrot.slane %v6097, 2
        %v6099 = vmax.f32 %v6097, %v6098
        %v6100 = vrot.slane %v6099, 1
        %v6101 = vmax.f32 %v6099, %v6100
        %v6102 = vsel %vm5667, %v5521, -inf
        %v6103 = vrot.slane %v6102, 4
        %v6104 = vmax.f32 %v6102, %v6103
        %v6105 = vrot.slane %v6104, 2
        %v6106 = vmax.f32 %v6104, %v6105
        %v6107 = vrot.slane %v6106, 1
        %v6108 = vmax.f32 %v6106, %v6107
        %v6109 = vsel %vm5667, %v5522, -inf
        %v6110 = vrot.slane %v6109, 4
        %v6111 = vmax.f32 %v6109, %v6110
        %v6112 = vrot.slane %v6111, 2
        %v6113 = vmax.f32 %v6111, %v6112
        %v6114 = vrot.slane %v6113, 1
        %v6115 = vmax.f32 %v6113, %v6114
        %v6116 = vsel %vm5667, %v5427, -inf
        %v6117 = vrot.slane %v6116, 4
        %v6118 = vmax.f32 %v6116, %v6117
        %v6119 = vrot.slane %v6118, 2
        %v6120 = vmax.f32 %v6118, %v6119
        %v6121 = vrot.slane %v6120, 1
        %v6122 = vmax.f32 %v6120, %v6121
        %v6123 = vsel %vm5667, %v5523, -inf
        %v6124 = vrot.slane %v6123, 4
        %v6125 = vmax.f32 %v6123, %v6124
        %v6126 = vrot.slane %v6125, 2
        %v6127 = vmax.f32 %v6125, %v6126
        %v6128 = vrot.slane %v6127, 1
        %v6129 = vmax.f32 %v6127, %v6128
        %v6130 = vsel %vm5667, %v5524, -inf
        %v6131 = vrot.slane %v6130, 4
        %v6132 = vmax.f32 %v6130, %v6131
        %v6133 = vrot.slane %v6132, 2
        %v6134 = vmax.f32 %v6132, %v6133
        %v6135 = vrot.slane %v6134, 1
        %v6136 = vmax.f32 %v6134, %v6135
        %v6137 = vsel %vm5667, %v5525, -inf
        %v6138 = vrot.slane %v6137, 4
        %v6139 = vmax.f32 %v6137, %v6138
        %v6140 = vrot.slane %v6139, 2
        %v6141 = vmax.f32 %v6139, %v6140
        %v6142 = vrot.slane %v6141, 1
        %v6143 = vmax.f32 %v6141, %v6142
        %v6144 = vsel %vm5667, %v5428, -inf
        %v6145 = vrot.slane %v6144, 4
        %v6146 = vmax.f32 %v6144, %v6145
        %v6147 = vrot.slane %v6146, 2
        %v6148 = vmax.f32 %v6146, %v6147
        %v6149 = vrot.slane %v6148, 1
        %v6150 = vmax.f32 %v6148, %v6149
        %v6151 = vsel %vm5667, %v5526, -inf
        %v6152 = vrot.slane %v6151, 4
        %v6153 = vmax.f32 %v6151, %v6152
        %v6154 = vrot.slane %v6153, 2
        %v6155 = vmax.f32 %v6153, %v6154
        %v6156 = vrot.slane %v6155, 1
        %v6157 = vmax.f32 %v6155, %v6156
        %v6158 = vsel %vm5667, %v5527, -inf
        %v6159 = vrot.slane %v6158, 4
        %v6160 = vmax.f32 %v6158, %v6159
        %v6161 = vrot.slane %v6160, 2
        %v6162 = vmax.f32 %v6160, %v6161
        %v6163 = vrot.slane %v6162, 1
        %v6164 = vmax.f32 %v6162, %v6163
        %v6165 = vsel %vm5667, %v5528, -inf
        %v6166 = vrot.slane %v6165, 4
        %v6167 = vmax.f32 %v6165, %v6166
        %v6168 = vrot.slane %v6167, 2
        %v6169 = vmax.f32 %v6167, %v6168
        %v6170 = vrot.slane %v6169, 1
        %v6171 = vmax.f32 %v6169, %v6170
        %v6172 = vsel %vm5667, %v5429, -inf
        %v6173 = vrot.slane %v6172, 4
        %v6174 = vmax.f32 %v6172, %v6173
        %v6175 = vrot.slane %v6174, 2
        %v6176 = vmax.f32 %v6174, %v6175
        %v6177 = vrot.slane %v6176, 1
        %v6178 = vmax.f32 %v6176, %v6177
        %v6179 = vsel %vm5667, %v5529, -inf
        %v6180 = vrot.slane %v6179, 4
        %v6181 = vmax.f32 %v6179, %v6180
        %v6182 = vrot.slane %v6181, 2
        %v6183 = vmax.f32 %v6181, %v6182
        %v6184 = vrot.slane %v6183, 1
        %v6185 = vmax.f32 %v6183, %v6184
        %v6186 = vsel %vm5667, %v5530, -inf
        %v6187 = vrot.slane %v6186, 4
        %v6188 = vmax.f32 %v6186, %v6187
        %v6189 = vrot.slane %v6188, 2
        %v6190 = vmax.f32 %v6188, %v6189
        %v6191 = vrot.slane %v6190, 1
        %v6192 = vmax.f32 %v6190, %v6191
        %v6193 = vsel %vm5667, %v5531, -inf
        %v6194 = vrot.slane %v6193, 4
        %v6195 = vmax.f32 %v6193, %v6194
        %v6196 = vrot.slane %v6195, 2
        %v6197 = vmax.f32 %v6195, %v6196
        %v6198 = vrot.slane %v6197, 1
        %v6199 = vmax.f32 %v6197, %v6198
        %v6200 = vsel %vm5667, %v5430, -inf
        %v6201 = vrot.slane %v6200, 4
        %v6202 = vmax.f32 %v6200, %v6201
        %v6203 = vrot.slane %v6202, 2
        %v6204 = vmax.f32 %v6202, %v6203
        %v6205 = vrot.slane %v6204, 1
        %v6206 = vmax.f32 %v6204, %v6205
        %v6207 = vsel %vm5667, %v5532, -inf
        %v6208 = vrot.slane %v6207, 4
        %v6209 = vmax.f32 %v6207, %v6208
        %v6210 = vrot.slane %v6209, 2
        %v6211 = vmax.f32 %v6209, %v6210
        %v6212 = vrot.slane %v6211, 1
        %v6213 = vmax.f32 %v6211, %v6212
        %v6214 = vsel %vm5667, %v5533, -inf
        %v6215 = vrot.slane %v6214, 4
        %v6216 = vmax.f32 %v6214, %v6215
        %v6217 = vrot.slane %v6216, 2
        %v6218 = vmax.f32 %v6216, %v6217
        %v6219 = vrot.slane %v6218, 1
        %v6220 = vmax.f32 %v6218, %v6219
        %v6221 = vsel %vm5667, %v5534, -inf
        %v6222 = vrot.slane %v6221, 4
        %v6223 = vmax.f32 %v6221, %v6222
        %v6224 = vrot.slane %v6223, 2
        %v6225 = vmax.f32 %v6223, %v6224
        %v6226 = vrot.slane %v6225, 1
        %v6227 = vmax.f32 %v6225, %v6226
        %v6228 = vsel %vm5667, %v5431, -inf
        %v6229 = vrot.slane %v6228, 4
        %v6230 = vmax.f32 %v6228, %v6229
        %v6231 = vrot.slane %v6230, 2
        %v6232 = vmax.f32 %v6230, %v6231
        %v6233 = vrot.slane %v6232, 1
        %v6234 = vmax.f32 %v6232, %v6233
        %v6235 = vsel %vm5667, %v5535, -inf
        %v6236 = vrot.slane %v6235, 4
        %v6237 = vmax.f32 %v6235, %v6236
        %v6238 = vrot.slane %v6237, 2
        %v6239 = vmax.f32 %v6237, %v6238
        %v6240 = vrot.slane %v6239, 1
        %v6241 = vmax.f32 %v6239, %v6240
        %v6242 = vsel %vm5667, %v5536, -inf
        %v6243 = vrot.slane %v6242, 4
        %v6244 = vmax.f32 %v6242, %v6243
        %v6245 = vrot.slane %v6244, 2
        %v6246 = vmax.f32 %v6244, %v6245
        %v6247 = vrot.slane %v6246, 1
        %v6248 = vmax.f32 %v6246, %v6247
        %v6249 = vsel %vm5667, %v5537, -inf
        %v6250 = vrot.slane %v6249, 4
        %v6251 = vmax.f32 %v6249, %v6250
        %v6252 = vrot.slane %v6251, 2
        %v6253 = vmax.f32 %v6251, %v6252
        %v6254 = vrot.slane %v6253, 1
        %v6255 = vmax.f32 %v6253, %v6254
        %v6256 = vsel %vm5667, %v5432, -inf
        %v6257 = vrot.slane %v6256, 4
        %v6258 = vmax.f32 %v6256, %v6257
        %v6259 = vrot.slane %v6258, 2
        %v6260 = vmax.f32 %v6258, %v6259
        %v6261 = vrot.slane %v6260, 1
        %v6262 = vmax.f32 %v6260, %v6261
        %v6263 = vsel %vm5667, %v5538, -inf
        %v6264 = vrot.slane %v6263, 4
        %v6265 = vmax.f32 %v6263, %v6264
        %v6266 = vrot.slane %v6265, 2
        %v6267 = vmax.f32 %v6265, %v6266
        %v6268 = vrot.slane %v6267, 1
        %v6269 = vmax.f32 %v6267, %v6268
        %v6270 = vsel %vm5667, %v5539, -inf
        %v6271 = vrot.slane %v6270, 4
        %v6272 = vmax.f32 %v6270, %v6271
        %v6273 = vrot.slane %v6272, 2
        %v6274 = vmax.f32 %v6272, %v6273
        %v6275 = vrot.slane %v6274, 1
        %v6276 = vmax.f32 %v6274, %v6275
        %v6277 = vsel %vm5667, %v5540, -inf
        %v6278 = vrot.slane %v6277, 4
        %v6279 = vmax.f32 %v6277, %v6278
        %v6280 = vrot.slane %v6279, 2
        %v6281 = vmax.f32 %v6279, %v6280
        %v6282 = vrot.slane %v6281, 1
        %v6283 = vmax.f32 %v6281, %v6282
        %v6284 = vsel %vm5667, %v5433, -inf
        %v6285 = vrot.slane %v6284, 4
        %v6286 = vmax.f32 %v6284, %v6285
        %v6287 = vrot.slane %v6286, 2
        %v6288 = vmax.f32 %v6286, %v6287
        %v6289 = vrot.slane %v6288, 1
        %v6290 = vmax.f32 %v6288, %v6289
        %v6291 = vsel %vm5667, %v5541, -inf
        %v6292 = vrot.slane %v6291, 4
        %v6293 = vmax.f32 %v6291, %v6292
        %v6294 = vrot.slane %v6293, 2
        %v6295 = vmax.f32 %v6293, %v6294
        %v6296 = vrot.slane %v6295, 1
        %v6297 = vmax.f32 %v6295, %v6296
        %v6298 = vsel %vm5667, %v5542, -inf
        %v6299 = vrot.slane %v6298, 4
        %v6300 = vmax.f32 %v6298, %v6299
        %v6301 = vrot.slane %v6300, 2
        %v6302 = vmax.f32 %v6300, %v6301
        %v6303 = vrot.slane %v6302, 1
        %v6304 = vmax.f32 %v6302, %v6303
        %v6305 = vsel %vm5667, %v5543, -inf
        %v6306 = vrot.slane %v6305, 4
        %v6307 = vmax.f32 %v6305, %v6306
        %v6308 = vrot.slane %v6307, 2
        %v6309 = vmax.f32 %v6307, %v6308
        %v6310 = vrot.slane %v6309, 1
        %v6311 = vmax.f32 %v6309, %v6310
        %v6312 = vsel %vm5667, %v5434, -inf
        %v6313 = vrot.slane %v6312, 4
        %v6314 = vmax.f32 %v6312, %v6313
        %v6315 = vrot.slane %v6314, 2
        %v6316 = vmax.f32 %v6314, %v6315
        %v6317 = vrot.slane %v6316, 1
        %v6318 = vmax.f32 %v6316, %v6317
        %v6319 = vsel %vm5667, %v5544, -inf
        %v6320 = vrot.slane %v6319, 4
        %v6321 = vmax.f32 %v6319, %v6320
        %v6322 = vrot.slane %v6321, 2
        %v6323 = vmax.f32 %v6321, %v6322
        %v6324 = vrot.slane %v6323, 1
        %v6325 = vmax.f32 %v6323, %v6324
        %v6326 = vsel %vm5667, %v5545, -inf
        %v6327 = vrot.slane %v6326, 4
        %v6328 = vmax.f32 %v6326, %v6327
        %v6329 = vrot.slane %v6328, 2
        %v6330 = vmax.f32 %v6328, %v6329
        %v6331 = vrot.slane %v6330, 1
        %v6332 = vmax.f32 %v6330, %v6331
        %v6333 = vsel %vm5667, %v5546, -inf
        %v6334 = vrot.slane %v6333, 4
        %v6335 = vmax.f32 %v6333, %v6334
        %v6336 = vrot.slane %v6335, 2
        %v6337 = vmax.f32 %v6335, %v6336
        %v6338 = vrot.slane %v6337, 1
        %v6339 = vmax.f32 %v6337, %v6338
        %v6340 = vsel %vm5667, %v5435, -inf
        %v6341 = vrot.slane %v6340, 4
        %v6342 = vmax.f32 %v6340, %v6341
        %v6343 = vrot.slane %v6342, 2
        %v6344 = vmax.f32 %v6342, %v6343
        %v6345 = vrot.slane %v6344, 1
        %v6346 = vmax.f32 %v6344, %v6345
        %v6347 = vsel %vm5667, %v5547, -inf
        %v6348 = vrot.slane %v6347, 4
        %v6349 = vmax.f32 %v6347, %v6348
        %v6350 = vrot.slane %v6349, 2
        %v6351 = vmax.f32 %v6349, %v6350
        %v6352 = vrot.slane %v6351, 1
        %v6353 = vmax.f32 %v6351, %v6352
        %v6354 = vsel %vm5667, %v5548, -inf
        %v6355 = vrot.slane %v6354, 4
        %v6356 = vmax.f32 %v6354, %v6355
        %v6357 = vrot.slane %v6356, 2
        %v6358 = vmax.f32 %v6356, %v6357
        %v6359 = vrot.slane %v6358, 1
        %v6360 = vmax.f32 %v6358, %v6359
        %v6361 = vsel %vm5667, %v5549, -inf
        %v6362 = vrot.slane %v6361, 4
        %v6363 = vmax.f32 %v6361, %v6362
        %v6364 = vrot.slane %v6363, 2
        %v6365 = vmax.f32 %v6363, %v6364
        %v6366 = vrot.slane %v6365, 1
        %v6367 = vmax.f32 %v6365, %v6366
        %v6368 = vsel %vm5667, %v5436, -inf
        %v6369 = vrot.slane %v6368, 4
        %v6370 = vmax.f32 %v6368, %v6369
        %v6371 = vrot.slane %v6370, 2
        %v6372 = vmax.f32 %v6370, %v6371
        %v6373 = vrot.slane %v6372, 1
        %v6374 = vmax.f32 %v6372, %v6373
        %v6375 = vsel %vm5667, %v5550, -inf
        %v6376 = vrot.slane %v6375, 4
        %v6377 = vmax.f32 %v6375, %v6376
        %v6378 = vrot.slane %v6377, 2
        %v6379 = vmax.f32 %v6377, %v6378
        %v6380 = vrot.slane %v6379, 1
        %v6381 = vmax.f32 %v6379, %v6380
        %v6382 = vsel %vm5667, %v5551, -inf
        %v6383 = vrot.slane %v6382, 4
        %v6384 = vmax.f32 %v6382, %v6383
        %v6385 = vrot.slane %v6384, 2
        %v6386 = vmax.f32 %v6384, %v6385
        %v6387 = vrot.slane %v6386, 1
        %v6388 = vmax.f32 %v6386, %v6387
        %v6389 = vsel %vm5667, %v5552, -inf
        %v6390 = vrot.slane %v6389, 4
        %v6391 = vmax.f32 %v6389, %v6390
        %v6392 = vrot.slane %v6391, 2
        %v6393 = vmax.f32 %v6391, %v6392
        %v6394 = vrot.slane %v6393, 1
        %v6395 = vmax.f32 %v6393, %v6394
        %v6396 = vsel %vm5667, %v5437, -inf
        %v6397 = vrot.slane %v6396, 4
        %v6398 = vmax.f32 %v6396, %v6397
        %v6399 = vrot.slane %v6398, 2
        %v6400 = vmax.f32 %v6398, %v6399
        %v6401 = vrot.slane %v6400, 1
        %v6402 = vmax.f32 %v6400, %v6401
        %v6403 = vsel %vm5667, %v5553, -inf
        %v6404 = vrot.slane %v6403, 4
        %v6405 = vmax.f32 %v6403, %v6404
        %v6406 = vrot.slane %v6405, 2
        %v6407 = vmax.f32 %v6405, %v6406
        %v6408 = vrot.slane %v6407, 1
        %v6409 = vmax.f32 %v6407, %v6408
        %v6410 = vsel %vm5667, %v5554, -inf
        %v6411 = vrot.slane %v6410, 4
        %v6412 = vmax.f32 %v6410, %v6411
        %v6413 = vrot.slane %v6412, 2
        %v6414 = vmax.f32 %v6412, %v6413
        %v6415 = vrot.slane %v6414, 1
        %v6416 = vmax.f32 %v6414, %v6415
        %v6417 = vsel %vm5667, %v5555, -inf
        %v6418 = vrot.slane %v6417, 4
        %v6419 = vmax.f32 %v6417, %v6418
        %v6420 = vrot.slane %v6419, 2
        %v6421 = vmax.f32 %v6419, %v6420
        %v6422 = vrot.slane %v6421, 1
        %v6423 = vmax.f32 %v6421, %v6422
        %v6424 = vsel %vm5667, %v5438, -inf
        %v6425 = vrot.slane %v6424, 4
        %v6426 = vmax.f32 %v6424, %v6425
        %v6427 = vrot.slane %v6426, 2
        %v6428 = vmax.f32 %v6426, %v6427
        %v6429 = vrot.slane %v6428, 1
        %v6430 = vmax.f32 %v6428, %v6429
        %v6431 = vsel %vm5667, %v5556, -inf
        %v6432 = vrot.slane %v6431, 4
        %v6433 = vmax.f32 %v6431, %v6432
        %v6434 = vrot.slane %v6433, 2
        %v6435 = vmax.f32 %v6433, %v6434
        %v6436 = vrot.slane %v6435, 1
        %v6437 = vmax.f32 %v6435, %v6436
        %v6438 = vsel %vm5667, %v5557, -inf
        %v6439 = vrot.slane %v6438, 4
        %v6440 = vmax.f32 %v6438, %v6439
        %v6441 = vrot.slane %v6440, 2
        %v6442 = vmax.f32 %v6440, %v6441
        %v6443 = vrot.slane %v6442, 1
        %v6444 = vmax.f32 %v6442, %v6443
        %v6445 = vsel %vm5667, %v5558, -inf
        %v6446 = vrot.slane %v6445, 4
        %v6447 = vmax.f32 %v6445, %v6446
        %v6448 = vrot.slane %v6447, 2
        %v6449 = vmax.f32 %v6447, %v6448
        %v6450 = vrot.slane %v6449, 1
        %v6451 = vmax.f32 %v6449, %v6450
        %v6452 = vsel %vm5667, %v5439, -inf
        %v6453 = vrot.slane %v6452, 4
        %v6454 = vmax.f32 %v6452, %v6453
        %v6455 = vrot.slane %v6454, 2
        %v6456 = vmax.f32 %v6454, %v6455
        %v6457 = vrot.slane %v6456, 1
        %v6458 = vmax.f32 %v6456, %v6457
        %v6459 = vsel %vm5667, %v5559, -inf
        %v6460 = vrot.slane %v6459, 4
        %v6461 = vmax.f32 %v6459, %v6460
        %v6462 = vrot.slane %v6461, 2
        %v6463 = vmax.f32 %v6461, %v6462
        %v6464 = vrot.slane %v6463, 1
        %v6465 = vmax.f32 %v6463, %v6464
        %v6466 = vsel %vm5667, %v5560, -inf
        %v6467 = vrot.slane %v6466, 4
        %v6468 = vmax.f32 %v6466, %v6467
        %v6469 = vrot.slane %v6468, 2
        %v6470 = vmax.f32 %v6468, %v6469
        %v6471 = vrot.slane %v6470, 1
        %v6472 = vmax.f32 %v6470, %v6471
        %v6473 = vsel %vm5667, %v5561, -inf
        %v6474 = vrot.slane %v6473, 4
        %v6475 = vmax.f32 %v6473, %v6474
        %v6476 = vrot.slane %v6475, 2
        %v6477 = vmax.f32 %v6475, %v6476
        %v6478 = vrot.slane %v6477, 1
        %v6479 = vmax.f32 %v6477, %v6478
        %v6480 = vsel %vm5667, %v5440, -inf
        %v6481 = vrot.slane %v6480, 4
        %v6482 = vmax.f32 %v6480, %v6481
        %v6483 = vrot.slane %v6482, 2
        %v6484 = vmax.f32 %v6482, %v6483
        %v6485 = vrot.slane %v6484, 1
        %v6486 = vmax.f32 %v6484, %v6485
        %v6487 = vsel %vm5667, %v5562, -inf
        %v6488 = vrot.slane %v6487, 4
        %v6489 = vmax.f32 %v6487, %v6488
        %v6490 = vrot.slane %v6489, 2
        %v6491 = vmax.f32 %v6489, %v6490
        %v6492 = vrot.slane %v6491, 1
        %v6493 = vmax.f32 %v6491, %v6492
        %v6494 = vsel %vm5667, %v5563, -inf
        %v6495 = vrot.slane %v6494, 4
        %v6496 = vmax.f32 %v6494, %v6495
        %v6497 = vrot.slane %v6496, 2
        %v6498 = vmax.f32 %v6496, %v6497
        %v6499 = vrot.slane %v6498, 1
        %v6500 = vmax.f32 %v6498, %v6499
        %v6501 = vsel %vm5667, %v5564, -inf
        %v6502 = vrot.slane %v6501, 4
        %v6503 = vmax.f32 %v6501, %v6502
        %v6504 = vrot.slane %v6503, 2
        %v6505 = vmax.f32 %v6503, %v6504
        %v6506 = vrot.slane %v6505, 1
        %v6507 = vmax.f32 %v6505, %v6506
        %v6508 = vsel %vm5667, %v5441, -inf
        %v6509 = vrot.slane %v6508, 4
        %v6510 = vmax.f32 %v6508, %v6509
        %v6511 = vrot.slane %v6510, 2
        %v6512 = vmax.f32 %v6510, %v6511
        %v6513 = vrot.slane %v6512, 1
        %v6514 = vmax.f32 %v6512, %v6513
        %v6515 = vsel %vm5667, %v5565, -inf
        %v6516 = vrot.slane %v6515, 4
        %v6517 = vmax.f32 %v6515, %v6516
        %v6518 = vrot.slane %v6517, 2
        %v6519 = vmax.f32 %v6517, %v6518
        %v6520 = vrot.slane %v6519, 1
        %v6521 = vmax.f32 %v6519, %v6520
        %v6522 = vsel %vm5667, %v5566, -inf
        %v6523 = vrot.slane %v6522, 4
        %v6524 = vmax.f32 %v6522, %v6523
        %v6525 = vrot.slane %v6524, 2
        %v6526 = vmax.f32 %v6524, %v6525
        %v6527 = vrot.slane %v6526, 1
        %v6528 = vmax.f32 %v6526, %v6527
        %v6529 = vsel %vm5667, %v5567, -inf
        %v6530 = vrot.slane %v6529, 4
        %v6531 = vmax.f32 %v6529, %v6530
        %v6532 = vrot.slane %v6531, 2
        %v6533 = vmax.f32 %v6531, %v6532
        %v6534 = vrot.slane %v6533, 1
        %v6535 = vmax.f32 %v6533, %v6534
        %v6536 = vsel %vm5667, %v5442, -inf
        %v6537 = vrot.slane %v6536, 4
        %v6538 = vmax.f32 %v6536, %v6537
        %v6539 = vrot.slane %v6538, 2
        %v6540 = vmax.f32 %v6538, %v6539
        %v6541 = vrot.slane %v6540, 1
        %v6542 = vmax.f32 %v6540, %v6541
        %v6543 = vsel %vm5667, %v5568, -inf
        %v6544 = vrot.slane %v6543, 4
        %v6545 = vmax.f32 %v6543, %v6544
        %v6546 = vrot.slane %v6545, 2
        %v6547 = vmax.f32 %v6545, %v6546
        %v6548 = vrot.slane %v6547, 1
        %v6549 = vmax.f32 %v6547, %v6548
        %v6550 = vsel %vm5667, %v5569, -inf
        %v6551 = vrot.slane %v6550, 4
        %v6552 = vmax.f32 %v6550, %v6551
        %v6553 = vrot.slane %v6552, 2
        %v6554 = vmax.f32 %v6552, %v6553
        %v6555 = vrot.slane %v6554, 1
        %v6556 = vmax.f32 %v6554, %v6555
        %v6557 = vsel %vm5667, %v5570, -inf
        %v6558 = vrot.slane %v6557, 4
        %v6559 = vmax.f32 %v6557, %v6558
        %v6560 = vrot.slane %v6559, 2
        %v6561 = vmax.f32 %v6559, %v6560
        %v6562 = vrot.slane %v6561, 1
        %v6563 = vmax.f32 %v6561, %v6562
        %v6564 = vmax.f32 %v5674, %v5730
        %v6565 = vmax.f32 %v5681, %v5737
        %v6566 = vmax.f32 %v5688, %v5744
        %v6567 = vmax.f32 %v5695, %v5751
        %v6568 = vmax.f32 %v5702, %v5758
        %v6569 = vmax.f32 %v5709, %v5765
        %v6570 = vmax.f32 %v5716, %v5772
        %v6571 = vmax.f32 %v5723, %v5779
        %v6572 = vmax.f32 %v5786, %v5842
        %v6573 = vmax.f32 %v5793, %v5849
        %v6574 = vmax.f32 %v5800, %v5856
        %v6575 = vmax.f32 %v5807, %v5863
        %v6576 = vmax.f32 %v5814, %v5870
        %v6577 = vmax.f32 %v5821, %v5877
        %v6578 = vmax.f32 %v5828, %v5884
        %v6579 = vmax.f32 %v5835, %v5891
        %v6580 = vmax.f32 %v5898, %v5954
        %v6581 = vmax.f32 %v5905, %v5961
        %v6582 = vmax.f32 %v5912, %v5968
        %v6583 = vmax.f32 %v5919, %v5975
        %v6584 = vmax.f32 %v5926, %v5982
        %v6585 = vmax.f32 %v5933, %v5989
        %v6586 = vmax.f32 %v5940, %v5996
        %v6587 = vmax.f32 %v5947, %v6003
        %v6588 = vmax.f32 %v6010, %v6066
        %v6589 = vmax.f32 %v6017, %v6073
        %v6590 = vmax.f32 %v6024, %v6080
        %v6591 = vmax.f32 %v6031, %v6087
        %v6592 = vmax.f32 %v6038, %v6094
        %v6593 = vmax.f32 %v6045, %v6101
        %v6594 = vmax.f32 %v6052, %v6108
        %v6595 = vmax.f32 %v6059, %v6115
        %v6596 = vmax.f32 %v6122, %v6178
        %v6597 = vmax.f32 %v6129, %v6185
        %v6598 = vmax.f32 %v6136, %v6192
        %v6599 = vmax.f32 %v6143, %v6199
        %v6600 = vmax.f32 %v6150, %v6206
        %v6601 = vmax.f32 %v6157, %v6213
        %v6602 = vmax.f32 %v6164, %v6220
        %v6603 = vmax.f32 %v6171, %v6227
        %v6604 = vmax.f32 %v6234, %v6290
        %v6605 = vmax.f32 %v6241, %v6297
        %v6606 = vmax.f32 %v6248, %v6304
        %v6607 = vmax.f32 %v6255, %v6311
        %v6608 = vmax.f32 %v6262, %v6318
        %v6609 = vmax.f32 %v6269, %v6325
        %v6610 = vmax.f32 %v6276, %v6332
        %v6611 = vmax.f32 %v6283, %v6339
        %v6612 = vmax.f32 %v6346, %v6402
        %v6613 = vmax.f32 %v6353, %v6409
        %v6614 = vmax.f32 %v6360, %v6416
        %v6615 = vmax.f32 %v6367, %v6423
        %v6616 = vmax.f32 %v6374, %v6430
        %v6617 = vmax.f32 %v6381, %v6437
        %v6618 = vmax.f32 %v6388, %v6444
        %v6619 = vmax.f32 %v6395, %v6451
        %v6620 = vmax.f32 %v6458, %v6514
        %v6621 = vmax.f32 %v6465, %v6521
        %v6622 = vmax.f32 %v6472, %v6528
        %v6623 = vmax.f32 %v6479, %v6535
        %v6624 = vmax.f32 %v6486, %v6542
        %v6625 = vmax.f32 %v6493, %v6549
        %v6626 = vmax.f32 %v6500, %v6556
        %v6627 = vmax.f32 %v6507, %v6563
        %vm6628 = vcmask 261120
        %6629 = vst.msk [vmem:[#allocation4] sm:$0xff] %vm6628, 0.0
        %vm6630 = vcmask 257024
        %6631 = vst.msk [vmem:[#allocation4 + $0x8] sm:$0xf] %vm6630, 0.0
        %6632 = vst.msk [vmem:[#allocation4 + $0x10] sm:$0xff] %vm6628, 0.0
        %6633 = vst.msk [vmem:[#allocation4 + $0x18] sm:$0xf] %vm6630, 0.0
        %6634 = vst.msk [vmem:[#allocation4 + $0x20] sm:$0xff] %vm6628, 0.0
        %6635 = vst.msk [vmem:[#allocation4 + $0x28] sm:$0xf] %vm6630, 0.0
        %6636 = vst.msk [vmem:[#allocation4 + $0x30] sm:$0xff] %vm6628, 0.0
        %6637 = vst.msk [vmem:[#allocation4 + $0x38] sm:$0xf] %vm6630, 0.0
        %6638 = vst.msk [vmem:[#allocation4 + $0x40] sm:$0xff] %vm6628, 0.0
        %6639 = vst.msk [vmem:[#allocation4 + $0x48] sm:$0xf] %vm6630, 0.0
        %6640 = vst.msk [vmem:[#allocation4 + $0x50] sm:$0xff] %vm6628, 0.0
        %6641 = vst.msk [vmem:[#allocation4 + $0x58] sm:$0xf] %vm6630, 0.0
        %6642 = vst.msk [vmem:[#allocation4 + $0x60] sm:$0xff] %vm6628, 0.0
        %6643 = vst.msk [vmem:[#allocation4 + $0x68] sm:$0xf] %vm6630, 0.0
        %6644 = vst.msk [vmem:[#allocation4 + $0x70] sm:$0xff] %vm6628, 0.0
        %6645 = vst.msk [vmem:[#allocation4 + $0x78] sm:$0xf] %vm6630, 0.0
        %6646 = vst.msk [vmem:[#allocation4 + $0x80] sm:$0xff] %vm6628, 0.0
        %6647 = vst.msk [vmem:[#allocation4 + $0x88] sm:$0xf] %vm6630, 0.0
        %6648 = vst.msk [vmem:[#allocation4 + $0x90] sm:$0xff] %vm6628, 0.0
        %6649 = vst.msk [vmem:[#allocation4 + $0x98] sm:$0xf] %vm6630, 0.0
        %6650 = vst.msk [vmem:[#allocation4 + $0xa0] sm:$0xff] %vm6628, 0.0
        %6651 = vst.msk [vmem:[#allocation4 + $0xa8] sm:$0xf] %vm6630, 0.0
        %6652 = vst.msk [vmem:[#allocation4 + $0xb0] sm:$0xff] %vm6628, 0.0
        %6653 = vst.msk [vmem:[#allocation4 + $0xb8] sm:$0xf] %vm6630, 0.0
        %vm6718 = vcmask 1041409
        %v6719 = vsel %vm6718, %v6565, %v6564
        %vm6720 = vcmask 1042434
        %v6721 = vsel %vm6720, %v6566, %v6719
        %vm6722 = vcmask 1043459
        %v6723 = vsel %vm6722, %v6567, %v6721
        %vm6724 = vcmask 1044484
        %v6725 = vsel %vm6724, %v6568, %v6723
        %vm6726 = vcmask 1045509
        %v6727 = vsel %vm6726, %v6569, %v6725
        %vm6728 = vcmask 1046534
        %v6729 = vsel %vm6728, %v6570, %v6727
        %vm6730 = vcmask 1047559
        %v6731 = vsel %vm6730, %v6571, %v6729
        %v6732 = vsel %vm6718, %v6573, %v6572
        %v6733 = vsel %vm6720, %v6574, %v6732
        %v6734 = vsel %vm6722, %v6575, %v6733
        %v6735 = vsel %vm6724, %v6576, %v6734
        %v6736 = vsel %vm6726, %v6577, %v6735
        %v6737 = vsel %vm6728, %v6578, %v6736
        %v6738 = vsel %vm6730, %v6579, %v6737
        %v6739 = vsel %vm6718, %v6581, %v6580
        %v6740 = vsel %vm6720, %v6582, %v6739
        %v6741 = vsel %vm6722, %v6583, %v6740
        %v6742 = vsel %vm6724, %v6584, %v6741
        %v6743 = vsel %vm6726, %v6585, %v6742
        %v6744 = vsel %vm6728, %v6586, %v6743
        %v6745 = vsel %vm6730, %v6587, %v6744
        %v6746 = vsel %vm6718, %v6589, %v6588
        %v6747 = vsel %vm6720, %v6590, %v6746
        %v6748 = vsel %vm6722, %v6591, %v6747
        %v6749 = vsel %vm6724, %v6592, %v6748
        %v6750 = vsel %vm6726, %v6593, %v6749
        %v6751 = vsel %vm6728, %v6594, %v6750
        %v6752 = vsel %vm6730, %v6595, %v6751
        %v6753 = vsel %vm6718, %v6597, %v6596
        %v6754 = vsel %vm6720, %v6598, %v6753
        %v6755 = vsel %vm6722, %v6599, %v6754
        %v6756 = vsel %vm6724, %v6600, %v6755
        %v6757 = vsel %vm6726, %v6601, %v6756
        %v6758 = vsel %vm6728, %v6602, %v6757
        %v6759 = vsel %vm6730, %v6603, %v6758
        %v6760 = vsel %vm6718, %v6605, %v6604
        %v6761 = vsel %vm6720, %v6606, %v6760
        %v6762 = vsel %vm6722, %v6607, %v6761
        %v6763 = vsel %vm6724, %v6608, %v6762
        %v6764 = vsel %vm6726, %v6609, %v6763
        %v6765 = vsel %vm6728, %v6610, %v6764
        %v6766 = vsel %vm6730, %v6611, %v6765
        %v6767 = vsel %vm6718, %v6613, %v6612
        %v6768 = vsel %vm6720, %v6614, %v6767
        %v6769 = vsel %vm6722, %v6615, %v6768
        %v6770 = vsel %vm6724, %v6616, %v6769
        %v6771 = vsel %vm6726, %v6617, %v6770
        %v6772 = vsel %vm6728, %v6618, %v6771
        %v6773 = vsel %vm6730, %v6619, %v6772
        %v6774 = vsel %vm6718, %v6621, %v6620
        %v6775 = vsel %vm6720, %v6622, %v6774
        %v6776 = vsel %vm6722, %v6623, %v6775
        %v6777 = vsel %vm6724, %v6624, %v6776
        %v6778 = vsel %vm6726, %v6625, %v6777
        %v6779 = vsel %vm6728, %v6626, %v6778
        %v6780 = vsel %vm6730, %v6627, %v6779
        %s6789 = scalar_lea.vmem [#allocation4], 32
        %6790 = vst.msk [vmem:[%s6789 + $0x2] sm:$0xff] %vm6628, %v6731
        %6791 = vst.msk [vmem:[%s6789 + $0x12] sm:$0xff] %vm6628, %v6738
        %6792 = vst.msk [vmem:[%s6789 + $0x22] sm:$0xff] %vm6628, %v6745
        %6793 = vst.msk [vmem:[%s6789 + $0x32] sm:$0xff] %vm6628, %v6752
        %6794 = vst.msk [vmem:[%s6789 + $0x42] sm:$0xff] %vm6628, %v6759
        %6795 = vst.msk [vmem:[%s6789 + $0x52] sm:$0xff] %vm6628, %v6766
        %6796 = vst.msk [vmem:[%s6789 + $0x62] sm:$0xff] %vm6628, %v6773
        %6797 = vst.msk [vmem:[%s6789 + $0x72] sm:$0xff] %vm6628, %v6780
        %v6798 = vld [vmem:[#allocation4] sm:$0xff]
        %v6799 = vld [vmem:[#allocation4 + $0x10] sm:$0xff]
        %v6800 = vld [vmem:[#allocation4 + $0x20] sm:$0xff]
        %v6801 = vld [vmem:[#allocation4 + $0x30] sm:$0xff]
        %v6802 = vld [vmem:[#allocation4 + $0x40] sm:$0xff]
        %v6803 = vld [vmem:[#allocation4 + $0x50] sm:$0xff]
        %v6804 = vld [vmem:[#allocation4 + $0x60] sm:$0xff]
        %v6805 = vld [vmem:[#allocation4 + $0x70] sm:$0xff]
        %6806 = vst.msk [vmem:[#allocation5] sm:$0xff] %vm6628, %v6798
        %6807 = vst.msk [vmem:[#allocation5 + $0x38] sm:$0xff] %vm6628, %v6799
        %6808 = vst.msk [vmem:[#allocation5 + $0x70] sm:$0xff] %vm6628, %v6800
        %6809 = vst.msk [vmem:[#allocation5 + $0xa8] sm:$0xff] %vm6628, %v6801
        %6810 = vst.msk [vmem:[#allocation5 + $0xe0] sm:$0xff] %vm6628, %v6802
        %6811 = vst.msk [vmem:[#allocation5 + $0x118] sm:$0xff] %vm6628, %v6803
        %6812 = vst.msk [vmem:[#allocation5 + $0x150] sm:$0xff] %vm6628, %v6804
        %6813 = vst.msk [vmem:[#allocation5 + $0x188] sm:$0xff] %vm6628, %v6805
        %v6814 = vld [vmem:[#allocation4 + $0x1] sm:$0xff]
        %v6815 = vld [vmem:[#allocation4 + $0x11] sm:$0xff]
        %v6816 = vld [vmem:[#allocation4 + $0x21] sm:$0xff]
        %v6817 = vld [vmem:[#allocation4 + $0x31] sm:$0xff]
        %v6818 = vld [vmem:[#allocation4 + $0x41] sm:$0xff]
        %v6819 = vld [vmem:[#allocation4 + $0x51] sm:$0xff]
        %v6820 = vld [vmem:[#allocation4 + $0x61] sm:$0xff]
        %v6821 = vld [vmem:[#allocation4 + $0x71] sm:$0xff]
        %6830 = vrot.lane.b32.xlu0 %v6814, 32
        %v6831 = vpop.permute.xlu0 %6830
        %6832 = vrot.lane.b32.xlu0 %v6815, 32
        %v6833 = vpop.permute.xlu0 %6832
        %6834 = vrot.lane.b32.xlu0 %v6816, 32
        %v6835 = vpop.permute.xlu0 %6834
        %6836 = vrot.lane.b32.xlu0 %v6817, 32
        %v6837 = vpop.permute.xlu0 %6836
        %6838 = vrot.lane.b32.xlu0 %v6818, 32
        %v6839 = vpop.permute.xlu0 %6838
        %6840 = vrot.lane.b32.xlu0 %v6819, 32
        %v6841 = vpop.permute.xlu0 %6840
        %6842 = vrot.lane.b32.xlu0 %v6820, 32
        %v6843 = vpop.permute.xlu0 %6842
        %6844 = vrot.lane.b32.xlu0 %v6821, 32
        %v6845 = vpop.permute.xlu0 %6844
        %vm6854 = vcmask 523520
        %6855 = vst.msk [vmem:[#allocation5] sm:$0xff] %vm6854, %v6831
        %6856 = vst.msk [vmem:[#allocation5 + $0x38] sm:$0xff] %vm6854, %v6833
        %6857 = vst.msk [vmem:[#allocation5 + $0x70] sm:$0xff] %vm6854, %v6835
        %6858 = vst.msk [vmem:[#allocation5 + $0xa8] sm:$0xff] %vm6854, %v6837
        %6859 = vst.msk [vmem:[#allocation5 + $0xe0] sm:$0xff] %vm6854, %v6839
        %6860 = vst.msk [vmem:[#allocation5 + $0x118] sm:$0xff] %vm6854, %v6841
        %6861 = vst.msk [vmem:[#allocation5 + $0x150] sm:$0xff] %vm6854, %v6843
        %6862 = vst.msk [vmem:[#allocation5 + $0x188] sm:$0xff] %vm6854, %v6845
        %v6863 = vld [vmem:[#allocation4 + $0x2] sm:$0xff]
        %v6864 = vld [vmem:[#allocation4 + $0x12] sm:$0xff]
        %v6865 = vld [vmem:[#allocation4 + $0x22] sm:$0xff]
        %v6866 = vld [vmem:[#allocation4 + $0x32] sm:$0xff]
        %v6867 = vld [vmem:[#allocation4 + $0x42] sm:$0xff]
        %v6868 = vld [vmem:[#allocation4 + $0x52] sm:$0xff]
        %v6869 = vld [vmem:[#allocation4 + $0x62] sm:$0xff]
        %v6870 = vld [vmem:[#allocation4 + $0x72] sm:$0xff]
        %6879 = vrot.lane.b32.xlu0 %v6863, 64
        %v6880 = vpop.permute.xlu0 %6879
        %6881 = vrot.lane.b32.xlu0 %v6864, 64
        %v6882 = vpop.permute.xlu0 %6881
        %6883 = vrot.lane.b32.xlu0 %v6865, 64
        %v6884 = vpop.permute.xlu0 %6883
        %6885 = vrot.lane.b32.xlu0 %v6866, 64
        %v6886 = vpop.permute.xlu0 %6885
        %6887 = vrot.lane.b32.xlu0 %v6867, 64
        %v6888 = vpop.permute.xlu0 %6887
        %6889 = vrot.lane.b32.xlu0 %v6868, 64
        %v6890 = vpop.permute.xlu0 %6889
        %6891 = vrot.lane.b32.xlu0 %v6869, 64
        %v6892 = vpop.permute.xlu0 %6891
        %6893 = vrot.lane.b32.xlu0 %v6870, 64
        %v6894 = vpop.permute.xlu0 %6893
        %vm6903 = vcmask 785920
        %6904 = vst.msk [vmem:[#allocation5] sm:$0xff] %vm6903, %v6880
        %6905 = vst.msk [vmem:[#allocation5 + $0x38] sm:$0xff] %vm6903, %v6882
        %6906 = vst.msk [vmem:[#allocation5 + $0x70] sm:$0xff] %vm6903, %v6884
        %6907 = vst.msk [vmem:[#allocation5 + $0xa8] sm:$0xff] %vm6903, %v6886
        %6908 = vst.msk [vmem:[#allocation5 + $0xe0] sm:$0xff] %vm6903, %v6888
        %6909 = vst.msk [vmem:[#allocation5 + $0x118] sm:$0xff] %vm6903, %v6890
        %6910 = vst.msk [vmem:[#allocation5 + $0x150] sm:$0xff] %vm6903, %v6892
        %6911 = vst.msk [vmem:[#allocation5 + $0x188] sm:$0xff] %vm6903, %v6894
        %v6912 = vld [vmem:[#allocation4 + $0x3] sm:$0xff]
        %v6913 = vld [vmem:[#allocation4 + $0x13] sm:$0xff]
        %v6914 = vld [vmem:[#allocation4 + $0x23] sm:$0xff]
        %v6915 = vld [vmem:[#allocation4 + $0x33] sm:$0xff]
        %v6916 = vld [vmem:[#allocation4 + $0x43] sm:$0xff]
        %v6917 = vld [vmem:[#allocation4 + $0x53] sm:$0xff]
        %v6918 = vld [vmem:[#allocation4 + $0x63] sm:$0xff]
        %v6919 = vld [vmem:[#allocation4 + $0x73] sm:$0xff]
        %6928 = vrot.lane.b32.xlu0 %v6912, 96
        %v6929 = vpop.permute.xlu0 %6928
        %6930 = vrot.lane.b32.xlu0 %v6913, 96
        %v6931 = vpop.permute.xlu0 %6930
        %6932 = vrot.lane.b32.xlu0 %v6914, 96
        %v6933 = vpop.permute.xlu0 %6932
        %6934 = vrot.lane.b32.xlu0 %v6915, 96
        %v6935 = vpop.permute.xlu0 %6934
        %6936 = vrot.lane.b32.xlu0 %v6916, 96
        %v6937 = vpop.permute.xlu0 %6936
        %6938 = vrot.lane.b32.xlu0 %v6917, 96
        %v6939 = vpop.permute.xlu0 %6938
        %6940 = vrot.lane.b32.xlu0 %v6918, 96
        %v6941 = vpop.permute.xlu0 %6940
        %6942 = vrot.lane.b32.xlu0 %v6919, 96
        %v6943 = vpop.permute.xlu0 %6942
        %vm6952 = vcmask 1048320
        %6953 = vst.msk [vmem:[#allocation5] sm:$0xff] %vm6952, %v6929
        %6954 = vst.msk [vmem:[#allocation5 + $0x38] sm:$0xff] %vm6952, %v6931
        %6955 = vst.msk [vmem:[#allocation5 + $0x70] sm:$0xff] %vm6952, %v6933
        %6956 = vst.msk [vmem:[#allocation5 + $0xa8] sm:$0xff] %vm6952, %v6935
        %6957 = vst.msk [vmem:[#allocation5 + $0xe0] sm:$0xff] %vm6952, %v6937
        %6958 = vst.msk [vmem:[#allocation5 + $0x118] sm:$0xff] %vm6952, %v6939
        %6959 = vst.msk [vmem:[#allocation5 + $0x150] sm:$0xff] %vm6952, %v6941
        %6960 = vst.msk [vmem:[#allocation5 + $0x188] sm:$0xff] %vm6952, %v6943
        %v6961 = vld [vmem:[#allocation4 + $0x4] sm:$0xff]
        %v6962 = vld [vmem:[#allocation4 + $0x14] sm:$0xff]
        %v6963 = vld [vmem:[#allocation4 + $0x24] sm:$0xff]
        %v6964 = vld [vmem:[#allocation4 + $0x34] sm:$0xff]
        %v6965 = vld [vmem:[#allocation4 + $0x44] sm:$0xff]
        %v6966 = vld [vmem:[#allocation4 + $0x54] sm:$0xff]
        %v6967 = vld [vmem:[#allocation4 + $0x64] sm:$0xff]
        %v6968 = vld [vmem:[#allocation4 + $0x74] sm:$0xff]
        %6969 = vst.msk [vmem:[#allocation5 + $0x8] sm:$0xff] %vm6628, %v6961
        %6970 = vst.msk [vmem:[#allocation5 + $0x40] sm:$0xff] %vm6628, %v6962
        %6971 = vst.msk [vmem:[#allocation5 + $0x78] sm:$0xff] %vm6628, %v6963
        %6972 = vst.msk [vmem:[#allocation5 + $0xb0] sm:$0xff] %vm6628, %v6964
        %6973 = vst.msk [vmem:[#allocation5 + $0xe8] sm:$0xff] %vm6628, %v6965
        %6974 = vst.msk [vmem:[#allocation5 + $0x120] sm:$0xff] %vm6628, %v6966
        %6975 = vst.msk [vmem:[#allocation5 + $0x158] sm:$0xff] %vm6628, %v6967
        %6976 = vst.msk [vmem:[#allocation5 + $0x190] sm:$0xff] %vm6628, %v6968
        %s6977 = scalar_lea.vmem [#allocation4], 16
        %v6978 = vld [vmem:[%s6977] sm:$0xff]
        %v6979 = vld [vmem:[%s6977 + $0x10] sm:$0xff]
        %v6980 = vld [vmem:[%s6977 + $0x20] sm:$0xff]
        %v6981 = vld [vmem:[%s6977 + $0x30] sm:$0xff]
        %v6982 = vld [vmem:[%s6977 + $0x40] sm:$0xff]
        %v6983 = vld [vmem:[%s6977 + $0x50] sm:$0xff]
        %v6984 = vld [vmem:[%s6977 + $0x60] sm:$0xff]
        %v6985 = vld [vmem:[%s6977 + $0x70] sm:$0xff]
        %6994 = vrot.lane.b32.xlu0 %v6978, 32
        %v6995 = vpop.permute.xlu0 %6994
        %6996 = vrot.lane.b32.xlu0 %v6979, 32
        %v6997 = vpop.permute.xlu0 %6996
        %6998 = vrot.lane.b32.xlu0 %v6980, 32
        %v6999 = vpop.permute.xlu0 %6998
        %7000 = vrot.lane.b32.xlu0 %v6981, 32
        %v7001 = vpop.permute.xlu0 %7000
        %7002 = vrot.lane.b32.xlu0 %v6982, 32
        %v7003 = vpop.permute.xlu0 %7002
        %7004 = vrot.lane.b32.xlu0 %v6983, 32
        %v7005 = vpop.permute.xlu0 %7004
        %7006 = vrot.lane.b32.xlu0 %v6984, 32
        %v7007 = vpop.permute.xlu0 %7006
        %7008 = vrot.lane.b32.xlu0 %v6985, 32
        %v7009 = vpop.permute.xlu0 %7008
        %7018 = vst.msk [vmem:[#allocation5 + $0x8] sm:$0xff] %vm6854, %v6995
        %7019 = vst.msk [vmem:[#allocation5 + $0x40] sm:$0xff] %vm6854, %v6997
        %7020 = vst.msk [vmem:[#allocation5 + $0x78] sm:$0xff] %vm6854, %v6999
        %7021 = vst.msk [vmem:[#allocation5 + $0xb0] sm:$0xff] %vm6854, %v7001
        %7022 = vst.msk [vmem:[#allocation5 + $0xe8] sm:$0xff] %vm6854, %v7003
        %7023 = vst.msk [vmem:[#allocation5 + $0x120] sm:$0xff] %vm6854, %v7005
        %7024 = vst.msk [vmem:[#allocation5 + $0x158] sm:$0xff] %vm6854, %v7007
        %7025 = vst.msk [vmem:[#allocation5 + $0x190] sm:$0xff] %vm6854, %v7009
        %v7026 = vld [vmem:[%s6977 + $0x1] sm:$0xff]
        %v7027 = vld [vmem:[%s6977 + $0x11] sm:$0xff]
        %v7028 = vld [vmem:[%s6977 + $0x21] sm:$0xff]
        %v7029 = vld [vmem:[%s6977 + $0x31] sm:$0xff]
        %v7030 = vld [vmem:[%s6977 + $0x41] sm:$0xff]
        %v7031 = vld [vmem:[%s6977 + $0x51] sm:$0xff]
        %v7032 = vld [vmem:[%s6977 + $0x61] sm:$0xff]
        %v7033 = vld [vmem:[%s6977 + $0x71] sm:$0xff]
        %7042 = vrot.lane.b32.xlu0 %v7026, 64
        %v7043 = vpop.permute.xlu0 %7042
        %7044 = vrot.lane.b32.xlu0 %v7027, 64
        %v7045 = vpop.permute.xlu0 %7044
        %7046 = vrot.lane.b32.xlu0 %v7028, 64
        %v7047 = vpop.permute.xlu0 %7046
        %7048 = vrot.lane.b32.xlu0 %v7029, 64
        %v7049 = vpop.permute.xlu0 %7048
        %7050 = vrot.lane.b32.xlu0 %v7030, 64
        %v7051 = vpop.permute.xlu0 %7050
        %7052 = vrot.lane.b32.xlu0 %v7031, 64
        %v7053 = vpop.permute.xlu0 %7052
        %7054 = vrot.lane.b32.xlu0 %v7032, 64
        %v7055 = vpop.permute.xlu0 %7054
        %7056 = vrot.lane.b32.xlu0 %v7033, 64
        %v7057 = vpop.permute.xlu0 %7056
        %7066 = vst.msk [vmem:[#allocation5 + $0x8] sm:$0xff] %vm6903, %v7043
        %7067 = vst.msk [vmem:[#allocation5 + $0x40] sm:$0xff] %vm6903, %v7045
        %7068 = vst.msk [vmem:[#allocation5 + $0x78] sm:$0xff] %vm6903, %v7047
        %7069 = vst.msk [vmem:[#allocation5 + $0xb0] sm:$0xff] %vm6903, %v7049
        %7070 = vst.msk [vmem:[#allocation5 + $0xe8] sm:$0xff] %vm6903, %v7051
        %7071 = vst.msk [vmem:[#allocation5 + $0x120] sm:$0xff] %vm6903, %v7053
        %7072 = vst.msk [vmem:[#allocation5 + $0x158] sm:$0xff] %vm6903, %v7055
        %7073 = vst.msk [vmem:[#allocation5 + $0x190] sm:$0xff] %vm6903, %v7057
        %v7074 = vld [vmem:[%s6977 + $0x2] sm:$0xff]
        %v7075 = vld [vmem:[%s6977 + $0x12] sm:$0xff]
        %v7076 = vld [vmem:[%s6977 + $0x22] sm:$0xff]
        %v7077 = vld [vmem:[%s6977 + $0x32] sm:$0xff]
        %v7078 = vld [vmem:[%s6977 + $0x42] sm:$0xff]
        %v7079 = vld [vmem:[%s6977 + $0x52] sm:$0xff]
        %v7080 = vld [vmem:[%s6977 + $0x62] sm:$0xff]
        %v7081 = vld [vmem:[%s6977 + $0x72] sm:$0xff]
        %7090 = vrot.lane.b32.xlu0 %v7074, 96
        %v7091 = vpop.permute.xlu0 %7090
        %7092 = vrot.lane.b32.xlu0 %v7075, 96
        %v7093 = vpop.permute.xlu0 %7092
        %7094 = vrot.lane.b32.xlu0 %v7076, 96
        %v7095 = vpop.permute.xlu0 %7094
        %7096 = vrot.lane.b32.xlu0 %v7077, 96
        %v7097 = vpop.permute.xlu0 %7096
        %7098 = vrot.lane.b32.xlu0 %v7078, 96
        %v7099 = vpop.permute.xlu0 %7098
        %7100 = vrot.lane.b32.xlu0 %v7079, 96
        %v7101 = vpop.permute.xlu0 %7100
        %7102 = vrot.lane.b32.xlu0 %v7080, 96
        %v7103 = vpop.permute.xlu0 %7102
        %7104 = vrot.lane.b32.xlu0 %v7081, 96
        %v7105 = vpop.permute.xlu0 %7104
        %7114 = vst.msk [vmem:[#allocation5 + $0x8] sm:$0xff] %vm6952, %v7091
        %7115 = vst.msk [vmem:[#allocation5 + $0x40] sm:$0xff] %vm6952, %v7093
        %7116 = vst.msk [vmem:[#allocation5 + $0x78] sm:$0xff] %vm6952, %v7095
        %7117 = vst.msk [vmem:[#allocation5 + $0xb0] sm:$0xff] %vm6952, %v7097
        %7118 = vst.msk [vmem:[#allocation5 + $0xe8] sm:$0xff] %vm6952, %v7099
        %7119 = vst.msk [vmem:[#allocation5 + $0x120] sm:$0xff] %vm6952, %v7101
        %7120 = vst.msk [vmem:[#allocation5 + $0x158] sm:$0xff] %vm6952, %v7103
        %7121 = vst.msk [vmem:[#allocation5 + $0x190] sm:$0xff] %vm6952, %v7105
        %v7122 = vld [vmem:[%s6977 + $0x3] sm:$0xff]
        %v7123 = vld [vmem:[%s6977 + $0x13] sm:$0xff]
        %v7124 = vld [vmem:[%s6977 + $0x23] sm:$0xff]
        %v7125 = vld [vmem:[%s6977 + $0x33] sm:$0xff]
        %v7126 = vld [vmem:[%s6977 + $0x43] sm:$0xff]
        %v7127 = vld [vmem:[%s6977 + $0x53] sm:$0xff]
        %v7128 = vld [vmem:[%s6977 + $0x63] sm:$0xff]
        %v7129 = vld [vmem:[%s6977 + $0x73] sm:$0xff]
        %7130 = vst.msk [vmem:[#allocation5 + $0x10] sm:$0xff] %vm6628, %v7122
        %7131 = vst.msk [vmem:[#allocation5 + $0x48] sm:$0xff] %vm6628, %v7123
        %7132 = vst.msk [vmem:[#allocation5 + $0x80] sm:$0xff] %vm6628, %v7124
        %7133 = vst.msk [vmem:[#allocation5 + $0xb8] sm:$0xff] %vm6628, %v7125
        %7134 = vst.msk [vmem:[#allocation5 + $0xf0] sm:$0xff] %vm6628, %v7126
        %7135 = vst.msk [vmem:[#allocation5 + $0x128] sm:$0xff] %vm6628, %v7127
        %7136 = vst.msk [vmem:[#allocation5 + $0x160] sm:$0xff] %vm6628, %v7128
        %7137 = vst.msk [vmem:[#allocation5 + $0x198] sm:$0xff] %vm6628, %v7129
        %v7138 = vld [vmem:[%s6977 + $0x4] sm:$0xff]
        %v7139 = vld [vmem:[%s6977 + $0x14] sm:$0xff]
        %v7140 = vld [vmem:[%s6977 + $0x24] sm:$0xff]
        %v7141 = vld [vmem:[%s6977 + $0x34] sm:$0xff]
        %v7142 = vld [vmem:[%s6977 + $0x44] sm:$0xff]
        %v7143 = vld [vmem:[%s6977 + $0x54] sm:$0xff]
        %v7144 = vld [vmem:[%s6977 + $0x64] sm:$0xff]
        %v7145 = vld [vmem:[%s6977 + $0x74] sm:$0xff]
        %7154 = vrot.lane.b32.xlu0 %v7138, 32
        %v7155 = vpop.permute.xlu0 %7154
        %7156 = vrot.lane.b32.xlu0 %v7139, 32
        %v7157 = vpop.permute.xlu0 %7156
        %7158 = vrot.lane.b32.xlu0 %v7140, 32
        %v7159 = vpop.permute.xlu0 %7158
        %7160 = vrot.lane.b32.xlu0 %v7141, 32
        %v7161 = vpop.permute.xlu0 %7160
        %7162 = vrot.lane.b32.xlu0 %v7142, 32
        %v7163 = vpop.permute.xlu0 %7162
        %7164 = vrot.lane.b32.xlu0 %v7143, 32
        %v7165 = vpop.permute.xlu0 %7164
        %7166 = vrot.lane.b32.xlu0 %v7144, 32
        %v7167 = vpop.permute.xlu0 %7166
        %7168 = vrot.lane.b32.xlu0 %v7145, 32
        %v7169 = vpop.permute.xlu0 %7168
        %7178 = vst.msk [vmem:[#allocation5 + $0x10] sm:$0xff] %vm6854, %v7155
        %7179 = vst.msk [vmem:[#allocation5 + $0x48] sm:$0xff] %vm6854, %v7157
        %7180 = vst.msk [vmem:[#allocation5 + $0x80] sm:$0xff] %vm6854, %v7159
        %7181 = vst.msk [vmem:[#allocation5 + $0xb8] sm:$0xff] %vm6854, %v7161
        %7182 = vst.msk [vmem:[#allocation5 + $0xf0] sm:$0xff] %vm6854, %v7163
        %7183 = vst.msk [vmem:[#allocation5 + $0x128] sm:$0xff] %vm6854, %v7165
        %7184 = vst.msk [vmem:[#allocation5 + $0x160] sm:$0xff] %vm6854, %v7167
        %7185 = vst.msk [vmem:[#allocation5 + $0x198] sm:$0xff] %vm6854, %v7169
        %v7186 = vld [vmem:[%s6789] sm:$0xff]
        %v7187 = vld [vmem:[%s6789 + $0x10] sm:$0xff]
        %v7188 = vld [vmem:[%s6789 + $0x20] sm:$0xff]
        %v7189 = vld [vmem:[%s6789 + $0x30] sm:$0xff]
        %v7190 = vld [vmem:[%s6789 + $0x40] sm:$0xff]
        %v7191 = vld [vmem:[%s6789 + $0x50] sm:$0xff]
        %v7192 = vld [vmem:[%s6789 + $0x60] sm:$0xff]
        %v7193 = vld [vmem:[%s6789 + $0x70] sm:$0xff]
        %7202 = vrot.lane.b32.xlu0 %v7186, 64
        %v7203 = vpop.permute.xlu0 %7202
        %7204 = vrot.lane.b32.xlu0 %v7187, 64
        %v7205 = vpop.permute.xlu0 %7204
        %7206 = vrot.lane.b32.xlu0 %v7188, 64
        %v7207 = vpop.permute.xlu0 %7206
        %7208 = vrot.lane.b32.xlu0 %v7189, 64
        %v7209 = vpop.permute.xlu0 %7208
        %7210 = vrot.lane.b32.xlu0 %v7190, 64
        %v7211 = vpop.permute.xlu0 %7210
        %7212 = vrot.lane.b32.xlu0 %v7191, 64
        %v7213 = vpop.permute.xlu0 %7212
        %7214 = vrot.lane.b32.xlu0 %v7192, 64
        %v7215 = vpop.permute.xlu0 %7214
        %7216 = vrot.lane.b32.xlu0 %v7193, 64
        %v7217 = vpop.permute.xlu0 %7216
        %7226 = vst.msk [vmem:[#allocation5 + $0x10] sm:$0xff] %vm6903, %v7203
        %7227 = vst.msk [vmem:[#allocation5 + $0x48] sm:$0xff] %vm6903, %v7205
        %7228 = vst.msk [vmem:[#allocation5 + $0x80] sm:$0xff] %vm6903, %v7207
        %7229 = vst.msk [vmem:[#allocation5 + $0xb8] sm:$0xff] %vm6903, %v7209
        %7230 = vst.msk [vmem:[#allocation5 + $0xf0] sm:$0xff] %vm6903, %v7211
        %7231 = vst.msk [vmem:[#allocation5 + $0x128] sm:$0xff] %vm6903, %v7213
        %7232 = vst.msk [vmem:[#allocation5 + $0x160] sm:$0xff] %vm6903, %v7215
        %7233 = vst.msk [vmem:[#allocation5 + $0x198] sm:$0xff] %vm6903, %v7217
        %v7234 = vld [vmem:[%s6789 + $0x1] sm:$0xff]
        %v7235 = vld [vmem:[%s6789 + $0x11] sm:$0xff]
        %v7236 = vld [vmem:[%s6789 + $0x21] sm:$0xff]
        %v7237 = vld [vmem:[%s6789 + $0x31] sm:$0xff]
        %v7238 = vld [vmem:[%s6789 + $0x41] sm:$0xff]
        %v7239 = vld [vmem:[%s6789 + $0x51] sm:$0xff]
        %v7240 = vld [vmem:[%s6789 + $0x61] sm:$0xff]
        %v7241 = vld [vmem:[%s6789 + $0x71] sm:$0xff]
        %7250 = vrot.lane.b32.xlu0 %v7234, 96
        %v7251 = vpop.permute.xlu0 %7250
        %7252 = vrot.lane.b32.xlu0 %v7235, 96
        %v7253 = vpop.permute.xlu0 %7252
        %7254 = vrot.lane.b32.xlu0 %v7236, 96
        %v7255 = vpop.permute.xlu0 %7254
        %7256 = vrot.lane.b32.xlu0 %v7237, 96
        %v7257 = vpop.permute.xlu0 %7256
        %7258 = vrot.lane.b32.xlu0 %v7238, 96
        %v7259 = vpop.permute.xlu0 %7258
        %7260 = vrot.lane.b32.xlu0 %v7239, 96
        %v7261 = vpop.permute.xlu0 %7260
        %7262 = vrot.lane.b32.xlu0 %v7240, 96
        %v7263 = vpop.permute.xlu0 %7262
        %7264 = vrot.lane.b32.xlu0 %v7241, 96
        %v7265 = vpop.permute.xlu0 %7264
        %7274 = vst.msk [vmem:[#allocation5 + $0x10] sm:$0xff] %vm6952, %v7251
        %7275 = vst.msk [vmem:[#allocation5 + $0x48] sm:$0xff] %vm6952, %v7253
        %7276 = vst.msk [vmem:[#allocation5 + $0x80] sm:$0xff] %vm6952, %v7255
        %7277 = vst.msk [vmem:[#allocation5 + $0xb8] sm:$0xff] %vm6952, %v7257
        %7278 = vst.msk [vmem:[#allocation5 + $0xf0] sm:$0xff] %vm6952, %v7259
        %7279 = vst.msk [vmem:[#allocation5 + $0x128] sm:$0xff] %vm6952, %v7261
        %7280 = vst.msk [vmem:[#allocation5 + $0x160] sm:$0xff] %vm6952, %v7263
        %7281 = vst.msk [vmem:[#allocation5 + $0x198] sm:$0xff] %vm6952, %v7265
        %v7282 = vld [vmem:[%s6789 + $0x2] sm:$0xff]
        %v7283 = vld [vmem:[%s6789 + $0x12] sm:$0xff]
        %v7284 = vld [vmem:[%s6789 + $0x22] sm:$0xff]
        %v7285 = vld [vmem:[%s6789 + $0x32] sm:$0xff]
        %v7286 = vld [vmem:[%s6789 + $0x42] sm:$0xff]
        %v7287 = vld [vmem:[%s6789 + $0x52] sm:$0xff]
        %v7288 = vld [vmem:[%s6789 + $0x62] sm:$0xff]
        %v7289 = vld [vmem:[%s6789 + $0x72] sm:$0xff]
        %7290 = vst.msk [vmem:[#allocation5 + $0x18] sm:$0xff] %vm6628, %v7282
        %7291 = vst.msk [vmem:[#allocation5 + $0x50] sm:$0xff] %vm6628, %v7283
        %7292 = vst.msk [vmem:[#allocation5 + $0x88] sm:$0xff] %vm6628, %v7284
        %7293 = vst.msk [vmem:[#allocation5 + $0xc0] sm:$0xff] %vm6628, %v7285
        %7294 = vst.msk [vmem:[#allocation5 + $0xf8] sm:$0xff] %vm6628, %v7286
        %7295 = vst.msk [vmem:[#allocation5 + $0x130] sm:$0xff] %vm6628, %v7287
        %7296 = vst.msk [vmem:[#allocation5 + $0x168] sm:$0xff] %vm6628, %v7288
        %7297 = vst.msk [vmem:[#allocation5 + $0x1a0] sm:$0xff] %vm6628, %v7289
        %v7298 = vld [vmem:[%s6789 + $0x3] sm:$0xff]
        %v7299 = vld [vmem:[%s6789 + $0x13] sm:$0xff]
        %v7300 = vld [vmem:[%s6789 + $0x23] sm:$0xff]
        %v7301 = vld [vmem:[%s6789 + $0x33] sm:$0xff]
        %v7302 = vld [vmem:[%s6789 + $0x43] sm:$0xff]
        %v7303 = vld [vmem:[%s6789 + $0x53] sm:$0xff]
        %v7304 = vld [vmem:[%s6789 + $0x63] sm:$0xff]
        %v7305 = vld [vmem:[%s6789 + $0x73] sm:$0xff]
        %7314 = vrot.lane.b32.xlu0 %v7298, 32
        %v7315 = vpop.permute.xlu0 %7314
        %7316 = vrot.lane.b32.xlu0 %v7299, 32
        %v7317 = vpop.permute.xlu0 %7316
        %7318 = vrot.lane.b32.xlu0 %v7300, 32
        %v7319 = vpop.permute.xlu0 %7318
        %7320 = vrot.lane.b32.xlu0 %v7301, 32
        %v7321 = vpop.permute.xlu0 %7320
        %7322 = vrot.lane.b32.xlu0 %v7302, 32
        %v7323 = vpop.permute.xlu0 %7322
        %7324 = vrot.lane.b32.xlu0 %v7303, 32
        %v7325 = vpop.permute.xlu0 %7324
        %7326 = vrot.lane.b32.xlu0 %v7304, 32
        %v7327 = vpop.permute.xlu0 %7326
        %7328 = vrot.lane.b32.xlu0 %v7305, 32
        %v7329 = vpop.permute.xlu0 %7328
        %7338 = vst.msk [vmem:[#allocation5 + $0x18] sm:$0xff] %vm6854, %v7315
        %7339 = vst.msk [vmem:[#allocation5 + $0x50] sm:$0xff] %vm6854, %v7317
        %7340 = vst.msk [vmem:[#allocation5 + $0x88] sm:$0xff] %vm6854, %v7319
        %7341 = vst.msk [vmem:[#allocation5 + $0xc0] sm:$0xff] %vm6854, %v7321
        %7342 = vst.msk [vmem:[#allocation5 + $0xf8] sm:$0xff] %vm6854, %v7323
        %7343 = vst.msk [vmem:[#allocation5 + $0x130] sm:$0xff] %vm6854, %v7325
        %7344 = vst.msk [vmem:[#allocation5 + $0x168] sm:$0xff] %vm6854, %v7327
        %7345 = vst.msk [vmem:[#allocation5 + $0x1a0] sm:$0xff] %vm6854, %v7329
        %v7346 = vld [vmem:[%s6789 + $0x4] sm:$0xff]
        %v7347 = vld [vmem:[%s6789 + $0x14] sm:$0xff]
        %v7348 = vld [vmem:[%s6789 + $0x24] sm:$0xff]
        %v7349 = vld [vmem:[%s6789 + $0x34] sm:$0xff]
        %v7350 = vld [vmem:[%s6789 + $0x44] sm:$0xff]
        %v7351 = vld [vmem:[%s6789 + $0x54] sm:$0xff]
        %v7352 = vld [vmem:[%s6789 + $0x64] sm:$0xff]
        %v7353 = vld [vmem:[%s6789 + $0x74] sm:$0xff]
        %7362 = vrot.lane.b32.xlu0 %v7346, 64
        %v7363 = vpop.permute.xlu0 %7362
        %7364 = vrot.lane.b32.xlu0 %v7347, 64
        %v7365 = vpop.permute.xlu0 %7364
        %7366 = vrot.lane.b32.xlu0 %v7348, 64
        %v7367 = vpop.permute.xlu0 %7366
        %7368 = vrot.lane.b32.xlu0 %v7349, 64
        %v7369 = vpop.permute.xlu0 %7368
        %7370 = vrot.lane.b32.xlu0 %v7350, 64
        %v7371 = vpop.permute.xlu0 %7370
        %7372 = vrot.lane.b32.xlu0 %v7351, 64
        %v7373 = vpop.permute.xlu0 %7372
        %7374 = vrot.lane.b32.xlu0 %v7352, 64
        %v7375 = vpop.permute.xlu0 %7374
        %7376 = vrot.lane.b32.xlu0 %v7353, 64
        %v7377 = vpop.permute.xlu0 %7376
        %7386 = vst.msk [vmem:[#allocation5 + $0x18] sm:$0xff] %vm6903, %v7363
        %7387 = vst.msk [vmem:[#allocation5 + $0x50] sm:$0xff] %vm6903, %v7365
        %7388 = vst.msk [vmem:[#allocation5 + $0x88] sm:$0xff] %vm6903, %v7367
        %7389 = vst.msk [vmem:[#allocation5 + $0xc0] sm:$0xff] %vm6903, %v7369
        %7390 = vst.msk [vmem:[#allocation5 + $0xf8] sm:$0xff] %vm6903, %v7371
        %7391 = vst.msk [vmem:[#allocation5 + $0x130] sm:$0xff] %vm6903, %v7373
        %7392 = vst.msk [vmem:[#allocation5 + $0x168] sm:$0xff] %vm6903, %v7375
        %7393 = vst.msk [vmem:[#allocation5 + $0x1a0] sm:$0xff] %vm6903, %v7377
        %s7394 = scalar_lea.vmem [#allocation4], 48
        %v7395 = vld [vmem:[%s7394] sm:$0xff]
        %v7396 = vld [vmem:[%s7394 + $0x10] sm:$0xff]
        %v7397 = vld [vmem:[%s7394 + $0x20] sm:$0xff]
        %v7398 = vld [vmem:[%s7394 + $0x30] sm:$0xff]
        %v7399 = vld [vmem:[%s7394 + $0x40] sm:$0xff]
        %v7400 = vld [vmem:[%s7394 + $0x50] sm:$0xff]
        %v7401 = vld [vmem:[%s7394 + $0x60] sm:$0xff]
        %v7402 = vld [vmem:[%s7394 + $0x70] sm:$0xff]
        %7411 = vrot.lane.b32.xlu0 %v7395, 96
        %v7412 = vpop.permute.xlu0 %7411
        %7413 = vrot.lane.b32.xlu0 %v7396, 96
        %v7414 = vpop.permute.xlu0 %7413
        %7415 = vrot.lane.b32.xlu0 %v7397, 96
        %v7416 = vpop.permute.xlu0 %7415
        %7417 = vrot.lane.b32.xlu0 %v7398, 96
        %v7418 = vpop.permute.xlu0 %7417
        %7419 = vrot.lane.b32.xlu0 %v7399, 96
        %v7420 = vpop.permute.xlu0 %7419
        %7421 = vrot.lane.b32.xlu0 %v7400, 96
        %v7422 = vpop.permute.xlu0 %7421
        %7423 = vrot.lane.b32.xlu0 %v7401, 96
        %v7424 = vpop.permute.xlu0 %7423
        %7425 = vrot.lane.b32.xlu0 %v7402, 96
        %v7426 = vpop.permute.xlu0 %7425
        %7435 = vst.msk [vmem:[#allocation5 + $0x18] sm:$0xff] %vm6952, %v7412
        %7436 = vst.msk [vmem:[#allocation5 + $0x50] sm:$0xff] %vm6952, %v7414
        %7437 = vst.msk [vmem:[#allocation5 + $0x88] sm:$0xff] %vm6952, %v7416
        %7438 = vst.msk [vmem:[#allocation5 + $0xc0] sm:$0xff] %vm6952, %v7418
        %7439 = vst.msk [vmem:[#allocation5 + $0xf8] sm:$0xff] %vm6952, %v7420
        %7440 = vst.msk [vmem:[#allocation5 + $0x130] sm:$0xff] %vm6952, %v7422
        %7441 = vst.msk [vmem:[#allocation5 + $0x168] sm:$0xff] %vm6952, %v7424
        %7442 = vst.msk [vmem:[#allocation5 + $0x1a0] sm:$0xff] %vm6952, %v7426
        %v7443 = vld [vmem:[%s7394 + $0x1] sm:$0xff]
        %v7444 = vld [vmem:[%s7394 + $0x11] sm:$0xff]
        %v7445 = vld [vmem:[%s7394 + $0x21] sm:$0xff]
        %v7446 = vld [vmem:[%s7394 + $0x31] sm:$0xff]
        %v7447 = vld [vmem:[%s7394 + $0x41] sm:$0xff]
        %v7448 = vld [vmem:[%s7394 + $0x51] sm:$0xff]
        %v7449 = vld [vmem:[%s7394 + $0x61] sm:$0xff]
        %v7450 = vld [vmem:[%s7394 + $0x71] sm:$0xff]
        %7451 = vst.msk [vmem:[#allocation5 + $0x20] sm:$0xff] %vm6628, %v7443
        %7452 = vst.msk [vmem:[#allocation5 + $0x58] sm:$0xff] %vm6628, %v7444
        %7453 = vst.msk [vmem:[#allocation5 + $0x90] sm:$0xff] %vm6628, %v7445
        %7454 = vst.msk [vmem:[#allocation5 + $0xc8] sm:$0xff] %vm6628, %v7446
        %7455 = vst.msk [vmem:[#allocation5 + $0x100] sm:$0xff] %vm6628, %v7447
        %7456 = vst.msk [vmem:[#allocation5 + $0x138] sm:$0xff] %vm6628, %v7448
        %7457 = vst.msk [vmem:[#allocation5 + $0x170] sm:$0xff] %vm6628, %v7449
        %7458 = vst.msk [vmem:[#allocation5 + $0x1a8] sm:$0xff] %vm6628, %v7450
        %v7459 = vld [vmem:[%s7394 + $0x2] sm:$0xff]
        %v7460 = vld [vmem:[%s7394 + $0x12] sm:$0xff]
        %v7461 = vld [vmem:[%s7394 + $0x22] sm:$0xff]
        %v7462 = vld [vmem:[%s7394 + $0x32] sm:$0xff]
        %v7463 = vld [vmem:[%s7394 + $0x42] sm:$0xff]
        %v7464 = vld [vmem:[%s7394 + $0x52] sm:$0xff]
        %v7465 = vld [vmem:[%s7394 + $0x62] sm:$0xff]
        %v7466 = vld [vmem:[%s7394 + $0x72] sm:$0xff]
        %7475 = vrot.lane.b32.xlu0 %v7459, 32
        %v7476 = vpop.permute.xlu0 %7475
        %7477 = vrot.lane.b32.xlu0 %v7460, 32
        %v7478 = vpop.permute.xlu0 %7477
        %7479 = vrot.lane.b32.xlu0 %v7461, 32
        %v7480 = vpop.permute.xlu0 %7479
        %7481 = vrot.lane.b32.xlu0 %v7462, 32
        %v7482 = vpop.permute.xlu0 %7481
        %7483 = vrot.lane.b32.xlu0 %v7463, 32
        %v7484 = vpop.permute.xlu0 %7483
        %7485 = vrot.lane.b32.xlu0 %v7464, 32
        %v7486 = vpop.permute.xlu0 %7485
        %7487 = vrot.lane.b32.xlu0 %v7465, 32
        %v7488 = vpop.permute.xlu0 %7487
        %7489 = vrot.lane.b32.xlu0 %v7466, 32
        %v7490 = vpop.permute.xlu0 %7489
        %7499 = vst.msk [vmem:[#allocation5 + $0x20] sm:$0xff] %vm6854, %v7476
        %7500 = vst.msk [vmem:[#allocation5 + $0x58] sm:$0xff] %vm6854, %v7478
        %7501 = vst.msk [vmem:[#allocation5 + $0x90] sm:$0xff] %vm6854, %v7480
        %7502 = vst.msk [vmem:[#allocation5 + $0xc8] sm:$0xff] %vm6854, %v7482
        %7503 = vst.msk [vmem:[#allocation5 + $0x100] sm:$0xff] %vm6854, %v7484
        %7504 = vst.msk [vmem:[#allocation5 + $0x138] sm:$0xff] %vm6854, %v7486
        %7505 = vst.msk [vmem:[#allocation5 + $0x170] sm:$0xff] %vm6854, %v7488
        %7506 = vst.msk [vmem:[#allocation5 + $0x1a8] sm:$0xff] %vm6854, %v7490
        %v7507 = vld [vmem:[%s7394 + $0x3] sm:$0xff]
        %v7508 = vld [vmem:[%s7394 + $0x13] sm:$0xff]
        %v7509 = vld [vmem:[%s7394 + $0x23] sm:$0xff]
        %v7510 = vld [vmem:[%s7394 + $0x33] sm:$0xff]
        %v7511 = vld [vmem:[%s7394 + $0x43] sm:$0xff]
        %v7512 = vld [vmem:[%s7394 + $0x53] sm:$0xff]
        %v7513 = vld [vmem:[%s7394 + $0x63] sm:$0xff]
        %v7514 = vld [vmem:[%s7394 + $0x73] sm:$0xff]
        %7523 = vrot.lane.b32.xlu0 %v7507, 64
        %v7524 = vpop.permute.xlu0 %7523
        %7525 = vrot.lane.b32.xlu0 %v7508, 64
        %v7526 = vpop.permute.xlu0 %7525
        %7527 = vrot.lane.b32.xlu0 %v7509, 64
        %v7528 = vpop.permute.xlu0 %7527
        %7529 = vrot.lane.b32.xlu0 %v7510, 64
        %v7530 = vpop.permute.xlu0 %7529
        %7531 = vrot.lane.b32.xlu0 %v7511, 64
        %v7532 = vpop.permute.xlu0 %7531
        %7533 = vrot.lane.b32.xlu0 %v7512, 64
        %v7534 = vpop.permute.xlu0 %7533
        %7535 = vrot.lane.b32.xlu0 %v7513, 64
        %v7536 = vpop.permute.xlu0 %7535
        %7537 = vrot.lane.b32.xlu0 %v7514, 64
        %v7538 = vpop.permute.xlu0 %7537
        %7547 = vst.msk [vmem:[#allocation5 + $0x20] sm:$0xff] %vm6903, %v7524
        %7548 = vst.msk [vmem:[#allocation5 + $0x58] sm:$0xff] %vm6903, %v7526
        %7549 = vst.msk [vmem:[#allocation5 + $0x90] sm:$0xff] %vm6903, %v7528
        %7550 = vst.msk [vmem:[#allocation5 + $0xc8] sm:$0xff] %vm6903, %v7530
        %7551 = vst.msk [vmem:[#allocation5 + $0x100] sm:$0xff] %vm6903, %v7532
        %7552 = vst.msk [vmem:[#allocation5 + $0x138] sm:$0xff] %vm6903, %v7534
        %7553 = vst.msk [vmem:[#allocation5 + $0x170] sm:$0xff] %vm6903, %v7536
        %7554 = vst.msk [vmem:[#allocation5 + $0x1a8] sm:$0xff] %vm6903, %v7538
        %v7555 = vld [vmem:[%s7394 + $0x4] sm:$0xff]
        %v7556 = vld [vmem:[%s7394 + $0x14] sm:$0xff]
        %v7557 = vld [vmem:[%s7394 + $0x24] sm:$0xff]
        %v7558 = vld [vmem:[%s7394 + $0x34] sm:$0xff]
        %v7559 = vld [vmem:[%s7394 + $0x44] sm:$0xff]
        %v7560 = vld [vmem:[%s7394 + $0x54] sm:$0xff]
        %v7561 = vld [vmem:[%s7394 + $0x64] sm:$0xff]
        %v7562 = vld [vmem:[%s7394 + $0x74] sm:$0xff]
        %7571 = vrot.lane.b32.xlu0 %v7555, 96
        %v7572 = vpop.permute.xlu0 %7571
        %7573 = vrot.lane.b32.xlu0 %v7556, 96
        %v7574 = vpop.permute.xlu0 %7573
        %7575 = vrot.lane.b32.xlu0 %v7557, 96
        %v7576 = vpop.permute.xlu0 %7575
        %7577 = vrot.lane.b32.xlu0 %v7558, 96
        %v7578 = vpop.permute.xlu0 %7577
        %7579 = vrot.lane.b32.xlu0 %v7559, 96
        %v7580 = vpop.permute.xlu0 %7579
        %7581 = vrot.lane.b32.xlu0 %v7560, 96
        %v7582 = vpop.permute.xlu0 %7581
        %7583 = vrot.lane.b32.xlu0 %v7561, 96
        %v7584 = vpop.permute.xlu0 %7583
        %7585 = vrot.lane.b32.xlu0 %v7562, 96
        %v7586 = vpop.permute.xlu0 %7585
        %7595 = vst.msk [vmem:[#allocation5 + $0x20] sm:$0xff] %vm6952, %v7572
        %7596 = vst.msk [vmem:[#allocation5 + $0x58] sm:$0xff] %vm6952, %v7574
        %7597 = vst.msk [vmem:[#allocation5 + $0x90] sm:$0xff] %vm6952, %v7576
        %7598 = vst.msk [vmem:[#allocation5 + $0xc8] sm:$0xff] %vm6952, %v7578
        %7599 = vst.msk [vmem:[#allocation5 + $0x100] sm:$0xff] %vm6952, %v7580
        %7600 = vst.msk [vmem:[#allocation5 + $0x138] sm:$0xff] %vm6952, %v7582
        %7601 = vst.msk [vmem:[#allocation5 + $0x170] sm:$0xff] %vm6952, %v7584
        %7602 = vst.msk [vmem:[#allocation5 + $0x1a8] sm:$0xff] %vm6952, %v7586
        %s7603 = scalar_lea.vmem [#allocation4], 64
        %v7604 = vld [vmem:[%s7603] sm:$0xff]
        %v7605 = vld [vmem:[%s7603 + $0x10] sm:$0xff]
        %v7606 = vld [vmem:[%s7603 + $0x20] sm:$0xff]
        %v7607 = vld [vmem:[%s7603 + $0x30] sm:$0xff]
        %v7608 = vld [vmem:[%s7603 + $0x40] sm:$0xff]
        %v7609 = vld [vmem:[%s7603 + $0x50] sm:$0xff]
        %v7610 = vld [vmem:[%s7603 + $0x60] sm:$0xff]
        %v7611 = vld [vmem:[%s7603 + $0x70] sm:$0xff]
        %7612 = vst.msk [vmem:[#allocation5 + $0x28] sm:$0xff] %vm6628, %v7604
        %7613 = vst.msk [vmem:[#allocation5 + $0x60] sm:$0xff] %vm6628, %v7605
        %7614 = vst.msk [vmem:[#allocation5 + $0x98] sm:$0xff] %vm6628, %v7606
        %7615 = vst.msk [vmem:[#allocation5 + $0xd0] sm:$0xff] %vm6628, %v7607
        %7616 = vst.msk [vmem:[#allocation5 + $0x108] sm:$0xff] %vm6628, %v7608
        %7617 = vst.msk [vmem:[#allocation5 + $0x140] sm:$0xff] %vm6628, %v7609
        %7618 = vst.msk [vmem:[#allocation5 + $0x178] sm:$0xff] %vm6628, %v7610
        %7619 = vst.msk [vmem:[#allocation5 + $0x1b0] sm:$0xff] %vm6628, %v7611
        %v7620 = vld [vmem:[%s7603 + $0x1] sm:$0xff]
        %v7621 = vld [vmem:[%s7603 + $0x11] sm:$0xff]
        %v7622 = vld [vmem:[%s7603 + $0x21] sm:$0xff]
        %v7623 = vld [vmem:[%s7603 + $0x31] sm:$0xff]
        %v7624 = vld [vmem:[%s7603 + $0x41] sm:$0xff]
        %v7625 = vld [vmem:[%s7603 + $0x51] sm:$0xff]
        %v7626 = vld [vmem:[%s7603 + $0x61] sm:$0xff]
        %v7627 = vld [vmem:[%s7603 + $0x71] sm:$0xff]
        %7636 = vrot.lane.b32.xlu0 %v7620, 32
        %v7637 = vpop.permute.xlu0 %7636
        %7638 = vrot.lane.b32.xlu0 %v7621, 32
        %v7639 = vpop.permute.xlu0 %7638
        %7640 = vrot.lane.b32.xlu0 %v7622, 32
        %v7641 = vpop.permute.xlu0 %7640
        %7642 = vrot.lane.b32.xlu0 %v7623, 32
        %v7643 = vpop.permute.xlu0 %7642
        %7644 = vrot.lane.b32.xlu0 %v7624, 32
        %v7645 = vpop.permute.xlu0 %7644
        %7646 = vrot.lane.b32.xlu0 %v7625, 32
        %v7647 = vpop.permute.xlu0 %7646
        %7648 = vrot.lane.b32.xlu0 %v7626, 32
        %v7649 = vpop.permute.xlu0 %7648
        %7650 = vrot.lane.b32.xlu0 %v7627, 32
        %v7651 = vpop.permute.xlu0 %7650
        %7660 = vst.msk [vmem:[#allocation5 + $0x28] sm:$0xff] %vm6854, %v7637
        %7661 = vst.msk [vmem:[#allocation5 + $0x60] sm:$0xff] %vm6854, %v7639
        %7662 = vst.msk [vmem:[#allocation5 + $0x98] sm:$0xff] %vm6854, %v7641
        %7663 = vst.msk [vmem:[#allocation5 + $0xd0] sm:$0xff] %vm6854, %v7643
        %7664 = vst.msk [vmem:[#allocation5 + $0x108] sm:$0xff] %vm6854, %v7645
        %7665 = vst.msk [vmem:[#allocation5 + $0x140] sm:$0xff] %vm6854, %v7647
        %7666 = vst.msk [vmem:[#allocation5 + $0x178] sm:$0xff] %vm6854, %v7649
        %7667 = vst.msk [vmem:[#allocation5 + $0x1b0] sm:$0xff] %vm6854, %v7651
        %v7668 = vld [vmem:[%s7603 + $0x2] sm:$0xff]
        %v7669 = vld [vmem:[%s7603 + $0x12] sm:$0xff]
        %v7670 = vld [vmem:[%s7603 + $0x22] sm:$0xff]
        %v7671 = vld [vmem:[%s7603 + $0x32] sm:$0xff]
        %v7672 = vld [vmem:[%s7603 + $0x42] sm:$0xff]
        %v7673 = vld [vmem:[%s7603 + $0x52] sm:$0xff]
        %v7674 = vld [vmem:[%s7603 + $0x62] sm:$0xff]
        %v7675 = vld [vmem:[%s7603 + $0x72] sm:$0xff]
        %7684 = vrot.lane.b32.xlu0 %v7668, 64
        %v7685 = vpop.permute.xlu0 %7684
        %7686 = vrot.lane.b32.xlu0 %v7669, 64
        %v7687 = vpop.permute.xlu0 %7686
        %7688 = vrot.lane.b32.xlu0 %v7670, 64
        %v7689 = vpop.permute.xlu0 %7688
        %7690 = vrot.lane.b32.xlu0 %v7671, 64
        %v7691 = vpop.permute.xlu0 %7690
        %7692 = vrot.lane.b32.xlu0 %v7672, 64
        %v7693 = vpop.permute.xlu0 %7692
        %7694 = vrot.lane.b32.xlu0 %v7673, 64
        %v7695 = vpop.permute.xlu0 %7694
        %7696 = vrot.lane.b32.xlu0 %v7674, 64
        %v7697 = vpop.permute.xlu0 %7696
        %7698 = vrot.lane.b32.xlu0 %v7675, 64
        %v7699 = vpop.permute.xlu0 %7698
        %7708 = vst.msk [vmem:[#allocation5 + $0x28] sm:$0xff] %vm6903, %v7685
        %7709 = vst.msk [vmem:[#allocation5 + $0x60] sm:$0xff] %vm6903, %v7687
        %7710 = vst.msk [vmem:[#allocation5 + $0x98] sm:$0xff] %vm6903, %v7689
        %7711 = vst.msk [vmem:[#allocation5 + $0xd0] sm:$0xff] %vm6903, %v7691
        %7712 = vst.msk [vmem:[#allocation5 + $0x108] sm:$0xff] %vm6903, %v7693
        %7713 = vst.msk [vmem:[#allocation5 + $0x140] sm:$0xff] %vm6903, %v7695
        %7714 = vst.msk [vmem:[#allocation5 + $0x178] sm:$0xff] %vm6903, %v7697
        %7715 = vst.msk [vmem:[#allocation5 + $0x1b0] sm:$0xff] %vm6903, %v7699
        %v7716 = vld [vmem:[%s7603 + $0x3] sm:$0xff]
        %v7717 = vld [vmem:[%s7603 + $0x13] sm:$0xff]
        %v7718 = vld [vmem:[%s7603 + $0x23] sm:$0xff]
        %v7719 = vld [vmem:[%s7603 + $0x33] sm:$0xff]
        %v7720 = vld [vmem:[%s7603 + $0x43] sm:$0xff]
        %v7721 = vld [vmem:[%s7603 + $0x53] sm:$0xff]
        %v7722 = vld [vmem:[%s7603 + $0x63] sm:$0xff]
        %v7723 = vld [vmem:[%s7603 + $0x73] sm:$0xff]
        %7732 = vrot.lane.b32.xlu0 %v7716, 96
        %v7733 = vpop.permute.xlu0 %7732
        %7734 = vrot.lane.b32.xlu0 %v7717, 96
        %v7735 = vpop.permute.xlu0 %7734
        %7736 = vrot.lane.b32.xlu0 %v7718, 96
        %v7737 = vpop.permute.xlu0 %7736
        %7738 = vrot.lane.b32.xlu0 %v7719, 96
        %v7739 = vpop.permute.xlu0 %7738
        %7740 = vrot.lane.b32.xlu0 %v7720, 96
        %v7741 = vpop.permute.xlu0 %7740
        %7742 = vrot.lane.b32.xlu0 %v7721, 96
        %v7743 = vpop.permute.xlu0 %7742
        %7744 = vrot.lane.b32.xlu0 %v7722, 96
        %v7745 = vpop.permute.xlu0 %7744
        %7746 = vrot.lane.b32.xlu0 %v7723, 96
        %v7747 = vpop.permute.xlu0 %7746
        %7756 = vst.msk [vmem:[#allocation5 + $0x28] sm:$0xff] %vm6952, %v7733
        %7757 = vst.msk [vmem:[#allocation5 + $0x60] sm:$0xff] %vm6952, %v7735
        %7758 = vst.msk [vmem:[#allocation5 + $0x98] sm:$0xff] %vm6952, %v7737
        %7759 = vst.msk [vmem:[#allocation5 + $0xd0] sm:$0xff] %vm6952, %v7739
        %7760 = vst.msk [vmem:[#allocation5 + $0x108] sm:$0xff] %vm6952, %v7741
        %7761 = vst.msk [vmem:[#allocation5 + $0x140] sm:$0xff] %vm6952, %v7743
        %7762 = vst.msk [vmem:[#allocation5 + $0x178] sm:$0xff] %vm6952, %v7745
        %7763 = vst.msk [vmem:[#allocation5 + $0x1b0] sm:$0xff] %vm6952, %v7747
        %v7764 = vld [vmem:[%s7603 + $0x4] sm:$0xff]
        %v7765 = vld [vmem:[%s7603 + $0x14] sm:$0xff]
        %v7766 = vld [vmem:[%s7603 + $0x24] sm:$0xff]
        %v7767 = vld [vmem:[%s7603 + $0x34] sm:$0xff]
        %v7768 = vld [vmem:[%s7603 + $0x44] sm:$0xff]
        %v7769 = vld [vmem:[%s7603 + $0x54] sm:$0xff]
        %v7770 = vld [vmem:[%s7603 + $0x64] sm:$0xff]
        %v7771 = vld [vmem:[%s7603 + $0x74] sm:$0xff]
        %7772 = vst.msk [vmem:[#allocation5 + $0x30] sm:$0xff] %vm6628, %v7764
        %7773 = vst.msk [vmem:[#allocation5 + $0x68] sm:$0xff] %vm6628, %v7765
        %7774 = vst.msk [vmem:[#allocation5 + $0xa0] sm:$0xff] %vm6628, %v7766
        %7775 = vst.msk [vmem:[#allocation5 + $0xd8] sm:$0xff] %vm6628, %v7767
        %7776 = vst.msk [vmem:[#allocation5 + $0x110] sm:$0xff] %vm6628, %v7768
        %7777 = vst.msk [vmem:[#allocation5 + $0x148] sm:$0xff] %vm6628, %v7769
        %7778 = vst.msk [vmem:[#allocation5 + $0x180] sm:$0xff] %vm6628, %v7770
        %7779 = vst.msk [vmem:[#allocation5 + $0x1b8] sm:$0xff] %vm6628, %v7771
        %v7780 = vld [vmem:[#allocation5] sm:$0xff]
        %v7781 = vld [vmem:[#allocation5 + $0x8] sm:$0xff]
        %v7782 = vld [vmem:[#allocation5 + $0x10] sm:$0xff]
        %v7783 = vld [vmem:[#allocation5 + $0x18] sm:$0xff]
        %v7784 = vld [vmem:[#allocation5 + $0x20] sm:$0xff]
        %v7785 = vld [vmem:[#allocation5 + $0x28] sm:$0xff]
        %v7786 = vld [vmem:[#allocation5 + $0x30] sm:$0xff]
        %v7787 = vld [vmem:[#allocation5 + $0x38] sm:$0xff]
        %v7788 = vld [vmem:[#allocation5 + $0x40] sm:$0xff]
        %v7789 = vld [vmem:[#allocation5 + $0x48] sm:$0xff]
        %v7790 = vld [vmem:[#allocation5 + $0x50] sm:$0xff]
        %v7791 = vld [vmem:[#allocation5 + $0x58] sm:$0xff]
        %v7792 = vld [vmem:[#allocation5 + $0x60] sm:$0xff]
        %v7793 = vld [vmem:[#allocation5 + $0x68] sm:$0xff]
        %v7794 = vld [vmem:[#allocation5 + $0x70] sm:$0xff]
        %v7795 = vld [vmem:[#allocation5 + $0x78] sm:$0xff]
        %v7796 = vld [vmem:[#allocation5 + $0x80] sm:$0xff]
        %v7797 = vld [vmem:[#allocation5 + $0x88] sm:$0xff]
        %v7798 = vld [vmem:[#allocation5 + $0x90] sm:$0xff]
        %v7799 = vld [vmem:[#allocation5 + $0x98] sm:$0xff]
        %v7800 = vld [vmem:[#allocation5 + $0xa0] sm:$0xff]
        %v7801 = vld [vmem:[#allocation5 + $0xa8] sm:$0xff]
        %v7802 = vld [vmem:[#allocation5 + $0xb0] sm:$0xff]
        %v7803 = vld [vmem:[#allocation5 + $0xb8] sm:$0xff]
        %v7804 = vld [vmem:[#allocation5 + $0xc0] sm:$0xff]
        %v7805 = vld [vmem:[#allocation5 + $0xc8] sm:$0xff]
        %v7806 = vld [vmem:[#allocation5 + $0xd0] sm:$0xff]
        %v7807 = vld [vmem:[#allocation5 + $0xd8] sm:$0xff]
        %v7808 = vld [vmem:[#allocation5 + $0xe0] sm:$0xff]
        %v7809 = vld [vmem:[#allocation5 + $0xe8] sm:$0xff]
        %v7810 = vld [vmem:[#allocation5 + $0xf0] sm:$0xff]
        %v7811 = vld [vmem:[#allocation5 + $0xf8] sm:$0xff]
        %v7812 = vld [vmem:[#allocation5 + $0x100] sm:$0xff]
        %v7813 = vld [vmem:[#allocation5 + $0x108] sm:$0xff]
        %v7814 = vld [vmem:[#allocation5 + $0x110] sm:$0xff]
        %v7815 = vld [vmem:[#allocation5 + $0x118] sm:$0xff]
        %v7816 = vld [vmem:[#allocation5 + $0x120] sm:$0xff]
        %v7817 = vld [vmem:[#allocation5 + $0x128] sm:$0xff]
        %v7818 = vld [vmem:[#allocation5 + $0x130] sm:$0xff]
        %v7819 = vld [vmem:[#allocation5 + $0x138] sm:$0xff]
        %v7820 = vld [vmem:[#allocation5 + $0x140] sm:$0xff]
        %v7821 = vld [vmem:[#allocation5 + $0x148] sm:$0xff]
        %v7822 = vld [vmem:[#allocation5 + $0x150] sm:$0xff]
        %v7823 = vld [vmem:[#allocation5 + $0x158] sm:$0xff]
        %v7824 = vld [vmem:[#allocation5 + $0x160] sm:$0xff]
        %v7825 = vld [vmem:[#allocation5 + $0x168] sm:$0xff]
        %v7826 = vld [vmem:[#allocation5 + $0x170] sm:$0xff]
        %v7827 = vld [vmem:[#allocation5 + $0x178] sm:$0xff]
        %v7828 = vld [vmem:[#allocation5 + $0x180] sm:$0xff]
        %v7829 = vld [vmem:[#allocation5 + $0x188] sm:$0xff]
        %v7830 = vld [vmem:[#allocation5 + $0x190] sm:$0xff]
        %v7831 = vld [vmem:[#allocation5 + $0x198] sm:$0xff]
        %v7832 = vld [vmem:[#allocation5 + $0x1a0] sm:$0xff]
        %v7833 = vld [vmem:[#allocation5 + $0x1a8] sm:$0xff]
        %v7834 = vld [vmem:[#allocation5 + $0x1b0] sm:$0xff]
        %v7835 = vld [vmem:[#allocation5 + $0x1b8] sm:$0xff]
        %v7836 = vld [vmem:[%s3] sm:$0xff]
        %v7837 = vld [vmem:[%s3 + $0x8] sm:$0xff]
        %v7838 = vld [vmem:[%s3 + $0x10] sm:$0xff]
        %v7839 = vld [vmem:[%s3 + $0x18] sm:$0xff]
        %v7840 = vld [vmem:[%s3 + $0x20] sm:$0xff]
        %v7841 = vld [vmem:[%s3 + $0x28] sm:$0xff]
        %v7842 = vld [vmem:[%s3 + $0x30] sm:$0xff]
        %v7843 = vld [vmem:[%s3 + $0x38] sm:$0xff]
        %v7844 = vld [vmem:[%s3 + $0x40] sm:$0xff]
        %v7845 = vld [vmem:[%s3 + $0x48] sm:$0xff]
        %v7846 = vld [vmem:[%s3 + $0x50] sm:$0xff]
        %v7847 = vld [vmem:[%s3 + $0x58] sm:$0xff]
        %v7848 = vld [vmem:[%s3 + $0x60] sm:$0xff]
        %v7849 = vld [vmem:[%s3 + $0x68] sm:$0xff]
        %v7850 = vld [vmem:[%s3 + $0x70] sm:$0xff]
        %v7851 = vld [vmem:[%s3 + $0x78] sm:$0xff]
        %v7852 = vld [vmem:[%s3 + $0x80] sm:$0xff]
        %v7853 = vld [vmem:[%s3 + $0x88] sm:$0xff]
        %v7854 = vld [vmem:[%s3 + $0x90] sm:$0xff]
        %v7855 = vld [vmem:[%s3 + $0x98] sm:$0xff]
        %v7856 = vld [vmem:[%s3 + $0xa0] sm:$0xff]
        %v7857 = vld [vmem:[%s3 + $0xa8] sm:$0xff]
        %v7858 = vld [vmem:[%s3 + $0xb0] sm:$0xff]
        %v7859 = vld [vmem:[%s3 + $0xb8] sm:$0xff]
        %v7860 = vld [vmem:[%s3 + $0xc0] sm:$0xff]
        %v7861 = vld [vmem:[%s3 + $0xc8] sm:$0xff]
        %v7862 = vld [vmem:[%s3 + $0xd0] sm:$0xff]
        %v7863 = vld [vmem:[%s3 + $0xd8] sm:$0xff]
        %v7864 = vld [vmem:[%s3 + $0xe0] sm:$0xff]
        %v7865 = vld [vmem:[%s3 + $0xe8] sm:$0xff]
        %v7866 = vld [vmem:[%s3 + $0xf0] sm:$0xff]
        %v7867 = vld [vmem:[%s3 + $0xf8] sm:$0xff]
        %v7868 = vld [vmem:[%s3 + $0x100] sm:$0xff]
        %v7869 = vld [vmem:[%s3 + $0x108] sm:$0xff]
        %v7870 = vld [vmem:[%s3 + $0x110] sm:$0xff]
        %v7871 = vld [vmem:[%s3 + $0x118] sm:$0xff]
        %v7872 = vld [vmem:[%s3 + $0x120] sm:$0xff]
        %v7873 = vld [vmem:[%s3 + $0x128] sm:$0xff]
        %v7874 = vld [vmem:[%s3 + $0x130] sm:$0xff]
        %v7875 = vld [vmem:[%s3 + $0x138] sm:$0xff]
        %v7876 = vld [vmem:[%s3 + $0x140] sm:$0xff]
        %v7877 = vld [vmem:[%s3 + $0x148] sm:$0xff]
        %v7878 = vld [vmem:[%s3 + $0x150] sm:$0xff]
        %v7879 = vld [vmem:[%s3 + $0x158] sm:$0xff]
        %v7880 = vld [vmem:[%s3 + $0x160] sm:$0xff]
        %v7881 = vld [vmem:[%s3 + $0x168] sm:$0xff]
        %v7882 = vld [vmem:[%s3 + $0x170] sm:$0xff]
        %v7883 = vld [vmem:[%s3 + $0x178] sm:$0xff]
        %v7884 = vld [vmem:[%s3 + $0x180] sm:$0xff]
        %v7885 = vld [vmem:[%s3 + $0x188] sm:$0xff]
        %v7886 = vld [vmem:[%s3 + $0x190] sm:$0xff]
        %v7887 = vld [vmem:[%s3 + $0x198] sm:$0xff]
        %v7888 = vld [vmem:[%s3 + $0x1a0] sm:$0xff]
        %v7889 = vld [vmem:[%s3 + $0x1a8] sm:$0xff]
        %v7890 = vld [vmem:[%s3 + $0x1b0] sm:$0xff]
        %v7891 = vld [vmem:[%s3 + $0x1b8] sm:$0xff]
        %v7892 = vld [vmem:[%s3 + $0x1c0] sm:$0xff]
        %v7893 = vld [vmem:[%s3 + $0x1c8] sm:$0xff]
        %v7894 = vld [vmem:[%s3 + $0x1d0] sm:$0xff]
        %v7895 = vld [vmem:[%s3 + $0x1d8] sm:$0xff]
        %v7896 = vld [vmem:[%s3 + $0x1e0] sm:$0xff]
        %v7897 = vld [vmem:[%s3 + $0x1e8] sm:$0xff]
        %v7898 = vld [vmem:[%s3 + $0x1f0] sm:$0xff]
        %v7899 = vld [vmem:[%s3 + $0x1f8] sm:$0xff]
        %v7900 = vld [vmem:[%s3 + $0x200] sm:$0xff]
        %v7901 = vld [vmem:[%s3 + $0x208] sm:$0xff]
        %v7902 = vld [vmem:[%s3 + $0x210] sm:$0xff]
        %v7903 = vld [vmem:[%s3 + $0x218] sm:$0xff]
        %v7904 = vld [vmem:[%s3 + $0x220] sm:$0xff]
        %v7905 = vld [vmem:[%s3 + $0x228] sm:$0xff]
        %v7906 = vld [vmem:[%s3 + $0x230] sm:$0xff]
        %v7907 = vld [vmem:[%s3 + $0x238] sm:$0xff]
        %v7908 = vld [vmem:[%s3 + $0x240] sm:$0xff]
        %v7909 = vld [vmem:[%s3 + $0x248] sm:$0xff]
        %v7910 = vld [vmem:[%s3 + $0x250] sm:$0xff]
        %v7911 = vld [vmem:[%s3 + $0x258] sm:$0xff]
        %v7912 = vld [vmem:[%s3 + $0x260] sm:$0xff]
        %v7913 = vld [vmem:[%s3 + $0x268] sm:$0xff]
        %v7914 = vld [vmem:[%s3 + $0x270] sm:$0xff]
        %v7915 = vld [vmem:[%s3 + $0x278] sm:$0xff]
        %v7916 = vld [vmem:[%s3 + $0x280] sm:$0xff]
        %v7917 = vld [vmem:[%s3 + $0x288] sm:$0xff]
        %v7918 = vld [vmem:[%s3 + $0x290] sm:$0xff]
        %v7919 = vld [vmem:[%s3 + $0x298] sm:$0xff]
        %v7920 = vld [vmem:[%s3 + $0x2a0] sm:$0xff]
        %v7921 = vld [vmem:[%s3 + $0x2a8] sm:$0xff]
        %v7922 = vld [vmem:[%s3 + $0x2b0] sm:$0xff]
        %v7923 = vld [vmem:[%s3 + $0x2b8] sm:$0xff]
        %v7924 = vld [vmem:[%s3 + $0x2c0] sm:$0xff]
        %v7925 = vld [vmem:[%s3 + $0x2c8] sm:$0xff]
        %v7926 = vld [vmem:[%s3 + $0x2d0] sm:$0xff]
        %v7927 = vld [vmem:[%s3 + $0x2d8] sm:$0xff]
        %v7928 = vld [vmem:[%s3 + $0x2e0] sm:$0xff]
        %v7929 = vld [vmem:[%s3 + $0x2e8] sm:$0xff]
        %v7930 = vld [vmem:[%s3 + $0x2f0] sm:$0xff]
        %v7931 = vld [vmem:[%s3 + $0x2f8] sm:$0xff]
        %v7932 = vld [vmem:[%s3 + $0x300] sm:$0xff]
        %v7933 = vld [vmem:[%s3 + $0x308] sm:$0xff]
        %v7934 = vld [vmem:[%s3 + $0x310] sm:$0xff]
        %v7935 = vld [vmem:[%s3 + $0x318] sm:$0xff]
        %v7936 = vld [vmem:[#allocation10] sm:$0x1]
        %v7938 = vperm.slane %v7936, 0
        %v7941 = vsel %vm6628, %v7786, 0
        %v7944 = vsel %vm6628, %v7793, 0
        %v7947 = vsel %vm6628, %v7800, 0
        %v7950 = vsel %vm6628, %v7807, 0
        %v7953 = vsel %vm6628, %v7814, 0
        %v7956 = vsel %vm6628, %v7821, 0
        %v7959 = vsel %vm6628, %v7828, 0
        %v7962 = vsel %vm6628, %v7835, 0
        %7964 = vmatpush.msra.mxu0 %v7851
        %7965 = vmatpush.msra.mxu0 %v7850
        %7966 = vmatpush.msra.mxu0 %v7849
        %7967 = vmatpush.msra.mxu0 %v7848
        %7968 = vmatpush.msra.mxu0 %v7847
        %7969 = vmatpush.msra.mxu0 %v7846
        %7970 = vmatpush.msra.mxu0 %v7845
        %7971 = vmatpush.msra.mxu0 %v7844
        %7972 = vmatpush.msra.mxu0 %v7843
        %7973 = vmatpush.msra.mxu0 %v7842
        %7974 = vmatpush.msra.mxu0 %v7841
        %7975 = vmatpush.msra.mxu0 %v7840
        %7976 = vmatpush.msra.mxu0 %v7839
        %7977 = vmatpush.msra.mxu0 %v7838
        %7978 = vmatpush.msra.mxu0 %v7837
        %7979 = vmatpush.msra.mxu0 %v7836
        %7980 = vmatmul.f32.gmra.mxu0 %v7780
        %v7981 = vpop.f32.mrf.mxu0
        %v7982 = vadd.f32 %v7938, %v7981
        %7983 = vmatmul.f32.gmra.mxu0 %v7787
        %v7984 = vpop.f32.mrf.mxu0
        %v7985 = vadd.f32 %v7938, %v7984
        %7986 = vmatmul.f32.gmra.mxu0 %v7794
        %v7987 = vpop.f32.mrf.mxu0
        %v7988 = vadd.f32 %v7938, %v7987
        %7989 = vmatmul.f32.gmra.mxu0 %v7801
        %v7990 = vpop.f32.mrf.mxu0
        %v7991 = vadd.f32 %v7938, %v7990
        %7992 = vmatmul.f32.gmra.mxu0 %v7808
        %v7993 = vpop.f32.mrf.mxu0
        %v7994 = vadd.f32 %v7938, %v7993
        %7995 = vmatmul.f32.gmra.mxu0 %v7815
        %v7996 = vpop.f32.mrf.mxu0
        %v7997 = vadd.f32 %v7938, %v7996
        %7998 = vmatmul.f32.gmra.mxu0 %v7822
        %v7999 = vpop.f32.mrf.mxu0
        %v8000 = vadd.f32 %v7938, %v7999
        %8001 = vmatmul.f32.gmra.mxu0 %v7829
        %v8002 = vpop.f32.mrf.mxu0
        %v8003 = vadd.f32 %v7938, %v8002
        %8004 = vdwg.mxu0
        %8005 = vmatpush.msra.mxu0 %v7867
        %8006 = vmatpush.msra.mxu0 %v7866
        %8007 = vmatpush.msra.mxu0 %v7865
        %8008 = vmatpush.msra.mxu0 %v7864
        %8009 = vmatpush.msra.mxu0 %v7863
        %8010 = vmatpush.msra.mxu0 %v7862
        %8011 = vmatpush.msra.mxu0 %v7861
        %8012 = vmatpush.msra.mxu0 %v7860
        %8013 = vmatpush.msra.mxu0 %v7859
        %8014 = vmatpush.msra.mxu0 %v7858
        %8015 = vmatpush.msra.mxu0 %v7857
        %8016 = vmatpush.msra.mxu0 %v7856
        %8017 = vmatpush.msra.mxu0 %v7855
        %8018 = vmatpush.msra.mxu0 %v7854
        %8019 = vmatpush.msra.mxu0 %v7853
        %8020 = vmatpush.msra.mxu0 %v7852
        %8021 = vmatmul.f32.gmra.mxu0 %v7781
        %v8022 = vpop.f32.mrf.mxu0
        %v8023 = vadd.f32 %v7982, %v8022
        %8024 = vmatmul.f32.gmra.mxu0 %v7788
        %v8025 = vpop.f32.mrf.mxu0
        %v8026 = vadd.f32 %v7985, %v8025
        %8027 = vmatmul.f32.gmra.mxu0 %v7795
        %v8028 = vpop.f32.mrf.mxu0
        %v8029 = vadd.f32 %v7988, %v8028
        %8030 = vmatmul.f32.gmra.mxu0 %v7802
        %v8031 = vpop.f32.mrf.mxu0
        %v8032 = vadd.f32 %v7991, %v8031
        %8033 = vmatmul.f32.gmra.mxu0 %v7809
        %v8034 = vpop.f32.mrf.mxu0
        %v8035 = vadd.f32 %v7994, %v8034
        %8036 = vmatmul.f32.gmra.mxu0 %v7816
        %v8037 = vpop.f32.mrf.mxu0
        %v8038 = vadd.f32 %v7997, %v8037
        %8039 = vmatmul.f32.gmra.mxu0 %v7823
        %v8040 = vpop.f32.mrf.mxu0
        %v8041 = vadd.f32 %v8000, %v8040
        %8042 = vmatmul.f32.gmra.mxu0 %v7830
        %v8043 = vpop.f32.mrf.mxu0
        %v8044 = vadd.f32 %v8003, %v8043
        %8045 = vdwg.mxu0
        %8046 = vmatpush.msra.mxu0 %v7883
        %8047 = vmatpush.msra.mxu0 %v7882
        %8048 = vmatpush.msra.mxu0 %v7881
        %8049 = vmatpush.msra.mxu0 %v7880
        %8050 = vmatpush.msra.mxu0 %v7879
        %8051 = vmatpush.msra.mxu0 %v7878
        %8052 = vmatpush.msra.mxu0 %v7877
        %8053 = vmatpush.msra.mxu0 %v7876
        %8054 = vmatpush.msra.mxu0 %v7875
        %8055 = vmatpush.msra.mxu0 %v7874
        %8056 = vmatpush.msra.mxu0 %v7873
        %8057 = vmatpush.msra.mxu0 %v7872
        %8058 = vmatpush.msra.mxu0 %v7871
        %8059 = vmatpush.msra.mxu0 %v7870
        %8060 = vmatpush.msra.mxu0 %v7869
        %8061 = vmatpush.msra.mxu0 %v7868
        %8062 = vmatmul.f32.gmra.mxu0 %v7782
        %v8063 = vpop.f32.mrf.mxu0
        %v8064 = vadd.f32 %v8023, %v8063
        %8065 = vmatmul.f32.gmra.mxu0 %v7789
        %v8066 = vpop.f32.mrf.mxu0
        %v8067 = vadd.f32 %v8026, %v8066
        %8068 = vmatmul.f32.gmra.mxu0 %v7796
        %v8069 = vpop.f32.mrf.mxu0
        %v8070 = vadd.f32 %v8029, %v8069
        %8071 = vmatmul.f32.gmra.mxu0 %v7803
        %v8072 = vpop.f32.mrf.mxu0
        %v8073 = vadd.f32 %v8032, %v8072
        %8074 = vmatmul.f32.gmra.mxu0 %v7810
        %v8075 = vpop.f32.mrf.mxu0
        %v8076 = vadd.f32 %v8035, %v8075
        %8077 = vmatmul.f32.gmra.mxu0 %v7817
        %v8078 = vpop.f32.mrf.mxu0
        %v8079 = vadd.f32 %v8038, %v8078
        %8080 = vmatmul.f32.gmra.mxu0 %v7824
        %v8081 = vpop.f32.mrf.mxu0
        %v8082 = vadd.f32 %v8041, %v8081
        %8083 = vmatmul.f32.gmra.mxu0 %v7831
        %v8084 = vpop.f32.mrf.mxu0
        %v8085 = vadd.f32 %v8044, %v8084
        %8086 = vdwg.mxu0
        %8087 = vmatpush.msra.mxu0 %v7899
        %8088 = vmatpush.msra.mxu0 %v7898
        %8089 = vmatpush.msra.mxu0 %v7897
        %8090 = vmatpush.msra.mxu0 %v7896
        %8091 = vmatpush.msra.mxu0 %v7895
        %8092 = vmatpush.msra.mxu0 %v7894
        %8093 = vmatpush.msra.mxu0 %v7893
        %8094 = vmatpush.msra.mxu0 %v7892
        %8095 = vmatpush.msra.mxu0 %v7891
        %8096 = vmatpush.msra.mxu0 %v7890
        %8097 = vmatpush.msra.mxu0 %v7889
        %8098 = vmatpush.msra.mxu0 %v7888
        %8099 = vmatpush.msra.mxu0 %v7887
        %8100 = vmatpush.msra.mxu0 %v7886
        %8101 = vmatpush.msra.mxu0 %v7885
        %8102 = vmatpush.msra.mxu0 %v7884
        %8103 = vmatmul.f32.gmra.mxu0 %v7783
        %v8104 = vpop.f32.mrf.mxu0
        %v8105 = vadd.f32 %v8064, %v8104
        %8106 = vmatmul.f32.gmra.mxu0 %v7790
        %v8107 = vpop.f32.mrf.mxu0
        %v8108 = vadd.f32 %v8067, %v8107
        %8109 = vmatmul.f32.gmra.mxu0 %v7797
        %v8110 = vpop.f32.mrf.mxu0
        %v8111 = vadd.f32 %v8070, %v8110
        %8112 = vmatmul.f32.gmra.mxu0 %v7804
        %v8113 = vpop.f32.mrf.mxu0
        %v8114 = vadd.f32 %v8073, %v8113
        %8115 = vmatmul.f32.gmra.mxu0 %v7811
        %v8116 = vpop.f32.mrf.mxu0
        %v8117 = vadd.f32 %v8076, %v8116
        %8118 = vmatmul.f32.gmra.mxu0 %v7818
        %v8119 = vpop.f32.mrf.mxu0
        %v8120 = vadd.f32 %v8079, %v8119
        %8121 = vmatmul.f32.gmra.mxu0 %v7825
        %v8122 = vpop.f32.mrf.mxu0
        %v8123 = vadd.f32 %v8082, %v8122
        %8124 = vmatmul.f32.gmra.mxu0 %v7832
        %v8125 = vpop.f32.mrf.mxu0
        %v8126 = vadd.f32 %v8085, %v8125
        %8127 = vdwg.mxu0
        %8128 = vmatpush.msra.mxu0 %v7915
        %8129 = vmatpush.msra.mxu0 %v7914
        %8130 = vmatpush.msra.mxu0 %v7913
        %8131 = vmatpush.msra.mxu0 %v7912
        %8132 = vmatpush.msra.mxu0 %v7911
        %8133 = vmatpush.msra.mxu0 %v7910
        %8134 = vmatpush.msra.mxu0 %v7909
        %8135 = vmatpush.msra.mxu0 %v7908
        %8136 = vmatpush.msra.mxu0 %v7907
        %8137 = vmatpush.msra.mxu0 %v7906
        %8138 = vmatpush.msra.mxu0 %v7905
        %8139 = vmatpush.msra.mxu0 %v7904
        %8140 = vmatpush.msra.mxu0 %v7903
        %8141 = vmatpush.msra.mxu0 %v7902
        %8142 = vmatpush.msra.mxu0 %v7901
        %8143 = vmatpush.msra.mxu0 %v7900
        %8144 = vmatmul.f32.gmra.mxu0 %v7784
        %v8145 = vpop.f32.mrf.mxu0
        %v8146 = vadd.f32 %v8105, %v8145
        %8147 = vmatmul.f32.gmra.mxu0 %v7791
        %v8148 = vpop.f32.mrf.mxu0
        %v8149 = vadd.f32 %v8108, %v8148
        %8150 = vmatmul.f32.gmra.mxu0 %v7798
        %v8151 = vpop.f32.mrf.mxu0
        %v8152 = vadd.f32 %v8111, %v8151
        %8153 = vmatmul.f32.gmra.mxu0 %v7805
        %v8154 = vpop.f32.mrf.mxu0
        %v8155 = vadd.f32 %v8114, %v8154
        %8156 = vmatmul.f32.gmra.mxu0 %v7812
        %v8157 = vpop.f32.mrf.mxu0
        %v8158 = vadd.f32 %v8117, %v8157
        %8159 = vmatmul.f32.gmra.mxu0 %v7819
        %v8160 = vpop.f32.mrf.mxu0
        %v8161 = vadd.f32 %v8120, %v8160
        %8162 = vmatmul.f32.gmra.mxu0 %v7826
        %v8163 = vpop.f32.mrf.mxu0
        %v8164 = vadd.f32 %v8123, %v8163
        %8165 = vmatmul.f32.gmra.mxu0 %v7833
        %v8166 = vpop.f32.mrf.mxu0
        %v8167 = vadd.f32 %v8126, %v8166
        %8168 = vdwg.mxu0
        %8169 = vmatpush.msra.mxu0 %v7931
        %8170 = vmatpush.msra.mxu0 %v7930
        %8171 = vmatpush.msra.mxu0 %v7929
        %8172 = vmatpush.msra.mxu0 %v7928
        %8173 = vmatpush.msra.mxu0 %v7927
        %8174 = vmatpush.msra.mxu0 %v7926
        %8175 = vmatpush.msra.mxu0 %v7925
        %8176 = vmatpush.msra.mxu0 %v7924
        %8177 = vmatpush.msra.mxu0 %v7923
        %8178 = vmatpush.msra.mxu0 %v7922
        %8179 = vmatpush.msra.mxu0 %v7921
        %8180 = vmatpush.msra.mxu0 %v7920
        %8181 = vmatpush.msra.mxu0 %v7919
        %8182 = vmatpush.msra.mxu0 %v7918
        %8183 = vmatpush.msra.mxu0 %v7917
        %8184 = vmatpush.msra.mxu0 %v7916
        %8185 = vmatmul.f32.gmra.mxu0 %v7785
        %v8186 = vpop.f32.mrf.mxu0
        %v8187 = vadd.f32 %v8146, %v8186
        %8188 = vmatmul.f32.gmra.mxu0 %v7792
        %v8189 = vpop.f32.mrf.mxu0
        %v8190 = vadd.f32 %v8149, %v8189
        %8191 = vmatmul.f32.gmra.mxu0 %v7799
        %v8192 = vpop.f32.mrf.mxu0
        %v8193 = vadd.f32 %v8152, %v8192
        %8194 = vmatmul.f32.gmra.mxu0 %v7806
        %v8195 = vpop.f32.mrf.mxu0
        %v8196 = vadd.f32 %v8155, %v8195
        %8197 = vmatmul.f32.gmra.mxu0 %v7813
        %v8198 = vpop.f32.mrf.mxu0
        %v8199 = vadd.f32 %v8158, %v8198
        %8200 = vmatmul.f32.gmra.mxu0 %v7820
        %v8201 = vpop.f32.mrf.mxu0
        %v8202 = vadd.f32 %v8161, %v8201
        %8203 = vmatmul.f32.gmra.mxu0 %v7827
        %v8204 = vpop.f32.mrf.mxu0
        %v8205 = vadd.f32 %v8164, %v8204
        %8206 = vmatmul.f32.gmra.mxu0 %v7834
        %v8207 = vpop.f32.mrf.mxu0
        %v8208 = vadd.f32 %v8167, %v8207
        %8209 = vdwg.mxu0
        %8210 = vmatpush.msra.mxu0 0.0
        %8211 = vmatpush.msra.mxu0 0.0
        %8212 = vmatpush.msra.mxu0 0.0
        %8213 = vmatpush.msra.mxu0 0.0
        %8214 = vmatpush.msra.mxu0 0.0
        %8215 = vmatpush.msra.mxu0 0.0
        %8216 = vmatpush.msra.mxu0 0.0
        %8217 = vmatpush.msra.mxu0 0.0
        %8218 = vmatpush.msra.mxu0 0.0
        %8219 = vmatpush.msra.mxu0 0.0
        %8220 = vmatpush.msra.mxu0 0.0
        %8221 = vmatpush.msra.mxu0 0.0
        %8222 = vmatpush.msra.mxu0 %v7935
        %8223 = vmatpush.msra.mxu0 %v7934
        %8224 = vmatpush.msra.mxu0 %v7933
        %8225 = vmatpush.msra.mxu0 %v7932
        %8226 = vmatmul.f32.gmra.mxu0 %v7941
        %v8227 = vpop.f32.mrf.mxu0
        %v8228 = vadd.f32 %v8187, %v8227
        %8229 = vmatmul.f32.gmra.mxu0 %v7944
        %v8230 = vpop.f32.mrf.mxu0
        %v8231 = vadd.f32 %v8190, %v8230
        %8232 = vmatmul.f32.gmra.mxu0 %v7947
        %v8233 = vpop.f32.mrf.mxu0
        %v8234 = vadd.f32 %v8193, %v8233
        %8235 = vmatmul.f32.gmra.mxu0 %v7950
        %v8236 = vpop.f32.mrf.mxu0
        %v8237 = vadd.f32 %v8196, %v8236
        %8238 = vmatmul.f32.gmra.mxu0 %v7953
        %v8239 = vpop.f32.mrf.mxu0
        %v8240 = vadd.f32 %v8199, %v8239
        %8241 = vmatmul.f32.gmra.mxu0 %v7956
        %v8242 = vpop.f32.mrf.mxu0
        %v8243 = vadd.f32 %v8202, %v8242
        %8244 = vmatmul.f32.gmra.mxu0 %v7959
        %v8245 = vpop.f32.mrf.mxu0
        %v8246 = vadd.f32 %v8205, %v8245
        %8247 = vmatmul.f32.gmra.mxu0 %v7962
        %v8248 = vpop.f32.mrf.mxu0
        %v8249 = vadd.f32 %v8208, %v8248
        %8250 = vdwg.mxu0
        %v8251 = vmax.f32 %v8228, 0.0
        %v8252 = vmax.f32 %v8231, 0.0
        %v8253 = vmax.f32 %v8234, 0.0
        %v8254 = vmax.f32 %v8237, 0.0
        %v8255 = vmax.f32 %v8240, 0.0
        %v8256 = vmax.f32 %v8243, 0.0
        %v8257 = vmax.f32 %v8246, 0.0
        %v8258 = vmax.f32 %v8249, 0.0
        %v8267 = vrot.slane %v8251, 2
        %v8268 = vrot.slane %v8251, 4
        %v8269 = vrot.slane %v8251, 6
        %v8270 = vrot.slane %v8252, 2
        %v8271 = vrot.slane %v8252, 4
        %v8272 = vrot.slane %v8252, 6
        %v8273 = vrot.slane %v8253, 2
        %v8274 = vrot.slane %v8253, 4
        %v8275 = vrot.slane %v8253, 6
        %v8276 = vrot.slane %v8254, 2
        %v8277 = vrot.slane %v8254, 4
        %v8278 = vrot.slane %v8254, 6
        %v8279 = vrot.slane %v8255, 2
        %v8280 = vrot.slane %v8255, 4
        %v8281 = vrot.slane %v8255, 6
        %v8282 = vrot.slane %v8256, 2
        %v8283 = vrot.slane %v8256, 4
        %v8284 = vrot.slane %v8256, 6
        %v8285 = vrot.slane %v8257, 2
        %v8286 = vrot.slane %v8257, 4
        %v8287 = vrot.slane %v8257, 6
        %v8288 = vrot.slane %v8258, 2
        %v8289 = vrot.slane %v8258, 4
        %v8290 = vrot.slane %v8258, 6
        %vm8315 = vcmask 517120
        %v8316 = vsel %vm8315, %v8251, -inf
        %v8317 = vrot.slane %v8316, 4
        %v8318 = vmax.f32 %v8316, %v8317
        %v8319 = vrot.slane %v8318, 2
        %v8320 = vmax.f32 %v8318, %v8319
        %v8321 = vrot.slane %v8320, 1
        %v8322 = vmax.f32 %v8320, %v8321
        %v8323 = vsel %vm8315, %v8267, -inf
        %v8324 = vrot.slane %v8323, 4
        %v8325 = vmax.f32 %v8323, %v8324
        %v8326 = vrot.slane %v8325, 2
        %v8327 = vmax.f32 %v8325, %v8326
        %v8328 = vrot.slane %v8327, 1
        %v8329 = vmax.f32 %v8327, %v8328
        %v8330 = vsel %vm8315, %v8268, -inf
        %v8331 = vrot.slane %v8330, 4
        %v8332 = vmax.f32 %v8330, %v8331
        %v8333 = vrot.slane %v8332, 2
        %v8334 = vmax.f32 %v8332, %v8333
        %v8335 = vrot.slane %v8334, 1
        %v8336 = vmax.f32 %v8334, %v8335
        %v8337 = vsel %vm8315, %v8269, -inf
        %v8338 = vrot.slane %v8337, 4
        %v8339 = vmax.f32 %v8337, %v8338
        %v8340 = vrot.slane %v8339, 2
        %v8341 = vmax.f32 %v8339, %v8340
        %v8342 = vrot.slane %v8341, 1
        %v8343 = vmax.f32 %v8341, %v8342
        %v8344 = vsel %vm8315, %v8252, -inf
        %v8345 = vrot.slane %v8344, 4
        %v8346 = vmax.f32 %v8344, %v8345
        %v8347 = vrot.slane %v8346, 2
        %v8348 = vmax.f32 %v8346, %v8347
        %v8349 = vrot.slane %v8348, 1
        %v8350 = vmax.f32 %v8348, %v8349
        %v8351 = vsel %vm8315, %v8270, -inf
        %v8352 = vrot.slane %v8351, 4
        %v8353 = vmax.f32 %v8351, %v8352
        %v8354 = vrot.slane %v8353, 2
        %v8355 = vmax.f32 %v8353, %v8354
        %v8356 = vrot.slane %v8355, 1
        %v8357 = vmax.f32 %v8355, %v8356
        %v8358 = vsel %vm8315, %v8271, -inf
        %v8359 = vrot.slane %v8358, 4
        %v8360 = vmax.f32 %v8358, %v8359
        %v8361 = vrot.slane %v8360, 2
        %v8362 = vmax.f32 %v8360, %v8361
        %v8363 = vrot.slane %v8362, 1
        %v8364 = vmax.f32 %v8362, %v8363
        %v8365 = vsel %vm8315, %v8272, -inf
        %v8366 = vrot.slane %v8365, 4
        %v8367 = vmax.f32 %v8365, %v8366
        %v8368 = vrot.slane %v8367, 2
        %v8369 = vmax.f32 %v8367, %v8368
        %v8370 = vrot.slane %v8369, 1
        %v8371 = vmax.f32 %v8369, %v8370
        %v8372 = vsel %vm8315, %v8253, -inf
        %v8373 = vrot.slane %v8372, 4
        %v8374 = vmax.f32 %v8372, %v8373
        %v8375 = vrot.slane %v8374, 2
        %v8376 = vmax.f32 %v8374, %v8375
        %v8377 = vrot.slane %v8376, 1
        %v8378 = vmax.f32 %v8376, %v8377
        %v8379 = vsel %vm8315, %v8273, -inf
        %v8380 = vrot.slane %v8379, 4
        %v8381 = vmax.f32 %v8379, %v8380
        %v8382 = vrot.slane %v8381, 2
        %v8383 = vmax.f32 %v8381, %v8382
        %v8384 = vrot.slane %v8383, 1
        %v8385 = vmax.f32 %v8383, %v8384
        %v8386 = vsel %vm8315, %v8274, -inf
        %v8387 = vrot.slane %v8386, 4
        %v8388 = vmax.f32 %v8386, %v8387
        %v8389 = vrot.slane %v8388, 2
        %v8390 = vmax.f32 %v8388, %v8389
        %v8391 = vrot.slane %v8390, 1
        %v8392 = vmax.f32 %v8390, %v8391
        %v8393 = vsel %vm8315, %v8275, -inf
        %v8394 = vrot.slane %v8393, 4
        %v8395 = vmax.f32 %v8393, %v8394
        %v8396 = vrot.slane %v8395, 2
        %v8397 = vmax.f32 %v8395, %v8396
        %v8398 = vrot.slane %v8397, 1
        %v8399 = vmax.f32 %v8397, %v8398
        %v8400 = vsel %vm8315, %v8254, -inf
        %v8401 = vrot.slane %v8400, 4
        %v8402 = vmax.f32 %v8400, %v8401
        %v8403 = vrot.slane %v8402, 2
        %v8404 = vmax.f32 %v8402, %v8403
        %v8405 = vrot.slane %v8404, 1
        %v8406 = vmax.f32 %v8404, %v8405
        %v8407 = vsel %vm8315, %v8276, -inf
        %v8408 = vrot.slane %v8407, 4
        %v8409 = vmax.f32 %v8407, %v8408
        %v8410 = vrot.slane %v8409, 2
        %v8411 = vmax.f32 %v8409, %v8410
        %v8412 = vrot.slane %v8411, 1
        %v8413 = vmax.f32 %v8411, %v8412
        %v8414 = vsel %vm8315, %v8277, -inf
        %v8415 = vrot.slane %v8414, 4
        %v8416 = vmax.f32 %v8414, %v8415
        %v8417 = vrot.slane %v8416, 2
        %v8418 = vmax.f32 %v8416, %v8417
        %v8419 = vrot.slane %v8418, 1
        %v8420 = vmax.f32 %v8418, %v8419
        %v8421 = vsel %vm8315, %v8278, -inf
        %v8422 = vrot.slane %v8421, 4
        %v8423 = vmax.f32 %v8421, %v8422
        %v8424 = vrot.slane %v8423, 2
        %v8425 = vmax.f32 %v8423, %v8424
        %v8426 = vrot.slane %v8425, 1
        %v8427 = vmax.f32 %v8425, %v8426
        %v8428 = vsel %vm8315, %v8255, -inf
        %v8429 = vrot.slane %v8428, 4
        %v8430 = vmax.f32 %v8428, %v8429
        %v8431 = vrot.slane %v8430, 2
        %v8432 = vmax.f32 %v8430, %v8431
        %v8433 = vrot.slane %v8432, 1
        %v8434 = vmax.f32 %v8432, %v8433
        %v8435 = vsel %vm8315, %v8279, -inf
        %v8436 = vrot.slane %v8435, 4
        %v8437 = vmax.f32 %v8435, %v8436
        %v8438 = vrot.slane %v8437, 2
        %v8439 = vmax.f32 %v8437, %v8438
        %v8440 = vrot.slane %v8439, 1
        %v8441 = vmax.f32 %v8439, %v8440
        %v8442 = vsel %vm8315, %v8280, -inf
        %v8443 = vrot.slane %v8442, 4
        %v8444 = vmax.f32 %v8442, %v8443
        %v8445 = vrot.slane %v8444, 2
        %v8446 = vmax.f32 %v8444, %v8445
        %v8447 = vrot.slane %v8446, 1
        %v8448 = vmax.f32 %v8446, %v8447
        %v8449 = vsel %vm8315, %v8281, -inf
        %v8450 = vrot.slane %v8449, 4
        %v8451 = vmax.f32 %v8449, %v8450
        %v8452 = vrot.slane %v8451, 2
        %v8453 = vmax.f32 %v8451, %v8452
        %v8454 = vrot.slane %v8453, 1
        %v8455 = vmax.f32 %v8453, %v8454
        %v8456 = vsel %vm8315, %v8256, -inf
        %v8457 = vrot.slane %v8456, 4
        %v8458 = vmax.f32 %v8456, %v8457
        %v8459 = vrot.slane %v8458, 2
        %v8460 = vmax.f32 %v8458, %v8459
        %v8461 = vrot.slane %v8460, 1
        %v8462 = vmax.f32 %v8460, %v8461
        %v8463 = vsel %vm8315, %v8282, -inf
        %v8464 = vrot.slane %v8463, 4
        %v8465 = vmax.f32 %v8463, %v8464
        %v8466 = vrot.slane %v8465, 2
        %v8467 = vmax.f32 %v8465, %v8466
        %v8468 = vrot.slane %v8467, 1
        %v8469 = vmax.f32 %v8467, %v8468
        %v8470 = vsel %vm8315, %v8283, -inf
        %v8471 = vrot.slane %v8470, 4
        %v8472 = vmax.f32 %v8470, %v8471
        %v8473 = vrot.slane %v8472, 2
        %v8474 = vmax.f32 %v8472, %v8473
        %v8475 = vrot.slane %v8474, 1
        %v8476 = vmax.f32 %v8474, %v8475
        %v8477 = vsel %vm8315, %v8284, -inf
        %v8478 = vrot.slane %v8477, 4
        %v8479 = vmax.f32 %v8477, %v8478
        %v8480 = vrot.slane %v8479, 2
        %v8481 = vmax.f32 %v8479, %v8480
        %v8482 = vrot.slane %v8481, 1
        %v8483 = vmax.f32 %v8481, %v8482
        %v8484 = vsel %vm8315, %v8257, -inf
        %v8485 = vrot.slane %v8484, 4
        %v8486 = vmax.f32 %v8484, %v8485
        %v8487 = vrot.slane %v8486, 2
        %v8488 = vmax.f32 %v8486, %v8487
        %v8489 = vrot.slane %v8488, 1
        %v8490 = vmax.f32 %v8488, %v8489
        %v8491 = vsel %vm8315, %v8285, -inf
        %v8492 = vrot.slane %v8491, 4
        %v8493 = vmax.f32 %v8491, %v8492
        %v8494 = vrot.slane %v8493, 2
        %v8495 = vmax.f32 %v8493, %v8494
        %v8496 = vrot.slane %v8495, 1
        %v8497 = vmax.f32 %v8495, %v8496
        %v8498 = vsel %vm8315, %v8286, -inf
        %v8499 = vrot.slane %v8498, 4
        %v8500 = vmax.f32 %v8498, %v8499
        %v8501 = vrot.slane %v8500, 2
        %v8502 = vmax.f32 %v8500, %v8501
        %v8503 = vrot.slane %v8502, 1
        %v8504 = vmax.f32 %v8502, %v8503
        %v8505 = vsel %vm8315, %v8287, -inf
        %v8506 = vrot.slane %v8505, 4
        %v8507 = vmax.f32 %v8505, %v8506
        %v8508 = vrot.slane %v8507, 2
        %v8509 = vmax.f32 %v8507, %v8508
        %v8510 = vrot.slane %v8509, 1
        %v8511 = vmax.f32 %v8509, %v8510
        %v8512 = vsel %vm8315, %v8258, -inf
        %v8513 = vrot.slane %v8512, 4
        %v8514 = vmax.f32 %v8512, %v8513
        %v8515 = vrot.slane %v8514, 2
        %v8516 = vmax.f32 %v8514, %v8515
        %v8517 = vrot.slane %v8516, 1
        %v8518 = vmax.f32 %v8516, %v8517
        %v8519 = vsel %vm8315, %v8288, -inf
        %v8520 = vrot.slane %v8519, 4
        %v8521 = vmax.f32 %v8519, %v8520
        %v8522 = vrot.slane %v8521, 2
        %v8523 = vmax.f32 %v8521, %v8522
        %v8524 = vrot.slane %v8523, 1
        %v8525 = vmax.f32 %v8523, %v8524
        %v8526 = vsel %vm8315, %v8289, -inf
        %v8527 = vrot.slane %v8526, 4
        %v8528 = vmax.f32 %v8526, %v8527
        %v8529 = vrot.slane %v8528, 2
        %v8530 = vmax.f32 %v8528, %v8529
        %v8531 = vrot.slane %v8530, 1
        %v8532 = vmax.f32 %v8530, %v8531
        %v8533 = vsel %vm8315, %v8290, -inf
        %v8534 = vrot.slane %v8533, 4
        %v8535 = vmax.f32 %v8533, %v8534
        %v8536 = vrot.slane %v8535, 2
        %v8537 = vmax.f32 %v8535, %v8536
        %v8538 = vrot.slane %v8537, 1
        %v8539 = vmax.f32 %v8537, %v8538
        %v8540 = vmax.f32 %v8322, %v8350
        %v8541 = vmax.f32 %v8329, %v8357
        %v8542 = vmax.f32 %v8336, %v8364
        %v8543 = vmax.f32 %v8343, %v8371
        %v8544 = vmax.f32 %v8378, %v8406
        %v8545 = vmax.f32 %v8385, %v8413
        %v8546 = vmax.f32 %v8392, %v8420
        %v8547 = vmax.f32 %v8399, %v8427
        %v8548 = vmax.f32 %v8434, %v8462
        %v8549 = vmax.f32 %v8441, %v8469
        %v8550 = vmax.f32 %v8448, %v8476
        %v8551 = vmax.f32 %v8455, %v8483
        %v8552 = vmax.f32 %v8490, %v8518
        %v8553 = vmax.f32 %v8497, %v8525
        %v8554 = vmax.f32 %v8504, %v8532
        %v8555 = vmax.f32 %v8511, %v8539
        %v8556 = vlaneseq
        %vm8557 = vcmp.ge.s32.totalorder %v8556, 0
        %vm8558 = vcmp.lt.s32.totalorder %v8556, 64
        %vm8559 = vmand %vm8557, %vm8558
        %8560 = vst.msk [vmem:[#allocation6] sm:$0x1] %vm8559, %v8540
        %8562 = vrot.lane.b32.xlu0 %v8541, 64
        %v8563 = vpop.permute.xlu0 %8562
        %vm8565 = vcmp.ge.s32.totalorder %v8556, 64
        %vm8566 = vcmp.lt.s32.totalorder %v8556, 128
        %vm8567 = vmand %vm8565, %vm8566
        %8568 = vst.msk [vmem:[#allocation6] sm:$0x1] %vm8567, %v8563
        %8569 = vst.msk [vmem:[#allocation6 + $0x1] sm:$0x1] %vm8559, %v8542
        %8571 = vrot.lane.b32.xlu0 %v8543, 64
        %v8572 = vpop.permute.xlu0 %8571
        %8574 = vst.msk [vmem:[#allocation6 + $0x1] sm:$0x1] %vm8567, %v8572
        %8575 = vst.msk [vmem:[#allocation6 + $0x2] sm:$0x1] %vm8559, %v8544
        %8577 = vrot.lane.b32.xlu0 %v8545, 64
        %v8578 = vpop.permute.xlu0 %8577
        %8580 = vst.msk [vmem:[#allocation6 + $0x2] sm:$0x1] %vm8567, %v8578
        %8581 = vst.msk [vmem:[#allocation6 + $0x3] sm:$0x1] %vm8559, %v8546
        %8583 = vrot.lane.b32.xlu0 %v8547, 64
        %v8584 = vpop.permute.xlu0 %8583
        %8586 = vst.msk [vmem:[#allocation6 + $0x3] sm:$0x1] %vm8567, %v8584
        %8587 = vst.msk [vmem:[#allocation6 + $0x4] sm:$0x1] %vm8559, %v8548
        %8589 = vrot.lane.b32.xlu0 %v8549, 64
        %v8590 = vpop.permute.xlu0 %8589
        %8592 = vst.msk [vmem:[#allocation6 + $0x4] sm:$0x1] %vm8567, %v8590
        %8593 = vst.msk [vmem:[#allocation6 + $0x5] sm:$0x1] %vm8559, %v8550
        %8595 = vrot.lane.b32.xlu0 %v8551, 64
        %v8596 = vpop.permute.xlu0 %8595
        %8598 = vst.msk [vmem:[#allocation6 + $0x5] sm:$0x1] %vm8567, %v8596
        %8599 = vst.msk [vmem:[#allocation6 + $0x6] sm:$0x1] %vm8559, %v8552
        %8601 = vrot.lane.b32.xlu0 %v8553, 64
        %v8602 = vpop.permute.xlu0 %8601
        %8604 = vst.msk [vmem:[#allocation6 + $0x6] sm:$0x1] %vm8567, %v8602
        %8605 = vst.msk [vmem:[#allocation6 + $0x7] sm:$0x1] %vm8559, %v8554
        %8607 = vrot.lane.b32.xlu0 %v8555, 64
        %v8608 = vpop.permute.xlu0 %8607
        %8610 = vst.msk [vmem:[#allocation6 + $0x7] sm:$0x1] %vm8567, %v8608
        %v8611 = vld [vmem:[#allocation6] sm:$0xff]
        %v8612 = vld [vmem:[#allocation12] sm:$0xff]
        %v8613 = vld [vmem:[#allocation12 + $0x8] sm:$0xff]
        %v8614 = vld [vmem:[#allocation12 + $0x10] sm:$0xff]
        %v8615 = vld [vmem:[#allocation12 + $0x18] sm:$0xff]
        %v8616 = vld [vmem:[#allocation12 + $0x20] sm:$0xff]
        %v8617 = vld [vmem:[#allocation12 + $0x28] sm:$0xff]
        %v8618 = vld [vmem:[#allocation12 + $0x30] sm:$0xff]
        %v8619 = vld [vmem:[#allocation12 + $0x38] sm:$0xff]
        %v8620 = vld [vmem:[#allocation12 + $0x40] sm:$0xff]
        %v8621 = vld [vmem:[#allocation12 + $0x48] sm:$0xff]
        %v8622 = vld [vmem:[#allocation12 + $0x50] sm:$0xff]
        %v8623 = vld [vmem:[#allocation12 + $0x58] sm:$0xff]
        %v8624 = vld [vmem:[#allocation12 + $0x60] sm:$0xff]
        %v8625 = vld [vmem:[#allocation12 + $0x68] sm:$0xff]
        %v8626 = vld [vmem:[#allocation12 + $0x70] sm:$0xff]
        %v8627 = vld [vmem:[#allocation12 + $0x78] sm:$0xff]
        %v8628 = vld [vmem:[#allocation12 + $0x80] sm:$0xff]
        %v8629 = vld [vmem:[#allocation12 + $0x88] sm:$0xff]
        %v8630 = vld [vmem:[#allocation12 + $0x90] sm:$0xff]
        %v8631 = vld [vmem:[#allocation12 + $0x98] sm:$0xff]
        %v8632 = vld [vmem:[#allocation12 + $0xa0] sm:$0xff]
        %v8633 = vld [vmem:[#allocation12 + $0xa8] sm:$0xff]
        %v8634 = vld [vmem:[#allocation12 + $0xb0] sm:$0xff]
        %v8635 = vld [vmem:[#allocation12 + $0xb8] sm:$0xff]
        %v8636 = vld [vmem:[#allocation12 + $0xc0] sm:$0xff]
        %v8637 = vld [vmem:[#allocation12 + $0xc8] sm:$0xff]
        %v8638 = vld [vmem:[#allocation12 + $0xd0] sm:$0xff]
        %v8639 = vld [vmem:[#allocation12 + $0xd8] sm:$0xff]
        %v8640 = vld [vmem:[#allocation12 + $0xe0] sm:$0xff]
        %v8641 = vld [vmem:[#allocation12 + $0xe8] sm:$0xff]
        %v8642 = vld [vmem:[#allocation12 + $0xf0] sm:$0xff]
        %v8643 = vld [vmem:[#allocation12 + $0xf8] sm:$0xff]
        %v8644 = vld [vmem:[#allocation12 + $0x100] sm:$0xff]
        %v8645 = vld [vmem:[#allocation12 + $0x108] sm:$0xff]
        %v8646 = vld [vmem:[#allocation12 + $0x110] sm:$0xff]
        %v8647 = vld [vmem:[#allocation12 + $0x118] sm:$0xff]
        %v8648 = vld [vmem:[#allocation12 + $0x120] sm:$0xff]
        %v8649 = vld [vmem:[#allocation12 + $0x128] sm:$0xff]
        %v8650 = vld [vmem:[#allocation12 + $0x130] sm:$0xff]
        %v8651 = vld [vmem:[#allocation12 + $0x138] sm:$0xff]
        %v8652 = vld [vmem:[#allocation12 + $0x140] sm:$0xff]
        %v8653 = vld [vmem:[#allocation12 + $0x148] sm:$0xff]
        %v8654 = vld [vmem:[#allocation12 + $0x150] sm:$0xff]
        %v8655 = vld [vmem:[#allocation12 + $0x158] sm:$0xff]
        %v8656 = vld [vmem:[#allocation12 + $0x160] sm:$0xff]
        %v8657 = vld [vmem:[#allocation12 + $0x168] sm:$0xff]
        %v8658 = vld [vmem:[#allocation12 + $0x170] sm:$0xff]
        %v8659 = vld [vmem:[#allocation12 + $0x178] sm:$0xff]
        %v8660 = vld [vmem:[#allocation12 + $0x180] sm:$0xff]
        %v8661 = vld [vmem:[#allocation12 + $0x188] sm:$0xff]
        %v8662 = vld [vmem:[#allocation12 + $0x190] sm:$0xff]
        %v8663 = vld [vmem:[#allocation12 + $0x198] sm:$0xff]
        %v8664 = vld [vmem:[#allocation12 + $0x1a0] sm:$0xff]
        %v8665 = vld [vmem:[#allocation12 + $0x1a8] sm:$0xff]
        %v8666 = vld [vmem:[#allocation12 + $0x1b0] sm:$0xff]
        %v8667 = vld [vmem:[#allocation12 + $0x1b8] sm:$0xff]
        %v8668 = vld [vmem:[#allocation12 + $0x1c0] sm:$0xff]
        %v8669 = vld [vmem:[#allocation12 + $0x1c8] sm:$0xff]
        %v8670 = vld [vmem:[#allocation12 + $0x1d0] sm:$0xff]
        %v8671 = vld [vmem:[#allocation12 + $0x1d8] sm:$0xff]
        %v8672 = vld [vmem:[#allocation12 + $0x1e0] sm:$0xff]
        %v8673 = vld [vmem:[#allocation12 + $0x1e8] sm:$0xff]
        %v8674 = vld [vmem:[#allocation12 + $0x1f0] sm:$0xff]
        %v8675 = vld [vmem:[#allocation12 + $0x1f8] sm:$0xff]
        %v8676 = vld [vmem:[#allocation12 + $0x200] sm:$0xff]
        %v8677 = vld [vmem:[#allocation12 + $0x208] sm:$0xff]
        %v8678 = vld [vmem:[#allocation12 + $0x210] sm:$0xff]
        %v8679 = vld [vmem:[#allocation12 + $0x218] sm:$0xff]
        %v8680 = vld [vmem:[#allocation12 + $0x220] sm:$0xff]
        %v8681 = vld [vmem:[#allocation12 + $0x228] sm:$0xff]
        %v8682 = vld [vmem:[#allocation12 + $0x230] sm:$0xff]
        %v8683 = vld [vmem:[#allocation12 + $0x238] sm:$0xff]
        %v8684 = vld [vmem:[#allocation12 + $0x240] sm:$0xff]
        %v8685 = vld [vmem:[#allocation12 + $0x248] sm:$0xff]
        %v8686 = vld [vmem:[#allocation12 + $0x250] sm:$0xff]
        %v8687 = vld [vmem:[#allocation12 + $0x258] sm:$0xff]
        %v8688 = vld [vmem:[#allocation12 + $0x260] sm:$0xff]
        %v8689 = vld [vmem:[#allocation12 + $0x268] sm:$0xff]
        %v8690 = vld [vmem:[#allocation12 + $0x270] sm:$0xff]
        %v8691 = vld [vmem:[#allocation12 + $0x278] sm:$0xff]
        %v8692 = vld [vmem:[#allocation12 + $0x280] sm:$0xff]
        %v8693 = vld [vmem:[#allocation12 + $0x288] sm:$0xff]
        %v8694 = vld [vmem:[#allocation12 + $0x290] sm:$0xff]
        %v8695 = vld [vmem:[#allocation12 + $0x298] sm:$0xff]
        %v8696 = vld [vmem:[#allocation12 + $0x2a0] sm:$0xff]
        %v8697 = vld [vmem:[#allocation12 + $0x2a8] sm:$0xff]
        %v8698 = vld [vmem:[#allocation12 + $0x2b0] sm:$0xff]
        %v8699 = vld [vmem:[#allocation12 + $0x2b8] sm:$0xff]
        %v8700 = vld [vmem:[#allocation12 + $0x2c0] sm:$0xff]
        %v8701 = vld [vmem:[#allocation12 + $0x2c8] sm:$0xff]
        %v8702 = vld [vmem:[#allocation12 + $0x2d0] sm:$0xff]
        %v8703 = vld [vmem:[#allocation12 + $0x2d8] sm:$0xff]
        %v8704 = vld [vmem:[#allocation12 + $0x2e0] sm:$0xff]
        %v8705 = vld [vmem:[#allocation12 + $0x2e8] sm:$0xff]
        %v8706 = vld [vmem:[#allocation12 + $0x2f0] sm:$0xff]
        %v8707 = vld [vmem:[#allocation12 + $0x2f8] sm:$0xff]
        %v8708 = vld [vmem:[#allocation12 + $0x300] sm:$0xff]
        %v8709 = vld [vmem:[#allocation12 + $0x308] sm:$0xff]
        %v8710 = vld [vmem:[#allocation12 + $0x310] sm:$0xff]
        %v8711 = vld [vmem:[#allocation12 + $0x318] sm:$0xff]
        %v8712 = vld [vmem:[#allocation12 + $0x320] sm:$0xff]
        %v8713 = vld [vmem:[#allocation12 + $0x328] sm:$0xff]
        %v8714 = vld [vmem:[#allocation12 + $0x330] sm:$0xff]
        %v8715 = vld [vmem:[#allocation12 + $0x338] sm:$0xff]
        %v8716 = vld [vmem:[#allocation12 + $0x340] sm:$0xff]
        %v8717 = vld [vmem:[#allocation12 + $0x348] sm:$0xff]
        %v8718 = vld [vmem:[#allocation12 + $0x350] sm:$0xff]
        %v8719 = vld [vmem:[#allocation12 + $0x358] sm:$0xff]
        %v8720 = vld [vmem:[#allocation12 + $0x360] sm:$0xff]
        %v8721 = vld [vmem:[#allocation12 + $0x368] sm:$0xff]
        %v8722 = vld [vmem:[#allocation12 + $0x370] sm:$0xff]
        %v8723 = vld [vmem:[#allocation12 + $0x378] sm:$0xff]
        %v8724 = vld [vmem:[#allocation12 + $0x380] sm:$0xff]
        %v8725 = vld [vmem:[#allocation12 + $0x388] sm:$0xff]
        %v8726 = vld [vmem:[#allocation12 + $0x390] sm:$0xff]
        %v8727 = vld [vmem:[#allocation12 + $0x398] sm:$0xff]
        %v8728 = vld [vmem:[#allocation12 + $0x3a0] sm:$0xff]
        %v8729 = vld [vmem:[#allocation12 + $0x3a8] sm:$0xff]
        %v8730 = vld [vmem:[#allocation12 + $0x3b0] sm:$0xff]
        %v8731 = vld [vmem:[#allocation12 + $0x3b8] sm:$0xff]
        %v8732 = vld [vmem:[#allocation12 + $0x3c0] sm:$0xff]
        %v8733 = vld [vmem:[#allocation12 + $0x3c8] sm:$0xff]
        %v8734 = vld [vmem:[#allocation12 + $0x3d0] sm:$0xff]
        %v8735 = vld [vmem:[#allocation12 + $0x3d8] sm:$0xff]
        %v8736 = vld [vmem:[#allocation12 + $0x3e0] sm:$0xff]
        %v8737 = vld [vmem:[#allocation12 + $0x3e8] sm:$0xff]
        %v8738 = vld [vmem:[#allocation12 + $0x3f0] sm:$0xff]
        %v8739 = vld [vmem:[#allocation12 + $0x3f8] sm:$0xff]
        %v8740 = vld [vmem:[#allocation12 + $0x400] sm:$0xff]
        %v8741 = vld [vmem:[#allocation12 + $0x408] sm:$0xff]
        %v8742 = vld [vmem:[#allocation12 + $0x410] sm:$0xff]
        %v8743 = vld [vmem:[#allocation12 + $0x418] sm:$0xff]
        %v8744 = vld [vmem:[#allocation12 + $0x420] sm:$0xff]
        %v8745 = vld [vmem:[#allocation12 + $0x428] sm:$0xff]
        %v8746 = vld [vmem:[#allocation12 + $0x430] sm:$0xff]
        %v8747 = vld [vmem:[#allocation12 + $0x438] sm:$0xff]
        %v8748 = vld [vmem:[#allocation12 + $0x440] sm:$0xff]
        %v8749 = vld [vmem:[#allocation12 + $0x448] sm:$0xff]
        %v8750 = vld [vmem:[#allocation12 + $0x450] sm:$0xff]
        %v8751 = vld [vmem:[#allocation12 + $0x458] sm:$0xff]
        %v8752 = vld [vmem:[#allocation12 + $0x460] sm:$0xff]
        %v8753 = vld [vmem:[#allocation12 + $0x468] sm:$0xff]
        %v8754 = vld [vmem:[#allocation12 + $0x470] sm:$0xff]
        %v8755 = vld [vmem:[#allocation12 + $0x478] sm:$0xff]
        %v8756 = vld [vmem:[#allocation12 + $0x480] sm:$0xff]
        %v8757 = vld [vmem:[#allocation12 + $0x488] sm:$0xff]
        %v8758 = vld [vmem:[#allocation12 + $0x490] sm:$0xff]
        %v8759 = vld [vmem:[#allocation12 + $0x498] sm:$0xff]
        %v8760 = vld [vmem:[#allocation12 + $0x4a0] sm:$0xff]
        %v8761 = vld [vmem:[#allocation12 + $0x4a8] sm:$0xff]
        %v8762 = vld [vmem:[#allocation12 + $0x4b0] sm:$0xff]
        %v8763 = vld [vmem:[#allocation12 + $0x4b8] sm:$0xff]
        %v8764 = vld [vmem:[#allocation12 + $0x4c0] sm:$0xff]
        %v8765 = vld [vmem:[#allocation12 + $0x4c8] sm:$0xff]
        %v8766 = vld [vmem:[#allocation12 + $0x4d0] sm:$0xff]
        %v8767 = vld [vmem:[#allocation12 + $0x4d8] sm:$0xff]
        %v8768 = vld [vmem:[#allocation12 + $0x4e0] sm:$0xff]
        %v8769 = vld [vmem:[#allocation12 + $0x4e8] sm:$0xff]
        %v8770 = vld [vmem:[#allocation12 + $0x4f0] sm:$0xff]
        %v8771 = vld [vmem:[#allocation12 + $0x4f8] sm:$0xff]
        %v8772 = vld [vmem:[#allocation12 + $0x500] sm:$0xff]
        %v8773 = vld [vmem:[#allocation12 + $0x508] sm:$0xff]
        %v8774 = vld [vmem:[#allocation12 + $0x510] sm:$0xff]
        %v8775 = vld [vmem:[#allocation12 + $0x518] sm:$0xff]
        %v8776 = vld [vmem:[#allocation12 + $0x520] sm:$0xff]
        %v8777 = vld [vmem:[#allocation12 + $0x528] sm:$0xff]
        %v8778 = vld [vmem:[#allocation12 + $0x530] sm:$0xff]
        %v8779 = vld [vmem:[#allocation12 + $0x538] sm:$0xff]
        %v8780 = vld [vmem:[#allocation12 + $0x540] sm:$0xff]
        %v8781 = vld [vmem:[#allocation12 + $0x548] sm:$0xff]
        %v8782 = vld [vmem:[#allocation12 + $0x550] sm:$0xff]
        %v8783 = vld [vmem:[#allocation12 + $0x558] sm:$0xff]
        %v8784 = vld [vmem:[#allocation12 + $0x560] sm:$0xff]
        %v8785 = vld [vmem:[#allocation12 + $0x568] sm:$0xff]
        %v8786 = vld [vmem:[#allocation12 + $0x570] sm:$0xff]
        %v8787 = vld [vmem:[#allocation12 + $0x578] sm:$0xff]
        %v8788 = vld [vmem:[#allocation12 + $0x580] sm:$0xff]
        %v8789 = vld [vmem:[#allocation12 + $0x588] sm:$0xff]
        %v8790 = vld [vmem:[#allocation12 + $0x590] sm:$0xff]
        %v8791 = vld [vmem:[#allocation12 + $0x598] sm:$0xff]
        %v8792 = vld [vmem:[#allocation12 + $0x5a0] sm:$0xff]
        %v8793 = vld [vmem:[#allocation12 + $0x5a8] sm:$0xff]
        %v8794 = vld [vmem:[#allocation12 + $0x5b0] sm:$0xff]
        %v8795 = vld [vmem:[#allocation12 + $0x5b8] sm:$0xff]
        %v8796 = vld [vmem:[#allocation12 + $0x5c0] sm:$0xff]
        %v8797 = vld [vmem:[#allocation12 + $0x5c8] sm:$0xff]
        %v8798 = vld [vmem:[#allocation12 + $0x5d0] sm:$0xff]
        %v8799 = vld [vmem:[#allocation12 + $0x5d8] sm:$0xff]
        %v8800 = vld [vmem:[#allocation12 + $0x5e0] sm:$0xff]
        %v8801 = vld [vmem:[#allocation12 + $0x5e8] sm:$0xff]
        %v8802 = vld [vmem:[#allocation12 + $0x5f0] sm:$0xff]
        %v8803 = vld [vmem:[#allocation12 + $0x5f8] sm:$0xff]
        %v8804 = vld [vmem:[#allocation12 + $0x600] sm:$0xff]
        %v8805 = vld [vmem:[#allocation12 + $0x608] sm:$0xff]
        %v8806 = vld [vmem:[#allocation12 + $0x610] sm:$0xff]
        %v8807 = vld [vmem:[#allocation12 + $0x618] sm:$0xff]
        %v8808 = vld [vmem:[#allocation12 + $0x620] sm:$0xff]
        %v8809 = vld [vmem:[#allocation12 + $0x628] sm:$0xff]
        %v8810 = vld [vmem:[#allocation12 + $0x630] sm:$0xff]
        %v8811 = vld [vmem:[#allocation12 + $0x638] sm:$0xff]
        %v8812 = vld [vmem:[#allocation12 + $0x640] sm:$0xff]
        %v8813 = vld [vmem:[#allocation12 + $0x648] sm:$0xff]
        %v8814 = vld [vmem:[#allocation12 + $0x650] sm:$0xff]
        %v8815 = vld [vmem:[#allocation12 + $0x658] sm:$0xff]
        %v8816 = vld [vmem:[#allocation12 + $0x660] sm:$0xff]
        %v8817 = vld [vmem:[#allocation12 + $0x668] sm:$0xff]
        %v8818 = vld [vmem:[#allocation12 + $0x670] sm:$0xff]
        %v8819 = vld [vmem:[#allocation12 + $0x678] sm:$0xff]
        %v8820 = vld [vmem:[#allocation12 + $0x680] sm:$0xff]
        %v8821 = vld [vmem:[#allocation12 + $0x688] sm:$0xff]
        %v8822 = vld [vmem:[#allocation12 + $0x690] sm:$0xff]
        %v8823 = vld [vmem:[#allocation12 + $0x698] sm:$0xff]
        %v8824 = vld [vmem:[#allocation12 + $0x6a0] sm:$0xff]
        %v8825 = vld [vmem:[#allocation12 + $0x6a8] sm:$0xff]
        %v8826 = vld [vmem:[#allocation12 + $0x6b0] sm:$0xff]
        %v8827 = vld [vmem:[#allocation12 + $0x6b8] sm:$0xff]
        %v8828 = vld [vmem:[#allocation12 + $0x6c0] sm:$0xff]
        %v8829 = vld [vmem:[#allocation12 + $0x6c8] sm:$0xff]
        %v8830 = vld [vmem:[#allocation12 + $0x6d0] sm:$0xff]
        %v8831 = vld [vmem:[#allocation12 + $0x6d8] sm:$0xff]
        %v8832 = vld [vmem:[#allocation12 + $0x6e0] sm:$0xff]
        %v8833 = vld [vmem:[#allocation12 + $0x6e8] sm:$0xff]
        %v8834 = vld [vmem:[#allocation12 + $0x6f0] sm:$0xff]
        %v8835 = vld [vmem:[#allocation12 + $0x6f8] sm:$0xff]
        %v8836 = vld [vmem:[#allocation12 + $0x700] sm:$0xff]
        %v8837 = vld [vmem:[#allocation12 + $0x708] sm:$0xff]
        %v8838 = vld [vmem:[#allocation12 + $0x710] sm:$0xff]
        %v8839 = vld [vmem:[#allocation12 + $0x718] sm:$0xff]
        %v8840 = vld [vmem:[#allocation12 + $0x720] sm:$0xff]
        %v8841 = vld [vmem:[#allocation12 + $0x728] sm:$0xff]
        %v8842 = vld [vmem:[#allocation12 + $0x730] sm:$0xff]
        %v8843 = vld [vmem:[#allocation12 + $0x738] sm:$0xff]
        %v8844 = vld [vmem:[#allocation12 + $0x740] sm:$0xff]
        %v8845 = vld [vmem:[#allocation12 + $0x748] sm:$0xff]
        %v8846 = vld [vmem:[#allocation12 + $0x750] sm:$0xff]
        %v8847 = vld [vmem:[#allocation12 + $0x758] sm:$0xff]
        %v8848 = vld [vmem:[#allocation12 + $0x760] sm:$0xff]
        %v8849 = vld [vmem:[#allocation12 + $0x768] sm:$0xff]
        %v8850 = vld [vmem:[#allocation12 + $0x770] sm:$0xff]
        %v8851 = vld [vmem:[#allocation12 + $0x778] sm:$0xff]
        %v8852 = vld [vmem:[#allocation12 + $0x780] sm:$0xff]
        %v8853 = vld [vmem:[#allocation12 + $0x788] sm:$0xff]
        %v8854 = vld [vmem:[#allocation12 + $0x790] sm:$0xff]
        %v8855 = vld [vmem:[#allocation12 + $0x798] sm:$0xff]
        %v8856 = vld [vmem:[#allocation12 + $0x7a0] sm:$0xff]
        %v8857 = vld [vmem:[#allocation12 + $0x7a8] sm:$0xff]
        %v8858 = vld [vmem:[#allocation12 + $0x7b0] sm:$0xff]
        %v8859 = vld [vmem:[#allocation12 + $0x7b8] sm:$0xff]
        %v8860 = vld [vmem:[#allocation12 + $0x7c0] sm:$0xff]
        %v8861 = vld [vmem:[#allocation12 + $0x7c8] sm:$0xff]
        %v8862 = vld [vmem:[#allocation12 + $0x7d0] sm:$0xff]
        %v8863 = vld [vmem:[#allocation12 + $0x7d8] sm:$0xff]
        %v8864 = vld [vmem:[#allocation12 + $0x7e0] sm:$0xff]
        %v8865 = vld [vmem:[#allocation12 + $0x7e8] sm:$0xff]
        %v8866 = vld [vmem:[#allocation12 + $0x7f0] sm:$0xff]
        %v8867 = vld [vmem:[#allocation12 + $0x7f8] sm:$0xff]
        %v8868 = vld [vmem:[#allocation12 + $0x800] sm:$0xff]
        %v8869 = vld [vmem:[#allocation12 + $0x808] sm:$0xff]
        %v8870 = vld [vmem:[#allocation12 + $0x810] sm:$0xff]
        %v8871 = vld [vmem:[#allocation12 + $0x818] sm:$0xff]
        %v8872 = vld [vmem:[#allocation12 + $0x820] sm:$0xff]
        %v8873 = vld [vmem:[#allocation12 + $0x828] sm:$0xff]
        %v8874 = vld [vmem:[#allocation12 + $0x830] sm:$0xff]
        %v8875 = vld [vmem:[#allocation12 + $0x838] sm:$0xff]
        %v8876 = vld [vmem:[#allocation12 + $0x840] sm:$0xff]
        %v8877 = vld [vmem:[#allocation12 + $0x848] sm:$0xff]
        %v8878 = vld [vmem:[#allocation12 + $0x850] sm:$0xff]
        %v8879 = vld [vmem:[#allocation12 + $0x858] sm:$0xff]
        %v8880 = vld [vmem:[#allocation12 + $0x860] sm:$0xff]
        %v8881 = vld [vmem:[#allocation12 + $0x868] sm:$0xff]
        %v8882 = vld [vmem:[#allocation12 + $0x870] sm:$0xff]
        %v8883 = vld [vmem:[#allocation12 + $0x878] sm:$0xff]
        %v8884 = vld [vmem:[#allocation12 + $0x880] sm:$0xff]
        %v8885 = vld [vmem:[#allocation12 + $0x888] sm:$0xff]
        %v8886 = vld [vmem:[#allocation12 + $0x890] sm:$0xff]
        %v8887 = vld [vmem:[#allocation12 + $0x898] sm:$0xff]
        %v8888 = vld [vmem:[#allocation12 + $0x8a0] sm:$0xff]
        %v8889 = vld [vmem:[#allocation12 + $0x8a8] sm:$0xff]
        %v8890 = vld [vmem:[#allocation12 + $0x8b0] sm:$0xff]
        %v8891 = vld [vmem:[#allocation12 + $0x8b8] sm:$0xff]
        %v8892 = vld [vmem:[#allocation12 + $0x8c0] sm:$0xff]
        %v8893 = vld [vmem:[#allocation12 + $0x8c8] sm:$0xff]
        %v8894 = vld [vmem:[#allocation12 + $0x8d0] sm:$0xff]
        %v8895 = vld [vmem:[#allocation12 + $0x8d8] sm:$0xff]
        %v8896 = vld [vmem:[#allocation12 + $0x8e0] sm:$0xff]
        %v8897 = vld [vmem:[#allocation12 + $0x8e8] sm:$0xff]
        %v8898 = vld [vmem:[#allocation12 + $0x8f0] sm:$0xff]
        %v8899 = vld [vmem:[#allocation12 + $0x8f8] sm:$0xff]
        %v8900 = vld [vmem:[#allocation12 + $0x900] sm:$0xff]
        %v8901 = vld [vmem:[#allocation12 + $0x908] sm:$0xff]
        %v8902 = vld [vmem:[#allocation12 + $0x910] sm:$0xff]
        %v8903 = vld [vmem:[#allocation12 + $0x918] sm:$0xff]
        %v8904 = vld [vmem:[#allocation12 + $0x920] sm:$0xff]
        %v8905 = vld [vmem:[#allocation12 + $0x928] sm:$0xff]
        %v8906 = vld [vmem:[#allocation12 + $0x930] sm:$0xff]
        %v8907 = vld [vmem:[#allocation12 + $0x938] sm:$0xff]
        %v8908 = vld [vmem:[#allocation12 + $0x940] sm:$0xff]
        %v8909 = vld [vmem:[#allocation12 + $0x948] sm:$0xff]
        %v8910 = vld [vmem:[#allocation12 + $0x950] sm:$0xff]
        %v8911 = vld [vmem:[#allocation12 + $0x958] sm:$0xff]
        %v8912 = vld [vmem:[#allocation12 + $0x960] sm:$0xff]
        %v8913 = vld [vmem:[#allocation12 + $0x968] sm:$0xff]
        %v8914 = vld [vmem:[#allocation12 + $0x970] sm:$0xff]
        %v8915 = vld [vmem:[#allocation12 + $0x978] sm:$0xff]
        %v8916 = vld [vmem:[#allocation12 + $0x980] sm:$0xff]
        %v8917 = vld [vmem:[#allocation12 + $0x988] sm:$0xff]
        %v8918 = vld [vmem:[#allocation12 + $0x990] sm:$0xff]
        %v8919 = vld [vmem:[#allocation12 + $0x998] sm:$0xff]
        %v8920 = vld [vmem:[#allocation12 + $0x9a0] sm:$0xff]
        %v8921 = vld [vmem:[#allocation12 + $0x9a8] sm:$0xff]
        %v8922 = vld [vmem:[#allocation12 + $0x9b0] sm:$0xff]
        %v8923 = vld [vmem:[#allocation12 + $0x9b8] sm:$0xff]
        %v8924 = vld [vmem:[#allocation12 + $0x9c0] sm:$0xff]
        %v8925 = vld [vmem:[#allocation12 + $0x9c8] sm:$0xff]
        %v8926 = vld [vmem:[#allocation12 + $0x9d0] sm:$0xff]
        %v8927 = vld [vmem:[#allocation12 + $0x9d8] sm:$0xff]
        %v8928 = vld [vmem:[#allocation12 + $0x9e0] sm:$0xff]
        %v8929 = vld [vmem:[#allocation12 + $0x9e8] sm:$0xff]
        %v8930 = vld [vmem:[#allocation12 + $0x9f0] sm:$0xff]
        %v8931 = vld [vmem:[#allocation12 + $0x9f8] sm:$0xff]
        %v8932 = vld [vmem:[#allocation12 + $0xa00] sm:$0xff]
        %v8933 = vld [vmem:[#allocation12 + $0xa08] sm:$0xff]
        %v8934 = vld [vmem:[#allocation12 + $0xa10] sm:$0xff]
        %v8935 = vld [vmem:[#allocation12 + $0xa18] sm:$0xff]
        %v8936 = vld [vmem:[#allocation12 + $0xa20] sm:$0xff]
        %v8937 = vld [vmem:[#allocation12 + $0xa28] sm:$0xff]
        %v8938 = vld [vmem:[#allocation12 + $0xa30] sm:$0xff]
        %v8939 = vld [vmem:[#allocation12 + $0xa38] sm:$0xff]
        %v8940 = vld [vmem:[#allocation12 + $0xa40] sm:$0xff]
        %v8941 = vld [vmem:[#allocation12 + $0xa48] sm:$0xff]
        %v8942 = vld [vmem:[#allocation12 + $0xa50] sm:$0xff]
        %v8943 = vld [vmem:[#allocation12 + $0xa58] sm:$0xff]
        %v8944 = vld [vmem:[#allocation12 + $0xa60] sm:$0xff]
        %v8945 = vld [vmem:[#allocation12 + $0xa68] sm:$0xff]
        %v8946 = vld [vmem:[#allocation12 + $0xa70] sm:$0xff]
        %v8947 = vld [vmem:[#allocation12 + $0xa78] sm:$0xff]
        %v8948 = vld [vmem:[#allocation12 + $0xa80] sm:$0xff]
        %v8949 = vld [vmem:[#allocation12 + $0xa88] sm:$0xff]
        %v8950 = vld [vmem:[#allocation12 + $0xa90] sm:$0xff]
        %v8951 = vld [vmem:[#allocation12 + $0xa98] sm:$0xff]
        %v8952 = vld [vmem:[#allocation12 + $0xaa0] sm:$0xff]
        %v8953 = vld [vmem:[#allocation12 + $0xaa8] sm:$0xff]
        %v8954 = vld [vmem:[#allocation12 + $0xab0] sm:$0xff]
        %v8955 = vld [vmem:[#allocation12 + $0xab8] sm:$0xff]
        %v8956 = vld [vmem:[#allocation12 + $0xac0] sm:$0xff]
        %v8957 = vld [vmem:[#allocation12 + $0xac8] sm:$0xff]
        %v8958 = vld [vmem:[#allocation12 + $0xad0] sm:$0xff]
        %v8959 = vld [vmem:[#allocation12 + $0xad8] sm:$0xff]
        %v8960 = vld [vmem:[#allocation12 + $0xae0] sm:$0xff]
        %v8961 = vld [vmem:[#allocation12 + $0xae8] sm:$0xff]
        %v8962 = vld [vmem:[#allocation12 + $0xaf0] sm:$0xff]
        %v8963 = vld [vmem:[#allocation12 + $0xaf8] sm:$0xff]
        %v8964 = vld [vmem:[#allocation12 + $0xb00] sm:$0xff]
        %v8965 = vld [vmem:[#allocation12 + $0xb08] sm:$0xff]
        %v8966 = vld [vmem:[#allocation12 + $0xb10] sm:$0xff]
        %v8967 = vld [vmem:[#allocation12 + $0xb18] sm:$0xff]
        %v8968 = vld [vmem:[#allocation12 + $0xb20] sm:$0xff]
        %v8969 = vld [vmem:[#allocation12 + $0xb28] sm:$0xff]
        %v8970 = vld [vmem:[#allocation12 + $0xb30] sm:$0xff]
        %v8971 = vld [vmem:[#allocation12 + $0xb38] sm:$0xff]
        %v8972 = vld [vmem:[#allocation12 + $0xb40] sm:$0xff]
        %v8973 = vld [vmem:[#allocation12 + $0xb48] sm:$0xff]
        %v8974 = vld [vmem:[#allocation12 + $0xb50] sm:$0xff]
        %v8975 = vld [vmem:[#allocation12 + $0xb58] sm:$0xff]
        %v8976 = vld [vmem:[#allocation12 + $0xb60] sm:$0xff]
        %v8977 = vld [vmem:[#allocation12 + $0xb68] sm:$0xff]
        %v8978 = vld [vmem:[#allocation12 + $0xb70] sm:$0xff]
        %v8979 = vld [vmem:[#allocation12 + $0xb78] sm:$0xff]
        %v8980 = vld [vmem:[#allocation12 + $0xb80] sm:$0xff]
        %v8981 = vld [vmem:[#allocation12 + $0xb88] sm:$0xff]
        %v8982 = vld [vmem:[#allocation12 + $0xb90] sm:$0xff]
        %v8983 = vld [vmem:[#allocation12 + $0xb98] sm:$0xff]
        %v8984 = vld [vmem:[#allocation12 + $0xba0] sm:$0xff]
        %v8985 = vld [vmem:[#allocation12 + $0xba8] sm:$0xff]
        %v8986 = vld [vmem:[#allocation12 + $0xbb0] sm:$0xff]
        %v8987 = vld [vmem:[#allocation12 + $0xbb8] sm:$0xff]
        %v8988 = vld [vmem:[#allocation12 + $0xbc0] sm:$0xff]
        %v8989 = vld [vmem:[#allocation12 + $0xbc8] sm:$0xff]
        %v8990 = vld [vmem:[#allocation12 + $0xbd0] sm:$0xff]
        %v8991 = vld [vmem:[#allocation12 + $0xbd8] sm:$0xff]
        %v8992 = vld [vmem:[#allocation12 + $0xbe0] sm:$0xff]
        %v8993 = vld [vmem:[#allocation12 + $0xbe8] sm:$0xff]
        %v8994 = vld [vmem:[#allocation12 + $0xbf0] sm:$0xff]
        %v8995 = vld [vmem:[#allocation12 + $0xbf8] sm:$0xff]
        %v8996 = vld [vmem:[#allocation12 + $0xc00] sm:$0xff]
        %v8997 = vld [vmem:[#allocation12 + $0xc08] sm:$0xff]
        %v8998 = vld [vmem:[#allocation12 + $0xc10] sm:$0xff]
        %v8999 = vld [vmem:[#allocation12 + $0xc18] sm:$0xff]
        %v9000 = vld [vmem:[#allocation12 + $0xc20] sm:$0xff]
        %v9001 = vld [vmem:[#allocation12 + $0xc28] sm:$0xff]
        %v9002 = vld [vmem:[#allocation12 + $0xc30] sm:$0xff]
        %v9003 = vld [vmem:[#allocation12 + $0xc38] sm:$0xff]
        %v9004 = vld [vmem:[#allocation12 + $0xc40] sm:$0xff]
        %v9005 = vld [vmem:[#allocation12 + $0xc48] sm:$0xff]
        %v9006 = vld [vmem:[#allocation12 + $0xc50] sm:$0xff]
        %v9007 = vld [vmem:[#allocation12 + $0xc58] sm:$0xff]
        %v9008 = vld [vmem:[#allocation12 + $0xc60] sm:$0xff]
        %v9009 = vld [vmem:[#allocation12 + $0xc68] sm:$0xff]
        %v9010 = vld [vmem:[#allocation12 + $0xc70] sm:$0xff]
        %v9011 = vld [vmem:[#allocation12 + $0xc78] sm:$0xff]
        %v9012 = vld [vmem:[#allocation12 + $0xc80] sm:$0xff]
        %v9013 = vld [vmem:[#allocation12 + $0xc88] sm:$0xff]
        %v9014 = vld [vmem:[#allocation12 + $0xc90] sm:$0xff]
        %v9015 = vld [vmem:[#allocation12 + $0xc98] sm:$0xff]
        %v9016 = vld [vmem:[#allocation12 + $0xca0] sm:$0xff]
        %v9017 = vld [vmem:[#allocation12 + $0xca8] sm:$0xff]
        %v9018 = vld [vmem:[#allocation12 + $0xcb0] sm:$0xff]
        %v9019 = vld [vmem:[#allocation12 + $0xcb8] sm:$0xff]
        %v9020 = vld [vmem:[#allocation12 + $0xcc0] sm:$0xff]
        %v9021 = vld [vmem:[#allocation12 + $0xcc8] sm:$0xff]
        %v9022 = vld [vmem:[#allocation12 + $0xcd0] sm:$0xff]
        %v9023 = vld [vmem:[#allocation12 + $0xcd8] sm:$0xff]
        %v9024 = vld [vmem:[#allocation12 + $0xce0] sm:$0xff]
        %v9025 = vld [vmem:[#allocation12 + $0xce8] sm:$0xff]
        %v9026 = vld [vmem:[#allocation12 + $0xcf0] sm:$0xff]
        %v9027 = vld [vmem:[#allocation12 + $0xcf8] sm:$0xff]
        %v9028 = vld [vmem:[#allocation12 + $0xd00] sm:$0xff]
        %v9029 = vld [vmem:[#allocation12 + $0xd08] sm:$0xff]
        %v9030 = vld [vmem:[#allocation12 + $0xd10] sm:$0xff]
        %v9031 = vld [vmem:[#allocation12 + $0xd18] sm:$0xff]
        %v9032 = vld [vmem:[#allocation12 + $0xd20] sm:$0xff]
        %v9033 = vld [vmem:[#allocation12 + $0xd28] sm:$0xff]
        %v9034 = vld [vmem:[#allocation12 + $0xd30] sm:$0xff]
        %v9035 = vld [vmem:[#allocation12 + $0xd38] sm:$0xff]
        %v9036 = vld [vmem:[#allocation12 + $0xd40] sm:$0xff]
        %v9037 = vld [vmem:[#allocation12 + $0xd48] sm:$0xff]
        %v9038 = vld [vmem:[#allocation12 + $0xd50] sm:$0xff]
        %v9039 = vld [vmem:[#allocation12 + $0xd58] sm:$0xff]
        %v9040 = vld [vmem:[#allocation12 + $0xd60] sm:$0xff]
        %v9041 = vld [vmem:[#allocation12 + $0xd68] sm:$0xff]
        %v9042 = vld [vmem:[#allocation12 + $0xd70] sm:$0xff]
        %v9043 = vld [vmem:[#allocation12 + $0xd78] sm:$0xff]
        %v9044 = vld [vmem:[#allocation12 + $0xd80] sm:$0xff]
        %v9045 = vld [vmem:[#allocation12 + $0xd88] sm:$0xff]
        %v9046 = vld [vmem:[#allocation12 + $0xd90] sm:$0xff]
        %v9047 = vld [vmem:[#allocation12 + $0xd98] sm:$0xff]
        %v9048 = vld [vmem:[#allocation12 + $0xda0] sm:$0xff]
        %v9049 = vld [vmem:[#allocation12 + $0xda8] sm:$0xff]
        %v9050 = vld [vmem:[#allocation12 + $0xdb0] sm:$0xff]
        %v9051 = vld [vmem:[#allocation12 + $0xdb8] sm:$0xff]
        %v9052 = vld [vmem:[#allocation12 + $0xdc0] sm:$0xff]
        %v9053 = vld [vmem:[#allocation12 + $0xdc8] sm:$0xff]
        %v9054 = vld [vmem:[#allocation12 + $0xdd0] sm:$0xff]
        %v9055 = vld [vmem:[#allocation12 + $0xdd8] sm:$0xff]
        %v9056 = vld [vmem:[#allocation12 + $0xde0] sm:$0xff]
        %v9057 = vld [vmem:[#allocation12 + $0xde8] sm:$0xff]
        %v9058 = vld [vmem:[#allocation12 + $0xdf0] sm:$0xff]
        %v9059 = vld [vmem:[#allocation12 + $0xdf8] sm:$0xff]
        %v9060 = vld [vmem:[#allocation12 + $0xe00] sm:$0xff]
        %v9061 = vld [vmem:[#allocation12 + $0xe08] sm:$0xff]
        %v9062 = vld [vmem:[#allocation12 + $0xe10] sm:$0xff]
        %v9063 = vld [vmem:[#allocation12 + $0xe18] sm:$0xff]
        %v9064 = vld [vmem:[#allocation12 + $0xe20] sm:$0xff]
        %v9065 = vld [vmem:[#allocation12 + $0xe28] sm:$0xff]
        %v9066 = vld [vmem:[#allocation12 + $0xe30] sm:$0xff]
        %v9067 = vld [vmem:[#allocation12 + $0xe38] sm:$0xff]
        %v9068 = vld [vmem:[#allocation12 + $0xe40] sm:$0xff]
        %v9069 = vld [vmem:[#allocation12 + $0xe48] sm:$0xff]
        %v9070 = vld [vmem:[#allocation12 + $0xe50] sm:$0xff]
        %v9071 = vld [vmem:[#allocation12 + $0xe58] sm:$0xff]
        %v9072 = vld [vmem:[#allocation12 + $0xe60] sm:$0xff]
        %v9073 = vld [vmem:[#allocation12 + $0xe68] sm:$0xff]
        %v9074 = vld [vmem:[#allocation12 + $0xe70] sm:$0xff]
        %v9075 = vld [vmem:[#allocation12 + $0xe78] sm:$0xff]
        %v9076 = vld [vmem:[#allocation12 + $0xe80] sm:$0xff]
        %v9077 = vld [vmem:[#allocation12 + $0xe88] sm:$0xff]
        %v9078 = vld [vmem:[#allocation12 + $0xe90] sm:$0xff]
        %v9079 = vld [vmem:[#allocation12 + $0xe98] sm:$0xff]
        %v9080 = vld [vmem:[#allocation12 + $0xea0] sm:$0xff]
        %v9081 = vld [vmem:[#allocation12 + $0xea8] sm:$0xff]
        %v9082 = vld [vmem:[#allocation12 + $0xeb0] sm:$0xff]
        %v9083 = vld [vmem:[#allocation12 + $0xeb8] sm:$0xff]
        %v9084 = vld [vmem:[#allocation12 + $0xec0] sm:$0xff]
        %v9085 = vld [vmem:[#allocation12 + $0xec8] sm:$0xff]
        %v9086 = vld [vmem:[#allocation12 + $0xed0] sm:$0xff]
        %v9087 = vld [vmem:[#allocation12 + $0xed8] sm:$0xff]
        %v9088 = vld [vmem:[#allocation12 + $0xee0] sm:$0xff]
        %v9089 = vld [vmem:[#allocation12 + $0xee8] sm:$0xff]
        %v9090 = vld [vmem:[#allocation12 + $0xef0] sm:$0xff]
        %v9091 = vld [vmem:[#allocation12 + $0xef8] sm:$0xff]
        %v9092 = vld [vmem:[#allocation12 + $0xf00] sm:$0xff]
        %v9093 = vld [vmem:[#allocation12 + $0xf08] sm:$0xff]
        %v9094 = vld [vmem:[#allocation12 + $0xf10] sm:$0xff]
        %v9095 = vld [vmem:[#allocation12 + $0xf18] sm:$0xff]
        %v9096 = vld [vmem:[#allocation12 + $0xf20] sm:$0xff]
        %v9097 = vld [vmem:[#allocation12 + $0xf28] sm:$0xff]
        %v9098 = vld [vmem:[#allocation12 + $0xf30] sm:$0xff]
        %v9099 = vld [vmem:[#allocation12 + $0xf38] sm:$0xff]
        %v9100 = vld [vmem:[#allocation12 + $0xf40] sm:$0xff]
        %v9101 = vld [vmem:[#allocation12 + $0xf48] sm:$0xff]
        %v9102 = vld [vmem:[#allocation12 + $0xf50] sm:$0xff]
        %v9103 = vld [vmem:[#allocation12 + $0xf58] sm:$0xff]
        %v9104 = vld [vmem:[#allocation12 + $0xf60] sm:$0xff]
        %v9105 = vld [vmem:[#allocation12 + $0xf68] sm:$0xff]
        %v9106 = vld [vmem:[#allocation12 + $0xf70] sm:$0xff]
        %v9107 = vld [vmem:[#allocation12 + $0xf78] sm:$0xff]
        %v9108 = vld [vmem:[#allocation12 + $0xf80] sm:$0xff]
        %v9109 = vld [vmem:[#allocation12 + $0xf88] sm:$0xff]
        %v9110 = vld [vmem:[#allocation12 + $0xf90] sm:$0xff]
        %v9111 = vld [vmem:[#allocation12 + $0xf98] sm:$0xff]
        %v9112 = vld [vmem:[#allocation12 + $0xfa0] sm:$0xff]
        %v9113 = vld [vmem:[#allocation12 + $0xfa8] sm:$0xff]
        %v9114 = vld [vmem:[#allocation12 + $0xfb0] sm:$0xff]
        %v9115 = vld [vmem:[#allocation12 + $0xfb8] sm:$0xff]
        %v9116 = vld [vmem:[#allocation12 + $0xfc0] sm:$0xff]
        %v9117 = vld [vmem:[#allocation12 + $0xfc8] sm:$0xff]
        %v9118 = vld [vmem:[#allocation12 + $0xfd0] sm:$0xff]
        %v9119 = vld [vmem:[#allocation12 + $0xfd8] sm:$0xff]
        %v9120 = vld [vmem:[#allocation12 + $0xfe0] sm:$0xff]
        %v9121 = vld [vmem:[#allocation12 + $0xfe8] sm:$0xff]
        %v9122 = vld [vmem:[#allocation12 + $0xff0] sm:$0xff]
        %v9123 = vld [vmem:[#allocation12 + $0xff8] sm:$0xff]
        %v9125 = vperm.slane %v8611, 0
        %v9126 = vperm.slane %v8611, 1
        %v9127 = vperm.slane %v8611, 2
        %v9128 = vperm.slane %v8611, 3
        %v9129 = vperm.slane %v8611, 4
        %v9130 = vperm.slane %v8611, 5
        %v9131 = vperm.slane %v8611, 6
        %v9132 = vperm.slane %v8611, 7
        %9141 = vmatpush.msra.mxu0 %v8672
        %9142 = vmatpush.msra.mxu0 %v8668
        %9143 = vmatpush.msra.mxu0 %v8664
        %9144 = vmatpush.msra.mxu0 %v8660
        %9145 = vmatpush.msra.mxu0 %v8656
        %9146 = vmatpush.msra.mxu0 %v8652
        %9147 = vmatpush.msra.mxu0 %v8648
        %9148 = vmatpush.msra.mxu0 %v8644
        %9149 = vmatpush.msra.mxu0 %v8640
        %9150 = vmatpush.msra.mxu0 %v8636
        %9151 = vmatpush.msra.mxu0 %v8632
        %9152 = vmatpush.msra.mxu0 %v8628
        %9153 = vmatpush.msra.mxu0 %v8624
        %9154 = vmatpush.msra.mxu0 %v8620
        %9155 = vmatpush.msra.mxu0 %v8616
        %9156 = vmatpush.msra.mxu0 %v8612
        %9157 = vmatmul.f32.gmra.mxu0 %v9125
        %v9158 = vpop.f32.mrf.mxu0
        %v9159 = vadd.f32 0.0, %v9158
        %9160 = vdwg.mxu0
        %9161 = vmatpush.msra.mxu0 %v8736
        %9162 = vmatpush.msra.mxu0 %v8732
        %9163 = vmatpush.msra.mxu0 %v8728
        %9164 = vmatpush.msra.mxu0 %v8724
        %9165 = vmatpush.msra.mxu0 %v8720
        %9166 = vmatpush.msra.mxu0 %v8716
        %9167 = vmatpush.msra.mxu0 %v8712
        %9168 = vmatpush.msra.mxu0 %v8708
        %9169 = vmatpush.msra.mxu0 %v8704
        %9170 = vmatpush.msra.mxu0 %v8700
        %9171 = vmatpush.msra.mxu0 %v8696
        %9172 = vmatpush.msra.mxu0 %v8692
        %9173 = vmatpush.msra.mxu0 %v8688
        %9174 = vmatpush.msra.mxu0 %v8684
        %9175 = vmatpush.msra.mxu0 %v8680
        %9176 = vmatpush.msra.mxu0 %v8676
        %9177 = vmatmul.f32.gmra.mxu0 %v9126
        %v9178 = vpop.f32.mrf.mxu0
        %v9179 = vadd.f32 %v9159, %v9178
        %9180 = vdwg.mxu0
        %9181 = vmatpush.msra.mxu0 %v8800
        %9182 = vmatpush.msra.mxu0 %v8796
        %9183 = vmatpush.msra.mxu0 %v8792
        %9184 = vmatpush.msra.mxu0 %v8788
        %9185 = vmatpush.msra.mxu0 %v8784
        %9186 = vmatpush.msra.mxu0 %v8780
        %9187 = vmatpush.msra.mxu0 %v8776
        %9188 = vmatpush.msra.mxu0 %v8772
        %9189 = vmatpush.msra.mxu0 %v8768
        %9190 = vmatpush.msra.mxu0 %v8764
        %9191 = vmatpush.msra.mxu0 %v8760
        %9192 = vmatpush.msra.mxu0 %v8756
        %9193 = vmatpush.msra.mxu0 %v8752
        %9194 = vmatpush.msra.mxu0 %v8748
        %9195 = vmatpush.msra.mxu0 %v8744
        %9196 = vmatpush.msra.mxu0 %v8740
        %9197 = vmatmul.f32.gmra.mxu0 %v9127
        %v9198 = vpop.f32.mrf.mxu0
        %v9199 = vadd.f32 %v9179, %v9198
        %9200 = vdwg.mxu0
        %9201 = vmatpush.msra.mxu0 %v8864
        %9202 = vmatpush.msra.mxu0 %v8860
        %9203 = vmatpush.msra.mxu0 %v8856
        %9204 = vmatpush.msra.mxu0 %v8852
        %9205 = vmatpush.msra.mxu0 %v8848
        %9206 = vmatpush.msra.mxu0 %v8844
        %9207 = vmatpush.msra.mxu0 %v8840
        %9208 = vmatpush.msra.mxu0 %v8836
        %9209 = vmatpush.msra.mxu0 %v8832
        %9210 = vmatpush.msra.mxu0 %v8828
        %9211 = vmatpush.msra.mxu0 %v8824
        %9212 = vmatpush.msra.mxu0 %v8820
        %9213 = vmatpush.msra.mxu0 %v8816
        %9214 = vmatpush.msra.mxu0 %v8812
        %9215 = vmatpush.msra.mxu0 %v8808
        %9216 = vmatpush.msra.mxu0 %v8804
        %9217 = vmatmul.f32.gmra.mxu0 %v9128
        %v9218 = vpop.f32.mrf.mxu0
        %v9219 = vadd.f32 %v9199, %v9218
        %9220 = vdwg.mxu0
        %9221 = vmatpush.msra.mxu0 %v8928
        %9222 = vmatpush.msra.mxu0 %v8924
        %9223 = vmatpush.msra.mxu0 %v8920
        %9224 = vmatpush.msra.mxu0 %v8916
        %9225 = vmatpush.msra.mxu0 %v8912
        %9226 = vmatpush.msra.mxu0 %v8908
        %9227 = vmatpush.msra.mxu0 %v8904
        %9228 = vmatpush.msra.mxu0 %v8900
        %9229 = vmatpush.msra.mxu0 %v8896
        %9230 = vmatpush.msra.mxu0 %v8892
        %9231 = vmatpush.msra.mxu0 %v8888
        %9232 = vmatpush.msra.mxu0 %v8884
        %9233 = vmatpush.msra.mxu0 %v8880
        %9234 = vmatpush.msra.mxu0 %v8876
        %9235 = vmatpush.msra.mxu0 %v8872
        %9236 = vmatpush.msra.mxu0 %v8868
        %9237 = vmatmul.f32.gmra.mxu0 %v9129
        %v9238 = vpop.f32.mrf.mxu0
        %v9239 = vadd.f32 %v9219, %v9238
        %9240 = vdwg.mxu0
        %9241 = vmatpush.msra.mxu0 %v8992
        %9242 = vmatpush.msra.mxu0 %v8988
        %9243 = vmatpush.msra.mxu0 %v8984
        %9244 = vmatpush.msra.mxu0 %v8980
        %9245 = vmatpush.msra.mxu0 %v8976
        %9246 = vmatpush.msra.mxu0 %v8972
        %9247 = vmatpush.msra.mxu0 %v8968
        %9248 = vmatpush.msra.mxu0 %v8964
        %9249 = vmatpush.msra.mxu0 %v8960
        %9250 = vmatpush.msra.mxu0 %v8956
        %9251 = vmatpush.msra.mxu0 %v8952
        %9252 = vmatpush.msra.mxu0 %v8948
        %9253 = vmatpush.msra.mxu0 %v8944
        %9254 = vmatpush.msra.mxu0 %v8940
        %9255 = vmatpush.msra.mxu0 %v8936
        %9256 = vmatpush.msra.mxu0 %v8932
        %9257 = vmatmul.f32.gmra.mxu0 %v9130
        %v9258 = vpop.f32.mrf.mxu0
        %v9259 = vadd.f32 %v9239, %v9258
        %9260 = vdwg.mxu0
        %9261 = vmatpush.msra.mxu0 %v9056
        %9262 = vmatpush.msra.mxu0 %v9052
        %9263 = vmatpush.msra.mxu0 %v9048
        %9264 = vmatpush.msra.mxu0 %v9044
        %9265 = vmatpush.msra.mxu0 %v9040
        %9266 = vmatpush.msra.mxu0 %v9036
        %9267 = vmatpush.msra.mxu0 %v9032
        %9268 = vmatpush.msra.mxu0 %v9028
        %9269 = vmatpush.msra.mxu0 %v9024
        %9270 = vmatpush.msra.mxu0 %v9020
        %9271 = vmatpush.msra.mxu0 %v9016
        %9272 = vmatpush.msra.mxu0 %v9012
        %9273 = vmatpush.msra.mxu0 %v9008
        %9274 = vmatpush.msra.mxu0 %v9004
        %9275 = vmatpush.msra.mxu0 %v9000
        %9276 = vmatpush.msra.mxu0 %v8996
        %9277 = vmatmul.f32.gmra.mxu0 %v9131
        %v9278 = vpop.f32.mrf.mxu0
        %v9279 = vadd.f32 %v9259, %v9278
        %9280 = vdwg.mxu0
        %9281 = vmatpush.msra.mxu0 %v9120
        %9282 = vmatpush.msra.mxu0 %v9116
        %9283 = vmatpush.msra.mxu0 %v9112
        %9284 = vmatpush.msra.mxu0 %v9108
        %9285 = vmatpush.msra.mxu0 %v9104
        %9286 = vmatpush.msra.mxu0 %v9100
        %9287 = vmatpush.msra.mxu0 %v9096
        %9288 = vmatpush.msra.mxu0 %v9092
        %9289 = vmatpush.msra.mxu0 %v9088
        %9290 = vmatpush.msra.mxu0 %v9084
        %9291 = vmatpush.msra.mxu0 %v9080
        %9292 = vmatpush.msra.mxu0 %v9076
        %9293 = vmatpush.msra.mxu0 %v9072
        %9294 = vmatpush.msra.mxu0 %v9068
        %9295 = vmatpush.msra.mxu0 %v9064
        %9296 = vmatpush.msra.mxu0 %v9060
        %9297 = vmatmul.f32.gmra.mxu0 %v9132
        %v9298 = vpop.f32.mrf.mxu0
        %v9299 = vadd.f32 %v9279, %v9298
        %9300 = vdwg.mxu0
        %9301 = vmatpush.msra.mxu0 %v8673
        %9302 = vmatpush.msra.mxu0 %v8669
        %9303 = vmatpush.msra.mxu0 %v8665
        %9304 = vmatpush.msra.mxu0 %v8661
        %9305 = vmatpush.msra.mxu0 %v8657
        %9306 = vmatpush.msra.mxu0 %v8653
        %9307 = vmatpush.msra.mxu0 %v8649
        %9308 = vmatpush.msra.mxu0 %v8645
        %9309 = vmatpush.msra.mxu0 %v8641
        %9310 = vmatpush.msra.mxu0 %v8637
        %9311 = vmatpush.msra.mxu0 %v8633
        %9312 = vmatpush.msra.mxu0 %v8629
        %9313 = vmatpush.msra.mxu0 %v8625
        %9314 = vmatpush.msra.mxu0 %v8621
        %9315 = vmatpush.msra.mxu0 %v8617
        %9316 = vmatpush.msra.mxu0 %v8613
        %9317 = vmatmul.f32.gmra.mxu0 %v9125
        %v9318 = vpop.f32.mrf.mxu0
        %v9319 = vadd.f32 0.0, %v9318
        %9320 = vdwg.mxu0
        %9321 = vmatpush.msra.mxu0 %v8737
        %9322 = vmatpush.msra.mxu0 %v8733
        %9323 = vmatpush.msra.mxu0 %v8729
        %9324 = vmatpush.msra.mxu0 %v8725
        %9325 = vmatpush.msra.mxu0 %v8721
        %9326 = vmatpush.msra.mxu0 %v8717
        %9327 = vmatpush.msra.mxu0 %v8713
        %9328 = vmatpush.msra.mxu0 %v8709
        %9329 = vmatpush.msra.mxu0 %v8705
        %9330 = vmatpush.msra.mxu0 %v8701
        %9331 = vmatpush.msra.mxu0 %v8697
        %9332 = vmatpush.msra.mxu0 %v8693
        %9333 = vmatpush.msra.mxu0 %v8689
        %9334 = vmatpush.msra.mxu0 %v8685
        %9335 = vmatpush.msra.mxu0 %v8681
        %9336 = vmatpush.msra.mxu0 %v8677
        %9337 = vmatmul.f32.gmra.mxu0 %v9126
        %v9338 = vpop.f32.mrf.mxu0
        %v9339 = vadd.f32 %v9319, %v9338
        %9340 = vdwg.mxu0
        %9341 = vmatpush.msra.mxu0 %v8801
        %9342 = vmatpush.msra.mxu0 %v8797
        %9343 = vmatpush.msra.mxu0 %v8793
        %9344 = vmatpush.msra.mxu0 %v8789
        %9345 = vmatpush.msra.mxu0 %v8785
        %9346 = vmatpush.msra.mxu0 %v8781
        %9347 = vmatpush.msra.mxu0 %v8777
        %9348 = vmatpush.msra.mxu0 %v8773
        %9349 = vmatpush.msra.mxu0 %v8769
        %9350 = vmatpush.msra.mxu0 %v8765
        %9351 = vmatpush.msra.mxu0 %v8761
        %9352 = vmatpush.msra.mxu0 %v8757
        %9353 = vmatpush.msra.mxu0 %v8753
        %9354 = vmatpush.msra.mxu0 %v8749
        %9355 = vmatpush.msra.mxu0 %v8745
        %9356 = vmatpush.msra.mxu0 %v8741
        %9357 = vmatmul.f32.gmra.mxu0 %v9127
        %v9358 = vpop.f32.mrf.mxu0
        %v9359 = vadd.f32 %v9339, %v9358
        %9360 = vdwg.mxu0
        %9361 = vmatpush.msra.mxu0 %v8865
        %9362 = vmatpush.msra.mxu0 %v8861
        %9363 = vmatpush.msra.mxu0 %v8857
        %9364 = vmatpush.msra.mxu0 %v8853
        %9365 = vmatpush.msra.mxu0 %v8849
        %9366 = vmatpush.msra.mxu0 %v8845
        %9367 = vmatpush.msra.mxu0 %v8841
        %9368 = vmatpush.msra.mxu0 %v8837
        %9369 = vmatpush.msra.mxu0 %v8833
        %9370 = vmatpush.msra.mxu0 %v8829
        %9371 = vmatpush.msra.mxu0 %v8825
        %9372 = vmatpush.msra.mxu0 %v8821
        %9373 = vmatpush.msra.mxu0 %v8817
        %9374 = vmatpush.msra.mxu0 %v8813
        %9375 = vmatpush.msra.mxu0 %v8809
        %9376 = vmatpush.msra.mxu0 %v8805
        %9377 = vmatmul.f32.gmra.mxu0 %v9128
        %v9378 = vpop.f32.mrf.mxu0
        %v9379 = vadd.f32 %v9359, %v9378
        %9380 = vdwg.mxu0
        %9381 = vmatpush.msra.mxu0 %v8929
        %9382 = vmatpush.msra.mxu0 %v8925
        %9383 = vmatpush.msra.mxu0 %v8921
        %9384 = vmatpush.msra.mxu0 %v8917
        %9385 = vmatpush.msra.mxu0 %v8913
        %9386 = vmatpush.msra.mxu0 %v8909
        %9387 = vmatpush.msra.mxu0 %v8905
        %9388 = vmatpush.msra.mxu0 %v8901
        %9389 = vmatpush.msra.mxu0 %v8897
        %9390 = vmatpush.msra.mxu0 %v8893
        %9391 = vmatpush.msra.mxu0 %v8889
        %9392 = vmatpush.msra.mxu0 %v8885
        %9393 = vmatpush.msra.mxu0 %v8881
        %9394 = vmatpush.msra.mxu0 %v8877
        %9395 = vmatpush.msra.mxu0 %v8873
        %9396 = vmatpush.msra.mxu0 %v8869
        %9397 = vmatmul.f32.gmra.mxu0 %v9129
        %v9398 = vpop.f32.mrf.mxu0
        %v9399 = vadd.f32 %v9379, %v9398
        %9400 = vdwg.mxu0
        %9401 = vmatpush.msra.mxu0 %v8993
        %9402 = vmatpush.msra.mxu0 %v8989
        %9403 = vmatpush.msra.mxu0 %v8985
        %9404 = vmatpush.msra.mxu0 %v8981
        %9405 = vmatpush.msra.mxu0 %v8977
        %9406 = vmatpush.msra.mxu0 %v8973
        %9407 = vmatpush.msra.mxu0 %v8969
        %9408 = vmatpush.msra.mxu0 %v8965
        %9409 = vmatpush.msra.mxu0 %v8961
        %9410 = vmatpush.msra.mxu0 %v8957
        %9411 = vmatpush.msra.mxu0 %v8953
        %9412 = vmatpush.msra.mxu0 %v8949
        %9413 = vmatpush.msra.mxu0 %v8945
        %9414 = vmatpush.msra.mxu0 %v8941
        %9415 = vmatpush.msra.mxu0 %v8937
        %9416 = vmatpush.msra.mxu0 %v8933
        %9417 = vmatmul.f32.gmra.mxu0 %v9130
        %v9418 = vpop.f32.mrf.mxu0
        %v9419 = vadd.f32 %v9399, %v9418
        %9420 = vdwg.mxu0
        %9421 = vmatpush.msra.mxu0 %v9057
        %9422 = vmatpush.msra.mxu0 %v9053
        %9423 = vmatpush.msra.mxu0 %v9049
        %9424 = vmatpush.msra.mxu0 %v9045
        %9425 = vmatpush.msra.mxu0 %v9041
        %9426 = vmatpush.msra.mxu0 %v9037
        %9427 = vmatpush.msra.mxu0 %v9033
        %9428 = vmatpush.msra.mxu0 %v9029
        %9429 = vmatpush.msra.mxu0 %v9025
        %9430 = vmatpush.msra.mxu0 %v9021
        %9431 = vmatpush.msra.mxu0 %v9017
        %9432 = vmatpush.msra.mxu0 %v9013
        %9433 = vmatpush.msra.mxu0 %v9009
        %9434 = vmatpush.msra.mxu0 %v9005
        %9435 = vmatpush.msra.mxu0 %v9001
        %9436 = vmatpush.msra.mxu0 %v8997
        %9437 = vmatmul.f32.gmra.mxu0 %v9131
        %v9438 = vpop.f32.mrf.mxu0
        %v9439 = vadd.f32 %v9419, %v9438
        %9440 = vdwg.mxu0
        %9441 = vmatpush.msra.mxu0 %v9121
        %9442 = vmatpush.msra.mxu0 %v9117
        %9443 = vmatpush.msra.mxu0 %v9113
        %9444 = vmatpush.msra.mxu0 %v9109
        %9445 = vmatpush.msra.mxu0 %v9105
        %9446 = vmatpush.msra.mxu0 %v9101
        %9447 = vmatpush.msra.mxu0 %v9097
        %9448 = vmatpush.msra.mxu0 %v9093
        %9449 = vmatpush.msra.mxu0 %v9089
        %9450 = vmatpush.msra.mxu0 %v9085
        %9451 = vmatpush.msra.mxu0 %v9081
        %9452 = vmatpush.msra.mxu0 %v9077
        %9453 = vmatpush.msra.mxu0 %v9073
        %9454 = vmatpush.msra.mxu0 %v9069
        %9455 = vmatpush.msra.mxu0 %v9065
        %9456 = vmatpush.msra.mxu0 %v9061
        %9457 = vmatmul.f32.gmra.mxu0 %v9132
        %v9458 = vpop.f32.mrf.mxu0
        %v9459 = vadd.f32 %v9439, %v9458
        %9460 = vdwg.mxu0
        %9461 = vmatpush.msra.mxu0 %v8674
        %9462 = vmatpush.msra.mxu0 %v8670
        %9463 = vmatpush.msra.mxu0 %v8666
        %9464 = vmatpush.msra.mxu0 %v8662
        %9465 = vmatpush.msra.mxu0 %v8658
        %9466 = vmatpush.msra.mxu0 %v8654
        %9467 = vmatpush.msra.mxu0 %v8650
        %9468 = vmatpush.msra.mxu0 %v8646
        %9469 = vmatpush.msra.mxu0 %v8642
        %9470 = vmatpush.msra.mxu0 %v8638
        %9471 = vmatpush.msra.mxu0 %v8634
        %9472 = vmatpush.msra.mxu0 %v8630
        %9473 = vmatpush.msra.mxu0 %v8626
        %9474 = vmatpush.msra.mxu0 %v8622
        %9475 = vmatpush.msra.mxu0 %v8618
        %9476 = vmatpush.msra.mxu0 %v8614
        %9477 = vmatmul.f32.gmra.mxu0 %v9125
        %v9478 = vpop.f32.mrf.mxu0
        %v9479 = vadd.f32 0.0, %v9478
        %9480 = vdwg.mxu0
        %9481 = vmatpush.msra.mxu0 %v8738
        %9482 = vmatpush.msra.mxu0 %v8734
        %9483 = vmatpush.msra.mxu0 %v8730
        %9484 = vmatpush.msra.mxu0 %v8726
        %9485 = vmatpush.msra.mxu0 %v8722
        %9486 = vmatpush.msra.mxu0 %v8718
        %9487 = vmatpush.msra.mxu0 %v8714
        %9488 = vmatpush.msra.mxu0 %v8710
        %9489 = vmatpush.msra.mxu0 %v8706
        %9490 = vmatpush.msra.mxu0 %v8702
        %9491 = vmatpush.msra.mxu0 %v8698
        %9492 = vmatpush.msra.mxu0 %v8694
        %9493 = vmatpush.msra.mxu0 %v8690
        %9494 = vmatpush.msra.mxu0 %v8686
        %9495 = vmatpush.msra.mxu0 %v8682
        %9496 = vmatpush.msra.mxu0 %v8678
        %9497 = vmatmul.f32.gmra.mxu0 %v9126
        %v9498 = vpop.f32.mrf.mxu0
        %v9499 = vadd.f32 %v9479, %v9498
        %9500 = vdwg.mxu0
        %9501 = vmatpush.msra.mxu0 %v8802
        %9502 = vmatpush.msra.mxu0 %v8798
        %9503 = vmatpush.msra.mxu0 %v8794
        %9504 = vmatpush.msra.mxu0 %v8790
        %9505 = vmatpush.msra.mxu0 %v8786
        %9506 = vmatpush.msra.mxu0 %v8782
        %9507 = vmatpush.msra.mxu0 %v8778
        %9508 = vmatpush.msra.mxu0 %v8774
        %9509 = vmatpush.msra.mxu0 %v8770
        %9510 = vmatpush.msra.mxu0 %v8766
        %9511 = vmatpush.msra.mxu0 %v8762
        %9512 = vmatpush.msra.mxu0 %v8758
        %9513 = vmatpush.msra.mxu0 %v8754
        %9514 = vmatpush.msra.mxu0 %v8750
        %9515 = vmatpush.msra.mxu0 %v8746
        %9516 = vmatpush.msra.mxu0 %v8742
        %9517 = vmatmul.f32.gmra.mxu0 %v9127
        %v9518 = vpop.f32.mrf.mxu0
        %v9519 = vadd.f32 %v9499, %v9518
        %9520 = vdwg.mxu0
        %9521 = vmatpush.msra.mxu0 %v8866
        %9522 = vmatpush.msra.mxu0 %v8862
        %9523 = vmatpush.msra.mxu0 %v8858
        %9524 = vmatpush.msra.mxu0 %v8854
        %9525 = vmatpush.msra.mxu0 %v8850
        %9526 = vmatpush.msra.mxu0 %v8846
        %9527 = vmatpush.msra.mxu0 %v8842
        %9528 = vmatpush.msra.mxu0 %v8838
        %9529 = vmatpush.msra.mxu0 %v8834
        %9530 = vmatpush.msra.mxu0 %v8830
        %9531 = vmatpush.msra.mxu0 %v8826
        %9532 = vmatpush.msra.mxu0 %v8822
        %9533 = vmatpush.msra.mxu0 %v8818
        %9534 = vmatpush.msra.mxu0 %v8814
        %9535 = vmatpush.msra.mxu0 %v8810
        %9536 = vmatpush.msra.mxu0 %v8806
        %9537 = vmatmul.f32.gmra.mxu0 %v9128
        %v9538 = vpop.f32.mrf.mxu0
        %v9539 = vadd.f32 %v9519, %v9538
        %9540 = vdwg.mxu0
        %9541 = vmatpush.msra.mxu0 %v8930
        %9542 = vmatpush.msra.mxu0 %v8926
        %9543 = vmatpush.msra.mxu0 %v8922
        %9544 = vmatpush.msra.mxu0 %v8918
        %9545 = vmatpush.msra.mxu0 %v8914
        %9546 = vmatpush.msra.mxu0 %v8910
        %9547 = vmatpush.msra.mxu0 %v8906
        %9548 = vmatpush.msra.mxu0 %v8902
        %9549 = vmatpush.msra.mxu0 %v8898
        %9550 = vmatpush.msra.mxu0 %v8894
        %9551 = vmatpush.msra.mxu0 %v8890
        %9552 = vmatpush.msra.mxu0 %v8886
        %9553 = vmatpush.msra.mxu0 %v8882
        %9554 = vmatpush.msra.mxu0 %v8878
        %9555 = vmatpush.msra.mxu0 %v8874
        %9556 = vmatpush.msra.mxu0 %v8870
        %9557 = vmatmul.f32.gmra.mxu0 %v9129
        %v9558 = vpop.f32.mrf.mxu0
        %v9559 = vadd.f32 %v9539, %v9558
        %9560 = vdwg.mxu0
        %9561 = vmatpush.msra.mxu0 %v8994
        %9562 = vmatpush.msra.mxu0 %v8990
        %9563 = vmatpush.msra.mxu0 %v8986
        %9564 = vmatpush.msra.mxu0 %v8982
        %9565 = vmatpush.msra.mxu0 %v8978
        %9566 = vmatpush.msra.mxu0 %v8974
        %9567 = vmatpush.msra.mxu0 %v8970
        %9568 = vmatpush.msra.mxu0 %v8966
        %9569 = vmatpush.msra.mxu0 %v8962
        %9570 = vmatpush.msra.mxu0 %v8958
        %9571 = vmatpush.msra.mxu0 %v8954
        %9572 = vmatpush.msra.mxu0 %v8950
        %9573 = vmatpush.msra.mxu0 %v8946
        %9574 = vmatpush.msra.mxu0 %v8942
        %9575 = vmatpush.msra.mxu0 %v8938
        %9576 = vmatpush.msra.mxu0 %v8934
        %9577 = vmatmul.f32.gmra.mxu0 %v9130
        %v9578 = vpop.f32.mrf.mxu0
        %v9579 = vadd.f32 %v9559, %v9578
        %9580 = vdwg.mxu0
        %9581 = vmatpush.msra.mxu0 %v9058
        %9582 = vmatpush.msra.mxu0 %v9054
        %9583 = vmatpush.msra.mxu0 %v9050
        %9584 = vmatpush.msra.mxu0 %v9046
        %9585 = vmatpush.msra.mxu0 %v9042
        %9586 = vmatpush.msra.mxu0 %v9038
        %9587 = vmatpush.msra.mxu0 %v9034
        %9588 = vmatpush.msra.mxu0 %v9030
        %9589 = vmatpush.msra.mxu0 %v9026
        %9590 = vmatpush.msra.mxu0 %v9022
        %9591 = vmatpush.msra.mxu0 %v9018
        %9592 = vmatpush.msra.mxu0 %v9014
        %9593 = vmatpush.msra.mxu0 %v9010
        %9594 = vmatpush.msra.mxu0 %v9006
        %9595 = vmatpush.msra.mxu0 %v9002
        %9596 = vmatpush.msra.mxu0 %v8998
        %9597 = vmatmul.f32.gmra.mxu0 %v9131
        %v9598 = vpop.f32.mrf.mxu0
        %v9599 = vadd.f32 %v9579, %v9598
        %9600 = vdwg.mxu0
        %9601 = vmatpush.msra.mxu0 %v9122
        %9602 = vmatpush.msra.mxu0 %v9118
        %9603 = vmatpush.msra.mxu0 %v9114
        %9604 = vmatpush.msra.mxu0 %v9110
        %9605 = vmatpush.msra.mxu0 %v9106
        %9606 = vmatpush.msra.mxu0 %v9102
        %9607 = vmatpush.msra.mxu0 %v9098
        %9608 = vmatpush.msra.mxu0 %v9094
        %9609 = vmatpush.msra.mxu0 %v9090
        %9610 = vmatpush.msra.mxu0 %v9086
        %9611 = vmatpush.msra.mxu0 %v9082
        %9612 = vmatpush.msra.mxu0 %v9078
        %9613 = vmatpush.msra.mxu0 %v9074
        %9614 = vmatpush.msra.mxu0 %v9070
        %9615 = vmatpush.msra.mxu0 %v9066
        %9616 = vmatpush.msra.mxu0 %v9062
        %9617 = vmatmul.f32.gmra.mxu0 %v9132
        %v9618 = vpop.f32.mrf.mxu0
        %v9619 = vadd.f32 %v9599, %v9618
        %9620 = vdwg.mxu0
        %9621 = vmatpush.msra.mxu0 %v8675
        %9622 = vmatpush.msra.mxu0 %v8671
        %9623 = vmatpush.msra.mxu0 %v8667
        %9624 = vmatpush.msra.mxu0 %v8663
        %9625 = vmatpush.msra.mxu0 %v8659
        %9626 = vmatpush.msra.mxu0 %v8655
        %9627 = vmatpush.msra.mxu0 %v8651
        %9628 = vmatpush.msra.mxu0 %v8647
        %9629 = vmatpush.msra.mxu0 %v8643
        %9630 = vmatpush.msra.mxu0 %v8639
        %9631 = vmatpush.msra.mxu0 %v8635
        %9632 = vmatpush.msra.mxu0 %v8631
        %9633 = vmatpush.msra.mxu0 %v8627
        %9634 = vmatpush.msra.mxu0 %v8623
        %9635 = vmatpush.msra.mxu0 %v8619
        %9636 = vmatpush.msra.mxu0 %v8615
        %9637 = vmatmul.f32.gmra.mxu0 %v9125
        %v9638 = vpop.f32.mrf.mxu0
        %v9639 = vadd.f32 0.0, %v9638
        %9640 = vdwg.mxu0
        %9641 = vmatpush.msra.mxu0 %v8739
        %9642 = vmatpush.msra.mxu0 %v8735
        %9643 = vmatpush.msra.mxu0 %v8731
        %9644 = vmatpush.msra.mxu0 %v8727
        %9645 = vmatpush.msra.mxu0 %v8723
        %9646 = vmatpush.msra.mxu0 %v8719
        %9647 = vmatpush.msra.mxu0 %v8715
        %9648 = vmatpush.msra.mxu0 %v8711
        %9649 = vmatpush.msra.mxu0 %v8707
        %9650 = vmatpush.msra.mxu0 %v8703
        %9651 = vmatpush.msra.mxu0 %v8699
        %9652 = vmatpush.msra.mxu0 %v8695
        %9653 = vmatpush.msra.mxu0 %v8691
        %9654 = vmatpush.msra.mxu0 %v8687
        %9655 = vmatpush.msra.mxu0 %v8683
        %9656 = vmatpush.msra.mxu0 %v8679
        %9657 = vmatmul.f32.gmra.mxu0 %v9126
        %v9658 = vpop.f32.mrf.mxu0
        %v9659 = vadd.f32 %v9639, %v9658
        %9660 = vdwg.mxu0
        %9661 = vmatpush.msra.mxu0 %v8803
        %9662 = vmatpush.msra.mxu0 %v8799
        %9663 = vmatpush.msra.mxu0 %v8795
        %9664 = vmatpush.msra.mxu0 %v8791
        %9665 = vmatpush.msra.mxu0 %v8787
        %9666 = vmatpush.msra.mxu0 %v8783
        %9667 = vmatpush.msra.mxu0 %v8779
        %9668 = vmatpush.msra.mxu0 %v8775
        %9669 = vmatpush.msra.mxu0 %v8771
        %9670 = vmatpush.msra.mxu0 %v8767
        %9671 = vmatpush.msra.mxu0 %v8763
        %9672 = vmatpush.msra.mxu0 %v8759
        %9673 = vmatpush.msra.mxu0 %v8755
        %9674 = vmatpush.msra.mxu0 %v8751
        %9675 = vmatpush.msra.mxu0 %v8747
        %9676 = vmatpush.msra.mxu0 %v8743
        %9677 = vmatmul.f32.gmra.mxu0 %v9127
        %v9678 = vpop.f32.mrf.mxu0
        %v9679 = vadd.f32 %v9659, %v9678
        %9680 = vdwg.mxu0
        %9681 = vmatpush.msra.mxu0 %v8867
        %9682 = vmatpush.msra.mxu0 %v8863
        %9683 = vmatpush.msra.mxu0 %v8859
        %9684 = vmatpush.msra.mxu0 %v8855
        %9685 = vmatpush.msra.mxu0 %v8851
        %9686 = vmatpush.msra.mxu0 %v8847
        %9687 = vmatpush.msra.mxu0 %v8843
        %9688 = vmatpush.msra.mxu0 %v8839
        %9689 = vmatpush.msra.mxu0 %v8835
        %9690 = vmatpush.msra.mxu0 %v8831
        %9691 = vmatpush.msra.mxu0 %v8827
        %9692 = vmatpush.msra.mxu0 %v8823
        %9693 = vmatpush.msra.mxu0 %v8819
        %9694 = vmatpush.msra.mxu0 %v8815
        %9695 = vmatpush.msra.mxu0 %v8811
        %9696 = vmatpush.msra.mxu0 %v8807
        %9697 = vmatmul.f32.gmra.mxu0 %v9128
        %v9698 = vpop.f32.mrf.mxu0
        %v9699 = vadd.f32 %v9679, %v9698
        %9700 = vdwg.mxu0
        %9701 = vmatpush.msra.mxu0 %v8931
        %9702 = vmatpush.msra.mxu0 %v8927
        %9703 = vmatpush.msra.mxu0 %v8923
        %9704 = vmatpush.msra.mxu0 %v8919
        %9705 = vmatpush.msra.mxu0 %v8915
        %9706 = vmatpush.msra.mxu0 %v8911
        %9707 = vmatpush.msra.mxu0 %v8907
        %9708 = vmatpush.msra.mxu0 %v8903
        %9709 = vmatpush.msra.mxu0 %v8899
        %9710 = vmatpush.msra.mxu0 %v8895
        %9711 = vmatpush.msra.mxu0 %v8891
        %9712 = vmatpush.msra.mxu0 %v8887
        %9713 = vmatpush.msra.mxu0 %v8883
        %9714 = vmatpush.msra.mxu0 %v8879
        %9715 = vmatpush.msra.mxu0 %v8875
        %9716 = vmatpush.msra.mxu0 %v8871
        %9717 = vmatmul.f32.gmra.mxu0 %v9129
        %v9718 = vpop.f32.mrf.mxu0
        %v9719 = vadd.f32 %v9699, %v9718
        %9720 = vdwg.mxu0
        %9721 = vmatpush.msra.mxu0 %v8995
        %9722 = vmatpush.msra.mxu0 %v8991
        %9723 = vmatpush.msra.mxu0 %v8987
        %9724 = vmatpush.msra.mxu0 %v8983
        %9725 = vmatpush.msra.mxu0 %v8979
        %9726 = vmatpush.msra.mxu0 %v8975
        %9727 = vmatpush.msra.mxu0 %v8971
        %9728 = vmatpush.msra.mxu0 %v8967
        %9729 = vmatpush.msra.mxu0 %v8963
        %9730 = vmatpush.msra.mxu0 %v8959
        %9731 = vmatpush.msra.mxu0 %v8955
        %9732 = vmatpush.msra.mxu0 %v8951
        %9733 = vmatpush.msra.mxu0 %v8947
        %9734 = vmatpush.msra.mxu0 %v8943
        %9735 = vmatpush.msra.mxu0 %v8939
        %9736 = vmatpush.msra.mxu0 %v8935
        %9737 = vmatmul.f32.gmra.mxu0 %v9130
        %v9738 = vpop.f32.mrf.mxu0
        %v9739 = vadd.f32 %v9719, %v9738
        %9740 = vdwg.mxu0
        %9741 = vmatpush.msra.mxu0 %v9059
        %9742 = vmatpush.msra.mxu0 %v9055
        %9743 = vmatpush.msra.mxu0 %v9051
        %9744 = vmatpush.msra.mxu0 %v9047
        %9745 = vmatpush.msra.mxu0 %v9043
        %9746 = vmatpush.msra.mxu0 %v9039
        %9747 = vmatpush.msra.mxu0 %v9035
        %9748 = vmatpush.msra.mxu0 %v9031
        %9749 = vmatpush.msra.mxu0 %v9027
        %9750 = vmatpush.msra.mxu0 %v9023
        %9751 = vmatpush.msra.mxu0 %v9019
        %9752 = vmatpush.msra.mxu0 %v9015
        %9753 = vmatpush.msra.mxu0 %v9011
        %9754 = vmatpush.msra.mxu0 %v9007
        %9755 = vmatpush.msra.mxu0 %v9003
        %9756 = vmatpush.msra.mxu0 %v8999
        %9757 = vmatmul.f32.gmra.mxu0 %v9131
        %v9758 = vpop.f32.mrf.mxu0
        %v9759 = vadd.f32 %v9739, %v9758
        %9760 = vdwg.mxu0
        %9761 = vmatpush.msra.mxu0 %v9123
        %9762 = vmatpush.msra.mxu0 %v9119
        %9763 = vmatpush.msra.mxu0 %v9115
        %9764 = vmatpush.msra.mxu0 %v9111
        %9765 = vmatpush.msra.mxu0 %v9107
        %9766 = vmatpush.msra.mxu0 %v9103
        %9767 = vmatpush.msra.mxu0 %v9099
        %9768 = vmatpush.msra.mxu0 %v9095
        %9769 = vmatpush.msra.mxu0 %v9091
        %9770 = vmatpush.msra.mxu0 %v9087
        %9771 = vmatpush.msra.mxu0 %v9083
        %9772 = vmatpush.msra.mxu0 %v9079
        %9773 = vmatpush.msra.mxu0 %v9075
        %9774 = vmatpush.msra.mxu0 %v9071
        %9775 = vmatpush.msra.mxu0 %v9067
        %9776 = vmatpush.msra.mxu0 %v9063
        %9777 = vmatmul.f32.gmra.mxu0 %v9132
        %v9778 = vpop.f32.mrf.mxu0
        %v9779 = vadd.f32 %v9759, %v9778
        %9780 = vdwg.mxu0
        %v9781 = vmax.f32 %v9299, 0.0
        %v9782 = vmax.f32 %v9459, 0.0
        %v9783 = vmax.f32 %v9619, 0.0
        %v9784 = vmax.f32 %v9779, 0.0
        %v9785 = vld [vmem:[%s6] sm:$0xff]
        %v9786 = vld [vmem:[%s6 + $0x8] sm:$0xff]
        %v9787 = vld [vmem:[%s6 + $0x10] sm:$0xff]
        %v9788 = vld [vmem:[%s6 + $0x18] sm:$0xff]
        %v9789 = vld [vmem:[%s6 + $0x20] sm:$0xff]
        %v9790 = vld [vmem:[%s6 + $0x28] sm:$0xff]
        %v9791 = vld [vmem:[%s6 + $0x30] sm:$0xff]
        %v9792 = vld [vmem:[%s6 + $0x38] sm:$0xff]
        %v9793 = vld [vmem:[%s6 + $0x40] sm:$0xff]
        %v9794 = vld [vmem:[%s6 + $0x48] sm:$0xff]
        %v9795 = vld [vmem:[%s6 + $0x50] sm:$0xff]
        %v9796 = vld [vmem:[%s6 + $0x58] sm:$0xff]
        %v9797 = vld [vmem:[%s6 + $0x60] sm:$0xff]
        %v9798 = vld [vmem:[%s6 + $0x68] sm:$0xff]
        %v9799 = vld [vmem:[%s6 + $0x70] sm:$0xff]
        %v9800 = vld [vmem:[%s6 + $0x78] sm:$0xff]
        %v9801 = vld [vmem:[%s6 + $0x80] sm:$0xff]
        %v9802 = vld [vmem:[%s6 + $0x88] sm:$0xff]
        %v9803 = vld [vmem:[%s6 + $0x90] sm:$0xff]
        %v9804 = vld [vmem:[%s6 + $0x98] sm:$0xff]
        %v9805 = vld [vmem:[%s6 + $0xa0] sm:$0xff]
        %v9806 = vld [vmem:[%s6 + $0xa8] sm:$0xff]
        %v9807 = vld [vmem:[%s6 + $0xb0] sm:$0xff]
        %v9808 = vld [vmem:[%s6 + $0xb8] sm:$0xff]
        %v9809 = vld [vmem:[%s6 + $0xc0] sm:$0xff]
        %v9810 = vld [vmem:[%s6 + $0xc8] sm:$0xff]
        %v9811 = vld [vmem:[%s6 + $0xd0] sm:$0xff]
        %v9812 = vld [vmem:[%s6 + $0xd8] sm:$0xff]
        %v9813 = vld [vmem:[%s6 + $0xe0] sm:$0xff]
        %v9814 = vld [vmem:[%s6 + $0xe8] sm:$0xff]
        %v9815 = vld [vmem:[%s6 + $0xf0] sm:$0xff]
        %v9816 = vld [vmem:[%s6 + $0xf8] sm:$0xff]
        %v9817 = vld [vmem:[%s6 + $0x100] sm:$0xff]
        %v9818 = vld [vmem:[%s6 + $0x108] sm:$0xff]
        %v9819 = vld [vmem:[%s6 + $0x110] sm:$0xff]
        %v9820 = vld [vmem:[%s6 + $0x118] sm:$0xff]
        %v9821 = vld [vmem:[%s6 + $0x120] sm:$0xff]
        %v9822 = vld [vmem:[%s6 + $0x128] sm:$0xff]
        %v9823 = vld [vmem:[%s6 + $0x130] sm:$0xff]
        %v9824 = vld [vmem:[%s6 + $0x138] sm:$0xff]
        %v9825 = vld [vmem:[%s6 + $0x140] sm:$0xff]
        %v9826 = vld [vmem:[%s6 + $0x148] sm:$0xff]
        %v9827 = vld [vmem:[%s6 + $0x150] sm:$0xff]
        %v9828 = vld [vmem:[%s6 + $0x158] sm:$0xff]
        %v9829 = vld [vmem:[%s6 + $0x160] sm:$0xff]
        %v9830 = vld [vmem:[%s6 + $0x168] sm:$0xff]
        %v9831 = vld [vmem:[%s6 + $0x170] sm:$0xff]
        %v9832 = vld [vmem:[%s6 + $0x178] sm:$0xff]
        %v9833 = vld [vmem:[%s6 + $0x180] sm:$0xff]
        %v9834 = vld [vmem:[%s6 + $0x188] sm:$0xff]
        %v9835 = vld [vmem:[%s6 + $0x190] sm:$0xff]
        %v9836 = vld [vmem:[%s6 + $0x198] sm:$0xff]
        %v9837 = vld [vmem:[%s6 + $0x1a0] sm:$0xff]
        %v9838 = vld [vmem:[%s6 + $0x1a8] sm:$0xff]
        %v9839 = vld [vmem:[%s6 + $0x1b0] sm:$0xff]
        %v9840 = vld [vmem:[%s6 + $0x1b8] sm:$0xff]
        %v9841 = vld [vmem:[%s6 + $0x1c0] sm:$0xff]
        %v9842 = vld [vmem:[%s6 + $0x1c8] sm:$0xff]
        %v9843 = vld [vmem:[%s6 + $0x1d0] sm:$0xff]
        %v9844 = vld [vmem:[%s6 + $0x1d8] sm:$0xff]
        %v9845 = vld [vmem:[%s6 + $0x1e0] sm:$0xff]
        %v9846 = vld [vmem:[%s6 + $0x1e8] sm:$0xff]
        %v9847 = vld [vmem:[%s6 + $0x1f0] sm:$0xff]
        %v9848 = vld [vmem:[%s6 + $0x1f8] sm:$0xff]
        %9849 = vmatpush.msra.mxu0 %v9800
        %9850 = vmatpush.msra.mxu0 %v9799
        %9851 = vmatpush.msra.mxu0 %v9798
        %9852 = vmatpush.msra.mxu0 %v9797
        %9853 = vmatpush.msra.mxu0 %v9796
        %9854 = vmatpush.msra.mxu0 %v9795
        %9855 = vmatpush.msra.mxu0 %v9794
        %9856 = vmatpush.msra.mxu0 %v9793
        %9857 = vmatpush.msra.mxu0 %v9792
        %9858 = vmatpush.msra.mxu0 %v9791
        %9859 = vmatpush.msra.mxu0 %v9790
        %9860 = vmatpush.msra.mxu0 %v9789
        %9861 = vmatpush.msra.mxu0 %v9788
        %9862 = vmatpush.msra.mxu0 %v9787
        %9863 = vmatpush.msra.mxu0 %v9786
        %9864 = vmatpush.msra.mxu0 %v9785
        %9865 = vmatmul.f32.gmra.mxu0 %v9781
        %v9866 = vpop.f32.mrf.mxu0
        %v9867 = vadd.f32 0.0, %v9866
        %9868 = vdwg.mxu0
        %9869 = vmatpush.msra.mxu0 %v9816
        %9870 = vmatpush.msra.mxu0 %v9815
        %9871 = vmatpush.msra.mxu0 %v9814
        %9872 = vmatpush.msra.mxu0 %v9813
        %9873 = vmatpush.msra.mxu0 %v9812
        %9874 = vmatpush.msra.mxu0 %v9811
        %9875 = vmatpush.msra.mxu0 %v9810
        %9876 = vmatpush.msra.mxu0 %v9809
        %9877 = vmatpush.msra.mxu0 %v9808
        %9878 = vmatpush.msra.mxu0 %v9807
        %9879 = vmatpush.msra.mxu0 %v9806
        %9880 = vmatpush.msra.mxu0 %v9805
        %9881 = vmatpush.msra.mxu0 %v9804
        %9882 = vmatpush.msra.mxu0 %v9803
        %9883 = vmatpush.msra.mxu0 %v9802
        %9884 = vmatpush.msra.mxu0 %v9801
        %9885 = vmatmul.f32.gmra.mxu0 %v9782
        %v9886 = vpop.f32.mrf.mxu0
        %v9887 = vadd.f32 %v9867, %v9886
        %9888 = vdwg.mxu0
        %9889 = vmatpush.msra.mxu0 %v9832
        %9890 = vmatpush.msra.mxu0 %v9831
        %9891 = vmatpush.msra.mxu0 %v9830
        %9892 = vmatpush.msra.mxu0 %v9829
        %9893 = vmatpush.msra.mxu0 %v9828
        %9894 = vmatpush.msra.mxu0 %v9827
        %9895 = vmatpush.msra.mxu0 %v9826
        %9896 = vmatpush.msra.mxu0 %v9825
        %9897 = vmatpush.msra.mxu0 %v9824
        %9898 = vmatpush.msra.mxu0 %v9823
        %9899 = vmatpush.msra.mxu0 %v9822
        %9900 = vmatpush.msra.mxu0 %v9821
        %9901 = vmatpush.msra.mxu0 %v9820
        %9902 = vmatpush.msra.mxu0 %v9819
        %9903 = vmatpush.msra.mxu0 %v9818
        %9904 = vmatpush.msra.mxu0 %v9817
        %9905 = vmatmul.f32.gmra.mxu0 %v9783
        %v9906 = vpop.f32.mrf.mxu0
        %v9907 = vadd.f32 %v9887, %v9906
        %9908 = vdwg.mxu0
        %9909 = vmatpush.msra.mxu0 %v9848
        %9910 = vmatpush.msra.mxu0 %v9847
        %9911 = vmatpush.msra.mxu0 %v9846
        %9912 = vmatpush.msra.mxu0 %v9845
        %9913 = vmatpush.msra.mxu0 %v9844
        %9914 = vmatpush.msra.mxu0 %v9843
        %9915 = vmatpush.msra.mxu0 %v9842
        %9916 = vmatpush.msra.mxu0 %v9841
        %9917 = vmatpush.msra.mxu0 %v9840
        %9918 = vmatpush.msra.mxu0 %v9839
        %9919 = vmatpush.msra.mxu0 %v9838
        %9920 = vmatpush.msra.mxu0 %v9837
        %9921 = vmatpush.msra.mxu0 %v9836
        %9922 = vmatpush.msra.mxu0 %v9835
        %9923 = vmatpush.msra.mxu0 %v9834
        %9924 = vmatpush.msra.mxu0 %v9833
        %9925 = vmatmul.f32.gmra.mxu0 %v9784
        %v9926 = vpop.f32.mrf.mxu0
        %v9927 = vadd.f32 %v9907, %v9926
        %9928 = vdwg.mxu0
        %vm9929 = vcmask 73728
        %9930 = vst.msk [vmem:[%s316] sm:$0x1] %vm9929, %v9927
        %s9931 = sand.u32 %s183, 1
        %s9932 = scalar_lea.sflag [#allocation9], %s9931
        %s9933 = sand.u32 %s183, 1
        %s9934 = scalar_lea.vmem [#allocation13], %s9933
        // Predicated region
        $region61: #{lenet5_forward.1} parent=47 // pred_check
          %p9935 = pneg %p193
        $region62: #{lenet5_forward.1} parent=47 // pred_check_branch
          %9937 = sbr.rel (%p9935) target = $region64
        $region63: #{lenet5_forward.1} parent=47 // pred_region
          %9939 = vsyncadd %s9932, 0
          %s9940 = scalar_lea.hbm %s7, %s23
          %s9942 = sshll.u32 %s9934, 4
          %s9943 = int_to_ptr.vmem [resolvable:$true] %s9942
          %s9944 = sshll.u32 %s9940, 4
          %s9945 = int_to_ptr.hbm [resolvable:$true] %s9944
          %9947 = dma.vmem_to_hbm [thread:$0]  %s9943, 16, %s9945, %s9932
        $region64: #{lenet5_forward.1} parent=47 // pred_fallthru
          _
      $region48: #{lenet5_forward.1} parent=5 // pred_fallthru
        _
      %p9948 = scmp.le.s32.totalorder 2, %s18
      // Predicated region
      $region65: #{lenet5_forward.1} parent=5 // pred_check
        %p9949 = pneg %p9948
      $region66: #{lenet5_forward.1} parent=5 // pred_check_branch
        %9951 = sbr.rel (%p9949) target = $region68
      $region67: #{lenet5_forward.1} parent=5 // pred_region
        %s9952 = ssub.s32 %s18, 2
        // Predicated region
        $region69: #{lenet5_forward.1} parent=67 // pred_check
          %p9953 = pneg %p199
        $region70: #{lenet5_forward.1} parent=67 // pred_check_branch
          %9955 = sbr.rel (%p9953) target = $region72
        $region71: #{lenet5_forward.1} parent=67 // pred_region
          %s9956 = sand.u32 %s184, 1
          %s9957 = scalar_lea.sflag [#allocation9], %s9956
          %s9958 = sand.u32 %s184, 1
          %s9959 = scalar_lea.vmem [#allocation13], %s9958
          %9961 = dma.done %s9957, 16
        $region72: #{lenet5_forward.1} parent=67 // pred_fallthru
          _
      $region68: #{lenet5_forward.1} parent=5 // pred_fallthru
        _
    $region6: #{lenet5_forward.1} parent=1 // loop_footer
      %s22 = sadd.s32 1, %s18
    $region7: #{lenet5_forward.1} parent=1 // loop_footer_branch
      %17 = sbr.rel target = $region3
    $region8: #{lenet5_forward.1} parent=1 // loop_exit
      _
    %9962 = vsyncpa [#allocation8], 1
    %s9963 = scalar_lea.sflag [#allocation8], 1
    %9964 = vsyncpa %s9963, 1
    %9965 = vsyncpa [#allocation11], 1
    %9966 = vsyncpa [#allocation9], 1
    %s9967 = scalar_lea.sflag [#allocation9], 1
    %9968 = vsyncpa %s9967, 1

</llo_original>
